<compile_context>
chip_gen: v5e
topology: v5e:2x2
jax: 0.10.0
libtpu: 0.0.40
codegen_flags: <defaults>
</compile_context>

<pallas_src>
import functools

import jax
import jax.numpy as jnp
from jax.experimental import pallas as pl
from jax.experimental.pallas import tpu as pltpu


def _corr_kernel(b0_ref, b1_ref, out_ref, *, md, ngr, ngw, s2, ks, a_base,
                 out_h, out_w, wq, inv_sumelems):
    """One (batch, dj) grid step.

    b0_ref : (1, C, H0, W0)  first image (unpadded when pad<=md, else padded)
    b1_ref : (1, C, Hp, Wp)  zero-padded second image
    out_ref: (1, 1, ngw, out_h*out_w) correlation for vertical displacement dj,
             all ngw horizontal displacements, spatially flattened (lane-dense).
    """
    dj = pl.program_id(1)              # vertical displacement index (dynamic)
    s2p = (dj - ngr) * s2              # vertical displacement in padded coords

    # ---- Gram matrix on the MXU: S[y, x, q] = sum_{c,(j,i)} a * b ------------
    # One batched-over-y matmul per kernel-window tap; contraction over C.
    s = None
    for j in range(ks):
        for i in range(ks):
            a = b0_ref[0, :, pl.ds(a_base + j, out_h), pl.ds(a_base + i, out_w)]
            bm = b1_ref[0, :, pl.ds(md + j + s2p, out_h), pl.ds(i, wq)]
            contrib = jnp.einsum(
                'cyx,cyq->yxq', a, bm,
                preferred_element_type=jnp.float32,
                precision=jax.lax.Precision.HIGHEST)
            s = contrib if s is None else s + contrib

    # Flatten (y, x) onto the sublane axis so band extraction and the final
    # store are lane-dense (last dim out_h*out_w instead of out_w).
    n = out_h * out_w
    s = s.reshape(n, wq)

    # ---- band extraction: out[di, y*out_w + x] = S[y*out_w + x, x + md + s2o] -
    row = jax.lax.broadcasted_iota(jnp.int32, (n, wq), 0)
    col = jax.lax.broadcasted_iota(jnp.int32, (n, wq), 1)
    rel = col - (row % out_w)          # q - x   (hoisted out of the di loop)
    bands = []
    for di in range(ngw):              # static unroll over horizontal disps
        off = md + (di - ngr) * s2     # static per-di band offset
        bands.append(jnp.sum(jnp.where(rel == off, s, 0.0), axis=-1))

    out_block = jnp.stack(bands, axis=0) * inv_sumelems     # (ngw, out_h*out_w)
    out_ref[0, 0] = out_block.astype(out_ref.dtype)


def correlation(first, second, *, pad_size, max_displacement, stride_1,
                stride_2, kernel_size):
    B, C, H, W = first.shape
    assert second.shape == first.shape
    # TODO(synk): stride_1 > 1 would need strided output sampling; the module
    # default (and FlowNetC/PWC usage) is stride_1 == 1.
    assert stride_1 == 1
    # TODO(synk): even kernel_size would read past the padded border in this
    # formulation; module default is kernel_size == 1.
    assert kernel_size % 2 == 1

    kr = (kernel_size - 1) // 2
    ngr = max_displacement // stride_2
    ngw = 2 * ngr + 1
    out_channels = ngw * ngw
    Hp, Wp = H + 2 * pad_size, W + 2 * pad_size
    border = max_displacement + kr
    out_h = (Hp - 2 * border - 1) // stride_1 + 1
    out_w = (Wp - 2 * border - 1) // stride_1 + 1
    wq = out_w + 2 * max_displacement          # width of the b1 band window
    n = out_h * out_w

    pad_cfg = ((0, 0), (0, 0), (pad_size, pad_size), (pad_size, pad_size))
    # `first` is only read on [md+j, md+j+out_h) x [md+i, md+i+out_w) which lies
    # entirely inside the unpadded image when pad_size <= max_displacement:
    # skip its pad (less HBM traffic, smaller VMEM block).
    if pad_size <= max_displacement:
        b0, a_base = first, max_displacement - pad_size
    else:
        b0, a_base = jnp.pad(first, pad_cfg), max_displacement
    # TODO(synk): `second`'s zero border could be built in-kernel (pl.ANY + manual
    # DMA of the interior) to avoid the jnp.pad HBM round-trip entirely.
    b1 = jnp.pad(second, pad_cfg)
    H0, W0 = int(b0.shape[2]), int(b0.shape[3])

    kernel = functools.partial(
        _corr_kernel, md=max_displacement, ngr=ngr, ngw=ngw, s2=stride_2,
        ks=kernel_size, a_base=a_base, out_h=out_h, out_w=out_w, wq=wq,
        inv_sumelems=1.0 / float(kernel_size * kernel_size * C))

    # Whole-image blocks stay resident across the dj axis; raise the scoped VMEM
    # limit so production shapes (e.g. C=256) fit, capped at 3/4 of physical
    # VMEM on the current chip (~96 MiB on v5e/v6e, ~48 MiB on v7x).
    itemsize = jnp.dtype(first.dtype).itemsize
    try:
        phys = int(getattr(pltpu.get_tpu_info(), "vmem_capacity_bytes", 0)) \
            or 128 * 1024 * 1024
    except Exception:
        phys = 128 * 1024 * 1024
    need = 2 * C * (H0 * W0 + Hp * Wp) * itemsize + 16 * 1024 * 1024
    vmem_limit = max(32 * 1024 * 1024, min(need, (phys * 3) // 4))

    out = pl.pallas_call(
        kernel,
        out_shape=jax.ShapeDtypeStruct((B, ngw, ngw, n), first.dtype),
        grid=(B, ngw),
        in_specs=[
            pl.BlockSpec((1, C, H0, W0), lambda b, dj: (b, 0, 0, 0)),
            pl.BlockSpec((1, C, Hp, Wp), lambda b, dj: (b, 0, 0, 0)),
        ],
        out_specs=pl.BlockSpec((1, 1, ngw, n), lambda b, dj: (b, dj, 0, 0)),
        compiler_params=pltpu.CompilerParams(
            dimension_semantics=("parallel", "parallel"),
            vmem_limit_bytes=int(vmem_limit)),
    )(b0, b1)

    # Free layout plumbing: (B, dj, di, y*out_w + x) -> (B, dj*ngw+di, y, x).
    return out.reshape(B, out_channels, out_h, out_w)


class ModuleCorrelation:
    """JAX/Pallas equivalent of the PyTorch ModuleCorrelation forward (no params)."""

    def __init__(self, pad_size=20, max_displacement=20, stride_1=1,
                 stride_2=2, kernel_size=1):
        self.params = dict(pad_size=pad_size, max_displacement=max_displacement,
                           stride_1=stride_1, stride_2=stride_2,
                           kernel_size=kernel_size)
        self._fn = jax.jit(functools.partial(correlation, **self.params))

    def __call__(self, tensorFirst, tensorSecond):
        return self._fn(tensorFirst, tensorSecond)


def correlation_reference(first, second, *, pad_size, max_displacement,
                          stride_1, stride_2, kernel_size):
    """Pure-JAX reference (same math, no Pallas)."""
    assert stride_1 == 1
    B, C, H, W = first.shape
    kr = (kernel_size - 1) // 2
    ngr = max_displacement // stride_2
    ngw = 2 * ngr + 1
    Hp, Wp = H + 2 * pad_size, W + 2 * pad_size
    border = max_displacement + kr
    out_h = (Hp - 2 * border - 1) // stride_1 + 1
    out_w = (Wp - 2 * border - 1) // stride_1 + 1
    pad_cfg = ((0, 0), (0, 0), (pad_size, pad_size), (pad_size, pad_size))
    b0 = jnp.pad(first, pad_cfg)
    b1 = jnp.pad(second, pad_cfg)
    md = max_displacement
    chans = []
    for dj in range(ngw):
        s2p = (dj - ngr) * stride_2
        for di in range(ngw):
            s2o = (di - ngr) * stride_2
            acc = jnp.zeros((B, out_h, out_w), jnp.float32)
            for j in range(kernel_size):
                for i in range(kernel_size):
                    a = b0[:, :, md + j: md + j + out_h, md + i: md + i + out_w]
                    bb = b1[:, :, md + j + s2p: md + j + s2p + out_h,
                            md + i + s2o: md + i + s2o + out_w]
                    acc = acc + jnp.sum(a * bb, axis=1)
            chans.append(acc / float(kernel_size * kernel_size * C))
    return jnp.stack(chans, axis=1).astype(first.dtype)


if __name__ == "__main__":
    key = jax.random.PRNGKey(0)
    k1, k2 = jax.random.split(key)
    B, C, H, W = 2, 4, 16, 16
    first = jax.random.normal(k1, (B, C, H, W), dtype=jnp.float32)
    second = jax.random.normal(k2, (B, C, H, W), dtype=jnp.float32)

    module = ModuleCorrelation()   # defaults: pad=20, md=20, s1=1, s2=2, ks=1
    out = jax.block_until_ready(module(first, second))
    assert out.shape == (B, 21 * 21, H, W), out.shape

    ref = correlation_reference(first, second, **module.params)
    err = float(jnp.max(jnp.abs(out - ref)))
    assert err < 1e-4, err

    print("KERNEL_OK")
</pallas_src>

<mosaic_0001>
module attributes {stable_mosaic.version = 11 : i64} {
  func.func @_corr_kernel(%arg0: i32, %arg1: i32, %arg2: memref<1x4x16x16xf32, #tpu.memory_space<vmem>>, %arg3: memref<1x4x56x56xf32, #tpu.memory_space<vmem>>, %arg4: memref<1x1x21x256xf32, #tpu.memory_space<vmem>>) attributes {dimension_semantics = [#tpu.dimension_semantics<parallel>, #tpu.dimension_semantics<parallel>], iteration_bounds = array<i64: 2, 21>, scalar_prefetch = 0 : i64, scratch_operands = 0 : i64, tpu.core_type = #tpu.core_type<tc>, window_params = [{transform_indices = @transform_0, window_bounds = array<i64: 1, 4, 16, 16>}, {transform_indices = @transform_1, window_bounds = array<i64: 1, 4, 56, 56>}, {transform_indices = @transform_2, window_bounds = array<i64: 1, 1, 21, 256>}]} {
    %c10_i32 = arith.constant 10 : i32
    %0 = arith.subi %arg1, %c10_i32 : i32
    %c2_i32 = arith.constant 2 : i32
    %1 = arith.muli %0, %c2_i32 : i32
    %c0 = arith.constant 0 : index
    %c0_0 = arith.constant 0 : index
    %c0_1 = arith.constant 0 : index
    %c0_2 = arith.constant 0 : index
    %2 = vector.load %arg2[%c0, %c0_0, %c0_1, %c0_2] : memref<1x4x16x16xf32, #tpu.memory_space<vmem>>, vector<1x4x16x16xf32>
    %3 = vector.shape_cast %2 : vector<1x4x16x16xf32> to vector<4x16x16xf32>
    %c20_i32 = arith.constant 20 : i32
    %4 = arith.addi %c20_i32, %1 : i32
    %c0_3 = arith.constant 0 : index
    %c0_4 = arith.constant 0 : index
    %5 = arith.index_cast %4 : i32 to index
    %c0_5 = arith.constant 0 : index
    %6 = vector.load %arg3[%c0_3, %c0_4, %5, %c0_5] : memref<1x4x56x56xf32, #tpu.memory_space<vmem>>, vector<1x4x16x56xf32>
    %7 = vector.shape_cast %6 : vector<1x4x16x56xf32> to vector<4x16x56xf32>
    "tpu.trace_start"() <{level = 10 : i32, message = "cyx,cyq->yxq"}> : () -> ()
    %cst = arith.constant dense<0.000000e+00> : vector<16x16x56xf32>
    %8 = tpu.matmul %3, %7, %cst {dimension_numbers = #tpu.dot_dimension_numbers<[0], [0], [2], [2], [0, 1, 0, 2, 1, 2], [1], [1]>, precision = #tpu.contract_precision<fp32>} : vector<4x16x16xf32>, vector<4x16x56xf32>, vector<16x16x56xf32> -> vector<16x16x56xf32>
    "tpu.trace_stop"() : () -> ()
    %9 = vector.shape_cast %8 : vector<16x16x56xf32> to vector<256x56xf32>
    %10 = tpu.iota {dimensions = array<i32: 0>} : vector<256x56xi32>
    %11 = tpu.iota {dimensions = array<i32: 1>} : vector<256x56xi32>
    %c16_i32 = arith.constant 16 : i32
    %c0_i32 = arith.constant 0 : i32
    %12 = arith.cmpi eq, %c16_i32, %c0_i32 : i32
    %c1_i32 = arith.constant 1 : i32
    %13 = arith.select %12, %c1_i32, %c16_i32 : i32
    %14 = vector.broadcast %13 : i32 to vector<256x56xi32>
    %15 = arith.remsi %10, %14 : vector<256x56xi32>
    %c0_i32_6 = arith.constant 0 : i32
    %16 = vector.broadcast %c0_i32_6 : i32 to vector<256x56xi32>
    %17 = arith.cmpi ne, %15, %16 : vector<256x56xi32>
    %c0_i32_7 = arith.constant 0 : i32
    %18 = vector.broadcast %c0_i32_7 : i32 to vector<256x56xi32>
    %19 = arith.cmpi slt, %15, %18 : vector<256x56xi32>
    %c0_i32_8 = arith.constant 0 : i32
    %20 = arith.cmpi slt, %13, %c0_i32_8 : i32
    %21 = vector.broadcast %20 : i1 to vector<256x56xi1>
    %22 = vector.broadcast %21 : vector<256x56xi1> to vector<256x56xi1>
    %23 = arith.xori %19, %22 : vector<256x56xi1>
    %24 = arith.andi %23, %17 : vector<256x56xi1>
    %25 = vector.broadcast %13 : i32 to vector<256x56xi32>
    %26 = arith.addi %15, %25 : vector<256x56xi32>
    %27 = arith.select %24, %26, %15 : vector<256x56xi1>, vector<256x56xi32>
    %28 = arith.subi %11, %27 : vector<256x56xi32>
    %c0_i32_9 = arith.constant 0 : i32
    %29 = vector.broadcast %c0_i32_9 : i32 to vector<256x56xi32>
    %30 = arith.cmpi eq, %28, %29 : vector<256x56xi32>
    %cst_10 = arith.constant 0.000000e+00 : f32
    %31 = vector.broadcast %cst_10 : f32 to vector<256x56xf32>
    %32 = arith.select %30, %9, %31 : vector<256x56xi1>, vector<256x56xf32>
    %cst_11 = arith.constant dense<0.000000e+00> : vector<256xf32>
    %33 = vector.multi_reduction <add>, %32, %cst_11 [1] : vector<256x56xf32> to vector<256xf32>
    %c2_i32_12 = arith.constant 2 : i32
    %34 = vector.broadcast %c2_i32_12 : i32 to vector<256x56xi32>
    %35 = arith.cmpi eq, %28, %34 : vector<256x56xi32>
    %cst_13 = arith.constant 0.000000e+00 : f32
    %36 = vector.broadcast %cst_13 : f32 to vector<256x56xf32>
    %37 = arith.select %35, %9, %36 : vector<256x56xi1>, vector<256x56xf32>
    %cst_14 = arith.constant dense<0.000000e+00> : vector<256xf32>
    %38 = vector.multi_reduction <add>, %37, %cst_14 [1] : vector<256x56xf32> to vector<256xf32>
    %c4_i32 = arith.constant 4 : i32
    %39 = vector.broadcast %c4_i32 : i32 to vector<256x56xi32>
    %40 = arith.cmpi eq, %28, %39 : vector<256x56xi32>
    %cst_15 = arith.constant 0.000000e+00 : f32
    %41 = vector.broadcast %cst_15 : f32 to vector<256x56xf32>
    %42 = arith.select %40, %9, %41 : vector<256x56xi1>, vector<256x56xf32>
    %cst_16 = arith.constant dense<0.000000e+00> : vector<256xf32>
    %43 = vector.multi_reduction <add>, %42, %cst_16 [1] : vector<256x56xf32> to vector<256xf32>
    %c6_i32 = arith.constant 6 : i32
    %44 = vector.broadcast %c6_i32 : i32 to vector<256x56xi32>
    %45 = arith.cmpi eq, %28, %44 : vector<256x56xi32>
    %cst_17 = arith.constant 0.000000e+00 : f32
    %46 = vector.broadcast %cst_17 : f32 to vector<256x56xf32>
    %47 = arith.select %45, %9, %46 : vector<256x56xi1>, vector<256x56xf32>
    %cst_18 = arith.constant dense<0.000000e+00> : vector<256xf32>
    %48 = vector.multi_reduction <add>, %47, %cst_18 [1] : vector<256x56xf32> to vector<256xf32>
    %c8_i32 = arith.constant 8 : i32
    %49 = vector.broadcast %c8_i32 : i32 to vector<256x56xi32>
    %50 = arith.cmpi eq, %28, %49 : vector<256x56xi32>
    %cst_19 = arith.constant 0.000000e+00 : f32
    %51 = vector.broadcast %cst_19 : f32 to vector<256x56xf32>
    %52 = arith.select %50, %9, %51 : vector<256x56xi1>, vector<256x56xf32>
    %cst_20 = arith.constant dense<0.000000e+00> : vector<256xf32>
    %53 = vector.multi_reduction <add>, %52, %cst_20 [1] : vector<256x56xf32> to vector<256xf32>
    %c10_i32_21 = arith.constant 10 : i32
    %54 = vector.broadcast %c10_i32_21 : i32 to vector<256x56xi32>
    %55 = arith.cmpi eq, %28, %54 : vector<256x56xi32>
    %cst_22 = arith.constant 0.000000e+00 : f32
    %56 = vector.broadcast %cst_22 : f32 to vector<256x56xf32>
    %57 = arith.select %55, %9, %56 : vector<256x56xi1>, vector<256x56xf32>
    %cst_23 = arith.constant dense<0.000000e+00> : vector<256xf32>
    %58 = vector.multi_reduction <add>, %57, %cst_23 [1] : vector<256x56xf32> to vector<256xf32>
    %c12_i32 = arith.constant 12 : i32
    %59 = vector.broadcast %c12_i32 : i32 to vector<256x56xi32>
    %60 = arith.cmpi eq, %28, %59 : vector<256x56xi32>
    %cst_24 = arith.constant 0.000000e+00 : f32
    %61 = vector.broadcast %cst_24 : f32 to vector<256x56xf32>
    %62 = arith.select %60, %9, %61 : vector<256x56xi1>, vector<256x56xf32>
    %cst_25 = arith.constant dense<0.000000e+00> : vector<256xf32>
    %63 = vector.multi_reduction <add>, %62, %cst_25 [1] : vector<256x56xf32> to vector<256xf32>
    %c14_i32 = arith.constant 14 : i32
    %64 = vector.broadcast %c14_i32 : i32 to vector<256x56xi32>
    %65 = arith.cmpi eq, %28, %64 : vector<256x56xi32>
    %cst_26 = arith.constant 0.000000e+00 : f32
    %66 = vector.broadcast %cst_26 : f32 to vector<256x56xf32>
    %67 = arith.select %65, %9, %66 : vector<256x56xi1>, vector<256x56xf32>
    %cst_27 = arith.constant dense<0.000000e+00> : vector<256xf32>
    %68 = vector.multi_reduction <add>, %67, %cst_27 [1] : vector<256x56xf32> to vector<256xf32>
    %c16_i32_28 = arith.constant 16 : i32
    %69 = vector.broadcast %c16_i32_28 : i32 to vector<256x56xi32>
    %70 = arith.cmpi eq, %28, %69 : vector<256x56xi32>
    %cst_29 = arith.constant 0.000000e+00 : f32
    %71 = vector.broadcast %cst_29 : f32 to vector<256x56xf32>
    %72 = arith.select %70, %9, %71 : vector<256x56xi1>, vector<256x56xf32>
    %cst_30 = arith.constant dense<0.000000e+00> : vector<256xf32>
    %73 = vector.multi_reduction <add>, %72, %cst_30 [1] : vector<256x56xf32> to vector<256xf32>
    %c18_i32 = arith.constant 18 : i32
    %74 = vector.broadcast %c18_i32 : i32 to vector<256x56xi32>
    %75 = arith.cmpi eq, %28, %74 : vector<256x56xi32>
    %cst_31 = arith.constant 0.000000e+00 : f32
    %76 = vector.broadcast %cst_31 : f32 to vector<256x56xf32>
    %77 = arith.select %75, %9, %76 : vector<256x56xi1>, vector<256x56xf32>
    %cst_32 = arith.constant dense<0.000000e+00> : vector<256xf32>
    %78 = vector.multi_reduction <add>, %77, %cst_32 [1] : vector<256x56xf32> to vector<256xf32>
    %c20_i32_33 = arith.constant 20 : i32
    %79 = vector.broadcast %c20_i32_33 : i32 to vector<256x56xi32>
    %80 = arith.cmpi eq, %28, %79 : vector<256x56xi32>
    %cst_34 = arith.constant 0.000000e+00 : f32
    %81 = vector.broadcast %cst_34 : f32 to vector<256x56xf32>
    %82 = arith.select %80, %9, %81 : vector<256x56xi1>, vector<256x56xf32>
    %cst_35 = arith.constant dense<0.000000e+00> : vector<256xf32>
    %83 = vector.multi_reduction <add>, %82, %cst_35 [1] : vector<256x56xf32> to vector<256xf32>
    %c22_i32 = arith.constant 22 : i32
    %84 = vector.broadcast %c22_i32 : i32 to vector<256x56xi32>
    %85 = arith.cmpi eq, %28, %84 : vector<256x56xi32>
    %cst_36 = arith.constant 0.000000e+00 : f32
    %86 = vector.broadcast %cst_36 : f32 to vector<256x56xf32>
    %87 = arith.select %85, %9, %86 : vector<256x56xi1>, vector<256x56xf32>
    %cst_37 = arith.constant dense<0.000000e+00> : vector<256xf32>
    %88 = vector.multi_reduction <add>, %87, %cst_37 [1] : vector<256x56xf32> to vector<256xf32>
    %c24_i32 = arith.constant 24 : i32
    %89 = vector.broadcast %c24_i32 : i32 to vector<256x56xi32>
    %90 = arith.cmpi eq, %28, %89 : vector<256x56xi32>
    %cst_38 = arith.constant 0.000000e+00 : f32
    %91 = vector.broadcast %cst_38 : f32 to vector<256x56xf32>
    %92 = arith.select %90, %9, %91 : vector<256x56xi1>, vector<256x56xf32>
    %cst_39 = arith.constant dense<0.000000e+00> : vector<256xf32>
    %93 = vector.multi_reduction <add>, %92, %cst_39 [1] : vector<256x56xf32> to vector<256xf32>
    %c26_i32 = arith.constant 26 : i32
    %94 = vector.broadcast %c26_i32 : i32 to vector<256x56xi32>
    %95 = arith.cmpi eq, %28, %94 : vector<256x56xi32>
    %cst_40 = arith.constant 0.000000e+00 : f32
    %96 = vector.broadcast %cst_40 : f32 to vector<256x56xf32>
    %97 = arith.select %95, %9, %96 : vector<256x56xi1>, vector<256x56xf32>
    %cst_41 = arith.constant dense<0.000000e+00> : vector<256xf32>
    %98 = vector.multi_reduction <add>, %97, %cst_41 [1] : vector<256x56xf32> to vector<256xf32>
    %c28_i32 = arith.constant 28 : i32
    %99 = vector.broadcast %c28_i32 : i32 to vector<256x56xi32>
    %100 = arith.cmpi eq, %28, %99 : vector<256x56xi32>
    %cst_42 = arith.constant 0.000000e+00 : f32
    %101 = vector.broadcast %cst_42 : f32 to vector<256x56xf32>
    %102 = arith.select %100, %9, %101 : vector<256x56xi1>, vector<256x56xf32>
    %cst_43 = arith.constant dense<0.000000e+00> : vector<256xf32>
    %103 = vector.multi_reduction <add>, %102, %cst_43 [1] : vector<256x56xf32> to vector<256xf32>
    %c30_i32 = arith.constant 30 : i32
    %104 = vector.broadcast %c30_i32 : i32 to vector<256x56xi32>
    %105 = arith.cmpi eq, %28, %104 : vector<256x56xi32>
    %cst_44 = arith.constant 0.000000e+00 : f32
    %106 = vector.broadcast %cst_44 : f32 to vector<256x56xf32>
    %107 = arith.select %105, %9, %106 : vector<256x56xi1>, vector<256x56xf32>
    %cst_45 = arith.constant dense<0.000000e+00> : vector<256xf32>
    %108 = vector.multi_reduction <add>, %107, %cst_45 [1] : vector<256x56xf32> to vector<256xf32>
    %c32_i32 = arith.constant 32 : i32
    %109 = vector.broadcast %c32_i32 : i32 to vector<256x56xi32>
    %110 = arith.cmpi eq, %28, %109 : vector<256x56xi32>
    %cst_46 = arith.constant 0.000000e+00 : f32
    %111 = vector.broadcast %cst_46 : f32 to vector<256x56xf32>
    %112 = arith.select %110, %9, %111 : vector<256x56xi1>, vector<256x56xf32>
    %cst_47 = arith.constant dense<0.000000e+00> : vector<256xf32>
    %113 = vector.multi_reduction <add>, %112, %cst_47 [1] : vector<256x56xf32> to vector<256xf32>
    %c34_i32 = arith.constant 34 : i32
    %114 = vector.broadcast %c34_i32 : i32 to vector<256x56xi32>
    %115 = arith.cmpi eq, %28, %114 : vector<256x56xi32>
    %cst_48 = arith.constant 0.000000e+00 : f32
    %116 = vector.broadcast %cst_48 : f32 to vector<256x56xf32>
    %117 = arith.select %115, %9, %116 : vector<256x56xi1>, vector<256x56xf32>
    %cst_49 = arith.constant dense<0.000000e+00> : vector<256xf32>
    %118 = vector.multi_reduction <add>, %117, %cst_49 [1] : vector<256x56xf32> to vector<256xf32>
    %c36_i32 = arith.constant 36 : i32
    %119 = vector.broadcast %c36_i32 : i32 to vector<256x56xi32>
    %120 = arith.cmpi eq, %28, %119 : vector<256x56xi32>
    %cst_50 = arith.constant 0.000000e+00 : f32
    %121 = vector.broadcast %cst_50 : f32 to vector<256x56xf32>
    %122 = arith.select %120, %9, %121 : vector<256x56xi1>, vector<256x56xf32>
    %cst_51 = arith.constant dense<0.000000e+00> : vector<256xf32>
    %123 = vector.multi_reduction <add>, %122, %cst_51 [1] : vector<256x56xf32> to vector<256xf32>
    %c38_i32 = arith.constant 38 : i32
    %124 = vector.broadcast %c38_i32 : i32 to vector<256x56xi32>
    %125 = arith.cmpi eq, %28, %124 : vector<256x56xi32>
    %cst_52 = arith.constant 0.000000e+00 : f32
    %126 = vector.broadcast %cst_52 : f32 to vector<256x56xf32>
    %127 = arith.select %125, %9, %126 : vector<256x56xi1>, vector<256x56xf32>
    %cst_53 = arith.constant dense<0.000000e+00> : vector<256xf32>
    %128 = vector.multi_reduction <add>, %127, %cst_53 [1] : vector<256x56xf32> to vector<256xf32>
    %c40_i32 = arith.constant 40 : i32
    %129 = vector.broadcast %c40_i32 : i32 to vector<256x56xi32>
    %130 = arith.cmpi eq, %28, %129 : vector<256x56xi32>
    %cst_54 = arith.constant 0.000000e+00 : f32
    %131 = vector.broadcast %cst_54 : f32 to vector<256x56xf32>
    %132 = arith.select %130, %9, %131 : vector<256x56xi1>, vector<256x56xf32>
    %cst_55 = arith.constant dense<0.000000e+00> : vector<256xf32>
    %133 = vector.multi_reduction <add>, %132, %cst_55 [1] : vector<256x56xf32> to vector<256xf32>
    %134 = vector.shape_cast %33 : vector<256xf32> to vector<1x256xf32>
    %135 = vector.shape_cast %38 : vector<256xf32> to vector<1x256xf32>
    %136 = vector.shape_cast %43 : vector<256xf32> to vector<1x256xf32>
    %137 = vector.shape_cast %48 : vector<256xf32> to vector<1x256xf32>
    %138 = vector.shape_cast %53 : vector<256xf32> to vector<1x256xf32>
    %139 = vector.shape_cast %58 : vector<256xf32> to vector<1x256xf32>
    %140 = vector.shape_cast %63 : vector<256xf32> to vector<1x256xf32>
    %141 = vector.shape_cast %68 : vector<256xf32> to vector<1x256xf32>
    %142 = vector.shape_cast %73 : vector<256xf32> to vector<1x256xf32>
    %143 = vector.shape_cast %78 : vector<256xf32> to vector<1x256xf32>
    %144 = vector.shape_cast %83 : vector<256xf32> to vector<1x256xf32>
    %145 = vector.shape_cast %88 : vector<256xf32> to vector<1x256xf32>
    %146 = vector.shape_cast %93 : vector<256xf32> to vector<1x256xf32>
    %147 = vector.shape_cast %98 : vector<256xf32> to vector<1x256xf32>
    %148 = vector.shape_cast %103 : vector<256xf32> to vector<1x256xf32>
    %149 = vector.shape_cast %108 : vector<256xf32> to vector<1x256xf32>
    %150 = vector.shape_cast %113 : vector<256xf32> to vector<1x256xf32>
    %151 = vector.shape_cast %118 : vector<256xf32> to vector<1x256xf32>
    %152 = vector.shape_cast %123 : vector<256xf32> to vector<1x256xf32>
    %153 = vector.shape_cast %128 : vector<256xf32> to vector<1x256xf32>
    %154 = vector.shape_cast %133 : vector<256xf32> to vector<1x256xf32>
    %155 = tpu.concatenate %134, %135, %136, %137, %138, %139, %140, %141, %142, %143, %144, %145, %146, %147, %148, %149 in 0 : vector<1x256xf32>, vector<1x256xf32>, vector<1x256xf32>, vector<1x256xf32>, vector<1x256xf32>, vector<1x256xf32>, vector<1x256xf32>, vector<1x256xf32>, vector<1x256xf32>, vector<1x256xf32>, vector<1x256xf32>, vector<1x256xf32>, vector<1x256xf32>, vector<1x256xf32>, vector<1x256xf32>, vector<1x256xf32> -> vector<16x256xf32>
    %156 = tpu.concatenate %150, %151, %152, %153, %154 in 0 : vector<1x256xf32>, vector<1x256xf32>, vector<1x256xf32>, vector<1x256xf32>, vector<1x256xf32> -> vector<5x256xf32>
    %157 = tpu.concatenate %155, %156 in 0 : vector<16x256xf32>, vector<5x256xf32> -> vector<21x256xf32>
    %cst_56 = arith.constant 2.500000e-01 : f32
    %158 = vector.broadcast %cst_56 : f32 to vector<21x256xf32>
    %159 = arith.mulf %157, %158 : vector<21x256xf32>
    %c0_57 = arith.constant 0 : index
    %c0_58 = arith.constant 0 : index
    %c0_59 = arith.constant 0 : index
    %c0_60 = arith.constant 0 : index
    %160 = vector.load %arg4[%c0_57, %c0_58, %c0_59, %c0_60] : memref<1x1x21x256xf32, #tpu.memory_space<vmem>>, vector<1x1x21x256xf32>
    %161 = vector.shape_cast %160 : vector<1x1x21x256xf32> to vector<21x256xf32>
    %162 = vector.shape_cast %159 : vector<21x256xf32> to vector<1x1x21x256xf32>
    tpu.vector_store %arg4[%c0_57, %c0_58, %c0_59, %c0_60], %162 {strides = array<i32>} : memref<1x1x21x256xf32, #tpu.memory_space<vmem>>, vector<1x1x21x256xf32>,
    return
  }
  func.func @transform_0(%arg0: i32, %arg1: i32) -> (i32, i32, i32, i32) {
    %c0_i32 = arith.constant 0 : i32
    %c0_i32_0 = arith.constant 0 : i32
    %c0_i32_1 = arith.constant 0 : i32
    %c0_i32_2 = arith.constant 0 : i32
    return %arg0, %c0_i32, %c0_i32_0, %c0_i32_1 : i32, i32, i32, i32
  }
  func.func @transform_1(%arg0: i32, %arg1: i32) -> (i32, i32, i32, i32) {
    %c0_i32 = arith.constant 0 : i32
    %c0_i32_0 = arith.constant 0 : i32
    %c0_i32_1 = arith.constant 0 : i32
    %c0_i32_2 = arith.constant 0 : i32
    return %arg0, %c0_i32, %c0_i32_0, %c0_i32_1 : i32, i32, i32, i32
  }
  func.func @transform_2(%arg0: i32, %arg1: i32) -> (i32, i32, i32, i32) {
    %c0_i32 = arith.constant 0 : i32
    %c0_i32_0 = arith.constant 0 : i32
    %c0_i32_1 = arith.constant 0 : i32
    return %arg0, %arg1, %c0_i32, %c0_i32_0 : i32, i32, i32, i32
  }
}

</mosaic_0001>

<llo_original>
// kernel: correlation.1
$region0: #{correlation.1}
  #allocation0 [shape = 'u32[]', space=smem, size = 0x4, offset = 0x4, fixed_abs, tag = 'smem constant byte address 0x4 - core index']
  #allocation1 [shape = 'u32[72,128]{1,0:T(1,128)}', space=vmem, size = 0x9000, scoped, tag = 'internal scratch']
  %s0 = inlined_call_operand.hbm [shape: f32[2,4,16,16], index: 0, kind: input, shape index: {}]
  %s1 = inlined_call_operand.vmem [shape: f32[2,4,56,56], index: 1, kind: input, shape index: {}]
  %s2 = inlined_call_operand.vmem [shape: f32[2,21,21,256], index: 2, kind: output, shape index: {}]
  %s3 = sld [smem:[#allocation0]]
  $region45: #{correlation.1} parent=0
    _
  %s5 = ssub.s32 1, %s3
  %s6 = scalar_select 0, %s5, %s3
  $region1: #{correlation.1} parent=0
    #allocation2 [shape = 'u8[65536]{0}', space=vmem, size = 0x10000, scoped, tag = 'input window, operand 0']
    #allocation3 [shape = 's32[2]{0}', space=sflag, size = 0x8, scoped, tag = 'scoped memory for correlation.1']
    %7 = vsyncpa [#allocation3], 0
    %s8 = scalar_lea.sflag [#allocation3], 1
    %9 = vsyncpa %s8, 0
    loop: start=0, step=1, limit=44
    $region2: #{correlation.1} parent=1 // loop_pre_header
      _
    $region3: #{correlation.1} parent=1 // loop_header
      %s11 = sphi 0, %s15
      %p12 = scmp.ge.s32.totalorder %s11, 44
      %s18 = sphi 0, %s30
      %s19 = sphi 0, %s26
      %s20 = sphi 0, %s18
      %s21 = sphi 0, %s19
      %s22 = sphi 0, %s20
      %s23 = sphi 0, %s21
      %s33 = sphi 0, %s35
      %s36 = sphi 0, %s33
      %s37 = sphi 0, %s36
      %s53 = sphi 0, %s37
      %s59 = sphi 0, %s61
      %s62 = sphi 0, %s59
      %s63 = sphi 0, %s62
      %s79 = sphi 0, %s63
      %s87 = sphi 0, %s89
      %s90 = sphi 0, %s87
      %s91 = sphi 0, %s90
      %s107 = sphi 0, %s91
    $region4: #{correlation.1} parent=1 // loop_header_branch
      %14 = sbr.rel (%p12) target = $region8
    $region5: #{correlation.1} parent=1 // loop_body
      %s16 = ssub.s32 %s11, 1
      %s17 = ssub.s32 %s11, 2
      %s24 = sadd.s32 1, %s19
      %p25 = scmp.ge.s32.totalorder %s24, 21
      %s26 = scalar_select %p25, 0, %s24
      %s27 = sadd.s32 1, %s18
      %s28 = scalar_select %p25, %s27, %s18
      %p29 = scmp.ge.s32.totalorder %s28, 2
      %s30 = scalar_select %p29, 0, %s28
      %s31 = ssub.s32 %s18, %s30
      %p32 = scmp.eq.s32.totalorder %s31, 0
      %s34 = sadd.s32 %s33, 1
      %s35 = scalar_select %p32, %s33, %s34
      %p38 = pneg %p32
      %p39 = scmp.eq.s32.totalorder %s11, 41
      %p40 = por %p38, %p39
      %p41 = scmp.ne.s32.totalorder %s33, %s36
      %p42 = scmp.eq.s32.totalorder %s11, 0
      %p43 = por %p41, %p42
      %p44 = scmp.ne.s32.totalorder %s33, %s36
      %p45 = scmp.eq.s32.totalorder %s16, 41
      %p46 = por %p44, %p45
      %p47 = scmp.ne.s32.totalorder %s36, %s37
      %p48 = scmp.eq.s32.totalorder %s16, 0
      %p49 = por %p47, %p48
      %p50 = scmp.ne.s32.totalorder %s36, %s37
      %p51 = scmp.eq.s32.totalorder %s17, 41
      %p52 = por %p50, %p51
      %p54 = scmp.ne.s32.totalorder %s37, %s53
      %p55 = scmp.eq.s32.totalorder %s17, 0
      %p56 = por %p54, %p55
      %s57 = ssub.s32 %s18, %s30
      %p58 = scmp.eq.s32.totalorder %s57, 0
      %s60 = sadd.s32 %s59, 1
      %s61 = scalar_select %p58, %s59, %s60
      %p64 = pneg %p58
      %p65 = scmp.eq.s32.totalorder %s11, 41
      %p66 = por %p64, %p65
      %p67 = scmp.ne.s32.totalorder %s59, %s62
      %p68 = scmp.eq.s32.totalorder %s11, 0
      %p69 = por %p67, %p68
      %p70 = scmp.ne.s32.totalorder %s59, %s62
      %p71 = scmp.eq.s32.totalorder %s16, 41
      %p72 = por %p70, %p71
      %p73 = scmp.ne.s32.totalorder %s62, %s63
      %p74 = scmp.eq.s32.totalorder %s16, 0
      %p75 = por %p73, %p74
      %p76 = scmp.ne.s32.totalorder %s62, %s63
      %p77 = scmp.eq.s32.totalorder %s17, 41
      %p78 = por %p76, %p77
      %p80 = scmp.ne.s32.totalorder %s63, %s79
      %p81 = scmp.eq.s32.totalorder %s17, 0
      %p82 = por %p80, %p81
      %s83 = ssub.s32 %s18, %s30
      %s84 = ssub.s32 %s19, %s26
      %s85 = sor.u32 %s83, %s84
      %p86 = scmp.eq.s32.totalorder %s85, 0
      %s88 = sadd.s32 %s87, 1
      %s89 = scalar_select %p86, %s87, %s88
      %p92 = pneg %p86
      %p93 = scmp.eq.s32.totalorder %s11, 41
      %p94 = por %p92, %p93
      %p95 = scmp.ne.s32.totalorder %s87, %s90
      %p96 = scmp.eq.s32.totalorder %s11, 0
      %p97 = por %p95, %p96
      %p98 = scmp.ne.s32.totalorder %s87, %s90
      %p99 = scmp.eq.s32.totalorder %s16, 41
      %p100 = por %p98, %p99
      %p101 = scmp.ne.s32.totalorder %s90, %s91
      %p102 = scmp.eq.s32.totalorder %s16, 0
      %p103 = por %p101, %p102
      %p104 = scmp.ne.s32.totalorder %s90, %s91
      %p105 = scmp.eq.s32.totalorder %s17, 41
      %p106 = por %p104, %p105
      %p108 = scmp.ne.s32.totalorder %s91, %s107
      %p109 = scmp.eq.s32.totalorder %s17, 0
      %p110 = por %p108, %p109
      %p111 = scmp.le.s32.totalorder 1, %s11
      %p112 = scmp.lt.s32.totalorder %s11, 43
      %p113 = pnand %p111, %p112
      %p114 = pneg %p113
      // Predicated region
      $region9: #{correlation.1} parent=5 // pred_check
        _
      $region10: #{correlation.1} parent=5 // pred_check_branch
        %116 = sbr.rel (%p113) target = $region12
      $region11: #{correlation.1} parent=5 // pred_region
        %s117 = ssub.s32 %s11, 1
      $region12: #{correlation.1} parent=5 // pred_fallthru
        _
      %p118 = scmp.lt.s32.totalorder %s11, 42
      // Predicated region
      $region13: #{correlation.1} parent=5 // pred_check
        %p119 = pneg %p118
      $region14: #{correlation.1} parent=5 // pred_check_branch
        %121 = sbr.rel (%p119) target = $region16
      $region15: #{correlation.1} parent=5 // pred_region
        // Predicated region
        $region17: #{correlation.1} parent=15 // pred_check
          %p122 = pneg %p43
        $region18: #{correlation.1} parent=15 // pred_check_branch
          %124 = sbr.rel (%p122) target = $region20
        $region19: #{correlation.1} parent=15 // pred_region
          %s125 = sand.u32 %s33, 1
          %s126 = scalar_lea.sflag [#allocation3], %s125
          %s127 = sand.u32 %s33, 1
          %s128 = smul.addr %s127, 64
          %s129 = scalar_lea.vmem [#allocation2], %s128
          %131 = vsyncadd %s126, 0
          %s132 = smul.addr %s18, 8
          %s133 = smul.addr %s132, 8
          %s134 = scalar_lea.hbm %s0, %s133
          %s135 = sshll.u32 %s134, 4
          %s136 = int_to_ptr.hbm [resolvable:$true] %s135
          %s137 = sshll.u32 %s129, 4
          %s138 = int_to_ptr.vmem [resolvable:$true] %s137
          %143 = dma.hbm_to_vmem [thread:$0]  %s136, 1024, %s138, %s126, 128, 128, 8
        $region20: #{correlation.1} parent=15 // pred_fallthru
          _
        // Predicated region
        $region21: #{correlation.1} parent=15 // pred_check
          %p144 = pneg %p69
        $region22: #{correlation.1} parent=15 // pred_check_branch
          %146 = sbr.rel (%p144) target = $region24
        $region23: #{correlation.1} parent=15 // pred_region
          %p147 = scmp.lt.s32.totalorder %s18, 1
          %s148 = scalar_select %p147, %s18, 1
          %s149 = smul.addr %s148, 28
          %s150 = smul.addr %s149, 8
          %s151 = scalar_lea.vmem %s1, %s150
        $region24: #{correlation.1} parent=15 // pred_fallthru
          _
      $region16: #{correlation.1} parent=5 // pred_fallthru
        _
      %p152 = scmp.le.s32.totalorder 1, %s11
      %p153 = scmp.lt.s32.totalorder %s11, 43
      %p154 = pnand %p152, %p153
      %p155 = pneg %p154
      // Predicated region
      $region25: #{correlation.1} parent=5 // pred_check
        _
      $region26: #{correlation.1} parent=5 // pred_check_branch
        %157 = sbr.rel (%p154) target = $region28
      $region27: #{correlation.1} parent=5 // pred_region
        %s158 = ssub.s32 %s11, 1
        %s159 = sand.u32 %s36, 1
        %s160 = scalar_lea.sflag [#allocation3], %s159
        %s161 = sand.u32 %s36, 1
        %s162 = smul.addr %s161, 64
        %s163 = scalar_lea.vmem [#allocation2], %s162
        // Predicated region
        $region29: #{correlation.1} parent=27 // pred_check
          %p164 = pneg %p49
        $region30: #{correlation.1} parent=27 // pred_check_branch
          %166 = sbr.rel (%p164) target = $region32
        $region31: #{correlation.1} parent=27 // pred_region
          %168 = dma.done %s160, 1024
        $region32: #{correlation.1} parent=27 // pred_fallthru
          _
        %s169 = sand.u32 %s36, 1
        %s170 = scalar_lea.sflag [#allocation3], %s169
        %s171 = sand.u32 %s36, 1
        %s172 = smul.addr %s171, 64
        %s173 = scalar_lea.vmem [#allocation2], %s172
        %p174 = pneg %p49
        %p175 = pneg %p46
        %p176 = scmp.lt.s32.totalorder %s20, 1
        %s177 = scalar_select %p176, %s20, 1
        %s178 = smul.addr %s177, 28
        %s179 = smul.addr %s178, 8
        %s180 = scalar_lea.vmem %s1, %s179
        %p181 = pneg %p75
        %p182 = pneg %p72
        %p183 = pneg %p103
        %p184 = pneg %p100
        %p185 = scmp.lt.s32.totalorder %s20, 1
        %s186 = scalar_select %p185, %s20, 1
        %p187 = scmp.lt.s32.totalorder %s21, 20
        %s188 = scalar_select %p187, %s21, 20
        %s189 = smul.addr %s188, 6
        %s190 = smul.addr %s186, 126
        %s191 = sadd.s32 %s189, %s190
        %s192 = smul.addr %s191, 8
        %s193 = scalar_lea.vmem %s2, %s192
        %p194 = scmp.lt.s32.totalorder %s20, 1
        %s195 = scalar_select %p194, %s20, 1
        %s196 = smul.addr %s195, 28
        %s197 = smul.addr %s196, 8
        %s198 = scalar_lea.vmem %s1, %s197
        %p199 = scmp.lt.s32.totalorder %s20, 1
        %s200 = scalar_select %p199, %s20, 1
        %p201 = scmp.lt.s32.totalorder %s21, 20
        %s202 = scalar_select %p201, %s21, 20
        %s203 = smul.addr %s202, 6
        %s204 = smul.addr %s200, 126
        %s205 = sadd.s32 %s203, %s204
        %s206 = smul.addr %s205, 8
        %s207 = scalar_lea.vmem %s2, %s206
        %s208 = ssub.s32 %s21, 10
        %s209 = smul.u32 %s208, 2
        %v210 = vld [vmem:[%s163] sm:$0xff]
        %v211 = vld [vmem:[%s163 + $0x8] sm:$0xff]
        %v212 = vld [vmem:[%s163 + $0x10] sm:$0xff]
        %v213 = vld [vmem:[%s163 + $0x18] sm:$0xff]
        %v214 = vld [vmem:[%s163 + $0x20] sm:$0xff]
        %v215 = vld [vmem:[%s163 + $0x28] sm:$0xff]
        %v216 = vld [vmem:[%s163 + $0x30] sm:$0xff]
        %v217 = vld [vmem:[%s163 + $0x38] sm:$0xff]
        %s218 = sadd.s32 %s209, 20
        %s219 = scalar_lea.vmem %s198, %s218
        %v220 = vld [vmem:[%s219] sm:$0xff]
        %v221 = vld [vmem:[%s219 + $0x8] sm:$0xff]
        %v222 = vld [vmem:[%s219 + $0x38] sm:$0xff]
        %v223 = vld [vmem:[%s219 + $0x40] sm:$0xff]
        %v224 = vld [vmem:[%s219 + $0x70] sm:$0xff]
        %v225 = vld [vmem:[%s219 + $0x78] sm:$0xff]
        %v226 = vld [vmem:[%s219 + $0xa8] sm:$0xff]
        %v227 = vld [vmem:[%s219 + $0xb0] sm:$0xff]
        %228 = vxpose.xlu0.b32.start [1/16] %v210, 128
        %229 = vxpose.xlu0.b32.cont [2/16] %v211, 128
        %230 = vxpose.xlu0.b32.cont [3/16] 0.0, 128
        %231 = vxpose.xlu0.b32.cont [4/16] 0.0, 128
        %232 = vxpose.xlu0.b32.cont [5/16] 0.0, 128
        %233 = vxpose.xlu0.b32.cont [6/16] 0.0, 128
        %234 = vxpose.xlu0.b32.cont [7/16] 0.0, 128
        %235 = vxpose.xlu0.b32.cont [8/16] 0.0, 128
        %236 = vxpose.xlu0.b32.cont [9/16] 0.0, 128
        %237 = vxpose.xlu0.b32.cont [10/16] 0.0, 128
        %238 = vxpose.xlu0.b32.cont [11/16] 0.0, 128
        %239 = vxpose.xlu0.b32.cont [12/16] 0.0, 128
        %240 = vxpose.xlu0.b32.cont [13/16] 0.0, 128
        %241 = vxpose.xlu0.b32.cont [14/16] 0.0, 128
        %242 = vxpose.xlu0.b32.cont [15/16] 0.0, 128
        %243 = vxpose.xlu0.b32.end [16/16] 0.0, 128
        %v244 = vpop.trf.xlu0
        %v245 = vpop.trf.xlu0
        %v246 = vpop.trf.xlu0
        %v247 = vpop.trf.xlu0
        %v248 = vpop.trf.xlu0
        %v249 = vpop.trf.xlu0
        %v250 = vpop.trf.xlu0
        %v251 = vpop.trf.xlu0
        %v252 = vpop.trf.xlu0
        %v253 = vpop.trf.xlu0
        %v254 = vpop.trf.xlu0
        %v255 = vpop.trf.xlu0
        %v256 = vpop.trf.xlu0
        %v257 = vpop.trf.xlu0
        %v258 = vpop.trf.xlu0
        %v259 = vpop.trf.xlu0
        %260 = vxpose.xlu0.b32.start [1/16] %v212, 128
        %261 = vxpose.xlu0.b32.cont [2/16] %v213, 128
        %262 = vxpose.xlu0.b32.cont [3/16] 0.0, 128
        %263 = vxpose.xlu0.b32.cont [4/16] 0.0, 128
        %264 = vxpose.xlu0.b32.cont [5/16] 0.0, 128
        %265 = vxpose.xlu0.b32.cont [6/16] 0.0, 128
        %266 = vxpose.xlu0.b32.cont [7/16] 0.0, 128
        %267 = vxpose.xlu0.b32.cont [8/16] 0.0, 128
        %268 = vxpose.xlu0.b32.cont [9/16] 0.0, 128
        %269 = vxpose.xlu0.b32.cont [10/16] 0.0, 128
        %270 = vxpose.xlu0.b32.cont [11/16] 0.0, 128
        %271 = vxpose.xlu0.b32.cont [12/16] 0.0, 128
        %272 = vxpose.xlu0.b32.cont [13/16] 0.0, 128
        %273 = vxpose.xlu0.b32.cont [14/16] 0.0, 128
        %274 = vxpose.xlu0.b32.cont [15/16] 0.0, 128
        %275 = vxpose.xlu0.b32.end [16/16] 0.0, 128
        %v276 = vpop.trf.xlu0
        %v277 = vpop.trf.xlu0
        %v278 = vpop.trf.xlu0
        %v279 = vpop.trf.xlu0
        %v280 = vpop.trf.xlu0
        %v281 = vpop.trf.xlu0
        %v282 = vpop.trf.xlu0
        %v283 = vpop.trf.xlu0
        %v284 = vpop.trf.xlu0
        %v285 = vpop.trf.xlu0
        %v286 = vpop.trf.xlu0
        %v287 = vpop.trf.xlu0
        %v288 = vpop.trf.xlu0
        %v289 = vpop.trf.xlu0
        %v290 = vpop.trf.xlu0
        %v291 = vpop.trf.xlu0
        %292 = vxpose.xlu0.b32.start [1/16] %v214, 128
        %293 = vxpose.xlu0.b32.cont [2/16] %v215, 128
        %294 = vxpose.xlu0.b32.cont [3/16] 0.0, 128
        %295 = vxpose.xlu0.b32.cont [4/16] 0.0, 128
        %296 = vxpose.xlu0.b32.cont [5/16] 0.0, 128
        %297 = vxpose.xlu0.b32.cont [6/16] 0.0, 128
        %298 = vxpose.xlu0.b32.cont [7/16] 0.0, 128
        %299 = vxpose.xlu0.b32.cont [8/16] 0.0, 128
        %300 = vxpose.xlu0.b32.cont [9/16] 0.0, 128
        %301 = vxpose.xlu0.b32.cont [10/16] 0.0, 128
        %302 = vxpose.xlu0.b32.cont [11/16] 0.0, 128
        %303 = vxpose.xlu0.b32.cont [12/16] 0.0, 128
        %304 = vxpose.xlu0.b32.cont [13/16] 0.0, 128
        %305 = vxpose.xlu0.b32.cont [14/16] 0.0, 128
        %306 = vxpose.xlu0.b32.cont [15/16] 0.0, 128
        %307 = vxpose.xlu0.b32.end [16/16] 0.0, 128
        %v308 = vpop.trf.xlu0
        %v309 = vpop.trf.xlu0
        %v310 = vpop.trf.xlu0
        %v311 = vpop.trf.xlu0
        %v312 = vpop.trf.xlu0
        %v313 = vpop.trf.xlu0
        %v314 = vpop.trf.xlu0
        %v315 = vpop.trf.xlu0
        %v316 = vpop.trf.xlu0
        %v317 = vpop.trf.xlu0
        %v318 = vpop.trf.xlu0
        %v319 = vpop.trf.xlu0
        %v320 = vpop.trf.xlu0
        %v321 = vpop.trf.xlu0
        %v322 = vpop.trf.xlu0
        %v323 = vpop.trf.xlu0
        %324 = vxpose.xlu0.b32.start [1/16] %v216, 128
        %325 = vxpose.xlu0.b32.cont [2/16] %v217, 128
        %326 = vxpose.xlu0.b32.cont [3/16] 0.0, 128
        %327 = vxpose.xlu0.b32.cont [4/16] 0.0, 128
        %328 = vxpose.xlu0.b32.cont [5/16] 0.0, 128
        %329 = vxpose.xlu0.b32.cont [6/16] 0.0, 128
        %330 = vxpose.xlu0.b32.cont [7/16] 0.0, 128
        %331 = vxpose.xlu0.b32.cont [8/16] 0.0, 128
        %332 = vxpose.xlu0.b32.cont [9/16] 0.0, 128
        %333 = vxpose.xlu0.b32.cont [10/16] 0.0, 128
        %334 = vxpose.xlu0.b32.cont [11/16] 0.0, 128
        %335 = vxpose.xlu0.b32.cont [12/16] 0.0, 128
        %336 = vxpose.xlu0.b32.cont [13/16] 0.0, 128
        %337 = vxpose.xlu0.b32.cont [14/16] 0.0, 128
        %338 = vxpose.xlu0.b32.cont [15/16] 0.0, 128
        %339 = vxpose.xlu0.b32.end [16/16] 0.0, 128
        %v340 = vpop.trf.xlu0
        %v341 = vpop.trf.xlu0
        %v342 = vpop.trf.xlu0
        %v343 = vpop.trf.xlu0
        %v344 = vpop.trf.xlu0
        %v345 = vpop.trf.xlu0
        %v346 = vpop.trf.xlu0
        %v347 = vpop.trf.xlu0
        %v348 = vpop.trf.xlu0
        %v349 = vpop.trf.xlu0
        %v350 = vpop.trf.xlu0
        %v351 = vpop.trf.xlu0
        %v352 = vpop.trf.xlu0
        %v353 = vpop.trf.xlu0
        %v354 = vpop.trf.xlu0
        %v355 = vpop.trf.xlu0
        %v356 = vrot.slane %v308, 4
        %vm357 = vcmask 1047556
        %v358 = vsel %vm357, %v356, %v244
        %v359 = vrot.slane %v244, 4
        %v360 = vsel %vm357, %v308, %v359
        %v362 = vunpack.c.l.s4 1983009808
        %v363 = vunpack.c.0.s8 %v362
        %v364 = vperm.slane %v358, %v363
        %v366 = vunpack.c.l.s4 1983009808
        %v367 = vunpack.c.0.s8 %v366
        %v368 = vperm.slane %v360, %v367
        %v369 = vrot.slane %v340, 4
        %v370 = vsel %vm357, %v369, %v276
        %v371 = vrot.slane %v276, 4
        %v372 = vsel %vm357, %v340, %v371
        %v374 = vunpack.c.l.s4 1983009808
        %v375 = vunpack.c.0.s8 %v374
        %v376 = vperm.slane %v370, %v375
        %v378 = vunpack.c.l.s4 1983009808
        %v379 = vunpack.c.0.s8 %v378
        %v380 = vperm.slane %v372, %v379
        %v381 = vrot.slane %v376, 4
        %v382 = vsel %vm357, %v381, %v364
        %v383 = vrot.slane %v364, 4
        %v384 = vsel %vm357, %v376, %v383
        %v386 = vunpack.c.l.s4 1934713408
        %v387 = vunpack.c.0.s8 %v386
        %v388 = vperm.slane %v382, %v387
        %v390 = vunpack.c.l.s4 1934713408
        %v391 = vunpack.c.0.s8 %v390
        %v392 = vperm.slane %v384, %v391
        %v393 = vrot.slane %v380, 4
        %v394 = vsel %vm357, %v393, %v368
        %v395 = vrot.slane %v368, 4
        %v396 = vsel %vm357, %v380, %v395
        %v398 = vunpack.c.l.s4 1934713408
        %v399 = vunpack.c.0.s8 %v398
        %v400 = vperm.slane %v394, %v399
        %v402 = vunpack.c.l.s4 1934713408
        %v403 = vunpack.c.0.s8 %v402
        %v404 = vperm.slane %v396, %v403
        %v405 = vrot.slane %v388, 4
        %v406 = vsel %vm357, 0.0, %v405
        %v407 = vrot.slane %v392, 4
        %v408 = vsel %vm357, 0.0, %v407
        %v409 = vrot.slane %v400, 4
        %v410 = vsel %vm357, 0.0, %v409
        %v411 = vrot.slane %v404, 4
        %v412 = vsel %vm357, 0.0, %v411
        %v413 = vrot.slane %v309, 4
        %v414 = vsel %vm357, %v413, %v245
        %v415 = vrot.slane %v245, 4
        %v416 = vsel %vm357, %v309, %v415
        %v418 = vunpack.c.l.s4 1983009808
        %v419 = vunpack.c.0.s8 %v418
        %v420 = vperm.slane %v414, %v419
        %v422 = vunpack.c.l.s4 1983009808
        %v423 = vunpack.c.0.s8 %v422
        %v424 = vperm.slane %v416, %v423
        %v425 = vrot.slane %v341, 4
        %v426 = vsel %vm357, %v425, %v277
        %v427 = vrot.slane %v277, 4
        %v428 = vsel %vm357, %v341, %v427
        %v430 = vunpack.c.l.s4 1983009808
        %v431 = vunpack.c.0.s8 %v430
        %v432 = vperm.slane %v426, %v431
        %v434 = vunpack.c.l.s4 1983009808
        %v435 = vunpack.c.0.s8 %v434
        %v436 = vperm.slane %v428, %v435
        %v437 = vrot.slane %v432, 4
        %v438 = vsel %vm357, %v437, %v420
        %v439 = vrot.slane %v420, 4
        %v440 = vsel %vm357, %v432, %v439
        %v442 = vunpack.c.l.s4 1934713408
        %v443 = vunpack.c.0.s8 %v442
        %v444 = vperm.slane %v438, %v443
        %v446 = vunpack.c.l.s4 1934713408
        %v447 = vunpack.c.0.s8 %v446
        %v448 = vperm.slane %v440, %v447
        %v449 = vrot.slane %v436, 4
        %v450 = vsel %vm357, %v449, %v424
        %v451 = vrot.slane %v424, 4
        %v452 = vsel %vm357, %v436, %v451
        %v454 = vunpack.c.l.s4 1934713408
        %v455 = vunpack.c.0.s8 %v454
        %v456 = vperm.slane %v450, %v455
        %v458 = vunpack.c.l.s4 1934713408
        %v459 = vunpack.c.0.s8 %v458
        %v460 = vperm.slane %v452, %v459
        %v461 = vrot.slane %v444, 4
        %v462 = vsel %vm357, 0.0, %v461
        %v463 = vrot.slane %v448, 4
        %v464 = vsel %vm357, 0.0, %v463
        %v465 = vrot.slane %v456, 4
        %v466 = vsel %vm357, 0.0, %v465
        %v467 = vrot.slane %v460, 4
        %v468 = vsel %vm357, 0.0, %v467
        %469 = vxpose.xlu0.b32.start [1/16] %v388, 128
        %470 = vxpose.xlu0.b32.cont [2/16] 0.0, 128
        %471 = vxpose.xlu0.b32.cont [3/16] 0.0, 128
        %472 = vxpose.xlu0.b32.cont [4/16] 0.0, 128
        %473 = vxpose.xlu0.b32.cont [5/16] 0.0, 128
        %474 = vxpose.xlu0.b32.cont [6/16] 0.0, 128
        %475 = vxpose.xlu0.b32.cont [7/16] 0.0, 128
        %476 = vxpose.xlu0.b32.cont [8/16] 0.0, 128
        %477 = vxpose.xlu0.b32.cont [9/16] 0.0, 128
        %478 = vxpose.xlu0.b32.cont [10/16] 0.0, 128
        %479 = vxpose.xlu0.b32.cont [11/16] 0.0, 128
        %480 = vxpose.xlu0.b32.cont [12/16] 0.0, 128
        %481 = vxpose.xlu0.b32.cont [13/16] 0.0, 128
        %482 = vxpose.xlu0.b32.cont [14/16] 0.0, 128
        %483 = vxpose.xlu0.b32.cont [15/16] 0.0, 128
        %484 = vxpose.xlu0.b32.end [16/16] 0.0, 128
        %v485 = vpop.trf.xlu0
        %v486 = vpop.trf.xlu0
        %v487 = vpop.trf.xlu0
        %v488 = vpop.trf.xlu0
        %v489 = vpop.trf.xlu0
        %v490 = vpop.trf.xlu0
        %v491 = vpop.trf.xlu0
        %v492 = vpop.trf.xlu0
        %v493 = vpop.trf.xlu0
        %v494 = vpop.trf.xlu0
        %v495 = vpop.trf.xlu0
        %v496 = vpop.trf.xlu0
        %v497 = vpop.trf.xlu0
        %v498 = vpop.trf.xlu0
        %v499 = vpop.trf.xlu0
        %v500 = vpop.trf.xlu0
        %501 = vxpose.xlu0.b32.start [1/16] %v406, 128
        %502 = vxpose.xlu0.b32.cont [2/16] 0.0, 128
        %503 = vxpose.xlu0.b32.cont [3/16] 0.0, 128
        %504 = vxpose.xlu0.b32.cont [4/16] 0.0, 128
        %505 = vxpose.xlu0.b32.cont [5/16] 0.0, 128
        %506 = vxpose.xlu0.b32.cont [6/16] 0.0, 128
        %507 = vxpose.xlu0.b32.cont [7/16] 0.0, 128
        %508 = vxpose.xlu0.b32.cont [8/16] 0.0, 128
        %509 = vxpose.xlu0.b32.cont [9/16] 0.0, 128
        %510 = vxpose.xlu0.b32.cont [10/16] 0.0, 128
        %511 = vxpose.xlu0.b32.cont [11/16] 0.0, 128
        %512 = vxpose.xlu0.b32.cont [12/16] 0.0, 128
        %513 = vxpose.xlu0.b32.cont [13/16] 0.0, 128
        %514 = vxpose.xlu0.b32.cont [14/16] 0.0, 128
        %515 = vxpose.xlu0.b32.cont [15/16] 0.0, 128
        %516 = vxpose.xlu0.b32.end [16/16] 0.0, 128
        %v517 = vpop.trf.xlu0
        %v518 = vpop.trf.xlu0
        %v519 = vpop.trf.xlu0
        %v520 = vpop.trf.xlu0
        %v521 = vpop.trf.xlu0
        %v522 = vpop.trf.xlu0
        %v523 = vpop.trf.xlu0
        %v524 = vpop.trf.xlu0
        %v525 = vpop.trf.xlu0
        %v526 = vpop.trf.xlu0
        %v527 = vpop.trf.xlu0
        %v528 = vpop.trf.xlu0
        %v529 = vpop.trf.xlu0
        %v530 = vpop.trf.xlu0
        %v531 = vpop.trf.xlu0
        %v532 = vpop.trf.xlu0
        %533 = vxpose.xlu0.b32.start [1/16] %v392, 128
        %534 = vxpose.xlu0.b32.cont [2/16] 0.0, 128
        %535 = vxpose.xlu0.b32.cont [3/16] 0.0, 128
        %536 = vxpose.xlu0.b32.cont [4/16] 0.0, 128
        %537 = vxpose.xlu0.b32.cont [5/16] 0.0, 128
        %538 = vxpose.xlu0.b32.cont [6/16] 0.0, 128
        %539 = vxpose.xlu0.b32.cont [7/16] 0.0, 128
        %540 = vxpose.xlu0.b32.cont [8/16] 0.0, 128
        %541 = vxpose.xlu0.b32.cont [9/16] 0.0, 128
        %542 = vxpose.xlu0.b32.cont [10/16] 0.0, 128
        %543 = vxpose.xlu0.b32.cont [11/16] 0.0, 128
        %544 = vxpose.xlu0.b32.cont [12/16] 0.0, 128
        %545 = vxpose.xlu0.b32.cont [13/16] 0.0, 128
        %546 = vxpose.xlu0.b32.cont [14/16] 0.0, 128
        %547 = vxpose.xlu0.b32.cont [15/16] 0.0, 128
        %548 = vxpose.xlu0.b32.end [16/16] 0.0, 128
        %v549 = vpop.trf.xlu0
        %v550 = vpop.trf.xlu0
        %v551 = vpop.trf.xlu0
        %v552 = vpop.trf.xlu0
        %v553 = vpop.trf.xlu0
        %v554 = vpop.trf.xlu0
        %v555 = vpop.trf.xlu0
        %v556 = vpop.trf.xlu0
        %v557 = vpop.trf.xlu0
        %v558 = vpop.trf.xlu0
        %v559 = vpop.trf.xlu0
        %v560 = vpop.trf.xlu0
        %v561 = vpop.trf.xlu0
        %v562 = vpop.trf.xlu0
        %v563 = vpop.trf.xlu0
        %v564 = vpop.trf.xlu0
        %565 = vxpose.xlu0.b32.start [1/16] %v408, 128
        %566 = vxpose.xlu0.b32.cont [2/16] 0.0, 128
        %567 = vxpose.xlu0.b32.cont [3/16] 0.0, 128
        %568 = vxpose.xlu0.b32.cont [4/16] 0.0, 128
        %569 = vxpose.xlu0.b32.cont [5/16] 0.0, 128
        %570 = vxpose.xlu0.b32.cont [6/16] 0.0, 128
        %571 = vxpose.xlu0.b32.cont [7/16] 0.0, 128
        %572 = vxpose.xlu0.b32.cont [8/16] 0.0, 128
        %573 = vxpose.xlu0.b32.cont [9/16] 0.0, 128
        %574 = vxpose.xlu0.b32.cont [10/16] 0.0, 128
        %575 = vxpose.xlu0.b32.cont [11/16] 0.0, 128
        %576 = vxpose.xlu0.b32.cont [12/16] 0.0, 128
        %577 = vxpose.xlu0.b32.cont [13/16] 0.0, 128
        %578 = vxpose.xlu0.b32.cont [14/16] 0.0, 128
        %579 = vxpose.xlu0.b32.cont [15/16] 0.0, 128
        %580 = vxpose.xlu0.b32.end [16/16] 0.0, 128
        %v581 = vpop.trf.xlu0
        %v582 = vpop.trf.xlu0
        %v583 = vpop.trf.xlu0
        %v584 = vpop.trf.xlu0
        %v585 = vpop.trf.xlu0
        %v586 = vpop.trf.xlu0
        %v587 = vpop.trf.xlu0
        %v588 = vpop.trf.xlu0
        %v589 = vpop.trf.xlu0
        %v590 = vpop.trf.xlu0
        %v591 = vpop.trf.xlu0
        %v592 = vpop.trf.xlu0
        %v593 = vpop.trf.xlu0
        %v594 = vpop.trf.xlu0
        %v595 = vpop.trf.xlu0
        %v596 = vpop.trf.xlu0
        %597 = vxpose.xlu0.b32.start [1/16] %v400, 128
        %598 = vxpose.xlu0.b32.cont [2/16] 0.0, 128
        %599 = vxpose.xlu0.b32.cont [3/16] 0.0, 128
        %600 = vxpose.xlu0.b32.cont [4/16] 0.0, 128
        %601 = vxpose.xlu0.b32.cont [5/16] 0.0, 128
        %602 = vxpose.xlu0.b32.cont [6/16] 0.0, 128
        %603 = vxpose.xlu0.b32.cont [7/16] 0.0, 128
        %604 = vxpose.xlu0.b32.cont [8/16] 0.0, 128
        %605 = vxpose.xlu0.b32.cont [9/16] 0.0, 128
        %606 = vxpose.xlu0.b32.cont [10/16] 0.0, 128
        %607 = vxpose.xlu0.b32.cont [11/16] 0.0, 128
        %608 = vxpose.xlu0.b32.cont [12/16] 0.0, 128
        %609 = vxpose.xlu0.b32.cont [13/16] 0.0, 128
        %610 = vxpose.xlu0.b32.cont [14/16] 0.0, 128
        %611 = vxpose.xlu0.b32.cont [15/16] 0.0, 128
        %612 = vxpose.xlu0.b32.end [16/16] 0.0, 128
        %v613 = vpop.trf.xlu0
        %v614 = vpop.trf.xlu0
        %v615 = vpop.trf.xlu0
        %v616 = vpop.trf.xlu0
        %v617 = vpop.trf.xlu0
        %v618 = vpop.trf.xlu0
        %v619 = vpop.trf.xlu0
        %v620 = vpop.trf.xlu0
        %v621 = vpop.trf.xlu0
        %v622 = vpop.trf.xlu0
        %v623 = vpop.trf.xlu0
        %v624 = vpop.trf.xlu0
        %v625 = vpop.trf.xlu0
        %v626 = vpop.trf.xlu0
        %v627 = vpop.trf.xlu0
        %v628 = vpop.trf.xlu0
        %629 = vxpose.xlu0.b32.start [1/16] %v410, 128
        %630 = vxpose.xlu0.b32.cont [2/16] 0.0, 128
        %631 = vxpose.xlu0.b32.cont [3/16] 0.0, 128
        %632 = vxpose.xlu0.b32.cont [4/16] 0.0, 128
        %633 = vxpose.xlu0.b32.cont [5/16] 0.0, 128
        %634 = vxpose.xlu0.b32.cont [6/16] 0.0, 128
        %635 = vxpose.xlu0.b32.cont [7/16] 0.0, 128
        %636 = vxpose.xlu0.b32.cont [8/16] 0.0, 128
        %637 = vxpose.xlu0.b32.cont [9/16] 0.0, 128
        %638 = vxpose.xlu0.b32.cont [10/16] 0.0, 128
        %639 = vxpose.xlu0.b32.cont [11/16] 0.0, 128
        %640 = vxpose.xlu0.b32.cont [12/16] 0.0, 128
        %641 = vxpose.xlu0.b32.cont [13/16] 0.0, 128
        %642 = vxpose.xlu0.b32.cont [14/16] 0.0, 128
        %643 = vxpose.xlu0.b32.cont [15/16] 0.0, 128
        %644 = vxpose.xlu0.b32.end [16/16] 0.0, 128
        %v645 = vpop.trf.xlu0
        %v646 = vpop.trf.xlu0
        %v647 = vpop.trf.xlu0
        %v648 = vpop.trf.xlu0
        %v649 = vpop.trf.xlu0
        %v650 = vpop.trf.xlu0
        %v651 = vpop.trf.xlu0
        %v652 = vpop.trf.xlu0
        %v653 = vpop.trf.xlu0
        %v654 = vpop.trf.xlu0
        %v655 = vpop.trf.xlu0
        %v656 = vpop.trf.xlu0
        %v657 = vpop.trf.xlu0
        %v658 = vpop.trf.xlu0
        %v659 = vpop.trf.xlu0
        %v660 = vpop.trf.xlu0
        %661 = vxpose.xlu0.b32.start [1/16] %v404, 128
        %662 = vxpose.xlu0.b32.cont [2/16] 0.0, 128
        %663 = vxpose.xlu0.b32.cont [3/16] 0.0, 128
        %664 = vxpose.xlu0.b32.cont [4/16] 0.0, 128
        %665 = vxpose.xlu0.b32.cont [5/16] 0.0, 128
        %666 = vxpose.xlu0.b32.cont [6/16] 0.0, 128
        %667 = vxpose.xlu0.b32.cont [7/16] 0.0, 128
        %668 = vxpose.xlu0.b32.cont [8/16] 0.0, 128
        %669 = vxpose.xlu0.b32.cont [9/16] 0.0, 128
        %670 = vxpose.xlu0.b32.cont [10/16] 0.0, 128
        %671 = vxpose.xlu0.b32.cont [11/16] 0.0, 128
        %672 = vxpose.xlu0.b32.cont [12/16] 0.0, 128
        %673 = vxpose.xlu0.b32.cont [13/16] 0.0, 128
        %674 = vxpose.xlu0.b32.cont [14/16] 0.0, 128
        %675 = vxpose.xlu0.b32.cont [15/16] 0.0, 128
        %676 = vxpose.xlu0.b32.end [16/16] 0.0, 128
        %v677 = vpop.trf.xlu0
        %v678 = vpop.trf.xlu0
        %v679 = vpop.trf.xlu0
        %v680 = vpop.trf.xlu0
        %v681 = vpop.trf.xlu0
        %v682 = vpop.trf.xlu0
        %v683 = vpop.trf.xlu0
        %v684 = vpop.trf.xlu0
        %v685 = vpop.trf.xlu0
        %v686 = vpop.trf.xlu0
        %v687 = vpop.trf.xlu0
        %v688 = vpop.trf.xlu0
        %v689 = vpop.trf.xlu0
        %v690 = vpop.trf.xlu0
        %v691 = vpop.trf.xlu0
        %v692 = vpop.trf.xlu0
        %693 = vxpose.xlu0.b32.start [1/16] %v412, 128
        %694 = vxpose.xlu0.b32.cont [2/16] 0.0, 128
        %695 = vxpose.xlu0.b32.cont [3/16] 0.0, 128
        %696 = vxpose.xlu0.b32.cont [4/16] 0.0, 128
        %697 = vxpose.xlu0.b32.cont [5/16] 0.0, 128
        %698 = vxpose.xlu0.b32.cont [6/16] 0.0, 128
        %699 = vxpose.xlu0.b32.cont [7/16] 0.0, 128
        %700 = vxpose.xlu0.b32.cont [8/16] 0.0, 128
        %701 = vxpose.xlu0.b32.cont [9/16] 0.0, 128
        %702 = vxpose.xlu0.b32.cont [10/16] 0.0, 128
        %703 = vxpose.xlu0.b32.cont [11/16] 0.0, 128
        %704 = vxpose.xlu0.b32.cont [12/16] 0.0, 128
        %705 = vxpose.xlu0.b32.cont [13/16] 0.0, 128
        %706 = vxpose.xlu0.b32.cont [14/16] 0.0, 128
        %707 = vxpose.xlu0.b32.cont [15/16] 0.0, 128
        %708 = vxpose.xlu0.b32.end [16/16] 0.0, 128
        %v709 = vpop.trf.xlu0
        %v710 = vpop.trf.xlu0
        %v711 = vpop.trf.xlu0
        %v712 = vpop.trf.xlu0
        %v713 = vpop.trf.xlu0
        %v714 = vpop.trf.xlu0
        %v715 = vpop.trf.xlu0
        %v716 = vpop.trf.xlu0
        %v717 = vpop.trf.xlu0
        %v718 = vpop.trf.xlu0
        %v719 = vpop.trf.xlu0
        %v720 = vpop.trf.xlu0
        %v721 = vpop.trf.xlu0
        %v722 = vpop.trf.xlu0
        %v723 = vpop.trf.xlu0
        %v724 = vpop.trf.xlu0
        %725 = vxpose.xlu0.b32.start [1/16] %v444, 128
        %726 = vxpose.xlu0.b32.cont [2/16] 0.0, 128
        %727 = vxpose.xlu0.b32.cont [3/16] 0.0, 128
        %728 = vxpose.xlu0.b32.cont [4/16] 0.0, 128
        %729 = vxpose.xlu0.b32.cont [5/16] 0.0, 128
        %730 = vxpose.xlu0.b32.cont [6/16] 0.0, 128
        %731 = vxpose.xlu0.b32.cont [7/16] 0.0, 128
        %732 = vxpose.xlu0.b32.cont [8/16] 0.0, 128
        %733 = vxpose.xlu0.b32.cont [9/16] 0.0, 128
        %734 = vxpose.xlu0.b32.cont [10/16] 0.0, 128
        %735 = vxpose.xlu0.b32.cont [11/16] 0.0, 128
        %736 = vxpose.xlu0.b32.cont [12/16] 0.0, 128
        %737 = vxpose.xlu0.b32.cont [13/16] 0.0, 128
        %738 = vxpose.xlu0.b32.cont [14/16] 0.0, 128
        %739 = vxpose.xlu0.b32.cont [15/16] 0.0, 128
        %740 = vxpose.xlu0.b32.end [16/16] 0.0, 128
        %v741 = vpop.trf.xlu0
        %v742 = vpop.trf.xlu0
        %v743 = vpop.trf.xlu0
        %v744 = vpop.trf.xlu0
        %v745 = vpop.trf.xlu0
        %v746 = vpop.trf.xlu0
        %v747 = vpop.trf.xlu0
        %v748 = vpop.trf.xlu0
        %v749 = vpop.trf.xlu0
        %v750 = vpop.trf.xlu0
        %v751 = vpop.trf.xlu0
        %v752 = vpop.trf.xlu0
        %v753 = vpop.trf.xlu0
        %v754 = vpop.trf.xlu0
        %v755 = vpop.trf.xlu0
        %v756 = vpop.trf.xlu0
        %757 = vxpose.xlu0.b32.start [1/16] %v462, 128
        %758 = vxpose.xlu0.b32.cont [2/16] 0.0, 128
        %759 = vxpose.xlu0.b32.cont [3/16] 0.0, 128
        %760 = vxpose.xlu0.b32.cont [4/16] 0.0, 128
        %761 = vxpose.xlu0.b32.cont [5/16] 0.0, 128
        %762 = vxpose.xlu0.b32.cont [6/16] 0.0, 128
        %763 = vxpose.xlu0.b32.cont [7/16] 0.0, 128
        %764 = vxpose.xlu0.b32.cont [8/16] 0.0, 128
        %765 = vxpose.xlu0.b32.cont [9/16] 0.0, 128
        %766 = vxpose.xlu0.b32.cont [10/16] 0.0, 128
        %767 = vxpose.xlu0.b32.cont [11/16] 0.0, 128
        %768 = vxpose.xlu0.b32.cont [12/16] 0.0, 128
        %769 = vxpose.xlu0.b32.cont [13/16] 0.0, 128
        %770 = vxpose.xlu0.b32.cont [14/16] 0.0, 128
        %771 = vxpose.xlu0.b32.cont [15/16] 0.0, 128
        %772 = vxpose.xlu0.b32.end [16/16] 0.0, 128
        %v773 = vpop.trf.xlu0
        %v774 = vpop.trf.xlu0
        %v775 = vpop.trf.xlu0
        %v776 = vpop.trf.xlu0
        %v777 = vpop.trf.xlu0
        %v778 = vpop.trf.xlu0
        %v779 = vpop.trf.xlu0
        %v780 = vpop.trf.xlu0
        %v781 = vpop.trf.xlu0
        %v782 = vpop.trf.xlu0
        %v783 = vpop.trf.xlu0
        %v784 = vpop.trf.xlu0
        %v785 = vpop.trf.xlu0
        %v786 = vpop.trf.xlu0
        %v787 = vpop.trf.xlu0
        %v788 = vpop.trf.xlu0
        %789 = vxpose.xlu0.b32.start [1/16] %v448, 128
        %790 = vxpose.xlu0.b32.cont [2/16] 0.0, 128
        %791 = vxpose.xlu0.b32.cont [3/16] 0.0, 128
        %792 = vxpose.xlu0.b32.cont [4/16] 0.0, 128
        %793 = vxpose.xlu0.b32.cont [5/16] 0.0, 128
        %794 = vxpose.xlu0.b32.cont [6/16] 0.0, 128
        %795 = vxpose.xlu0.b32.cont [7/16] 0.0, 128
        %796 = vxpose.xlu0.b32.cont [8/16] 0.0, 128
        %797 = vxpose.xlu0.b32.cont [9/16] 0.0, 128
        %798 = vxpose.xlu0.b32.cont [10/16] 0.0, 128
        %799 = vxpose.xlu0.b32.cont [11/16] 0.0, 128
        %800 = vxpose.xlu0.b32.cont [12/16] 0.0, 128
        %801 = vxpose.xlu0.b32.cont [13/16] 0.0, 128
        %802 = vxpose.xlu0.b32.cont [14/16] 0.0, 128
        %803 = vxpose.xlu0.b32.cont [15/16] 0.0, 128
        %804 = vxpose.xlu0.b32.end [16/16] 0.0, 128
        %v805 = vpop.trf.xlu0
        %v806 = vpop.trf.xlu0
        %v807 = vpop.trf.xlu0
        %v808 = vpop.trf.xlu0
        %v809 = vpop.trf.xlu0
        %v810 = vpop.trf.xlu0
        %v811 = vpop.trf.xlu0
        %v812 = vpop.trf.xlu0
        %v813 = vpop.trf.xlu0
        %v814 = vpop.trf.xlu0
        %v815 = vpop.trf.xlu0
        %v816 = vpop.trf.xlu0
        %v817 = vpop.trf.xlu0
        %v818 = vpop.trf.xlu0
        %v819 = vpop.trf.xlu0
        %v820 = vpop.trf.xlu0
        %821 = vxpose.xlu0.b32.start [1/16] %v464, 128
        %822 = vxpose.xlu0.b32.cont [2/16] 0.0, 128
        %823 = vxpose.xlu0.b32.cont [3/16] 0.0, 128
        %824 = vxpose.xlu0.b32.cont [4/16] 0.0, 128
        %825 = vxpose.xlu0.b32.cont [5/16] 0.0, 128
        %826 = vxpose.xlu0.b32.cont [6/16] 0.0, 128
        %827 = vxpose.xlu0.b32.cont [7/16] 0.0, 128
        %828 = vxpose.xlu0.b32.cont [8/16] 0.0, 128
        %829 = vxpose.xlu0.b32.cont [9/16] 0.0, 128
        %830 = vxpose.xlu0.b32.cont [10/16] 0.0, 128
        %831 = vxpose.xlu0.b32.cont [11/16] 0.0, 128
        %832 = vxpose.xlu0.b32.cont [12/16] 0.0, 128
        %833 = vxpose.xlu0.b32.cont [13/16] 0.0, 128
        %834 = vxpose.xlu0.b32.cont [14/16] 0.0, 128
        %835 = vxpose.xlu0.b32.cont [15/16] 0.0, 128
        %836 = vxpose.xlu0.b32.end [16/16] 0.0, 128
        %v837 = vpop.trf.xlu0
        %v838 = vpop.trf.xlu0
        %v839 = vpop.trf.xlu0
        %v840 = vpop.trf.xlu0
        %v841 = vpop.trf.xlu0
        %v842 = vpop.trf.xlu0
        %v843 = vpop.trf.xlu0
        %v844 = vpop.trf.xlu0
        %v845 = vpop.trf.xlu0
        %v846 = vpop.trf.xlu0
        %v847 = vpop.trf.xlu0
        %v848 = vpop.trf.xlu0
        %v849 = vpop.trf.xlu0
        %v850 = vpop.trf.xlu0
        %v851 = vpop.trf.xlu0
        %v852 = vpop.trf.xlu0
        %853 = vxpose.xlu0.b32.start [1/16] %v456, 128
        %854 = vxpose.xlu0.b32.cont [2/16] 0.0, 128
        %855 = vxpose.xlu0.b32.cont [3/16] 0.0, 128
        %856 = vxpose.xlu0.b32.cont [4/16] 0.0, 128
        %857 = vxpose.xlu0.b32.cont [5/16] 0.0, 128
        %858 = vxpose.xlu0.b32.cont [6/16] 0.0, 128
        %859 = vxpose.xlu0.b32.cont [7/16] 0.0, 128
        %860 = vxpose.xlu0.b32.cont [8/16] 0.0, 128
        %861 = vxpose.xlu0.b32.cont [9/16] 0.0, 128
        %862 = vxpose.xlu0.b32.cont [10/16] 0.0, 128
        %863 = vxpose.xlu0.b32.cont [11/16] 0.0, 128
        %864 = vxpose.xlu0.b32.cont [12/16] 0.0, 128
        %865 = vxpose.xlu0.b32.cont [13/16] 0.0, 128
        %866 = vxpose.xlu0.b32.cont [14/16] 0.0, 128
        %867 = vxpose.xlu0.b32.cont [15/16] 0.0, 128
        %868 = vxpose.xlu0.b32.end [16/16] 0.0, 128
        %v869 = vpop.trf.xlu0
        %v870 = vpop.trf.xlu0
        %v871 = vpop.trf.xlu0
        %v872 = vpop.trf.xlu0
        %v873 = vpop.trf.xlu0
        %v874 = vpop.trf.xlu0
        %v875 = vpop.trf.xlu0
        %v876 = vpop.trf.xlu0
        %v877 = vpop.trf.xlu0
        %v878 = vpop.trf.xlu0
        %v879 = vpop.trf.xlu0
        %v880 = vpop.trf.xlu0
        %v881 = vpop.trf.xlu0
        %v882 = vpop.trf.xlu0
        %v883 = vpop.trf.xlu0
        %v884 = vpop.trf.xlu0
        %885 = vxpose.xlu0.b32.start [1/16] %v466, 128
        %886 = vxpose.xlu0.b32.cont [2/16] 0.0, 128
        %887 = vxpose.xlu0.b32.cont [3/16] 0.0, 128
        %888 = vxpose.xlu0.b32.cont [4/16] 0.0, 128
        %889 = vxpose.xlu0.b32.cont [5/16] 0.0, 128
        %890 = vxpose.xlu0.b32.cont [6/16] 0.0, 128
        %891 = vxpose.xlu0.b32.cont [7/16] 0.0, 128
        %892 = vxpose.xlu0.b32.cont [8/16] 0.0, 128
        %893 = vxpose.xlu0.b32.cont [9/16] 0.0, 128
        %894 = vxpose.xlu0.b32.cont [10/16] 0.0, 128
        %895 = vxpose.xlu0.b32.cont [11/16] 0.0, 128
        %896 = vxpose.xlu0.b32.cont [12/16] 0.0, 128
        %897 = vxpose.xlu0.b32.cont [13/16] 0.0, 128
        %898 = vxpose.xlu0.b32.cont [14/16] 0.0, 128
        %899 = vxpose.xlu0.b32.cont [15/16] 0.0, 128
        %900 = vxpose.xlu0.b32.end [16/16] 0.0, 128
        %v901 = vpop.trf.xlu0
        %v902 = vpop.trf.xlu0
        %v903 = vpop.trf.xlu0
        %v904 = vpop.trf.xlu0
        %v905 = vpop.trf.xlu0
        %v906 = vpop.trf.xlu0
        %v907 = vpop.trf.xlu0
        %v908 = vpop.trf.xlu0
        %v909 = vpop.trf.xlu0
        %v910 = vpop.trf.xlu0
        %v911 = vpop.trf.xlu0
        %v912 = vpop.trf.xlu0
        %v913 = vpop.trf.xlu0
        %v914 = vpop.trf.xlu0
        %v915 = vpop.trf.xlu0
        %v916 = vpop.trf.xlu0
        %917 = vxpose.xlu0.b32.start [1/16] %v460, 128
        %918 = vxpose.xlu0.b32.cont [2/16] 0.0, 128
        %919 = vxpose.xlu0.b32.cont [3/16] 0.0, 128
        %920 = vxpose.xlu0.b32.cont [4/16] 0.0, 128
        %921 = vxpose.xlu0.b32.cont [5/16] 0.0, 128
        %922 = vxpose.xlu0.b32.cont [6/16] 0.0, 128
        %923 = vxpose.xlu0.b32.cont [7/16] 0.0, 128
        %924 = vxpose.xlu0.b32.cont [8/16] 0.0, 128
        %925 = vxpose.xlu0.b32.cont [9/16] 0.0, 128
        %926 = vxpose.xlu0.b32.cont [10/16] 0.0, 128
        %927 = vxpose.xlu0.b32.cont [11/16] 0.0, 128
        %928 = vxpose.xlu0.b32.cont [12/16] 0.0, 128
        %929 = vxpose.xlu0.b32.cont [13/16] 0.0, 128
        %930 = vxpose.xlu0.b32.cont [14/16] 0.0, 128
        %931 = vxpose.xlu0.b32.cont [15/16] 0.0, 128
        %932 = vxpose.xlu0.b32.end [16/16] 0.0, 128
        %v933 = vpop.trf.xlu0
        %v934 = vpop.trf.xlu0
        %v935 = vpop.trf.xlu0
        %v936 = vpop.trf.xlu0
        %v937 = vpop.trf.xlu0
        %v938 = vpop.trf.xlu0
        %v939 = vpop.trf.xlu0
        %v940 = vpop.trf.xlu0
        %v941 = vpop.trf.xlu0
        %v942 = vpop.trf.xlu0
        %v943 = vpop.trf.xlu0
        %v944 = vpop.trf.xlu0
        %v945 = vpop.trf.xlu0
        %v946 = vpop.trf.xlu0
        %v947 = vpop.trf.xlu0
        %v948 = vpop.trf.xlu0
        %949 = vxpose.xlu0.b32.start [1/16] %v468, 128
        %950 = vxpose.xlu0.b32.cont [2/16] 0.0, 128
        %951 = vxpose.xlu0.b32.cont [3/16] 0.0, 128
        %952 = vxpose.xlu0.b32.cont [4/16] 0.0, 128
        %953 = vxpose.xlu0.b32.cont [5/16] 0.0, 128
        %954 = vxpose.xlu0.b32.cont [6/16] 0.0, 128
        %955 = vxpose.xlu0.b32.cont [7/16] 0.0, 128
        %956 = vxpose.xlu0.b32.cont [8/16] 0.0, 128
        %957 = vxpose.xlu0.b32.cont [9/16] 0.0, 128
        %958 = vxpose.xlu0.b32.cont [10/16] 0.0, 128
        %959 = vxpose.xlu0.b32.cont [11/16] 0.0, 128
        %960 = vxpose.xlu0.b32.cont [12/16] 0.0, 128
        %961 = vxpose.xlu0.b32.cont [13/16] 0.0, 128
        %962 = vxpose.xlu0.b32.cont [14/16] 0.0, 128
        %963 = vxpose.xlu0.b32.cont [15/16] 0.0, 128
        %964 = vxpose.xlu0.b32.end [16/16] 0.0, 128
        %v965 = vpop.trf.xlu0
        %v966 = vpop.trf.xlu0
        %v967 = vpop.trf.xlu0
        %v968 = vpop.trf.xlu0
        %v969 = vpop.trf.xlu0
        %v970 = vpop.trf.xlu0
        %v971 = vpop.trf.xlu0
        %v972 = vpop.trf.xlu0
        %v973 = vpop.trf.xlu0
        %v974 = vpop.trf.xlu0
        %v975 = vpop.trf.xlu0
        %v976 = vpop.trf.xlu0
        %v977 = vpop.trf.xlu0
        %v978 = vpop.trf.xlu0
        %v979 = vpop.trf.xlu0
        %v980 = vpop.trf.xlu0
        %v981 = vrot.slane %v549, 4
        %v982 = vsel %vm357, %v981, %v485
        %v983 = vrot.slane %v485, 4
        %v984 = vsel %vm357, %v549, %v983
        %v986 = vunpack.c.l.s4 1983009808
        %v987 = vunpack.c.0.s8 %v986
        %v988 = vperm.slane %v982, %v987
        %v990 = vunpack.c.l.s4 1983009808
        %v991 = vunpack.c.0.s8 %v990
        %v992 = vperm.slane %v984, %v991
        %v993 = vrot.slane %v581, 4
        %v994 = vsel %vm357, %v993, %v517
        %v995 = vrot.slane %v517, 4
        %v996 = vsel %vm357, %v581, %v995
        %v998 = vunpack.c.l.s4 1983009808
        %v999 = vunpack.c.0.s8 %v998
        %v1000 = vperm.slane %v994, %v999
        %v1002 = vunpack.c.l.s4 1983009808
        %v1003 = vunpack.c.0.s8 %v1002
        %v1004 = vperm.slane %v996, %v1003
        %v1005 = vrot.slane %v677, 4
        %v1006 = vsel %vm357, %v1005, %v613
        %v1007 = vrot.slane %v613, 4
        %v1008 = vsel %vm357, %v677, %v1007
        %v1010 = vunpack.c.l.s4 1983009808
        %v1011 = vunpack.c.0.s8 %v1010
        %v1012 = vperm.slane %v1006, %v1011
        %v1014 = vunpack.c.l.s4 1983009808
        %v1015 = vunpack.c.0.s8 %v1014
        %v1016 = vperm.slane %v1008, %v1015
        %v1017 = vrot.slane %v709, 4
        %v1018 = vsel %vm357, %v1017, %v645
        %v1019 = vrot.slane %v645, 4
        %v1020 = vsel %vm357, %v709, %v1019
        %v1022 = vunpack.c.l.s4 1983009808
        %v1023 = vunpack.c.0.s8 %v1022
        %v1024 = vperm.slane %v1018, %v1023
        %v1026 = vunpack.c.l.s4 1983009808
        %v1027 = vunpack.c.0.s8 %v1026
        %v1028 = vperm.slane %v1020, %v1027
        %v1029 = vrot.slane %v1000, 4
        %v1030 = vsel %vm357, %v1029, %v988
        %v1031 = vrot.slane %v988, 4
        %v1032 = vsel %vm357, %v1000, %v1031
        %v1034 = vunpack.c.l.s4 1934713408
        %v1035 = vunpack.c.0.s8 %v1034
        %v1036 = vperm.slane %v1030, %v1035
        %v1038 = vunpack.c.l.s4 1934713408
        %v1039 = vunpack.c.0.s8 %v1038
        %v1040 = vperm.slane %v1032, %v1039
        %v1041 = vrot.slane %v1004, 4
        %v1042 = vsel %vm357, %v1041, %v992
        %v1043 = vrot.slane %v992, 4
        %v1044 = vsel %vm357, %v1004, %v1043
        %v1046 = vunpack.c.l.s4 1934713408
        %v1047 = vunpack.c.0.s8 %v1046
        %v1048 = vperm.slane %v1042, %v1047
        %v1050 = vunpack.c.l.s4 1934713408
        %v1051 = vunpack.c.0.s8 %v1050
        %v1052 = vperm.slane %v1044, %v1051
        %v1053 = vrot.slane %v1024, 4
        %v1054 = vsel %vm357, %v1053, %v1012
        %v1055 = vrot.slane %v1012, 4
        %v1056 = vsel %vm357, %v1024, %v1055
        %v1058 = vunpack.c.l.s4 1934713408
        %v1059 = vunpack.c.0.s8 %v1058
        %v1060 = vperm.slane %v1054, %v1059
        %v1062 = vunpack.c.l.s4 1934713408
        %v1063 = vunpack.c.0.s8 %v1062
        %v1064 = vperm.slane %v1056, %v1063
        %v1065 = vrot.slane %v1028, 4
        %v1066 = vsel %vm357, %v1065, %v1016
        %v1067 = vrot.slane %v1016, 4
        %v1068 = vsel %vm357, %v1028, %v1067
        %v1070 = vunpack.c.l.s4 1934713408
        %v1071 = vunpack.c.0.s8 %v1070
        %v1072 = vperm.slane %v1066, %v1071
        %v1074 = vunpack.c.l.s4 1934713408
        %v1075 = vunpack.c.0.s8 %v1074
        %v1076 = vperm.slane %v1068, %v1075
        %v1077 = vrot.slane %v1060, 4
        %v1078 = vsel %vm357, %v1077, %v1036
        %v1079 = vrot.slane %v1036, 4
        %v1080 = vsel %vm357, %v1060, %v1079
        %v1081 = vrot.slane %v1064, 4
        %v1082 = vsel %vm357, %v1081, %v1040
        %v1083 = vrot.slane %v1040, 4
        %v1084 = vsel %vm357, %v1064, %v1083
        %v1085 = vrot.slane %v1072, 4
        %v1086 = vsel %vm357, %v1085, %v1048
        %v1087 = vrot.slane %v1048, 4
        %v1088 = vsel %vm357, %v1072, %v1087
        %v1089 = vrot.slane %v1076, 4
        %v1090 = vsel %vm357, %v1089, %v1052
        %v1091 = vrot.slane %v1052, 4
        %v1092 = vsel %vm357, %v1076, %v1091
        %v1093 = vrot.slane %v805, 4
        %v1094 = vsel %vm357, %v1093, %v741
        %v1095 = vrot.slane %v741, 4
        %v1096 = vsel %vm357, %v805, %v1095
        %v1098 = vunpack.c.l.s4 1983009808
        %v1099 = vunpack.c.0.s8 %v1098
        %v1100 = vperm.slane %v1094, %v1099
        %v1102 = vunpack.c.l.s4 1983009808
        %v1103 = vunpack.c.0.s8 %v1102
        %v1104 = vperm.slane %v1096, %v1103
        %v1105 = vrot.slane %v837, 4
        %v1106 = vsel %vm357, %v1105, %v773
        %v1107 = vrot.slane %v773, 4
        %v1108 = vsel %vm357, %v837, %v1107
        %v1110 = vunpack.c.l.s4 1983009808
        %v1111 = vunpack.c.0.s8 %v1110
        %v1112 = vperm.slane %v1106, %v1111
        %v1114 = vunpack.c.l.s4 1983009808
        %v1115 = vunpack.c.0.s8 %v1114
        %v1116 = vperm.slane %v1108, %v1115
        %v1117 = vrot.slane %v933, 4
        %v1118 = vsel %vm357, %v1117, %v869
        %v1119 = vrot.slane %v869, 4
        %v1120 = vsel %vm357, %v933, %v1119
        %v1122 = vunpack.c.l.s4 1983009808
        %v1123 = vunpack.c.0.s8 %v1122
        %v1124 = vperm.slane %v1118, %v1123
        %v1126 = vunpack.c.l.s4 1983009808
        %v1127 = vunpack.c.0.s8 %v1126
        %v1128 = vperm.slane %v1120, %v1127
        %v1129 = vrot.slane %v965, 4
        %v1130 = vsel %vm357, %v1129, %v901
        %v1131 = vrot.slane %v901, 4
        %v1132 = vsel %vm357, %v965, %v1131
        %v1134 = vunpack.c.l.s4 1983009808
        %v1135 = vunpack.c.0.s8 %v1134
        %v1136 = vperm.slane %v1130, %v1135
        %v1138 = vunpack.c.l.s4 1983009808
        %v1139 = vunpack.c.0.s8 %v1138
        %v1140 = vperm.slane %v1132, %v1139
        %v1141 = vrot.slane %v1112, 4
        %v1142 = vsel %vm357, %v1141, %v1100
        %v1143 = vrot.slane %v1100, 4
        %v1144 = vsel %vm357, %v1112, %v1143
        %v1146 = vunpack.c.l.s4 1934713408
        %v1147 = vunpack.c.0.s8 %v1146
        %v1148 = vperm.slane %v1142, %v1147
        %v1150 = vunpack.c.l.s4 1934713408
        %v1151 = vunpack.c.0.s8 %v1150
        %v1152 = vperm.slane %v1144, %v1151
        %v1153 = vrot.slane %v1116, 4
        %v1154 = vsel %vm357, %v1153, %v1104
        %v1155 = vrot.slane %v1104, 4
        %v1156 = vsel %vm357, %v1116, %v1155
        %v1158 = vunpack.c.l.s4 1934713408
        %v1159 = vunpack.c.0.s8 %v1158
        %v1160 = vperm.slane %v1154, %v1159
        %v1162 = vunpack.c.l.s4 1934713408
        %v1163 = vunpack.c.0.s8 %v1162
        %v1164 = vperm.slane %v1156, %v1163
        %v1165 = vrot.slane %v1136, 4
        %v1166 = vsel %vm357, %v1165, %v1124
        %v1167 = vrot.slane %v1124, 4
        %v1168 = vsel %vm357, %v1136, %v1167
        %v1170 = vunpack.c.l.s4 1934713408
        %v1171 = vunpack.c.0.s8 %v1170
        %v1172 = vperm.slane %v1166, %v1171
        %v1174 = vunpack.c.l.s4 1934713408
        %v1175 = vunpack.c.0.s8 %v1174
        %v1176 = vperm.slane %v1168, %v1175
        %v1177 = vrot.slane %v1140, 4
        %v1178 = vsel %vm357, %v1177, %v1128
        %v1179 = vrot.slane %v1128, 4
        %v1180 = vsel %vm357, %v1140, %v1179
        %v1182 = vunpack.c.l.s4 1934713408
        %v1183 = vunpack.c.0.s8 %v1182
        %v1184 = vperm.slane %v1178, %v1183
        %v1186 = vunpack.c.l.s4 1934713408
        %v1187 = vunpack.c.0.s8 %v1186
        %v1188 = vperm.slane %v1180, %v1187
        %v1189 = vrot.slane %v1172, 4
        %v1190 = vsel %vm357, %v1189, %v1148
        %v1191 = vrot.slane %v1148, 4
        %v1192 = vsel %vm357, %v1172, %v1191
        %v1193 = vrot.slane %v1176, 4
        %v1194 = vsel %vm357, %v1193, %v1152
        %v1195 = vrot.slane %v1152, 4
        %v1196 = vsel %vm357, %v1176, %v1195
        %v1197 = vrot.slane %v1184, 4
        %v1198 = vsel %vm357, %v1197, %v1160
        %v1199 = vrot.slane %v1160, 4
        %v1200 = vsel %vm357, %v1184, %v1199
        %v1201 = vrot.slane %v1188, 4
        %v1202 = vsel %vm357, %v1201, %v1164
        %v1203 = vrot.slane %v1164, 4
        %v1204 = vsel %vm357, %v1188, %v1203
        %v1205 = vrot.slane %v550, 4
        %v1206 = vsel %vm357, %v1205, %v486
        %v1207 = vrot.slane %v486, 4
        %v1208 = vsel %vm357, %v550, %v1207
        %v1210 = vunpack.c.l.s4 1983009808
        %v1211 = vunpack.c.0.s8 %v1210
        %v1212 = vperm.slane %v1206, %v1211
        %v1214 = vunpack.c.l.s4 1983009808
        %v1215 = vunpack.c.0.s8 %v1214
        %v1216 = vperm.slane %v1208, %v1215
        %v1217 = vrot.slane %v582, 4
        %v1218 = vsel %vm357, %v1217, %v518
        %v1219 = vrot.slane %v518, 4
        %v1220 = vsel %vm357, %v582, %v1219
        %v1222 = vunpack.c.l.s4 1983009808
        %v1223 = vunpack.c.0.s8 %v1222
        %v1224 = vperm.slane %v1218, %v1223
        %v1226 = vunpack.c.l.s4 1983009808
        %v1227 = vunpack.c.0.s8 %v1226
        %v1228 = vperm.slane %v1220, %v1227
        %v1229 = vrot.slane %v678, 4
        %v1230 = vsel %vm357, %v1229, %v614
        %v1231 = vrot.slane %v614, 4
        %v1232 = vsel %vm357, %v678, %v1231
        %v1234 = vunpack.c.l.s4 1983009808
        %v1235 = vunpack.c.0.s8 %v1234
        %v1236 = vperm.slane %v1230, %v1235
        %v1238 = vunpack.c.l.s4 1983009808
        %v1239 = vunpack.c.0.s8 %v1238
        %v1240 = vperm.slane %v1232, %v1239
        %v1241 = vrot.slane %v710, 4
        %v1242 = vsel %vm357, %v1241, %v646
        %v1243 = vrot.slane %v646, 4
        %v1244 = vsel %vm357, %v710, %v1243
        %v1246 = vunpack.c.l.s4 1983009808
        %v1247 = vunpack.c.0.s8 %v1246
        %v1248 = vperm.slane %v1242, %v1247
        %v1250 = vunpack.c.l.s4 1983009808
        %v1251 = vunpack.c.0.s8 %v1250
        %v1252 = vperm.slane %v1244, %v1251
        %v1253 = vrot.slane %v1224, 4
        %v1254 = vsel %vm357, %v1253, %v1212
        %v1255 = vrot.slane %v1212, 4
        %v1256 = vsel %vm357, %v1224, %v1255
        %v1258 = vunpack.c.l.s4 1934713408
        %v1259 = vunpack.c.0.s8 %v1258
        %v1260 = vperm.slane %v1254, %v1259
        %v1262 = vunpack.c.l.s4 1934713408
        %v1263 = vunpack.c.0.s8 %v1262
        %v1264 = vperm.slane %v1256, %v1263
        %v1265 = vrot.slane %v1228, 4
        %v1266 = vsel %vm357, %v1265, %v1216
        %v1267 = vrot.slane %v1216, 4
        %v1268 = vsel %vm357, %v1228, %v1267
        %v1270 = vunpack.c.l.s4 1934713408
        %v1271 = vunpack.c.0.s8 %v1270
        %v1272 = vperm.slane %v1266, %v1271
        %v1274 = vunpack.c.l.s4 1934713408
        %v1275 = vunpack.c.0.s8 %v1274
        %v1276 = vperm.slane %v1268, %v1275
        %v1277 = vrot.slane %v1248, 4
        %v1278 = vsel %vm357, %v1277, %v1236
        %v1279 = vrot.slane %v1236, 4
        %v1280 = vsel %vm357, %v1248, %v1279
        %v1282 = vunpack.c.l.s4 1934713408
        %v1283 = vunpack.c.0.s8 %v1282
        %v1284 = vperm.slane %v1278, %v1283
        %v1286 = vunpack.c.l.s4 1934713408
        %v1287 = vunpack.c.0.s8 %v1286
        %v1288 = vperm.slane %v1280, %v1287
        %v1289 = vrot.slane %v1252, 4
        %v1290 = vsel %vm357, %v1289, %v1240
        %v1291 = vrot.slane %v1240, 4
        %v1292 = vsel %vm357, %v1252, %v1291
        %v1294 = vunpack.c.l.s4 1934713408
        %v1295 = vunpack.c.0.s8 %v1294
        %v1296 = vperm.slane %v1290, %v1295
        %v1298 = vunpack.c.l.s4 1934713408
        %v1299 = vunpack.c.0.s8 %v1298
        %v1300 = vperm.slane %v1292, %v1299
        %v1301 = vrot.slane %v1284, 4
        %v1302 = vsel %vm357, %v1301, %v1260
        %v1303 = vrot.slane %v1260, 4
        %v1304 = vsel %vm357, %v1284, %v1303
        %v1305 = vrot.slane %v1288, 4
        %v1306 = vsel %vm357, %v1305, %v1264
        %v1307 = vrot.slane %v1264, 4
        %v1308 = vsel %vm357, %v1288, %v1307
        %v1309 = vrot.slane %v1296, 4
        %v1310 = vsel %vm357, %v1309, %v1272
        %v1311 = vrot.slane %v1272, 4
        %v1312 = vsel %vm357, %v1296, %v1311
        %v1313 = vrot.slane %v1300, 4
        %v1314 = vsel %vm357, %v1313, %v1276
        %v1315 = vrot.slane %v1276, 4
        %v1316 = vsel %vm357, %v1300, %v1315
        %v1317 = vrot.slane %v806, 4
        %v1318 = vsel %vm357, %v1317, %v742
        %v1319 = vrot.slane %v742, 4
        %v1320 = vsel %vm357, %v806, %v1319
        %v1322 = vunpack.c.l.s4 1983009808
        %v1323 = vunpack.c.0.s8 %v1322
        %v1324 = vperm.slane %v1318, %v1323
        %v1326 = vunpack.c.l.s4 1983009808
        %v1327 = vunpack.c.0.s8 %v1326
        %v1328 = vperm.slane %v1320, %v1327
        %v1329 = vrot.slane %v838, 4
        %v1330 = vsel %vm357, %v1329, %v774
        %v1331 = vrot.slane %v774, 4
        %v1332 = vsel %vm357, %v838, %v1331
        %v1334 = vunpack.c.l.s4 1983009808
        %v1335 = vunpack.c.0.s8 %v1334
        %v1336 = vperm.slane %v1330, %v1335
        %v1338 = vunpack.c.l.s4 1983009808
        %v1339 = vunpack.c.0.s8 %v1338
        %v1340 = vperm.slane %v1332, %v1339
        %v1341 = vrot.slane %v934, 4
        %v1342 = vsel %vm357, %v1341, %v870
        %v1343 = vrot.slane %v870, 4
        %v1344 = vsel %vm357, %v934, %v1343
        %v1346 = vunpack.c.l.s4 1983009808
        %v1347 = vunpack.c.0.s8 %v1346
        %v1348 = vperm.slane %v1342, %v1347
        %v1350 = vunpack.c.l.s4 1983009808
        %v1351 = vunpack.c.0.s8 %v1350
        %v1352 = vperm.slane %v1344, %v1351
        %v1353 = vrot.slane %v966, 4
        %v1354 = vsel %vm357, %v1353, %v902
        %v1355 = vrot.slane %v902, 4
        %v1356 = vsel %vm357, %v966, %v1355
        %v1358 = vunpack.c.l.s4 1983009808
        %v1359 = vunpack.c.0.s8 %v1358
        %v1360 = vperm.slane %v1354, %v1359
        %v1362 = vunpack.c.l.s4 1983009808
        %v1363 = vunpack.c.0.s8 %v1362
        %v1364 = vperm.slane %v1356, %v1363
        %v1365 = vrot.slane %v1336, 4
        %v1366 = vsel %vm357, %v1365, %v1324
        %v1367 = vrot.slane %v1324, 4
        %v1368 = vsel %vm357, %v1336, %v1367
        %v1370 = vunpack.c.l.s4 1934713408
        %v1371 = vunpack.c.0.s8 %v1370
        %v1372 = vperm.slane %v1366, %v1371
        %v1374 = vunpack.c.l.s4 1934713408
        %v1375 = vunpack.c.0.s8 %v1374
        %v1376 = vperm.slane %v1368, %v1375
        %v1377 = vrot.slane %v1340, 4
        %v1378 = vsel %vm357, %v1377, %v1328
        %v1379 = vrot.slane %v1328, 4
        %v1380 = vsel %vm357, %v1340, %v1379
        %v1382 = vunpack.c.l.s4 1934713408
        %v1383 = vunpack.c.0.s8 %v1382
        %v1384 = vperm.slane %v1378, %v1383
        %v1386 = vunpack.c.l.s4 1934713408
        %v1387 = vunpack.c.0.s8 %v1386
        %v1388 = vperm.slane %v1380, %v1387
        %v1389 = vrot.slane %v1360, 4
        %v1390 = vsel %vm357, %v1389, %v1348
        %v1391 = vrot.slane %v1348, 4
        %v1392 = vsel %vm357, %v1360, %v1391
        %v1394 = vunpack.c.l.s4 1934713408
        %v1395 = vunpack.c.0.s8 %v1394
        %v1396 = vperm.slane %v1390, %v1395
        %v1398 = vunpack.c.l.s4 1934713408
        %v1399 = vunpack.c.0.s8 %v1398
        %v1400 = vperm.slane %v1392, %v1399
        %v1401 = vrot.slane %v1364, 4
        %v1402 = vsel %vm357, %v1401, %v1352
        %v1403 = vrot.slane %v1352, 4
        %v1404 = vsel %vm357, %v1364, %v1403
        %v1406 = vunpack.c.l.s4 1934713408
        %v1407 = vunpack.c.0.s8 %v1406
        %v1408 = vperm.slane %v1402, %v1407
        %v1410 = vunpack.c.l.s4 1934713408
        %v1411 = vunpack.c.0.s8 %v1410
        %v1412 = vperm.slane %v1404, %v1411
        %v1413 = vrot.slane %v1396, 4
        %v1414 = vsel %vm357, %v1413, %v1372
        %v1415 = vrot.slane %v1372, 4
        %v1416 = vsel %vm357, %v1396, %v1415
        %v1417 = vrot.slane %v1400, 4
        %v1418 = vsel %vm357, %v1417, %v1376
        %v1419 = vrot.slane %v1376, 4
        %v1420 = vsel %vm357, %v1400, %v1419
        %v1421 = vrot.slane %v1408, 4
        %v1422 = vsel %vm357, %v1421, %v1384
        %v1423 = vrot.slane %v1384, 4
        %v1424 = vsel %vm357, %v1408, %v1423
        %v1425 = vrot.slane %v1412, 4
        %v1426 = vsel %vm357, %v1425, %v1388
        %v1427 = vrot.slane %v1388, 4
        %v1428 = vsel %vm357, %v1412, %v1427
        %v1429 = vrot.slane %v224, 4
        %v1430 = vsel %vm357, %v1429, %v220
        %v1431 = vrot.slane %v220, 4
        %v1432 = vsel %vm357, %v224, %v1431
        %v1434 = vunpack.c.l.s4 1983009808
        %v1435 = vunpack.c.0.s8 %v1434
        %v1436 = vperm.slane %v1430, %v1435
        %v1438 = vunpack.c.l.s4 1983009808
        %v1439 = vunpack.c.0.s8 %v1438
        %v1440 = vperm.slane %v1432, %v1439
        %v1441 = vrot.slane %v226, 4
        %v1442 = vsel %vm357, %v1441, %v222
        %v1443 = vrot.slane %v222, 4
        %v1444 = vsel %vm357, %v226, %v1443
        %v1446 = vunpack.c.l.s4 1983009808
        %v1447 = vunpack.c.0.s8 %v1446
        %v1448 = vperm.slane %v1442, %v1447
        %v1450 = vunpack.c.l.s4 1983009808
        %v1451 = vunpack.c.0.s8 %v1450
        %v1452 = vperm.slane %v1444, %v1451
        %v1453 = vrot.slane %v1448, 4
        %v1454 = vsel %vm357, %v1453, %v1436
        %v1455 = vrot.slane %v1436, 4
        %v1456 = vsel %vm357, %v1448, %v1455
        %v1458 = vunpack.c.l.s4 1934713408
        %v1459 = vunpack.c.0.s8 %v1458
        %v1460 = vperm.slane %v1454, %v1459
        %v1462 = vunpack.c.l.s4 1934713408
        %v1463 = vunpack.c.0.s8 %v1462
        %v1464 = vperm.slane %v1456, %v1463
        %v1465 = vrot.slane %v1452, 4
        %v1466 = vsel %vm357, %v1465, %v1440
        %v1467 = vrot.slane %v1440, 4
        %v1468 = vsel %vm357, %v1452, %v1467
        %v1470 = vunpack.c.l.s4 1934713408
        %v1471 = vunpack.c.0.s8 %v1470
        %v1472 = vperm.slane %v1466, %v1471
        %v1474 = vunpack.c.l.s4 1934713408
        %v1475 = vunpack.c.0.s8 %v1474
        %v1476 = vperm.slane %v1468, %v1475
        %v1477 = vrot.slane %v1460, 4
        %v1478 = vsel %vm357, 0.0, %v1477
        %v1479 = vrot.slane %v1464, 4
        %v1480 = vsel %vm357, 0.0, %v1479
        %v1481 = vrot.slane %v1472, 4
        %v1482 = vsel %vm357, 0.0, %v1481
        %v1483 = vrot.slane %v1476, 4
        %v1484 = vsel %vm357, 0.0, %v1483
        %v1485 = vrot.slane %v225, 4
        %v1486 = vsel %vm357, %v1485, %v221
        %v1487 = vrot.slane %v221, 4
        %v1488 = vsel %vm357, %v225, %v1487
        %v1490 = vunpack.c.l.s4 1983009808
        %v1491 = vunpack.c.0.s8 %v1490
        %v1492 = vperm.slane %v1486, %v1491
        %v1494 = vunpack.c.l.s4 1983009808
        %v1495 = vunpack.c.0.s8 %v1494
        %v1496 = vperm.slane %v1488, %v1495
        %v1497 = vrot.slane %v227, 4
        %v1498 = vsel %vm357, %v1497, %v223
        %v1499 = vrot.slane %v223, 4
        %v1500 = vsel %vm357, %v227, %v1499
        %v1502 = vunpack.c.l.s4 1983009808
        %v1503 = vunpack.c.0.s8 %v1502
        %v1504 = vperm.slane %v1498, %v1503
        %v1506 = vunpack.c.l.s4 1983009808
        %v1507 = vunpack.c.0.s8 %v1506
        %v1508 = vperm.slane %v1500, %v1507
        %v1509 = vrot.slane %v1504, 4
        %v1510 = vsel %vm357, %v1509, %v1492
        %v1511 = vrot.slane %v1492, 4
        %v1512 = vsel %vm357, %v1504, %v1511
        %v1514 = vunpack.c.l.s4 1934713408
        %v1515 = vunpack.c.0.s8 %v1514
        %v1516 = vperm.slane %v1510, %v1515
        %v1518 = vunpack.c.l.s4 1934713408
        %v1519 = vunpack.c.0.s8 %v1518
        %v1520 = vperm.slane %v1512, %v1519
        %v1521 = vrot.slane %v1508, 4
        %v1522 = vsel %vm357, %v1521, %v1496
        %v1523 = vrot.slane %v1496, 4
        %v1524 = vsel %vm357, %v1508, %v1523
        %v1526 = vunpack.c.l.s4 1934713408
        %v1527 = vunpack.c.0.s8 %v1526
        %v1528 = vperm.slane %v1522, %v1527
        %v1530 = vunpack.c.l.s4 1934713408
        %v1531 = vunpack.c.0.s8 %v1530
        %v1532 = vperm.slane %v1524, %v1531
        %v1533 = vrot.slane %v1516, 4
        %v1534 = vsel %vm357, 0.0, %v1533
        %v1535 = vrot.slane %v1520, 4
        %v1536 = vsel %vm357, 0.0, %v1535
        %v1537 = vrot.slane %v1528, 4
        %v1538 = vsel %vm357, 0.0, %v1537
        %v1539 = vrot.slane %v1532, 4
        %v1540 = vsel %vm357, 0.0, %v1539
        %vm1541 = vcmask 31744
        %v1543 = vsel %vm1541, %v1078, 0
        %v1546 = vsel %vm1541, %v1190, 0
        %vm1548 = vcmask 1043456
        %v1550 = vsel %vm1548, %v1460, 0
        %1552 = vmatpush.msra.mxu0 0.0
        %1553 = vmatpush.msra.mxu0 0.0
        %1554 = vmatpush.msra.mxu0 0.0
        %1555 = vmatpush.msra.mxu0 0.0
        %1556 = vmatpush.msra.mxu0 0.0
        %1557 = vmatpush.msra.mxu0 0.0
        %1558 = vmatpush.msra.mxu0 0.0
        %1559 = vmatpush.msra.mxu0 0.0
        %1560 = vmatpush.msra.mxu0 0.0
        %1561 = vmatpush.msra.mxu0 0.0
        %1562 = vmatpush.msra.mxu0 0.0
        %1563 = vmatpush.msra.mxu0 0.0
        %1564 = vmatpush.msra.mxu0 0.0
        %1565 = vmatpush.msra.mxu0 0.0
        %1566 = vmatpush.msra.mxu0 0.0
        %v1567 = vand.u32 %v1550, 4294901760
        %1568 = vmatpush.msra.mxu0 %v1567
        %v1569 = vand.u32 %v1543, 4294901760
        %v1570 = vsub.f32 %v1543, %v1569
        %v1571 = vand.u32 %v1570, 4294901760
        %v1572 = vsub.f32 %v1570, %v1571
        %v1573 = vand.u32 %v1572, 4294901760
        %1574 = vmatmul.f32.gmra.mxu0 %v1573
        %v1575 = vpop.f32.mrf.mxu0
        %v1576 = vadd.f32 0.0, %v1575
        %v1577 = vand.u32 %v1546, 4294901760
        %v1578 = vsub.f32 %v1546, %v1577
        %v1579 = vand.u32 %v1578, 4294901760
        %v1580 = vsub.f32 %v1578, %v1579
        %v1581 = vand.u32 %v1580, 4294901760
        %1582 = vmatmul.f32.gmra.mxu0 %v1581
        %v1583 = vpop.f32.mrf.mxu0
        %v1584 = vadd.f32 0.0, %v1583
        %1585 = vdwg.mxu0
        %1586 = vmatpush.msra.mxu0 0.0
        %1587 = vmatpush.msra.mxu0 0.0
        %1588 = vmatpush.msra.mxu0 0.0
        %1589 = vmatpush.msra.mxu0 0.0
        %1590 = vmatpush.msra.mxu0 0.0
        %1591 = vmatpush.msra.mxu0 0.0
        %1592 = vmatpush.msra.mxu0 0.0
        %1593 = vmatpush.msra.mxu0 0.0
        %1594 = vmatpush.msra.mxu0 0.0
        %1595 = vmatpush.msra.mxu0 0.0
        %1596 = vmatpush.msra.mxu0 0.0
        %1597 = vmatpush.msra.mxu0 0.0
        %1598 = vmatpush.msra.mxu0 0.0
        %1599 = vmatpush.msra.mxu0 0.0
        %1600 = vmatpush.msra.mxu0 0.0
        %v1601 = vand.u32 %v1550, 4294901760
        %v1602 = vsub.f32 %v1550, %v1601
        %v1603 = vand.u32 %v1602, 4294901760
        %v1604 = vsub.f32 %v1602, %v1603
        %v1605 = vand.u32 %v1604, 4294901760
        %1606 = vmatpush.msra.mxu0 %v1605
        %v1607 = vand.u32 %v1543, 4294901760
        %1608 = vmatmul.f32.gmra.mxu0 %v1607
        %v1609 = vpop.f32.mrf.mxu0
        %v1610 = vadd.f32 %v1576, %v1609
        %v1611 = vand.u32 %v1546, 4294901760
        %1612 = vmatmul.f32.gmra.mxu0 %v1611
        %v1613 = vpop.f32.mrf.mxu0
        %v1614 = vadd.f32 %v1584, %v1613
        %1615 = vdwg.mxu0
        %1616 = vmatpush.msra.mxu0 0.0
        %1617 = vmatpush.msra.mxu0 0.0
        %1618 = vmatpush.msra.mxu0 0.0
        %1619 = vmatpush.msra.mxu0 0.0
        %1620 = vmatpush.msra.mxu0 0.0
        %1621 = vmatpush.msra.mxu0 0.0
        %1622 = vmatpush.msra.mxu0 0.0
        %1623 = vmatpush.msra.mxu0 0.0
        %1624 = vmatpush.msra.mxu0 0.0
        %1625 = vmatpush.msra.mxu0 0.0
        %1626 = vmatpush.msra.mxu0 0.0
        %1627 = vmatpush.msra.mxu0 0.0
        %1628 = vmatpush.msra.mxu0 0.0
        %1629 = vmatpush.msra.mxu0 0.0
        %1630 = vmatpush.msra.mxu0 0.0
        %v1631 = vand.u32 %v1550, 4294901760
        %v1632 = vsub.f32 %v1550, %v1631
        %1633 = vmatpush.msra.mxu0 %v1632
        %v1634 = vand.u32 %v1543, 4294901760
        %v1635 = vsub.f32 %v1543, %v1634
        %1636 = vmatmul.f32.gmra.mxu0 %v1635
        %v1637 = vpop.f32.mrf.mxu0
        %v1638 = vadd.f32 %v1610, %v1637
        %v1639 = vand.u32 %v1546, 4294901760
        %v1640 = vsub.f32 %v1546, %v1639
        %1641 = vmatmul.f32.gmra.mxu0 %v1640
        %v1642 = vpop.f32.mrf.mxu0
        %v1643 = vadd.f32 %v1614, %v1642
        %1644 = vdwg.mxu0
        %1645 = vmatpush.msra.mxu0 0.0
        %1646 = vmatpush.msra.mxu0 0.0
        %1647 = vmatpush.msra.mxu0 0.0
        %1648 = vmatpush.msra.mxu0 0.0
        %1649 = vmatpush.msra.mxu0 0.0
        %1650 = vmatpush.msra.mxu0 0.0
        %1651 = vmatpush.msra.mxu0 0.0
        %1652 = vmatpush.msra.mxu0 0.0
        %1653 = vmatpush.msra.mxu0 0.0
        %1654 = vmatpush.msra.mxu0 0.0
        %1655 = vmatpush.msra.mxu0 0.0
        %1656 = vmatpush.msra.mxu0 0.0
        %1657 = vmatpush.msra.mxu0 0.0
        %1658 = vmatpush.msra.mxu0 0.0
        %1659 = vmatpush.msra.mxu0 0.0
        %v1660 = vand.u32 %v1550, 4294901760
        %1661 = vmatpush.msra.mxu0 %v1660
        %v1662 = vand.u32 %v1543, 4294901760
        %v1663 = vsub.f32 %v1543, %v1662
        %v1664 = vand.u32 %v1663, 4294901760
        %1665 = vmatmul.f32.gmra.mxu0 %v1664
        %v1666 = vpop.f32.mrf.mxu0
        %v1667 = vadd.f32 %v1638, %v1666
        %v1668 = vand.u32 %v1546, 4294901760
        %v1669 = vsub.f32 %v1546, %v1668
        %v1670 = vand.u32 %v1669, 4294901760
        %1671 = vmatmul.f32.gmra.mxu0 %v1670
        %v1672 = vpop.f32.mrf.mxu0
        %v1673 = vadd.f32 %v1643, %v1672
        %1674 = vdwg.mxu0
        %1675 = vmatpush.msra.mxu0 0.0
        %1676 = vmatpush.msra.mxu0 0.0
        %1677 = vmatpush.msra.mxu0 0.0
        %1678 = vmatpush.msra.mxu0 0.0
        %1679 = vmatpush.msra.mxu0 0.0
        %1680 = vmatpush.msra.mxu0 0.0
        %1681 = vmatpush.msra.mxu0 0.0
        %1682 = vmatpush.msra.mxu0 0.0
        %1683 = vmatpush.msra.mxu0 0.0
        %1684 = vmatpush.msra.mxu0 0.0
        %1685 = vmatpush.msra.mxu0 0.0
        %1686 = vmatpush.msra.mxu0 0.0
        %1687 = vmatpush.msra.mxu0 0.0
        %1688 = vmatpush.msra.mxu0 0.0
        %1689 = vmatpush.msra.mxu0 0.0
        %v1690 = vand.u32 %v1550, 4294901760
        %v1691 = vsub.f32 %v1550, %v1690
        %v1692 = vand.u32 %v1691, 4294901760
        %1693 = vmatpush.msra.mxu0 %v1692
        %v1694 = vand.u32 %v1543, 4294901760
        %1695 = vmatmul.f32.gmra.mxu0 %v1694
        %v1696 = vpop.f32.mrf.mxu0
        %v1697 = vadd.f32 %v1667, %v1696
        %v1698 = vand.u32 %v1546, 4294901760
        %1699 = vmatmul.f32.gmra.mxu0 %v1698
        %v1700 = vpop.f32.mrf.mxu0
        %v1701 = vadd.f32 %v1673, %v1700
        %1702 = vdwg.mxu0
        %1703 = vmatpush.msra.mxu0 0.0
        %1704 = vmatpush.msra.mxu0 0.0
        %1705 = vmatpush.msra.mxu0 0.0
        %1706 = vmatpush.msra.mxu0 0.0
        %1707 = vmatpush.msra.mxu0 0.0
        %1708 = vmatpush.msra.mxu0 0.0
        %1709 = vmatpush.msra.mxu0 0.0
        %1710 = vmatpush.msra.mxu0 0.0
        %1711 = vmatpush.msra.mxu0 0.0
        %1712 = vmatpush.msra.mxu0 0.0
        %1713 = vmatpush.msra.mxu0 0.0
        %1714 = vmatpush.msra.mxu0 0.0
        %1715 = vmatpush.msra.mxu0 0.0
        %1716 = vmatpush.msra.mxu0 0.0
        %1717 = vmatpush.msra.mxu0 0.0
        %v1718 = vand.u32 %v1550, 4294901760
        %1719 = vmatpush.msra.mxu0 %v1718
        %v1720 = vand.u32 %v1543, 4294901760
        %1721 = vmatmul.f32.gmra.mxu0 %v1720
        %v1722 = vpop.f32.mrf.mxu0
        %v1723 = vadd.f32 %v1697, %v1722
        %v1724 = vand.u32 %v1546, 4294901760
        %1725 = vmatmul.f32.gmra.mxu0 %v1724
        %v1726 = vpop.f32.mrf.mxu0
        %v1727 = vadd.f32 %v1701, %v1726
        %1728 = vdwg.mxu0
        %v1730 = vsel %vm1541, %v1080, 0
        %v1733 = vsel %vm1541, %v1192, 0
        %v1736 = vsel %vm1548, %v1478, 0
        %1738 = vmatpush.msra.mxu0 0.0
        %1739 = vmatpush.msra.mxu0 0.0
        %1740 = vmatpush.msra.mxu0 0.0
        %1741 = vmatpush.msra.mxu0 0.0
        %1742 = vmatpush.msra.mxu0 0.0
        %1743 = vmatpush.msra.mxu0 0.0
        %1744 = vmatpush.msra.mxu0 0.0
        %1745 = vmatpush.msra.mxu0 0.0
        %1746 = vmatpush.msra.mxu0 0.0
        %1747 = vmatpush.msra.mxu0 0.0
        %1748 = vmatpush.msra.mxu0 0.0
        %1749 = vmatpush.msra.mxu0 0.0
        %1750 = vmatpush.msra.mxu0 0.0
        %1751 = vmatpush.msra.mxu0 0.0
        %1752 = vmatpush.msra.mxu0 0.0
        %v1753 = vand.u32 %v1736, 4294901760
        %1754 = vmatpush.msra.mxu0 %v1753
        %v1755 = vand.u32 %v1730, 4294901760
        %v1756 = vsub.f32 %v1730, %v1755
        %v1757 = vand.u32 %v1756, 4294901760
        %v1758 = vsub.f32 %v1756, %v1757
        %v1759 = vand.u32 %v1758, 4294901760
        %1760 = vmatmul.f32.gmra.mxu0 %v1759
        %v1761 = vpop.f32.mrf.mxu0
        %v1762 = vadd.f32 0.0, %v1761
        %v1763 = vand.u32 %v1733, 4294901760
        %v1764 = vsub.f32 %v1733, %v1763
        %v1765 = vand.u32 %v1764, 4294901760
        %v1766 = vsub.f32 %v1764, %v1765
        %v1767 = vand.u32 %v1766, 4294901760
        %1768 = vmatmul.f32.gmra.mxu0 %v1767
        %v1769 = vpop.f32.mrf.mxu0
        %v1770 = vadd.f32 0.0, %v1769
        %1771 = vdwg.mxu0
        %1772 = vmatpush.msra.mxu0 0.0
        %1773 = vmatpush.msra.mxu0 0.0
        %1774 = vmatpush.msra.mxu0 0.0
        %1775 = vmatpush.msra.mxu0 0.0
        %1776 = vmatpush.msra.mxu0 0.0
        %1777 = vmatpush.msra.mxu0 0.0
        %1778 = vmatpush.msra.mxu0 0.0
        %1779 = vmatpush.msra.mxu0 0.0
        %1780 = vmatpush.msra.mxu0 0.0
        %1781 = vmatpush.msra.mxu0 0.0
        %1782 = vmatpush.msra.mxu0 0.0
        %1783 = vmatpush.msra.mxu0 0.0
        %1784 = vmatpush.msra.mxu0 0.0
        %1785 = vmatpush.msra.mxu0 0.0
        %1786 = vmatpush.msra.mxu0 0.0
        %v1787 = vand.u32 %v1736, 4294901760
        %v1788 = vsub.f32 %v1736, %v1787
        %v1789 = vand.u32 %v1788, 4294901760
        %v1790 = vsub.f32 %v1788, %v1789
        %v1791 = vand.u32 %v1790, 4294901760
        %1792 = vmatpush.msra.mxu0 %v1791
        %v1793 = vand.u32 %v1730, 4294901760
        %1794 = vmatmul.f32.gmra.mxu0 %v1793
        %v1795 = vpop.f32.mrf.mxu0
        %v1796 = vadd.f32 %v1762, %v1795
        %v1797 = vand.u32 %v1733, 4294901760
        %1798 = vmatmul.f32.gmra.mxu0 %v1797
        %v1799 = vpop.f32.mrf.mxu0
        %v1800 = vadd.f32 %v1770, %v1799
        %1801 = vdwg.mxu0
        %1802 = vmatpush.msra.mxu0 0.0
        %1803 = vmatpush.msra.mxu0 0.0
        %1804 = vmatpush.msra.mxu0 0.0
        %1805 = vmatpush.msra.mxu0 0.0
        %1806 = vmatpush.msra.mxu0 0.0
        %1807 = vmatpush.msra.mxu0 0.0
        %1808 = vmatpush.msra.mxu0 0.0
        %1809 = vmatpush.msra.mxu0 0.0
        %1810 = vmatpush.msra.mxu0 0.0
        %1811 = vmatpush.msra.mxu0 0.0
        %1812 = vmatpush.msra.mxu0 0.0
        %1813 = vmatpush.msra.mxu0 0.0
        %1814 = vmatpush.msra.mxu0 0.0
        %1815 = vmatpush.msra.mxu0 0.0
        %1816 = vmatpush.msra.mxu0 0.0
        %v1817 = vand.u32 %v1736, 4294901760
        %v1818 = vsub.f32 %v1736, %v1817
        %1819 = vmatpush.msra.mxu0 %v1818
        %v1820 = vand.u32 %v1730, 4294901760
        %v1821 = vsub.f32 %v1730, %v1820
        %1822 = vmatmul.f32.gmra.mxu0 %v1821
        %v1823 = vpop.f32.mrf.mxu0
        %v1824 = vadd.f32 %v1796, %v1823
        %v1825 = vand.u32 %v1733, 4294901760
        %v1826 = vsub.f32 %v1733, %v1825
        %1827 = vmatmul.f32.gmra.mxu0 %v1826
        %v1828 = vpop.f32.mrf.mxu0
        %v1829 = vadd.f32 %v1800, %v1828
        %1830 = vdwg.mxu0
        %1831 = vmatpush.msra.mxu0 0.0
        %1832 = vmatpush.msra.mxu0 0.0
        %1833 = vmatpush.msra.mxu0 0.0
        %1834 = vmatpush.msra.mxu0 0.0
        %1835 = vmatpush.msra.mxu0 0.0
        %1836 = vmatpush.msra.mxu0 0.0
        %1837 = vmatpush.msra.mxu0 0.0
        %1838 = vmatpush.msra.mxu0 0.0
        %1839 = vmatpush.msra.mxu0 0.0
        %1840 = vmatpush.msra.mxu0 0.0
        %1841 = vmatpush.msra.mxu0 0.0
        %1842 = vmatpush.msra.mxu0 0.0
        %1843 = vmatpush.msra.mxu0 0.0
        %1844 = vmatpush.msra.mxu0 0.0
        %1845 = vmatpush.msra.mxu0 0.0
        %v1846 = vand.u32 %v1736, 4294901760
        %1847 = vmatpush.msra.mxu0 %v1846
        %v1848 = vand.u32 %v1730, 4294901760
        %v1849 = vsub.f32 %v1730, %v1848
        %v1850 = vand.u32 %v1849, 4294901760
        %1851 = vmatmul.f32.gmra.mxu0 %v1850
        %v1852 = vpop.f32.mrf.mxu0
        %v1853 = vadd.f32 %v1824, %v1852
        %v1854 = vand.u32 %v1733, 4294901760
        %v1855 = vsub.f32 %v1733, %v1854
        %v1856 = vand.u32 %v1855, 4294901760
        %1857 = vmatmul.f32.gmra.mxu0 %v1856
        %v1858 = vpop.f32.mrf.mxu0
        %v1859 = vadd.f32 %v1829, %v1858
        %1860 = vdwg.mxu0
        %1861 = vmatpush.msra.mxu0 0.0
        %1862 = vmatpush.msra.mxu0 0.0
        %1863 = vmatpush.msra.mxu0 0.0
        %1864 = vmatpush.msra.mxu0 0.0
        %1865 = vmatpush.msra.mxu0 0.0
        %1866 = vmatpush.msra.mxu0 0.0
        %1867 = vmatpush.msra.mxu0 0.0
        %1868 = vmatpush.msra.mxu0 0.0
        %1869 = vmatpush.msra.mxu0 0.0
        %1870 = vmatpush.msra.mxu0 0.0
        %1871 = vmatpush.msra.mxu0 0.0
        %1872 = vmatpush.msra.mxu0 0.0
        %1873 = vmatpush.msra.mxu0 0.0
        %1874 = vmatpush.msra.mxu0 0.0
        %1875 = vmatpush.msra.mxu0 0.0
        %v1876 = vand.u32 %v1736, 4294901760
        %v1877 = vsub.f32 %v1736, %v1876
        %v1878 = vand.u32 %v1877, 4294901760
        %1879 = vmatpush.msra.mxu0 %v1878
        %v1880 = vand.u32 %v1730, 4294901760
        %1881 = vmatmul.f32.gmra.mxu0 %v1880
        %v1882 = vpop.f32.mrf.mxu0
        %v1883 = vadd.f32 %v1853, %v1882
        %v1884 = vand.u32 %v1733, 4294901760
        %1885 = vmatmul.f32.gmra.mxu0 %v1884
        %v1886 = vpop.f32.mrf.mxu0
        %v1887 = vadd.f32 %v1859, %v1886
        %1888 = vdwg.mxu0
        %1889 = vmatpush.msra.mxu0 0.0
        %1890 = vmatpush.msra.mxu0 0.0
        %1891 = vmatpush.msra.mxu0 0.0
        %1892 = vmatpush.msra.mxu0 0.0
        %1893 = vmatpush.msra.mxu0 0.0
        %1894 = vmatpush.msra.mxu0 0.0
        %1895 = vmatpush.msra.mxu0 0.0
        %1896 = vmatpush.msra.mxu0 0.0
        %1897 = vmatpush.msra.mxu0 0.0
        %1898 = vmatpush.msra.mxu0 0.0
        %1899 = vmatpush.msra.mxu0 0.0
        %1900 = vmatpush.msra.mxu0 0.0
        %1901 = vmatpush.msra.mxu0 0.0
        %1902 = vmatpush.msra.mxu0 0.0
        %1903 = vmatpush.msra.mxu0 0.0
        %v1904 = vand.u32 %v1736, 4294901760
        %1905 = vmatpush.msra.mxu0 %v1904
        %v1906 = vand.u32 %v1730, 4294901760
        %1907 = vmatmul.f32.gmra.mxu0 %v1906
        %v1908 = vpop.f32.mrf.mxu0
        %v1909 = vadd.f32 %v1883, %v1908
        %v1910 = vand.u32 %v1733, 4294901760
        %1911 = vmatmul.f32.gmra.mxu0 %v1910
        %v1912 = vpop.f32.mrf.mxu0
        %v1913 = vadd.f32 %v1887, %v1912
        %1914 = vdwg.mxu0
        %v1916 = vsel %vm1541, %v1082, 0
        %v1919 = vsel %vm1541, %v1194, 0
        %v1922 = vsel %vm1548, %v1464, 0
        %1924 = vmatpush.msra.mxu0 0.0
        %1925 = vmatpush.msra.mxu0 0.0
        %1926 = vmatpush.msra.mxu0 0.0
        %1927 = vmatpush.msra.mxu0 0.0
        %1928 = vmatpush.msra.mxu0 0.0
        %1929 = vmatpush.msra.mxu0 0.0
        %1930 = vmatpush.msra.mxu0 0.0
        %1931 = vmatpush.msra.mxu0 0.0
        %1932 = vmatpush.msra.mxu0 0.0
        %1933 = vmatpush.msra.mxu0 0.0
        %1934 = vmatpush.msra.mxu0 0.0
        %1935 = vmatpush.msra.mxu0 0.0
        %1936 = vmatpush.msra.mxu0 0.0
        %1937 = vmatpush.msra.mxu0 0.0
        %1938 = vmatpush.msra.mxu0 0.0
        %v1939 = vand.u32 %v1922, 4294901760
        %1940 = vmatpush.msra.mxu0 %v1939
        %v1941 = vand.u32 %v1916, 4294901760
        %v1942 = vsub.f32 %v1916, %v1941
        %v1943 = vand.u32 %v1942, 4294901760
        %v1944 = vsub.f32 %v1942, %v1943
        %v1945 = vand.u32 %v1944, 4294901760
        %1946 = vmatmul.f32.gmra.mxu0 %v1945
        %v1947 = vpop.f32.mrf.mxu0
        %v1948 = vadd.f32 0.0, %v1947
        %v1949 = vand.u32 %v1919, 4294901760
        %v1950 = vsub.f32 %v1919, %v1949
        %v1951 = vand.u32 %v1950, 4294901760
        %v1952 = vsub.f32 %v1950, %v1951
        %v1953 = vand.u32 %v1952, 4294901760
        %1954 = vmatmul.f32.gmra.mxu0 %v1953
        %v1955 = vpop.f32.mrf.mxu0
        %v1956 = vadd.f32 0.0, %v1955
        %1957 = vdwg.mxu0
        %1958 = vmatpush.msra.mxu0 0.0
        %1959 = vmatpush.msra.mxu0 0.0
        %1960 = vmatpush.msra.mxu0 0.0
        %1961 = vmatpush.msra.mxu0 0.0
        %1962 = vmatpush.msra.mxu0 0.0
        %1963 = vmatpush.msra.mxu0 0.0
        %1964 = vmatpush.msra.mxu0 0.0
        %1965 = vmatpush.msra.mxu0 0.0
        %1966 = vmatpush.msra.mxu0 0.0
        %1967 = vmatpush.msra.mxu0 0.0
        %1968 = vmatpush.msra.mxu0 0.0
        %1969 = vmatpush.msra.mxu0 0.0
        %1970 = vmatpush.msra.mxu0 0.0
        %1971 = vmatpush.msra.mxu0 0.0
        %1972 = vmatpush.msra.mxu0 0.0
        %v1973 = vand.u32 %v1922, 4294901760
        %v1974 = vsub.f32 %v1922, %v1973
        %v1975 = vand.u32 %v1974, 4294901760
        %v1976 = vsub.f32 %v1974, %v1975
        %v1977 = vand.u32 %v1976, 4294901760
        %1978 = vmatpush.msra.mxu0 %v1977
        %v1979 = vand.u32 %v1916, 4294901760
        %1980 = vmatmul.f32.gmra.mxu0 %v1979
        %v1981 = vpop.f32.mrf.mxu0
        %v1982 = vadd.f32 %v1948, %v1981
        %v1983 = vand.u32 %v1919, 4294901760
        %1984 = vmatmul.f32.gmra.mxu0 %v1983
        %v1985 = vpop.f32.mrf.mxu0
        %v1986 = vadd.f32 %v1956, %v1985
        %1987 = vdwg.mxu0
        %1988 = vmatpush.msra.mxu0 0.0
        %1989 = vmatpush.msra.mxu0 0.0
        %1990 = vmatpush.msra.mxu0 0.0
        %1991 = vmatpush.msra.mxu0 0.0
        %1992 = vmatpush.msra.mxu0 0.0
        %1993 = vmatpush.msra.mxu0 0.0
        %1994 = vmatpush.msra.mxu0 0.0
        %1995 = vmatpush.msra.mxu0 0.0
        %1996 = vmatpush.msra.mxu0 0.0
        %1997 = vmatpush.msra.mxu0 0.0
        %1998 = vmatpush.msra.mxu0 0.0
        %1999 = vmatpush.msra.mxu0 0.0
        %2000 = vmatpush.msra.mxu0 0.0
        %2001 = vmatpush.msra.mxu0 0.0
        %2002 = vmatpush.msra.mxu0 0.0
        %v2003 = vand.u32 %v1922, 4294901760
        %v2004 = vsub.f32 %v1922, %v2003
        %2005 = vmatpush.msra.mxu0 %v2004
        %v2006 = vand.u32 %v1916, 4294901760
        %v2007 = vsub.f32 %v1916, %v2006
        %2008 = vmatmul.f32.gmra.mxu0 %v2007
        %v2009 = vpop.f32.mrf.mxu0
        %v2010 = vadd.f32 %v1982, %v2009
        %v2011 = vand.u32 %v1919, 4294901760
        %v2012 = vsub.f32 %v1919, %v2011
        %2013 = vmatmul.f32.gmra.mxu0 %v2012
        %v2014 = vpop.f32.mrf.mxu0
        %v2015 = vadd.f32 %v1986, %v2014
        %2016 = vdwg.mxu0
        %2017 = vmatpush.msra.mxu0 0.0
        %2018 = vmatpush.msra.mxu0 0.0
        %2019 = vmatpush.msra.mxu0 0.0
        %2020 = vmatpush.msra.mxu0 0.0
        %2021 = vmatpush.msra.mxu0 0.0
        %2022 = vmatpush.msra.mxu0 0.0
        %2023 = vmatpush.msra.mxu0 0.0
        %2024 = vmatpush.msra.mxu0 0.0
        %2025 = vmatpush.msra.mxu0 0.0
        %2026 = vmatpush.msra.mxu0 0.0
        %2027 = vmatpush.msra.mxu0 0.0
        %2028 = vmatpush.msra.mxu0 0.0
        %2029 = vmatpush.msra.mxu0 0.0
        %2030 = vmatpush.msra.mxu0 0.0
        %2031 = vmatpush.msra.mxu0 0.0
        %v2032 = vand.u32 %v1922, 4294901760
        %2033 = vmatpush.msra.mxu0 %v2032
        %v2034 = vand.u32 %v1916, 4294901760
        %v2035 = vsub.f32 %v1916, %v2034
        %v2036 = vand.u32 %v2035, 4294901760
        %2037 = vmatmul.f32.gmra.mxu0 %v2036
        %v2038 = vpop.f32.mrf.mxu0
        %v2039 = vadd.f32 %v2010, %v2038
        %v2040 = vand.u32 %v1919, 4294901760
        %v2041 = vsub.f32 %v1919, %v2040
        %v2042 = vand.u32 %v2041, 4294901760
        %2043 = vmatmul.f32.gmra.mxu0 %v2042
        %v2044 = vpop.f32.mrf.mxu0
        %v2045 = vadd.f32 %v2015, %v2044
        %2046 = vdwg.mxu0
        %2047 = vmatpush.msra.mxu0 0.0
        %2048 = vmatpush.msra.mxu0 0.0
        %2049 = vmatpush.msra.mxu0 0.0
        %2050 = vmatpush.msra.mxu0 0.0
        %2051 = vmatpush.msra.mxu0 0.0
        %2052 = vmatpush.msra.mxu0 0.0
        %2053 = vmatpush.msra.mxu0 0.0
        %2054 = vmatpush.msra.mxu0 0.0
        %2055 = vmatpush.msra.mxu0 0.0
        %2056 = vmatpush.msra.mxu0 0.0
        %2057 = vmatpush.msra.mxu0 0.0
        %2058 = vmatpush.msra.mxu0 0.0
        %2059 = vmatpush.msra.mxu0 0.0
        %2060 = vmatpush.msra.mxu0 0.0
        %2061 = vmatpush.msra.mxu0 0.0
        %v2062 = vand.u32 %v1922, 4294901760
        %v2063 = vsub.f32 %v1922, %v2062
        %v2064 = vand.u32 %v2063, 4294901760
        %2065 = vmatpush.msra.mxu0 %v2064
        %v2066 = vand.u32 %v1916, 4294901760
        %2067 = vmatmul.f32.gmra.mxu0 %v2066
        %v2068 = vpop.f32.mrf.mxu0
        %v2069 = vadd.f32 %v2039, %v2068
        %v2070 = vand.u32 %v1919, 4294901760
        %2071 = vmatmul.f32.gmra.mxu0 %v2070
        %v2072 = vpop.f32.mrf.mxu0
        %v2073 = vadd.f32 %v2045, %v2072
        %2074 = vdwg.mxu0
        %2075 = vmatpush.msra.mxu0 0.0
        %2076 = vmatpush.msra.mxu0 0.0
        %2077 = vmatpush.msra.mxu0 0.0
        %2078 = vmatpush.msra.mxu0 0.0
        %2079 = vmatpush.msra.mxu0 0.0
        %2080 = vmatpush.msra.mxu0 0.0
        %2081 = vmatpush.msra.mxu0 0.0
        %2082 = vmatpush.msra.mxu0 0.0
        %2083 = vmatpush.msra.mxu0 0.0
        %2084 = vmatpush.msra.mxu0 0.0
        %2085 = vmatpush.msra.mxu0 0.0
        %2086 = vmatpush.msra.mxu0 0.0
        %2087 = vmatpush.msra.mxu0 0.0
        %2088 = vmatpush.msra.mxu0 0.0
        %2089 = vmatpush.msra.mxu0 0.0
        %v2090 = vand.u32 %v1922, 4294901760
        %2091 = vmatpush.msra.mxu0 %v2090
        %v2092 = vand.u32 %v1916, 4294901760
        %2093 = vmatmul.f32.gmra.mxu0 %v2092
        %v2094 = vpop.f32.mrf.mxu0
        %v2095 = vadd.f32 %v2069, %v2094
        %v2096 = vand.u32 %v1919, 4294901760
        %2097 = vmatmul.f32.gmra.mxu0 %v2096
        %v2098 = vpop.f32.mrf.mxu0
        %v2099 = vadd.f32 %v2073, %v2098
        %2100 = vdwg.mxu0
        %v2102 = vsel %vm1541, %v1084, 0
        %v2105 = vsel %vm1541, %v1196, 0
        %v2108 = vsel %vm1548, %v1480, 0
        %2110 = vmatpush.msra.mxu0 0.0
        %2111 = vmatpush.msra.mxu0 0.0
        %2112 = vmatpush.msra.mxu0 0.0
        %2113 = vmatpush.msra.mxu0 0.0
        %2114 = vmatpush.msra.mxu0 0.0
        %2115 = vmatpush.msra.mxu0 0.0
        %2116 = vmatpush.msra.mxu0 0.0
        %2117 = vmatpush.msra.mxu0 0.0
        %2118 = vmatpush.msra.mxu0 0.0
        %2119 = vmatpush.msra.mxu0 0.0
        %2120 = vmatpush.msra.mxu0 0.0
        %2121 = vmatpush.msra.mxu0 0.0
        %2122 = vmatpush.msra.mxu0 0.0
        %2123 = vmatpush.msra.mxu0 0.0
        %2124 = vmatpush.msra.mxu0 0.0
        %v2125 = vand.u32 %v2108, 4294901760
        %2126 = vmatpush.msra.mxu0 %v2125
        %v2127 = vand.u32 %v2102, 4294901760
        %v2128 = vsub.f32 %v2102, %v2127
        %v2129 = vand.u32 %v2128, 4294901760
        %v2130 = vsub.f32 %v2128, %v2129
        %v2131 = vand.u32 %v2130, 4294901760
        %2132 = vmatmul.f32.gmra.mxu0 %v2131
        %v2133 = vpop.f32.mrf.mxu0
        %v2134 = vadd.f32 0.0, %v2133
        %v2135 = vand.u32 %v2105, 4294901760
        %v2136 = vsub.f32 %v2105, %v2135
        %v2137 = vand.u32 %v2136, 4294901760
        %v2138 = vsub.f32 %v2136, %v2137
        %v2139 = vand.u32 %v2138, 4294901760
        %2140 = vmatmul.f32.gmra.mxu0 %v2139
        %v2141 = vpop.f32.mrf.mxu0
        %v2142 = vadd.f32 0.0, %v2141
        %2143 = vdwg.mxu0
        %2144 = vmatpush.msra.mxu0 0.0
        %2145 = vmatpush.msra.mxu0 0.0
        %2146 = vmatpush.msra.mxu0 0.0
        %2147 = vmatpush.msra.mxu0 0.0
        %2148 = vmatpush.msra.mxu0 0.0
        %2149 = vmatpush.msra.mxu0 0.0
        %2150 = vmatpush.msra.mxu0 0.0
        %2151 = vmatpush.msra.mxu0 0.0
        %2152 = vmatpush.msra.mxu0 0.0
        %2153 = vmatpush.msra.mxu0 0.0
        %2154 = vmatpush.msra.mxu0 0.0
        %2155 = vmatpush.msra.mxu0 0.0
        %2156 = vmatpush.msra.mxu0 0.0
        %2157 = vmatpush.msra.mxu0 0.0
        %2158 = vmatpush.msra.mxu0 0.0
        %v2159 = vand.u32 %v2108, 4294901760
        %v2160 = vsub.f32 %v2108, %v2159
        %v2161 = vand.u32 %v2160, 4294901760
        %v2162 = vsub.f32 %v2160, %v2161
        %v2163 = vand.u32 %v2162, 4294901760
        %2164 = vmatpush.msra.mxu0 %v2163
        %v2165 = vand.u32 %v2102, 4294901760
        %2166 = vmatmul.f32.gmra.mxu0 %v2165
        %v2167 = vpop.f32.mrf.mxu0
        %v2168 = vadd.f32 %v2134, %v2167
        %v2169 = vand.u32 %v2105, 4294901760
        %2170 = vmatmul.f32.gmra.mxu0 %v2169
        %v2171 = vpop.f32.mrf.mxu0
        %v2172 = vadd.f32 %v2142, %v2171
        %2173 = vdwg.mxu0
        %2174 = vmatpush.msra.mxu0 0.0
        %2175 = vmatpush.msra.mxu0 0.0
        %2176 = vmatpush.msra.mxu0 0.0
        %2177 = vmatpush.msra.mxu0 0.0
        %2178 = vmatpush.msra.mxu0 0.0
        %2179 = vmatpush.msra.mxu0 0.0
        %2180 = vmatpush.msra.mxu0 0.0
        %2181 = vmatpush.msra.mxu0 0.0
        %2182 = vmatpush.msra.mxu0 0.0
        %2183 = vmatpush.msra.mxu0 0.0
        %2184 = vmatpush.msra.mxu0 0.0
        %2185 = vmatpush.msra.mxu0 0.0
        %2186 = vmatpush.msra.mxu0 0.0
        %2187 = vmatpush.msra.mxu0 0.0
        %2188 = vmatpush.msra.mxu0 0.0
        %v2189 = vand.u32 %v2108, 4294901760
        %v2190 = vsub.f32 %v2108, %v2189
        %2191 = vmatpush.msra.mxu0 %v2190
        %v2192 = vand.u32 %v2102, 4294901760
        %v2193 = vsub.f32 %v2102, %v2192
        %2194 = vmatmul.f32.gmra.mxu0 %v2193
        %v2195 = vpop.f32.mrf.mxu0
        %v2196 = vadd.f32 %v2168, %v2195
        %v2197 = vand.u32 %v2105, 4294901760
        %v2198 = vsub.f32 %v2105, %v2197
        %2199 = vmatmul.f32.gmra.mxu0 %v2198
        %v2200 = vpop.f32.mrf.mxu0
        %v2201 = vadd.f32 %v2172, %v2200
        %2202 = vdwg.mxu0
        %2203 = vmatpush.msra.mxu0 0.0
        %2204 = vmatpush.msra.mxu0 0.0
        %2205 = vmatpush.msra.mxu0 0.0
        %2206 = vmatpush.msra.mxu0 0.0
        %2207 = vmatpush.msra.mxu0 0.0
        %2208 = vmatpush.msra.mxu0 0.0
        %2209 = vmatpush.msra.mxu0 0.0
        %2210 = vmatpush.msra.mxu0 0.0
        %2211 = vmatpush.msra.mxu0 0.0
        %2212 = vmatpush.msra.mxu0 0.0
        %2213 = vmatpush.msra.mxu0 0.0
        %2214 = vmatpush.msra.mxu0 0.0
        %2215 = vmatpush.msra.mxu0 0.0
        %2216 = vmatpush.msra.mxu0 0.0
        %2217 = vmatpush.msra.mxu0 0.0
        %v2218 = vand.u32 %v2108, 4294901760
        %2219 = vmatpush.msra.mxu0 %v2218
        %v2220 = vand.u32 %v2102, 4294901760
        %v2221 = vsub.f32 %v2102, %v2220
        %v2222 = vand.u32 %v2221, 4294901760
        %2223 = vmatmul.f32.gmra.mxu0 %v2222
        %v2224 = vpop.f32.mrf.mxu0
        %v2225 = vadd.f32 %v2196, %v2224
        %v2226 = vand.u32 %v2105, 4294901760
        %v2227 = vsub.f32 %v2105, %v2226
        %v2228 = vand.u32 %v2227, 4294901760
        %2229 = vmatmul.f32.gmra.mxu0 %v2228
        %v2230 = vpop.f32.mrf.mxu0
        %v2231 = vadd.f32 %v2201, %v2230
        %2232 = vdwg.mxu0
        %2233 = vmatpush.msra.mxu0 0.0
        %2234 = vmatpush.msra.mxu0 0.0
        %2235 = vmatpush.msra.mxu0 0.0
        %2236 = vmatpush.msra.mxu0 0.0
        %2237 = vmatpush.msra.mxu0 0.0
        %2238 = vmatpush.msra.mxu0 0.0
        %2239 = vmatpush.msra.mxu0 0.0
        %2240 = vmatpush.msra.mxu0 0.0
        %2241 = vmatpush.msra.mxu0 0.0
        %2242 = vmatpush.msra.mxu0 0.0
        %2243 = vmatpush.msra.mxu0 0.0
        %2244 = vmatpush.msra.mxu0 0.0
        %2245 = vmatpush.msra.mxu0 0.0
        %2246 = vmatpush.msra.mxu0 0.0
        %2247 = vmatpush.msra.mxu0 0.0
        %v2248 = vand.u32 %v2108, 4294901760
        %v2249 = vsub.f32 %v2108, %v2248
        %v2250 = vand.u32 %v2249, 4294901760
        %2251 = vmatpush.msra.mxu0 %v2250
        %v2252 = vand.u32 %v2102, 4294901760
        %2253 = vmatmul.f32.gmra.mxu0 %v2252
        %v2254 = vpop.f32.mrf.mxu0
        %v2255 = vadd.f32 %v2225, %v2254
        %v2256 = vand.u32 %v2105, 4294901760
        %2257 = vmatmul.f32.gmra.mxu0 %v2256
        %v2258 = vpop.f32.mrf.mxu0
        %v2259 = vadd.f32 %v2231, %v2258
        %2260 = vdwg.mxu0
        %2261 = vmatpush.msra.mxu0 0.0
        %2262 = vmatpush.msra.mxu0 0.0
        %2263 = vmatpush.msra.mxu0 0.0
        %2264 = vmatpush.msra.mxu0 0.0
        %2265 = vmatpush.msra.mxu0 0.0
        %2266 = vmatpush.msra.mxu0 0.0
        %2267 = vmatpush.msra.mxu0 0.0
        %2268 = vmatpush.msra.mxu0 0.0
        %2269 = vmatpush.msra.mxu0 0.0
        %2270 = vmatpush.msra.mxu0 0.0
        %2271 = vmatpush.msra.mxu0 0.0
        %2272 = vmatpush.msra.mxu0 0.0
        %2273 = vmatpush.msra.mxu0 0.0
        %2274 = vmatpush.msra.mxu0 0.0
        %2275 = vmatpush.msra.mxu0 0.0
        %v2276 = vand.u32 %v2108, 4294901760
        %2277 = vmatpush.msra.mxu0 %v2276
        %v2278 = vand.u32 %v2102, 4294901760
        %2279 = vmatmul.f32.gmra.mxu0 %v2278
        %v2280 = vpop.f32.mrf.mxu0
        %v2281 = vadd.f32 %v2255, %v2280
        %v2282 = vand.u32 %v2105, 4294901760
        %2283 = vmatmul.f32.gmra.mxu0 %v2282
        %v2284 = vpop.f32.mrf.mxu0
        %v2285 = vadd.f32 %v2259, %v2284
        %2286 = vdwg.mxu0
        %v2288 = vsel %vm1541, %v1086, 0
        %v2291 = vsel %vm1541, %v1198, 0
        %v2294 = vsel %vm1548, %v1472, 0
        %2296 = vmatpush.msra.mxu0 0.0
        %2297 = vmatpush.msra.mxu0 0.0
        %2298 = vmatpush.msra.mxu0 0.0
        %2299 = vmatpush.msra.mxu0 0.0
        %2300 = vmatpush.msra.mxu0 0.0
        %2301 = vmatpush.msra.mxu0 0.0
        %2302 = vmatpush.msra.mxu0 0.0
        %2303 = vmatpush.msra.mxu0 0.0
        %2304 = vmatpush.msra.mxu0 0.0
        %2305 = vmatpush.msra.mxu0 0.0
        %2306 = vmatpush.msra.mxu0 0.0
        %2307 = vmatpush.msra.mxu0 0.0
        %2308 = vmatpush.msra.mxu0 0.0
        %2309 = vmatpush.msra.mxu0 0.0
        %2310 = vmatpush.msra.mxu0 0.0
        %v2311 = vand.u32 %v2294, 4294901760
        %2312 = vmatpush.msra.mxu0 %v2311
        %v2313 = vand.u32 %v2288, 4294901760
        %v2314 = vsub.f32 %v2288, %v2313
        %v2315 = vand.u32 %v2314, 4294901760
        %v2316 = vsub.f32 %v2314, %v2315
        %v2317 = vand.u32 %v2316, 4294901760
        %2318 = vmatmul.f32.gmra.mxu0 %v2317
        %v2319 = vpop.f32.mrf.mxu0
        %v2320 = vadd.f32 0.0, %v2319
        %v2321 = vand.u32 %v2291, 4294901760
        %v2322 = vsub.f32 %v2291, %v2321
        %v2323 = vand.u32 %v2322, 4294901760
        %v2324 = vsub.f32 %v2322, %v2323
        %v2325 = vand.u32 %v2324, 4294901760
        %2326 = vmatmul.f32.gmra.mxu0 %v2325
        %v2327 = vpop.f32.mrf.mxu0
        %v2328 = vadd.f32 0.0, %v2327
        %2329 = vdwg.mxu0
        %2330 = vmatpush.msra.mxu0 0.0
        %2331 = vmatpush.msra.mxu0 0.0
        %2332 = vmatpush.msra.mxu0 0.0
        %2333 = vmatpush.msra.mxu0 0.0
        %2334 = vmatpush.msra.mxu0 0.0
        %2335 = vmatpush.msra.mxu0 0.0
        %2336 = vmatpush.msra.mxu0 0.0
        %2337 = vmatpush.msra.mxu0 0.0
        %2338 = vmatpush.msra.mxu0 0.0
        %2339 = vmatpush.msra.mxu0 0.0
        %2340 = vmatpush.msra.mxu0 0.0
        %2341 = vmatpush.msra.mxu0 0.0
        %2342 = vmatpush.msra.mxu0 0.0
        %2343 = vmatpush.msra.mxu0 0.0
        %2344 = vmatpush.msra.mxu0 0.0
        %v2345 = vand.u32 %v2294, 4294901760
        %v2346 = vsub.f32 %v2294, %v2345
        %v2347 = vand.u32 %v2346, 4294901760
        %v2348 = vsub.f32 %v2346, %v2347
        %v2349 = vand.u32 %v2348, 4294901760
        %2350 = vmatpush.msra.mxu0 %v2349
        %v2351 = vand.u32 %v2288, 4294901760
        %2352 = vmatmul.f32.gmra.mxu0 %v2351
        %v2353 = vpop.f32.mrf.mxu0
        %v2354 = vadd.f32 %v2320, %v2353
        %v2355 = vand.u32 %v2291, 4294901760
        %2356 = vmatmul.f32.gmra.mxu0 %v2355
        %v2357 = vpop.f32.mrf.mxu0
        %v2358 = vadd.f32 %v2328, %v2357
        %2359 = vdwg.mxu0
        %2360 = vmatpush.msra.mxu0 0.0
        %2361 = vmatpush.msra.mxu0 0.0
        %2362 = vmatpush.msra.mxu0 0.0
        %2363 = vmatpush.msra.mxu0 0.0
        %2364 = vmatpush.msra.mxu0 0.0
        %2365 = vmatpush.msra.mxu0 0.0
        %2366 = vmatpush.msra.mxu0 0.0
        %2367 = vmatpush.msra.mxu0 0.0
        %2368 = vmatpush.msra.mxu0 0.0
        %2369 = vmatpush.msra.mxu0 0.0
        %2370 = vmatpush.msra.mxu0 0.0
        %2371 = vmatpush.msra.mxu0 0.0
        %2372 = vmatpush.msra.mxu0 0.0
        %2373 = vmatpush.msra.mxu0 0.0
        %2374 = vmatpush.msra.mxu0 0.0
        %v2375 = vand.u32 %v2294, 4294901760
        %v2376 = vsub.f32 %v2294, %v2375
        %2377 = vmatpush.msra.mxu0 %v2376
        %v2378 = vand.u32 %v2288, 4294901760
        %v2379 = vsub.f32 %v2288, %v2378
        %2380 = vmatmul.f32.gmra.mxu0 %v2379
        %v2381 = vpop.f32.mrf.mxu0
        %v2382 = vadd.f32 %v2354, %v2381
        %v2383 = vand.u32 %v2291, 4294901760
        %v2384 = vsub.f32 %v2291, %v2383
        %2385 = vmatmul.f32.gmra.mxu0 %v2384
        %v2386 = vpop.f32.mrf.mxu0
        %v2387 = vadd.f32 %v2358, %v2386
        %2388 = vdwg.mxu0
        %2389 = vmatpush.msra.mxu0 0.0
        %2390 = vmatpush.msra.mxu0 0.0
        %2391 = vmatpush.msra.mxu0 0.0
        %2392 = vmatpush.msra.mxu0 0.0
        %2393 = vmatpush.msra.mxu0 0.0
        %2394 = vmatpush.msra.mxu0 0.0
        %2395 = vmatpush.msra.mxu0 0.0
        %2396 = vmatpush.msra.mxu0 0.0
        %2397 = vmatpush.msra.mxu0 0.0
        %2398 = vmatpush.msra.mxu0 0.0
        %2399 = vmatpush.msra.mxu0 0.0
        %2400 = vmatpush.msra.mxu0 0.0
        %2401 = vmatpush.msra.mxu0 0.0
        %2402 = vmatpush.msra.mxu0 0.0
        %2403 = vmatpush.msra.mxu0 0.0
        %v2404 = vand.u32 %v2294, 4294901760
        %2405 = vmatpush.msra.mxu0 %v2404
        %v2406 = vand.u32 %v2288, 4294901760
        %v2407 = vsub.f32 %v2288, %v2406
        %v2408 = vand.u32 %v2407, 4294901760
        %2409 = vmatmul.f32.gmra.mxu0 %v2408
        %v2410 = vpop.f32.mrf.mxu0
        %v2411 = vadd.f32 %v2382, %v2410
        %v2412 = vand.u32 %v2291, 4294901760
        %v2413 = vsub.f32 %v2291, %v2412
        %v2414 = vand.u32 %v2413, 4294901760
        %2415 = vmatmul.f32.gmra.mxu0 %v2414
        %v2416 = vpop.f32.mrf.mxu0
        %v2417 = vadd.f32 %v2387, %v2416
        %2418 = vdwg.mxu0
        %2419 = vmatpush.msra.mxu0 0.0
        %2420 = vmatpush.msra.mxu0 0.0
        %2421 = vmatpush.msra.mxu0 0.0
        %2422 = vmatpush.msra.mxu0 0.0
        %2423 = vmatpush.msra.mxu0 0.0
        %2424 = vmatpush.msra.mxu0 0.0
        %2425 = vmatpush.msra.mxu0 0.0
        %2426 = vmatpush.msra.mxu0 0.0
        %2427 = vmatpush.msra.mxu0 0.0
        %2428 = vmatpush.msra.mxu0 0.0
        %2429 = vmatpush.msra.mxu0 0.0
        %2430 = vmatpush.msra.mxu0 0.0
        %2431 = vmatpush.msra.mxu0 0.0
        %2432 = vmatpush.msra.mxu0 0.0
        %2433 = vmatpush.msra.mxu0 0.0
        %v2434 = vand.u32 %v2294, 4294901760
        %v2435 = vsub.f32 %v2294, %v2434
        %v2436 = vand.u32 %v2435, 4294901760
        %2437 = vmatpush.msra.mxu0 %v2436
        %v2438 = vand.u32 %v2288, 4294901760
        %2439 = vmatmul.f32.gmra.mxu0 %v2438
        %v2440 = vpop.f32.mrf.mxu0
        %v2441 = vadd.f32 %v2411, %v2440
        %v2442 = vand.u32 %v2291, 4294901760
        %2443 = vmatmul.f32.gmra.mxu0 %v2442
        %v2444 = vpop.f32.mrf.mxu0
        %v2445 = vadd.f32 %v2417, %v2444
        %2446 = vdwg.mxu0
        %2447 = vmatpush.msra.mxu0 0.0
        %2448 = vmatpush.msra.mxu0 0.0
        %2449 = vmatpush.msra.mxu0 0.0
        %2450 = vmatpush.msra.mxu0 0.0
        %2451 = vmatpush.msra.mxu0 0.0
        %2452 = vmatpush.msra.mxu0 0.0
        %2453 = vmatpush.msra.mxu0 0.0
        %2454 = vmatpush.msra.mxu0 0.0
        %2455 = vmatpush.msra.mxu0 0.0
        %2456 = vmatpush.msra.mxu0 0.0
        %2457 = vmatpush.msra.mxu0 0.0
        %2458 = vmatpush.msra.mxu0 0.0
        %2459 = vmatpush.msra.mxu0 0.0
        %2460 = vmatpush.msra.mxu0 0.0
        %2461 = vmatpush.msra.mxu0 0.0
        %v2462 = vand.u32 %v2294, 4294901760
        %2463 = vmatpush.msra.mxu0 %v2462
        %v2464 = vand.u32 %v2288, 4294901760
        %2465 = vmatmul.f32.gmra.mxu0 %v2464
        %v2466 = vpop.f32.mrf.mxu0
        %v2467 = vadd.f32 %v2441, %v2466
        %v2468 = vand.u32 %v2291, 4294901760
        %2469 = vmatmul.f32.gmra.mxu0 %v2468
        %v2470 = vpop.f32.mrf.mxu0
        %v2471 = vadd.f32 %v2445, %v2470
        %2472 = vdwg.mxu0
        %v2474 = vsel %vm1541, %v1088, 0
        %v2477 = vsel %vm1541, %v1200, 0
        %v2480 = vsel %vm1548, %v1482, 0
        %2482 = vmatpush.msra.mxu0 0.0
        %2483 = vmatpush.msra.mxu0 0.0
        %2484 = vmatpush.msra.mxu0 0.0
        %2485 = vmatpush.msra.mxu0 0.0
        %2486 = vmatpush.msra.mxu0 0.0
        %2487 = vmatpush.msra.mxu0 0.0
        %2488 = vmatpush.msra.mxu0 0.0
        %2489 = vmatpush.msra.mxu0 0.0
        %2490 = vmatpush.msra.mxu0 0.0
        %2491 = vmatpush.msra.mxu0 0.0
        %2492 = vmatpush.msra.mxu0 0.0
        %2493 = vmatpush.msra.mxu0 0.0
        %2494 = vmatpush.msra.mxu0 0.0
        %2495 = vmatpush.msra.mxu0 0.0
        %2496 = vmatpush.msra.mxu0 0.0
        %v2497 = vand.u32 %v2480, 4294901760
        %2498 = vmatpush.msra.mxu0 %v2497
        %v2499 = vand.u32 %v2474, 4294901760
        %v2500 = vsub.f32 %v2474, %v2499
        %v2501 = vand.u32 %v2500, 4294901760
        %v2502 = vsub.f32 %v2500, %v2501
        %v2503 = vand.u32 %v2502, 4294901760
        %2504 = vmatmul.f32.gmra.mxu0 %v2503
        %v2505 = vpop.f32.mrf.mxu0
        %v2506 = vadd.f32 0.0, %v2505
        %v2507 = vand.u32 %v2477, 4294901760
        %v2508 = vsub.f32 %v2477, %v2507
        %v2509 = vand.u32 %v2508, 4294901760
        %v2510 = vsub.f32 %v2508, %v2509
        %v2511 = vand.u32 %v2510, 4294901760
        %2512 = vmatmul.f32.gmra.mxu0 %v2511
        %v2513 = vpop.f32.mrf.mxu0
        %v2514 = vadd.f32 0.0, %v2513
        %2515 = vdwg.mxu0
        %2516 = vmatpush.msra.mxu0 0.0
        %2517 = vmatpush.msra.mxu0 0.0
        %2518 = vmatpush.msra.mxu0 0.0
        %2519 = vmatpush.msra.mxu0 0.0
        %2520 = vmatpush.msra.mxu0 0.0
        %2521 = vmatpush.msra.mxu0 0.0
        %2522 = vmatpush.msra.mxu0 0.0
        %2523 = vmatpush.msra.mxu0 0.0
        %2524 = vmatpush.msra.mxu0 0.0
        %2525 = vmatpush.msra.mxu0 0.0
        %2526 = vmatpush.msra.mxu0 0.0
        %2527 = vmatpush.msra.mxu0 0.0
        %2528 = vmatpush.msra.mxu0 0.0
        %2529 = vmatpush.msra.mxu0 0.0
        %2530 = vmatpush.msra.mxu0 0.0
        %v2531 = vand.u32 %v2480, 4294901760
        %v2532 = vsub.f32 %v2480, %v2531
        %v2533 = vand.u32 %v2532, 4294901760
        %v2534 = vsub.f32 %v2532, %v2533
        %v2535 = vand.u32 %v2534, 4294901760
        %2536 = vmatpush.msra.mxu0 %v2535
        %v2537 = vand.u32 %v2474, 4294901760
        %2538 = vmatmul.f32.gmra.mxu0 %v2537
        %v2539 = vpop.f32.mrf.mxu0
        %v2540 = vadd.f32 %v2506, %v2539
        %v2541 = vand.u32 %v2477, 4294901760
        %2542 = vmatmul.f32.gmra.mxu0 %v2541
        %v2543 = vpop.f32.mrf.mxu0
        %v2544 = vadd.f32 %v2514, %v2543
        %2545 = vdwg.mxu0
        %2546 = vmatpush.msra.mxu0 0.0
        %2547 = vmatpush.msra.mxu0 0.0
        %2548 = vmatpush.msra.mxu0 0.0
        %2549 = vmatpush.msra.mxu0 0.0
        %2550 = vmatpush.msra.mxu0 0.0
        %2551 = vmatpush.msra.mxu0 0.0
        %2552 = vmatpush.msra.mxu0 0.0
        %2553 = vmatpush.msra.mxu0 0.0
        %2554 = vmatpush.msra.mxu0 0.0
        %2555 = vmatpush.msra.mxu0 0.0
        %2556 = vmatpush.msra.mxu0 0.0
        %2557 = vmatpush.msra.mxu0 0.0
        %2558 = vmatpush.msra.mxu0 0.0
        %2559 = vmatpush.msra.mxu0 0.0
        %2560 = vmatpush.msra.mxu0 0.0
        %v2561 = vand.u32 %v2480, 4294901760
        %v2562 = vsub.f32 %v2480, %v2561
        %2563 = vmatpush.msra.mxu0 %v2562
        %v2564 = vand.u32 %v2474, 4294901760
        %v2565 = vsub.f32 %v2474, %v2564
        %2566 = vmatmul.f32.gmra.mxu0 %v2565
        %v2567 = vpop.f32.mrf.mxu0
        %v2568 = vadd.f32 %v2540, %v2567
        %v2569 = vand.u32 %v2477, 4294901760
        %v2570 = vsub.f32 %v2477, %v2569
        %2571 = vmatmul.f32.gmra.mxu0 %v2570
        %v2572 = vpop.f32.mrf.mxu0
        %v2573 = vadd.f32 %v2544, %v2572
        %2574 = vdwg.mxu0
        %2575 = vmatpush.msra.mxu0 0.0
        %2576 = vmatpush.msra.mxu0 0.0
        %2577 = vmatpush.msra.mxu0 0.0
        %2578 = vmatpush.msra.mxu0 0.0
        %2579 = vmatpush.msra.mxu0 0.0
        %2580 = vmatpush.msra.mxu0 0.0
        %2581 = vmatpush.msra.mxu0 0.0
        %2582 = vmatpush.msra.mxu0 0.0
        %2583 = vmatpush.msra.mxu0 0.0
        %2584 = vmatpush.msra.mxu0 0.0
        %2585 = vmatpush.msra.mxu0 0.0
        %2586 = vmatpush.msra.mxu0 0.0
        %2587 = vmatpush.msra.mxu0 0.0
        %2588 = vmatpush.msra.mxu0 0.0
        %2589 = vmatpush.msra.mxu0 0.0
        %v2590 = vand.u32 %v2480, 4294901760
        %2591 = vmatpush.msra.mxu0 %v2590
        %v2592 = vand.u32 %v2474, 4294901760
        %v2593 = vsub.f32 %v2474, %v2592
        %v2594 = vand.u32 %v2593, 4294901760
        %2595 = vmatmul.f32.gmra.mxu0 %v2594
        %v2596 = vpop.f32.mrf.mxu0
        %v2597 = vadd.f32 %v2568, %v2596
        %v2598 = vand.u32 %v2477, 4294901760
        %v2599 = vsub.f32 %v2477, %v2598
        %v2600 = vand.u32 %v2599, 4294901760
        %2601 = vmatmul.f32.gmra.mxu0 %v2600
        %v2602 = vpop.f32.mrf.mxu0
        %v2603 = vadd.f32 %v2573, %v2602
        %2604 = vdwg.mxu0
        %2605 = vmatpush.msra.mxu0 0.0
        %2606 = vmatpush.msra.mxu0 0.0
        %2607 = vmatpush.msra.mxu0 0.0
        %2608 = vmatpush.msra.mxu0 0.0
        %2609 = vmatpush.msra.mxu0 0.0
        %2610 = vmatpush.msra.mxu0 0.0
        %2611 = vmatpush.msra.mxu0 0.0
        %2612 = vmatpush.msra.mxu0 0.0
        %2613 = vmatpush.msra.mxu0 0.0
        %2614 = vmatpush.msra.mxu0 0.0
        %2615 = vmatpush.msra.mxu0 0.0
        %2616 = vmatpush.msra.mxu0 0.0
        %2617 = vmatpush.msra.mxu0 0.0
        %2618 = vmatpush.msra.mxu0 0.0
        %2619 = vmatpush.msra.mxu0 0.0
        %v2620 = vand.u32 %v2480, 4294901760
        %v2621 = vsub.f32 %v2480, %v2620
        %v2622 = vand.u32 %v2621, 4294901760
        %2623 = vmatpush.msra.mxu0 %v2622
        %v2624 = vand.u32 %v2474, 4294901760
        %2625 = vmatmul.f32.gmra.mxu0 %v2624
        %v2626 = vpop.f32.mrf.mxu0
        %v2627 = vadd.f32 %v2597, %v2626
        %v2628 = vand.u32 %v2477, 4294901760
        %2629 = vmatmul.f32.gmra.mxu0 %v2628
        %v2630 = vpop.f32.mrf.mxu0
        %v2631 = vadd.f32 %v2603, %v2630
        %2632 = vdwg.mxu0
        %2633 = vmatpush.msra.mxu0 0.0
        %2634 = vmatpush.msra.mxu0 0.0
        %2635 = vmatpush.msra.mxu0 0.0
        %2636 = vmatpush.msra.mxu0 0.0
        %2637 = vmatpush.msra.mxu0 0.0
        %2638 = vmatpush.msra.mxu0 0.0
        %2639 = vmatpush.msra.mxu0 0.0
        %2640 = vmatpush.msra.mxu0 0.0
        %2641 = vmatpush.msra.mxu0 0.0
        %2642 = vmatpush.msra.mxu0 0.0
        %2643 = vmatpush.msra.mxu0 0.0
        %2644 = vmatpush.msra.mxu0 0.0
        %2645 = vmatpush.msra.mxu0 0.0
        %2646 = vmatpush.msra.mxu0 0.0
        %2647 = vmatpush.msra.mxu0 0.0
        %v2648 = vand.u32 %v2480, 4294901760
        %2649 = vmatpush.msra.mxu0 %v2648
        %v2650 = vand.u32 %v2474, 4294901760
        %2651 = vmatmul.f32.gmra.mxu0 %v2650
        %v2652 = vpop.f32.mrf.mxu0
        %v2653 = vadd.f32 %v2627, %v2652
        %v2654 = vand.u32 %v2477, 4294901760
        %2655 = vmatmul.f32.gmra.mxu0 %v2654
        %v2656 = vpop.f32.mrf.mxu0
        %v2657 = vadd.f32 %v2631, %v2656
        %2658 = vdwg.mxu0
        %v2660 = vsel %vm1541, %v1090, 0
        %v2663 = vsel %vm1541, %v1202, 0
        %v2666 = vsel %vm1548, %v1476, 0
        %2668 = vmatpush.msra.mxu0 0.0
        %2669 = vmatpush.msra.mxu0 0.0
        %2670 = vmatpush.msra.mxu0 0.0
        %2671 = vmatpush.msra.mxu0 0.0
        %2672 = vmatpush.msra.mxu0 0.0
        %2673 = vmatpush.msra.mxu0 0.0
        %2674 = vmatpush.msra.mxu0 0.0
        %2675 = vmatpush.msra.mxu0 0.0
        %2676 = vmatpush.msra.mxu0 0.0
        %2677 = vmatpush.msra.mxu0 0.0
        %2678 = vmatpush.msra.mxu0 0.0
        %2679 = vmatpush.msra.mxu0 0.0
        %2680 = vmatpush.msra.mxu0 0.0
        %2681 = vmatpush.msra.mxu0 0.0
        %2682 = vmatpush.msra.mxu0 0.0
        %v2683 = vand.u32 %v2666, 4294901760
        %2684 = vmatpush.msra.mxu0 %v2683
        %v2685 = vand.u32 %v2660, 4294901760
        %v2686 = vsub.f32 %v2660, %v2685
        %v2687 = vand.u32 %v2686, 4294901760
        %v2688 = vsub.f32 %v2686, %v2687
        %v2689 = vand.u32 %v2688, 4294901760
        %2690 = vmatmul.f32.gmra.mxu0 %v2689
        %v2691 = vpop.f32.mrf.mxu0
        %v2692 = vadd.f32 0.0, %v2691
        %v2693 = vand.u32 %v2663, 4294901760
        %v2694 = vsub.f32 %v2663, %v2693
        %v2695 = vand.u32 %v2694, 4294901760
        %v2696 = vsub.f32 %v2694, %v2695
        %v2697 = vand.u32 %v2696, 4294901760
        %2698 = vmatmul.f32.gmra.mxu0 %v2697
        %v2699 = vpop.f32.mrf.mxu0
        %v2700 = vadd.f32 0.0, %v2699
        %2701 = vdwg.mxu0
        %2702 = vmatpush.msra.mxu0 0.0
        %2703 = vmatpush.msra.mxu0 0.0
        %2704 = vmatpush.msra.mxu0 0.0
        %2705 = vmatpush.msra.mxu0 0.0
        %2706 = vmatpush.msra.mxu0 0.0
        %2707 = vmatpush.msra.mxu0 0.0
        %2708 = vmatpush.msra.mxu0 0.0
        %2709 = vmatpush.msra.mxu0 0.0
        %2710 = vmatpush.msra.mxu0 0.0
        %2711 = vmatpush.msra.mxu0 0.0
        %2712 = vmatpush.msra.mxu0 0.0
        %2713 = vmatpush.msra.mxu0 0.0
        %2714 = vmatpush.msra.mxu0 0.0
        %2715 = vmatpush.msra.mxu0 0.0
        %2716 = vmatpush.msra.mxu0 0.0
        %v2717 = vand.u32 %v2666, 4294901760
        %v2718 = vsub.f32 %v2666, %v2717
        %v2719 = vand.u32 %v2718, 4294901760
        %v2720 = vsub.f32 %v2718, %v2719
        %v2721 = vand.u32 %v2720, 4294901760
        %2722 = vmatpush.msra.mxu0 %v2721
        %v2723 = vand.u32 %v2660, 4294901760
        %2724 = vmatmul.f32.gmra.mxu0 %v2723
        %v2725 = vpop.f32.mrf.mxu0
        %v2726 = vadd.f32 %v2692, %v2725
        %v2727 = vand.u32 %v2663, 4294901760
        %2728 = vmatmul.f32.gmra.mxu0 %v2727
        %v2729 = vpop.f32.mrf.mxu0
        %v2730 = vadd.f32 %v2700, %v2729
        %2731 = vdwg.mxu0
        %2732 = vmatpush.msra.mxu0 0.0
        %2733 = vmatpush.msra.mxu0 0.0
        %2734 = vmatpush.msra.mxu0 0.0
        %2735 = vmatpush.msra.mxu0 0.0
        %2736 = vmatpush.msra.mxu0 0.0
        %2737 = vmatpush.msra.mxu0 0.0
        %2738 = vmatpush.msra.mxu0 0.0
        %2739 = vmatpush.msra.mxu0 0.0
        %2740 = vmatpush.msra.mxu0 0.0
        %2741 = vmatpush.msra.mxu0 0.0
        %2742 = vmatpush.msra.mxu0 0.0
        %2743 = vmatpush.msra.mxu0 0.0
        %2744 = vmatpush.msra.mxu0 0.0
        %2745 = vmatpush.msra.mxu0 0.0
        %2746 = vmatpush.msra.mxu0 0.0
        %v2747 = vand.u32 %v2666, 4294901760
        %v2748 = vsub.f32 %v2666, %v2747
        %2749 = vmatpush.msra.mxu0 %v2748
        %v2750 = vand.u32 %v2660, 4294901760
        %v2751 = vsub.f32 %v2660, %v2750
        %2752 = vmatmul.f32.gmra.mxu0 %v2751
        %v2753 = vpop.f32.mrf.mxu0
        %v2754 = vadd.f32 %v2726, %v2753
        %v2755 = vand.u32 %v2663, 4294901760
        %v2756 = vsub.f32 %v2663, %v2755
        %2757 = vmatmul.f32.gmra.mxu0 %v2756
        %v2758 = vpop.f32.mrf.mxu0
        %v2759 = vadd.f32 %v2730, %v2758
        %2760 = vdwg.mxu0
        %2761 = vmatpush.msra.mxu0 0.0
        %2762 = vmatpush.msra.mxu0 0.0
        %2763 = vmatpush.msra.mxu0 0.0
        %2764 = vmatpush.msra.mxu0 0.0
        %2765 = vmatpush.msra.mxu0 0.0
        %2766 = vmatpush.msra.mxu0 0.0
        %2767 = vmatpush.msra.mxu0 0.0
        %2768 = vmatpush.msra.mxu0 0.0
        %2769 = vmatpush.msra.mxu0 0.0
        %2770 = vmatpush.msra.mxu0 0.0
        %2771 = vmatpush.msra.mxu0 0.0
        %2772 = vmatpush.msra.mxu0 0.0
        %2773 = vmatpush.msra.mxu0 0.0
        %2774 = vmatpush.msra.mxu0 0.0
        %2775 = vmatpush.msra.mxu0 0.0
        %v2776 = vand.u32 %v2666, 4294901760
        %2777 = vmatpush.msra.mxu0 %v2776
        %v2778 = vand.u32 %v2660, 4294901760
        %v2779 = vsub.f32 %v2660, %v2778
        %v2780 = vand.u32 %v2779, 4294901760
        %2781 = vmatmul.f32.gmra.mxu0 %v2780
        %v2782 = vpop.f32.mrf.mxu0
        %v2783 = vadd.f32 %v2754, %v2782
        %v2784 = vand.u32 %v2663, 4294901760
        %v2785 = vsub.f32 %v2663, %v2784
        %v2786 = vand.u32 %v2785, 4294901760
        %2787 = vmatmul.f32.gmra.mxu0 %v2786
        %v2788 = vpop.f32.mrf.mxu0
        %v2789 = vadd.f32 %v2759, %v2788
        %2790 = vdwg.mxu0
        %2791 = vmatpush.msra.mxu0 0.0
        %2792 = vmatpush.msra.mxu0 0.0
        %2793 = vmatpush.msra.mxu0 0.0
        %2794 = vmatpush.msra.mxu0 0.0
        %2795 = vmatpush.msra.mxu0 0.0
        %2796 = vmatpush.msra.mxu0 0.0
        %2797 = vmatpush.msra.mxu0 0.0
        %2798 = vmatpush.msra.mxu0 0.0
        %2799 = vmatpush.msra.mxu0 0.0
        %2800 = vmatpush.msra.mxu0 0.0
        %2801 = vmatpush.msra.mxu0 0.0
        %2802 = vmatpush.msra.mxu0 0.0
        %2803 = vmatpush.msra.mxu0 0.0
        %2804 = vmatpush.msra.mxu0 0.0
        %2805 = vmatpush.msra.mxu0 0.0
        %v2806 = vand.u32 %v2666, 4294901760
        %v2807 = vsub.f32 %v2666, %v2806
        %v2808 = vand.u32 %v2807, 4294901760
        %2809 = vmatpush.msra.mxu0 %v2808
        %v2810 = vand.u32 %v2660, 4294901760
        %2811 = vmatmul.f32.gmra.mxu0 %v2810
        %v2812 = vpop.f32.mrf.mxu0
        %v2813 = vadd.f32 %v2783, %v2812
        %v2814 = vand.u32 %v2663, 4294901760
        %2815 = vmatmul.f32.gmra.mxu0 %v2814
        %v2816 = vpop.f32.mrf.mxu0
        %v2817 = vadd.f32 %v2789, %v2816
        %2818 = vdwg.mxu0
        %2819 = vmatpush.msra.mxu0 0.0
        %2820 = vmatpush.msra.mxu0 0.0
        %2821 = vmatpush.msra.mxu0 0.0
        %2822 = vmatpush.msra.mxu0 0.0
        %2823 = vmatpush.msra.mxu0 0.0
        %2824 = vmatpush.msra.mxu0 0.0
        %2825 = vmatpush.msra.mxu0 0.0
        %2826 = vmatpush.msra.mxu0 0.0
        %2827 = vmatpush.msra.mxu0 0.0
        %2828 = vmatpush.msra.mxu0 0.0
        %2829 = vmatpush.msra.mxu0 0.0
        %2830 = vmatpush.msra.mxu0 0.0
        %2831 = vmatpush.msra.mxu0 0.0
        %2832 = vmatpush.msra.mxu0 0.0
        %2833 = vmatpush.msra.mxu0 0.0
        %v2834 = vand.u32 %v2666, 4294901760
        %2835 = vmatpush.msra.mxu0 %v2834
        %v2836 = vand.u32 %v2660, 4294901760
        %2837 = vmatmul.f32.gmra.mxu0 %v2836
        %v2838 = vpop.f32.mrf.mxu0
        %v2839 = vadd.f32 %v2813, %v2838
        %v2840 = vand.u32 %v2663, 4294901760
        %2841 = vmatmul.f32.gmra.mxu0 %v2840
        %v2842 = vpop.f32.mrf.mxu0
        %v2843 = vadd.f32 %v2817, %v2842
        %2844 = vdwg.mxu0
        %v2846 = vsel %vm1541, %v1092, 0
        %v2849 = vsel %vm1541, %v1204, 0
        %v2852 = vsel %vm1548, %v1484, 0
        %2854 = vmatpush.msra.mxu0 0.0
        %2855 = vmatpush.msra.mxu0 0.0
        %2856 = vmatpush.msra.mxu0 0.0
        %2857 = vmatpush.msra.mxu0 0.0
        %2858 = vmatpush.msra.mxu0 0.0
        %2859 = vmatpush.msra.mxu0 0.0
        %2860 = vmatpush.msra.mxu0 0.0
        %2861 = vmatpush.msra.mxu0 0.0
        %2862 = vmatpush.msra.mxu0 0.0
        %2863 = vmatpush.msra.mxu0 0.0
        %2864 = vmatpush.msra.mxu0 0.0
        %2865 = vmatpush.msra.mxu0 0.0
        %2866 = vmatpush.msra.mxu0 0.0
        %2867 = vmatpush.msra.mxu0 0.0
        %2868 = vmatpush.msra.mxu0 0.0
        %v2869 = vand.u32 %v2852, 4294901760
        %2870 = vmatpush.msra.mxu0 %v2869
        %v2871 = vand.u32 %v2846, 4294901760
        %v2872 = vsub.f32 %v2846, %v2871
        %v2873 = vand.u32 %v2872, 4294901760
        %v2874 = vsub.f32 %v2872, %v2873
        %v2875 = vand.u32 %v2874, 4294901760
        %2876 = vmatmul.f32.gmra.mxu0 %v2875
        %v2877 = vpop.f32.mrf.mxu0
        %v2878 = vadd.f32 0.0, %v2877
        %v2879 = vand.u32 %v2849, 4294901760
        %v2880 = vsub.f32 %v2849, %v2879
        %v2881 = vand.u32 %v2880, 4294901760
        %v2882 = vsub.f32 %v2880, %v2881
        %v2883 = vand.u32 %v2882, 4294901760
        %2884 = vmatmul.f32.gmra.mxu0 %v2883
        %v2885 = vpop.f32.mrf.mxu0
        %v2886 = vadd.f32 0.0, %v2885
        %2887 = vdwg.mxu0
        %2888 = vmatpush.msra.mxu0 0.0
        %2889 = vmatpush.msra.mxu0 0.0
        %2890 = vmatpush.msra.mxu0 0.0
        %2891 = vmatpush.msra.mxu0 0.0
        %2892 = vmatpush.msra.mxu0 0.0
        %2893 = vmatpush.msra.mxu0 0.0
        %2894 = vmatpush.msra.mxu0 0.0
        %2895 = vmatpush.msra.mxu0 0.0
        %2896 = vmatpush.msra.mxu0 0.0
        %2897 = vmatpush.msra.mxu0 0.0
        %2898 = vmatpush.msra.mxu0 0.0
        %2899 = vmatpush.msra.mxu0 0.0
        %2900 = vmatpush.msra.mxu0 0.0
        %2901 = vmatpush.msra.mxu0 0.0
        %2902 = vmatpush.msra.mxu0 0.0
        %v2903 = vand.u32 %v2852, 4294901760
        %v2904 = vsub.f32 %v2852, %v2903
        %v2905 = vand.u32 %v2904, 4294901760
        %v2906 = vsub.f32 %v2904, %v2905
        %v2907 = vand.u32 %v2906, 4294901760
        %2908 = vmatpush.msra.mxu0 %v2907
        %v2909 = vand.u32 %v2846, 4294901760
        %2910 = vmatmul.f32.gmra.mxu0 %v2909
        %v2911 = vpop.f32.mrf.mxu0
        %v2912 = vadd.f32 %v2878, %v2911
        %v2913 = vand.u32 %v2849, 4294901760
        %2914 = vmatmul.f32.gmra.mxu0 %v2913
        %v2915 = vpop.f32.mrf.mxu0
        %v2916 = vadd.f32 %v2886, %v2915
        %2917 = vdwg.mxu0
        %2918 = vmatpush.msra.mxu0 0.0
        %2919 = vmatpush.msra.mxu0 0.0
        %2920 = vmatpush.msra.mxu0 0.0
        %2921 = vmatpush.msra.mxu0 0.0
        %2922 = vmatpush.msra.mxu0 0.0
        %2923 = vmatpush.msra.mxu0 0.0
        %2924 = vmatpush.msra.mxu0 0.0
        %2925 = vmatpush.msra.mxu0 0.0
        %2926 = vmatpush.msra.mxu0 0.0
        %2927 = vmatpush.msra.mxu0 0.0
        %2928 = vmatpush.msra.mxu0 0.0
        %2929 = vmatpush.msra.mxu0 0.0
        %2930 = vmatpush.msra.mxu0 0.0
        %2931 = vmatpush.msra.mxu0 0.0
        %2932 = vmatpush.msra.mxu0 0.0
        %v2933 = vand.u32 %v2852, 4294901760
        %v2934 = vsub.f32 %v2852, %v2933
        %2935 = vmatpush.msra.mxu0 %v2934
        %v2936 = vand.u32 %v2846, 4294901760
        %v2937 = vsub.f32 %v2846, %v2936
        %2938 = vmatmul.f32.gmra.mxu0 %v2937
        %v2939 = vpop.f32.mrf.mxu0
        %v2940 = vadd.f32 %v2912, %v2939
        %v2941 = vand.u32 %v2849, 4294901760
        %v2942 = vsub.f32 %v2849, %v2941
        %2943 = vmatmul.f32.gmra.mxu0 %v2942
        %v2944 = vpop.f32.mrf.mxu0
        %v2945 = vadd.f32 %v2916, %v2944
        %2946 = vdwg.mxu0
        %2947 = vmatpush.msra.mxu0 0.0
        %2948 = vmatpush.msra.mxu0 0.0
        %2949 = vmatpush.msra.mxu0 0.0
        %2950 = vmatpush.msra.mxu0 0.0
        %2951 = vmatpush.msra.mxu0 0.0
        %2952 = vmatpush.msra.mxu0 0.0
        %2953 = vmatpush.msra.mxu0 0.0
        %2954 = vmatpush.msra.mxu0 0.0
        %2955 = vmatpush.msra.mxu0 0.0
        %2956 = vmatpush.msra.mxu0 0.0
        %2957 = vmatpush.msra.mxu0 0.0
        %2958 = vmatpush.msra.mxu0 0.0
        %2959 = vmatpush.msra.mxu0 0.0
        %2960 = vmatpush.msra.mxu0 0.0
        %2961 = vmatpush.msra.mxu0 0.0
        %v2962 = vand.u32 %v2852, 4294901760
        %2963 = vmatpush.msra.mxu0 %v2962
        %v2964 = vand.u32 %v2846, 4294901760
        %v2965 = vsub.f32 %v2846, %v2964
        %v2966 = vand.u32 %v2965, 4294901760
        %2967 = vmatmul.f32.gmra.mxu0 %v2966
        %v2968 = vpop.f32.mrf.mxu0
        %v2969 = vadd.f32 %v2940, %v2968
        %v2970 = vand.u32 %v2849, 4294901760
        %v2971 = vsub.f32 %v2849, %v2970
        %v2972 = vand.u32 %v2971, 4294901760
        %2973 = vmatmul.f32.gmra.mxu0 %v2972
        %v2974 = vpop.f32.mrf.mxu0
        %v2975 = vadd.f32 %v2945, %v2974
        %2976 = vdwg.mxu0
        %2977 = vmatpush.msra.mxu0 0.0
        %2978 = vmatpush.msra.mxu0 0.0
        %2979 = vmatpush.msra.mxu0 0.0
        %2980 = vmatpush.msra.mxu0 0.0
        %2981 = vmatpush.msra.mxu0 0.0
        %2982 = vmatpush.msra.mxu0 0.0
        %2983 = vmatpush.msra.mxu0 0.0
        %2984 = vmatpush.msra.mxu0 0.0
        %2985 = vmatpush.msra.mxu0 0.0
        %2986 = vmatpush.msra.mxu0 0.0
        %2987 = vmatpush.msra.mxu0 0.0
        %2988 = vmatpush.msra.mxu0 0.0
        %2989 = vmatpush.msra.mxu0 0.0
        %2990 = vmatpush.msra.mxu0 0.0
        %2991 = vmatpush.msra.mxu0 0.0
        %v2992 = vand.u32 %v2852, 4294901760
        %v2993 = vsub.f32 %v2852, %v2992
        %v2994 = vand.u32 %v2993, 4294901760
        %2995 = vmatpush.msra.mxu0 %v2994
        %v2996 = vand.u32 %v2846, 4294901760
        %2997 = vmatmul.f32.gmra.mxu0 %v2996
        %v2998 = vpop.f32.mrf.mxu0
        %v2999 = vadd.f32 %v2969, %v2998
        %v3000 = vand.u32 %v2849, 4294901760
        %3001 = vmatmul.f32.gmra.mxu0 %v3000
        %v3002 = vpop.f32.mrf.mxu0
        %v3003 = vadd.f32 %v2975, %v3002
        %3004 = vdwg.mxu0
        %3005 = vmatpush.msra.mxu0 0.0
        %3006 = vmatpush.msra.mxu0 0.0
        %3007 = vmatpush.msra.mxu0 0.0
        %3008 = vmatpush.msra.mxu0 0.0
        %3009 = vmatpush.msra.mxu0 0.0
        %3010 = vmatpush.msra.mxu0 0.0
        %3011 = vmatpush.msra.mxu0 0.0
        %3012 = vmatpush.msra.mxu0 0.0
        %3013 = vmatpush.msra.mxu0 0.0
        %3014 = vmatpush.msra.mxu0 0.0
        %3015 = vmatpush.msra.mxu0 0.0
        %3016 = vmatpush.msra.mxu0 0.0
        %3017 = vmatpush.msra.mxu0 0.0
        %3018 = vmatpush.msra.mxu0 0.0
        %3019 = vmatpush.msra.mxu0 0.0
        %v3020 = vand.u32 %v2852, 4294901760
        %3021 = vmatpush.msra.mxu0 %v3020
        %v3022 = vand.u32 %v2846, 4294901760
        %3023 = vmatmul.f32.gmra.mxu0 %v3022
        %v3024 = vpop.f32.mrf.mxu0
        %v3025 = vadd.f32 %v2999, %v3024
        %v3026 = vand.u32 %v2849, 4294901760
        %3027 = vmatmul.f32.gmra.mxu0 %v3026
        %v3028 = vpop.f32.mrf.mxu0
        %v3029 = vadd.f32 %v3003, %v3028
        %3030 = vdwg.mxu0
        %v3032 = vsel %vm1541, %v1302, 0
        %v3035 = vsel %vm1541, %v1414, 0
        %v3038 = vsel %vm1548, %v1516, 0
        %3040 = vmatpush.msra.mxu0 0.0
        %3041 = vmatpush.msra.mxu0 0.0
        %3042 = vmatpush.msra.mxu0 0.0
        %3043 = vmatpush.msra.mxu0 0.0
        %3044 = vmatpush.msra.mxu0 0.0
        %3045 = vmatpush.msra.mxu0 0.0
        %3046 = vmatpush.msra.mxu0 0.0
        %3047 = vmatpush.msra.mxu0 0.0
        %3048 = vmatpush.msra.mxu0 0.0
        %3049 = vmatpush.msra.mxu0 0.0
        %3050 = vmatpush.msra.mxu0 0.0
        %3051 = vmatpush.msra.mxu0 0.0
        %3052 = vmatpush.msra.mxu0 0.0
        %3053 = vmatpush.msra.mxu0 0.0
        %3054 = vmatpush.msra.mxu0 0.0
        %v3055 = vand.u32 %v3038, 4294901760
        %3056 = vmatpush.msra.mxu0 %v3055
        %v3057 = vand.u32 %v3032, 4294901760
        %v3058 = vsub.f32 %v3032, %v3057
        %v3059 = vand.u32 %v3058, 4294901760
        %v3060 = vsub.f32 %v3058, %v3059
        %v3061 = vand.u32 %v3060, 4294901760
        %3062 = vmatmul.f32.gmra.mxu0 %v3061
        %v3063 = vpop.f32.mrf.mxu0
        %v3064 = vadd.f32 0.0, %v3063
        %v3065 = vand.u32 %v3035, 4294901760
        %v3066 = vsub.f32 %v3035, %v3065
        %v3067 = vand.u32 %v3066, 4294901760
        %v3068 = vsub.f32 %v3066, %v3067
        %v3069 = vand.u32 %v3068, 4294901760
        %3070 = vmatmul.f32.gmra.mxu0 %v3069
        %v3071 = vpop.f32.mrf.mxu0
        %v3072 = vadd.f32 0.0, %v3071
        %3073 = vdwg.mxu0
        %3074 = vmatpush.msra.mxu0 0.0
        %3075 = vmatpush.msra.mxu0 0.0
        %3076 = vmatpush.msra.mxu0 0.0
        %3077 = vmatpush.msra.mxu0 0.0
        %3078 = vmatpush.msra.mxu0 0.0
        %3079 = vmatpush.msra.mxu0 0.0
        %3080 = vmatpush.msra.mxu0 0.0
        %3081 = vmatpush.msra.mxu0 0.0
        %3082 = vmatpush.msra.mxu0 0.0
        %3083 = vmatpush.msra.mxu0 0.0
        %3084 = vmatpush.msra.mxu0 0.0
        %3085 = vmatpush.msra.mxu0 0.0
        %3086 = vmatpush.msra.mxu0 0.0
        %3087 = vmatpush.msra.mxu0 0.0
        %3088 = vmatpush.msra.mxu0 0.0
        %v3089 = vand.u32 %v3038, 4294901760
        %v3090 = vsub.f32 %v3038, %v3089
        %v3091 = vand.u32 %v3090, 4294901760
        %v3092 = vsub.f32 %v3090, %v3091
        %v3093 = vand.u32 %v3092, 4294901760
        %3094 = vmatpush.msra.mxu0 %v3093
        %v3095 = vand.u32 %v3032, 4294901760
        %3096 = vmatmul.f32.gmra.mxu0 %v3095
        %v3097 = vpop.f32.mrf.mxu0
        %v3098 = vadd.f32 %v3064, %v3097
        %v3099 = vand.u32 %v3035, 4294901760
        %3100 = vmatmul.f32.gmra.mxu0 %v3099
        %v3101 = vpop.f32.mrf.mxu0
        %v3102 = vadd.f32 %v3072, %v3101
        %3103 = vdwg.mxu0
        %3104 = vmatpush.msra.mxu0 0.0
        %3105 = vmatpush.msra.mxu0 0.0
        %3106 = vmatpush.msra.mxu0 0.0
        %3107 = vmatpush.msra.mxu0 0.0
        %3108 = vmatpush.msra.mxu0 0.0
        %3109 = vmatpush.msra.mxu0 0.0
        %3110 = vmatpush.msra.mxu0 0.0
        %3111 = vmatpush.msra.mxu0 0.0
        %3112 = vmatpush.msra.mxu0 0.0
        %3113 = vmatpush.msra.mxu0 0.0
        %3114 = vmatpush.msra.mxu0 0.0
        %3115 = vmatpush.msra.mxu0 0.0
        %3116 = vmatpush.msra.mxu0 0.0
        %3117 = vmatpush.msra.mxu0 0.0
        %3118 = vmatpush.msra.mxu0 0.0
        %v3119 = vand.u32 %v3038, 4294901760
        %v3120 = vsub.f32 %v3038, %v3119
        %3121 = vmatpush.msra.mxu0 %v3120
        %v3122 = vand.u32 %v3032, 4294901760
        %v3123 = vsub.f32 %v3032, %v3122
        %3124 = vmatmul.f32.gmra.mxu0 %v3123
        %v3125 = vpop.f32.mrf.mxu0
        %v3126 = vadd.f32 %v3098, %v3125
        %v3127 = vand.u32 %v3035, 4294901760
        %v3128 = vsub.f32 %v3035, %v3127
        %3129 = vmatmul.f32.gmra.mxu0 %v3128
        %v3130 = vpop.f32.mrf.mxu0
        %v3131 = vadd.f32 %v3102, %v3130
        %3132 = vdwg.mxu0
        %3133 = vmatpush.msra.mxu0 0.0
        %3134 = vmatpush.msra.mxu0 0.0
        %3135 = vmatpush.msra.mxu0 0.0
        %3136 = vmatpush.msra.mxu0 0.0
        %3137 = vmatpush.msra.mxu0 0.0
        %3138 = vmatpush.msra.mxu0 0.0
        %3139 = vmatpush.msra.mxu0 0.0
        %3140 = vmatpush.msra.mxu0 0.0
        %3141 = vmatpush.msra.mxu0 0.0
        %3142 = vmatpush.msra.mxu0 0.0
        %3143 = vmatpush.msra.mxu0 0.0
        %3144 = vmatpush.msra.mxu0 0.0
        %3145 = vmatpush.msra.mxu0 0.0
        %3146 = vmatpush.msra.mxu0 0.0
        %3147 = vmatpush.msra.mxu0 0.0
        %v3148 = vand.u32 %v3038, 4294901760
        %3149 = vmatpush.msra.mxu0 %v3148
        %v3150 = vand.u32 %v3032, 4294901760
        %v3151 = vsub.f32 %v3032, %v3150
        %v3152 = vand.u32 %v3151, 4294901760
        %3153 = vmatmul.f32.gmra.mxu0 %v3152
        %v3154 = vpop.f32.mrf.mxu0
        %v3155 = vadd.f32 %v3126, %v3154
        %v3156 = vand.u32 %v3035, 4294901760
        %v3157 = vsub.f32 %v3035, %v3156
        %v3158 = vand.u32 %v3157, 4294901760
        %3159 = vmatmul.f32.gmra.mxu0 %v3158
        %v3160 = vpop.f32.mrf.mxu0
        %v3161 = vadd.f32 %v3131, %v3160
        %3162 = vdwg.mxu0
        %3163 = vmatpush.msra.mxu0 0.0
        %3164 = vmatpush.msra.mxu0 0.0
        %3165 = vmatpush.msra.mxu0 0.0
        %3166 = vmatpush.msra.mxu0 0.0
        %3167 = vmatpush.msra.mxu0 0.0
        %3168 = vmatpush.msra.mxu0 0.0
        %3169 = vmatpush.msra.mxu0 0.0
        %3170 = vmatpush.msra.mxu0 0.0
        %3171 = vmatpush.msra.mxu0 0.0
        %3172 = vmatpush.msra.mxu0 0.0
        %3173 = vmatpush.msra.mxu0 0.0
        %3174 = vmatpush.msra.mxu0 0.0
        %3175 = vmatpush.msra.mxu0 0.0
        %3176 = vmatpush.msra.mxu0 0.0
        %3177 = vmatpush.msra.mxu0 0.0
        %v3178 = vand.u32 %v3038, 4294901760
        %v3179 = vsub.f32 %v3038, %v3178
        %v3180 = vand.u32 %v3179, 4294901760
        %3181 = vmatpush.msra.mxu0 %v3180
        %v3182 = vand.u32 %v3032, 4294901760
        %3183 = vmatmul.f32.gmra.mxu0 %v3182
        %v3184 = vpop.f32.mrf.mxu0
        %v3185 = vadd.f32 %v3155, %v3184
        %v3186 = vand.u32 %v3035, 4294901760
        %3187 = vmatmul.f32.gmra.mxu0 %v3186
        %v3188 = vpop.f32.mrf.mxu0
        %v3189 = vadd.f32 %v3161, %v3188
        %3190 = vdwg.mxu0
        %3191 = vmatpush.msra.mxu0 0.0
        %3192 = vmatpush.msra.mxu0 0.0
        %3193 = vmatpush.msra.mxu0 0.0
        %3194 = vmatpush.msra.mxu0 0.0
        %3195 = vmatpush.msra.mxu0 0.0
        %3196 = vmatpush.msra.mxu0 0.0
        %3197 = vmatpush.msra.mxu0 0.0
        %3198 = vmatpush.msra.mxu0 0.0
        %3199 = vmatpush.msra.mxu0 0.0
        %3200 = vmatpush.msra.mxu0 0.0
        %3201 = vmatpush.msra.mxu0 0.0
        %3202 = vmatpush.msra.mxu0 0.0
        %3203 = vmatpush.msra.mxu0 0.0
        %3204 = vmatpush.msra.mxu0 0.0
        %3205 = vmatpush.msra.mxu0 0.0
        %v3206 = vand.u32 %v3038, 4294901760
        %3207 = vmatpush.msra.mxu0 %v3206
        %v3208 = vand.u32 %v3032, 4294901760
        %3209 = vmatmul.f32.gmra.mxu0 %v3208
        %v3210 = vpop.f32.mrf.mxu0
        %v3211 = vadd.f32 %v3185, %v3210
        %v3212 = vand.u32 %v3035, 4294901760
        %3213 = vmatmul.f32.gmra.mxu0 %v3212
        %v3214 = vpop.f32.mrf.mxu0
        %v3215 = vadd.f32 %v3189, %v3214
        %3216 = vdwg.mxu0
        %v3218 = vsel %vm1541, %v1304, 0
        %v3221 = vsel %vm1541, %v1416, 0
        %v3224 = vsel %vm1548, %v1534, 0
        %3226 = vmatpush.msra.mxu0 0.0
        %3227 = vmatpush.msra.mxu0 0.0
        %3228 = vmatpush.msra.mxu0 0.0
        %3229 = vmatpush.msra.mxu0 0.0
        %3230 = vmatpush.msra.mxu0 0.0
        %3231 = vmatpush.msra.mxu0 0.0
        %3232 = vmatpush.msra.mxu0 0.0
        %3233 = vmatpush.msra.mxu0 0.0
        %3234 = vmatpush.msra.mxu0 0.0
        %3235 = vmatpush.msra.mxu0 0.0
        %3236 = vmatpush.msra.mxu0 0.0
        %3237 = vmatpush.msra.mxu0 0.0
        %3238 = vmatpush.msra.mxu0 0.0
        %3239 = vmatpush.msra.mxu0 0.0
        %3240 = vmatpush.msra.mxu0 0.0
        %v3241 = vand.u32 %v3224, 4294901760
        %3242 = vmatpush.msra.mxu0 %v3241
        %v3243 = vand.u32 %v3218, 4294901760
        %v3244 = vsub.f32 %v3218, %v3243
        %v3245 = vand.u32 %v3244, 4294901760
        %v3246 = vsub.f32 %v3244, %v3245
        %v3247 = vand.u32 %v3246, 4294901760
        %3248 = vmatmul.f32.gmra.mxu0 %v3247
        %v3249 = vpop.f32.mrf.mxu0
        %v3250 = vadd.f32 0.0, %v3249
        %v3251 = vand.u32 %v3221, 4294901760
        %v3252 = vsub.f32 %v3221, %v3251
        %v3253 = vand.u32 %v3252, 4294901760
        %v3254 = vsub.f32 %v3252, %v3253
        %v3255 = vand.u32 %v3254, 4294901760
        %3256 = vmatmul.f32.gmra.mxu0 %v3255
        %v3257 = vpop.f32.mrf.mxu0
        %v3258 = vadd.f32 0.0, %v3257
        %3259 = vdwg.mxu0
        %3260 = vmatpush.msra.mxu0 0.0
        %3261 = vmatpush.msra.mxu0 0.0
        %3262 = vmatpush.msra.mxu0 0.0
        %3263 = vmatpush.msra.mxu0 0.0
        %3264 = vmatpush.msra.mxu0 0.0
        %3265 = vmatpush.msra.mxu0 0.0
        %3266 = vmatpush.msra.mxu0 0.0
        %3267 = vmatpush.msra.mxu0 0.0
        %3268 = vmatpush.msra.mxu0 0.0
        %3269 = vmatpush.msra.mxu0 0.0
        %3270 = vmatpush.msra.mxu0 0.0
        %3271 = vmatpush.msra.mxu0 0.0
        %3272 = vmatpush.msra.mxu0 0.0
        %3273 = vmatpush.msra.mxu0 0.0
        %3274 = vmatpush.msra.mxu0 0.0
        %v3275 = vand.u32 %v3224, 4294901760
        %v3276 = vsub.f32 %v3224, %v3275
        %v3277 = vand.u32 %v3276, 4294901760
        %v3278 = vsub.f32 %v3276, %v3277
        %v3279 = vand.u32 %v3278, 4294901760
        %3280 = vmatpush.msra.mxu0 %v3279
        %v3281 = vand.u32 %v3218, 4294901760
        %3282 = vmatmul.f32.gmra.mxu0 %v3281
        %v3283 = vpop.f32.mrf.mxu0
        %v3284 = vadd.f32 %v3250, %v3283
        %v3285 = vand.u32 %v3221, 4294901760
        %3286 = vmatmul.f32.gmra.mxu0 %v3285
        %v3287 = vpop.f32.mrf.mxu0
        %v3288 = vadd.f32 %v3258, %v3287
        %3289 = vdwg.mxu0
        %3290 = vmatpush.msra.mxu0 0.0
        %3291 = vmatpush.msra.mxu0 0.0
        %3292 = vmatpush.msra.mxu0 0.0
        %3293 = vmatpush.msra.mxu0 0.0
        %3294 = vmatpush.msra.mxu0 0.0
        %3295 = vmatpush.msra.mxu0 0.0
        %3296 = vmatpush.msra.mxu0 0.0
        %3297 = vmatpush.msra.mxu0 0.0
        %3298 = vmatpush.msra.mxu0 0.0
        %3299 = vmatpush.msra.mxu0 0.0
        %3300 = vmatpush.msra.mxu0 0.0
        %3301 = vmatpush.msra.mxu0 0.0
        %3302 = vmatpush.msra.mxu0 0.0
        %3303 = vmatpush.msra.mxu0 0.0
        %3304 = vmatpush.msra.mxu0 0.0
        %v3305 = vand.u32 %v3224, 4294901760
        %v3306 = vsub.f32 %v3224, %v3305
        %3307 = vmatpush.msra.mxu0 %v3306
        %v3308 = vand.u32 %v3218, 4294901760
        %v3309 = vsub.f32 %v3218, %v3308
        %3310 = vmatmul.f32.gmra.mxu0 %v3309
        %v3311 = vpop.f32.mrf.mxu0
        %v3312 = vadd.f32 %v3284, %v3311
        %v3313 = vand.u32 %v3221, 4294901760
        %v3314 = vsub.f32 %v3221, %v3313
        %3315 = vmatmul.f32.gmra.mxu0 %v3314
        %v3316 = vpop.f32.mrf.mxu0
        %v3317 = vadd.f32 %v3288, %v3316
        %3318 = vdwg.mxu0
        %3319 = vmatpush.msra.mxu0 0.0
        %3320 = vmatpush.msra.mxu0 0.0
        %3321 = vmatpush.msra.mxu0 0.0
        %3322 = vmatpush.msra.mxu0 0.0
        %3323 = vmatpush.msra.mxu0 0.0
        %3324 = vmatpush.msra.mxu0 0.0
        %3325 = vmatpush.msra.mxu0 0.0
        %3326 = vmatpush.msra.mxu0 0.0
        %3327 = vmatpush.msra.mxu0 0.0
        %3328 = vmatpush.msra.mxu0 0.0
        %3329 = vmatpush.msra.mxu0 0.0
        %3330 = vmatpush.msra.mxu0 0.0
        %3331 = vmatpush.msra.mxu0 0.0
        %3332 = vmatpush.msra.mxu0 0.0
        %3333 = vmatpush.msra.mxu0 0.0
        %v3334 = vand.u32 %v3224, 4294901760
        %3335 = vmatpush.msra.mxu0 %v3334
        %v3336 = vand.u32 %v3218, 4294901760
        %v3337 = vsub.f32 %v3218, %v3336
        %v3338 = vand.u32 %v3337, 4294901760
        %3339 = vmatmul.f32.gmra.mxu0 %v3338
        %v3340 = vpop.f32.mrf.mxu0
        %v3341 = vadd.f32 %v3312, %v3340
        %v3342 = vand.u32 %v3221, 4294901760
        %v3343 = vsub.f32 %v3221, %v3342
        %v3344 = vand.u32 %v3343, 4294901760
        %3345 = vmatmul.f32.gmra.mxu0 %v3344
        %v3346 = vpop.f32.mrf.mxu0
        %v3347 = vadd.f32 %v3317, %v3346
        %3348 = vdwg.mxu0
        %3349 = vmatpush.msra.mxu0 0.0
        %3350 = vmatpush.msra.mxu0 0.0
        %3351 = vmatpush.msra.mxu0 0.0
        %3352 = vmatpush.msra.mxu0 0.0
        %3353 = vmatpush.msra.mxu0 0.0
        %3354 = vmatpush.msra.mxu0 0.0
        %3355 = vmatpush.msra.mxu0 0.0
        %3356 = vmatpush.msra.mxu0 0.0
        %3357 = vmatpush.msra.mxu0 0.0
        %3358 = vmatpush.msra.mxu0 0.0
        %3359 = vmatpush.msra.mxu0 0.0
        %3360 = vmatpush.msra.mxu0 0.0
        %3361 = vmatpush.msra.mxu0 0.0
        %3362 = vmatpush.msra.mxu0 0.0
        %3363 = vmatpush.msra.mxu0 0.0
        %v3364 = vand.u32 %v3224, 4294901760
        %v3365 = vsub.f32 %v3224, %v3364
        %v3366 = vand.u32 %v3365, 4294901760
        %3367 = vmatpush.msra.mxu0 %v3366
        %v3368 = vand.u32 %v3218, 4294901760
        %3369 = vmatmul.f32.gmra.mxu0 %v3368
        %v3370 = vpop.f32.mrf.mxu0
        %v3371 = vadd.f32 %v3341, %v3370
        %v3372 = vand.u32 %v3221, 4294901760
        %3373 = vmatmul.f32.gmra.mxu0 %v3372
        %v3374 = vpop.f32.mrf.mxu0
        %v3375 = vadd.f32 %v3347, %v3374
        %3376 = vdwg.mxu0
        %3377 = vmatpush.msra.mxu0 0.0
        %3378 = vmatpush.msra.mxu0 0.0
        %3379 = vmatpush.msra.mxu0 0.0
        %3380 = vmatpush.msra.mxu0 0.0
        %3381 = vmatpush.msra.mxu0 0.0
        %3382 = vmatpush.msra.mxu0 0.0
        %3383 = vmatpush.msra.mxu0 0.0
        %3384 = vmatpush.msra.mxu0 0.0
        %3385 = vmatpush.msra.mxu0 0.0
        %3386 = vmatpush.msra.mxu0 0.0
        %3387 = vmatpush.msra.mxu0 0.0
        %3388 = vmatpush.msra.mxu0 0.0
        %3389 = vmatpush.msra.mxu0 0.0
        %3390 = vmatpush.msra.mxu0 0.0
        %3391 = vmatpush.msra.mxu0 0.0
        %v3392 = vand.u32 %v3224, 4294901760
        %3393 = vmatpush.msra.mxu0 %v3392
        %v3394 = vand.u32 %v3218, 4294901760
        %3395 = vmatmul.f32.gmra.mxu0 %v3394
        %v3396 = vpop.f32.mrf.mxu0
        %v3397 = vadd.f32 %v3371, %v3396
        %v3398 = vand.u32 %v3221, 4294901760
        %3399 = vmatmul.f32.gmra.mxu0 %v3398
        %v3400 = vpop.f32.mrf.mxu0
        %v3401 = vadd.f32 %v3375, %v3400
        %3402 = vdwg.mxu0
        %v3404 = vsel %vm1541, %v1306, 0
        %v3407 = vsel %vm1541, %v1418, 0
        %v3410 = vsel %vm1548, %v1520, 0
        %3412 = vmatpush.msra.mxu0 0.0
        %3413 = vmatpush.msra.mxu0 0.0
        %3414 = vmatpush.msra.mxu0 0.0
        %3415 = vmatpush.msra.mxu0 0.0
        %3416 = vmatpush.msra.mxu0 0.0
        %3417 = vmatpush.msra.mxu0 0.0
        %3418 = vmatpush.msra.mxu0 0.0
        %3419 = vmatpush.msra.mxu0 0.0
        %3420 = vmatpush.msra.mxu0 0.0
        %3421 = vmatpush.msra.mxu0 0.0
        %3422 = vmatpush.msra.mxu0 0.0
        %3423 = vmatpush.msra.mxu0 0.0
        %3424 = vmatpush.msra.mxu0 0.0
        %3425 = vmatpush.msra.mxu0 0.0
        %3426 = vmatpush.msra.mxu0 0.0
        %v3427 = vand.u32 %v3410, 4294901760
        %3428 = vmatpush.msra.mxu0 %v3427
        %v3429 = vand.u32 %v3404, 4294901760
        %v3430 = vsub.f32 %v3404, %v3429
        %v3431 = vand.u32 %v3430, 4294901760
        %v3432 = vsub.f32 %v3430, %v3431
        %v3433 = vand.u32 %v3432, 4294901760
        %3434 = vmatmul.f32.gmra.mxu0 %v3433
        %v3435 = vpop.f32.mrf.mxu0
        %v3436 = vadd.f32 0.0, %v3435
        %v3437 = vand.u32 %v3407, 4294901760
        %v3438 = vsub.f32 %v3407, %v3437
        %v3439 = vand.u32 %v3438, 4294901760
        %v3440 = vsub.f32 %v3438, %v3439
        %v3441 = vand.u32 %v3440, 4294901760
        %3442 = vmatmul.f32.gmra.mxu0 %v3441
        %v3443 = vpop.f32.mrf.mxu0
        %v3444 = vadd.f32 0.0, %v3443
        %3445 = vdwg.mxu0
        %3446 = vmatpush.msra.mxu0 0.0
        %3447 = vmatpush.msra.mxu0 0.0
        %3448 = vmatpush.msra.mxu0 0.0
        %3449 = vmatpush.msra.mxu0 0.0
        %3450 = vmatpush.msra.mxu0 0.0
        %3451 = vmatpush.msra.mxu0 0.0
        %3452 = vmatpush.msra.mxu0 0.0
        %3453 = vmatpush.msra.mxu0 0.0
        %3454 = vmatpush.msra.mxu0 0.0
        %3455 = vmatpush.msra.mxu0 0.0
        %3456 = vmatpush.msra.mxu0 0.0
        %3457 = vmatpush.msra.mxu0 0.0
        %3458 = vmatpush.msra.mxu0 0.0
        %3459 = vmatpush.msra.mxu0 0.0
        %3460 = vmatpush.msra.mxu0 0.0
        %v3461 = vand.u32 %v3410, 4294901760
        %v3462 = vsub.f32 %v3410, %v3461
        %v3463 = vand.u32 %v3462, 4294901760
        %v3464 = vsub.f32 %v3462, %v3463
        %v3465 = vand.u32 %v3464, 4294901760
        %3466 = vmatpush.msra.mxu0 %v3465
        %v3467 = vand.u32 %v3404, 4294901760
        %3468 = vmatmul.f32.gmra.mxu0 %v3467
        %v3469 = vpop.f32.mrf.mxu0
        %v3470 = vadd.f32 %v3436, %v3469
        %v3471 = vand.u32 %v3407, 4294901760
        %3472 = vmatmul.f32.gmra.mxu0 %v3471
        %v3473 = vpop.f32.mrf.mxu0
        %v3474 = vadd.f32 %v3444, %v3473
        %3475 = vdwg.mxu0
        %3476 = vmatpush.msra.mxu0 0.0
        %3477 = vmatpush.msra.mxu0 0.0
        %3478 = vmatpush.msra.mxu0 0.0
        %3479 = vmatpush.msra.mxu0 0.0
        %3480 = vmatpush.msra.mxu0 0.0
        %3481 = vmatpush.msra.mxu0 0.0
        %3482 = vmatpush.msra.mxu0 0.0
        %3483 = vmatpush.msra.mxu0 0.0
        %3484 = vmatpush.msra.mxu0 0.0
        %3485 = vmatpush.msra.mxu0 0.0
        %3486 = vmatpush.msra.mxu0 0.0
        %3487 = vmatpush.msra.mxu0 0.0
        %3488 = vmatpush.msra.mxu0 0.0
        %3489 = vmatpush.msra.mxu0 0.0
        %3490 = vmatpush.msra.mxu0 0.0
        %v3491 = vand.u32 %v3410, 4294901760
        %v3492 = vsub.f32 %v3410, %v3491
        %3493 = vmatpush.msra.mxu0 %v3492
        %v3494 = vand.u32 %v3404, 4294901760
        %v3495 = vsub.f32 %v3404, %v3494
        %3496 = vmatmul.f32.gmra.mxu0 %v3495
        %v3497 = vpop.f32.mrf.mxu0
        %v3498 = vadd.f32 %v3470, %v3497
        %v3499 = vand.u32 %v3407, 4294901760
        %v3500 = vsub.f32 %v3407, %v3499
        %3501 = vmatmul.f32.gmra.mxu0 %v3500
        %v3502 = vpop.f32.mrf.mxu0
        %v3503 = vadd.f32 %v3474, %v3502
        %3504 = vdwg.mxu0
        %3505 = vmatpush.msra.mxu0 0.0
        %3506 = vmatpush.msra.mxu0 0.0
        %3507 = vmatpush.msra.mxu0 0.0
        %3508 = vmatpush.msra.mxu0 0.0
        %3509 = vmatpush.msra.mxu0 0.0
        %3510 = vmatpush.msra.mxu0 0.0
        %3511 = vmatpush.msra.mxu0 0.0
        %3512 = vmatpush.msra.mxu0 0.0
        %3513 = vmatpush.msra.mxu0 0.0
        %3514 = vmatpush.msra.mxu0 0.0
        %3515 = vmatpush.msra.mxu0 0.0
        %3516 = vmatpush.msra.mxu0 0.0
        %3517 = vmatpush.msra.mxu0 0.0
        %3518 = vmatpush.msra.mxu0 0.0
        %3519 = vmatpush.msra.mxu0 0.0
        %v3520 = vand.u32 %v3410, 4294901760
        %3521 = vmatpush.msra.mxu0 %v3520
        %v3522 = vand.u32 %v3404, 4294901760
        %v3523 = vsub.f32 %v3404, %v3522
        %v3524 = vand.u32 %v3523, 4294901760
        %3525 = vmatmul.f32.gmra.mxu0 %v3524
        %v3526 = vpop.f32.mrf.mxu0
        %v3527 = vadd.f32 %v3498, %v3526
        %v3528 = vand.u32 %v3407, 4294901760
        %v3529 = vsub.f32 %v3407, %v3528
        %v3530 = vand.u32 %v3529, 4294901760
        %3531 = vmatmul.f32.gmra.mxu0 %v3530
        %v3532 = vpop.f32.mrf.mxu0
        %v3533 = vadd.f32 %v3503, %v3532
        %3534 = vdwg.mxu0
        %3535 = vmatpush.msra.mxu0 0.0
        %3536 = vmatpush.msra.mxu0 0.0
        %3537 = vmatpush.msra.mxu0 0.0
        %3538 = vmatpush.msra.mxu0 0.0
        %3539 = vmatpush.msra.mxu0 0.0
        %3540 = vmatpush.msra.mxu0 0.0
        %3541 = vmatpush.msra.mxu0 0.0
        %3542 = vmatpush.msra.mxu0 0.0
        %3543 = vmatpush.msra.mxu0 0.0
        %3544 = vmatpush.msra.mxu0 0.0
        %3545 = vmatpush.msra.mxu0 0.0
        %3546 = vmatpush.msra.mxu0 0.0
        %3547 = vmatpush.msra.mxu0 0.0
        %3548 = vmatpush.msra.mxu0 0.0
        %3549 = vmatpush.msra.mxu0 0.0
        %v3550 = vand.u32 %v3410, 4294901760
        %v3551 = vsub.f32 %v3410, %v3550
        %v3552 = vand.u32 %v3551, 4294901760
        %3553 = vmatpush.msra.mxu0 %v3552
        %v3554 = vand.u32 %v3404, 4294901760
        %3555 = vmatmul.f32.gmra.mxu0 %v3554
        %v3556 = vpop.f32.mrf.mxu0
        %v3557 = vadd.f32 %v3527, %v3556
        %v3558 = vand.u32 %v3407, 4294901760
        %3559 = vmatmul.f32.gmra.mxu0 %v3558
        %v3560 = vpop.f32.mrf.mxu0
        %v3561 = vadd.f32 %v3533, %v3560
        %3562 = vdwg.mxu0
        %3563 = vmatpush.msra.mxu0 0.0
        %3564 = vmatpush.msra.mxu0 0.0
        %3565 = vmatpush.msra.mxu0 0.0
        %3566 = vmatpush.msra.mxu0 0.0
        %3567 = vmatpush.msra.mxu0 0.0
        %3568 = vmatpush.msra.mxu0 0.0
        %3569 = vmatpush.msra.mxu0 0.0
        %3570 = vmatpush.msra.mxu0 0.0
        %3571 = vmatpush.msra.mxu0 0.0
        %3572 = vmatpush.msra.mxu0 0.0
        %3573 = vmatpush.msra.mxu0 0.0
        %3574 = vmatpush.msra.mxu0 0.0
        %3575 = vmatpush.msra.mxu0 0.0
        %3576 = vmatpush.msra.mxu0 0.0
        %3577 = vmatpush.msra.mxu0 0.0
        %v3578 = vand.u32 %v3410, 4294901760
        %3579 = vmatpush.msra.mxu0 %v3578
        %v3580 = vand.u32 %v3404, 4294901760
        %3581 = vmatmul.f32.gmra.mxu0 %v3580
        %v3582 = vpop.f32.mrf.mxu0
        %v3583 = vadd.f32 %v3557, %v3582
        %v3584 = vand.u32 %v3407, 4294901760
        %3585 = vmatmul.f32.gmra.mxu0 %v3584
        %v3586 = vpop.f32.mrf.mxu0
        %v3587 = vadd.f32 %v3561, %v3586
        %3588 = vdwg.mxu0
        %v3590 = vsel %vm1541, %v1308, 0
        %v3593 = vsel %vm1541, %v1420, 0
        %v3596 = vsel %vm1548, %v1536, 0
        %3598 = vmatpush.msra.mxu0 0.0
        %3599 = vmatpush.msra.mxu0 0.0
        %3600 = vmatpush.msra.mxu0 0.0
        %3601 = vmatpush.msra.mxu0 0.0
        %3602 = vmatpush.msra.mxu0 0.0
        %3603 = vmatpush.msra.mxu0 0.0
        %3604 = vmatpush.msra.mxu0 0.0
        %3605 = vmatpush.msra.mxu0 0.0
        %3606 = vmatpush.msra.mxu0 0.0
        %3607 = vmatpush.msra.mxu0 0.0
        %3608 = vmatpush.msra.mxu0 0.0
        %3609 = vmatpush.msra.mxu0 0.0
        %3610 = vmatpush.msra.mxu0 0.0
        %3611 = vmatpush.msra.mxu0 0.0
        %3612 = vmatpush.msra.mxu0 0.0
        %v3613 = vand.u32 %v3596, 4294901760
        %3614 = vmatpush.msra.mxu0 %v3613
        %v3615 = vand.u32 %v3590, 4294901760
        %v3616 = vsub.f32 %v3590, %v3615
        %v3617 = vand.u32 %v3616, 4294901760
        %v3618 = vsub.f32 %v3616, %v3617
        %v3619 = vand.u32 %v3618, 4294901760
        %3620 = vmatmul.f32.gmra.mxu0 %v3619
        %v3621 = vpop.f32.mrf.mxu0
        %v3622 = vadd.f32 0.0, %v3621
        %v3623 = vand.u32 %v3593, 4294901760
        %v3624 = vsub.f32 %v3593, %v3623
        %v3625 = vand.u32 %v3624, 4294901760
        %v3626 = vsub.f32 %v3624, %v3625
        %v3627 = vand.u32 %v3626, 4294901760
        %3628 = vmatmul.f32.gmra.mxu0 %v3627
        %v3629 = vpop.f32.mrf.mxu0
        %v3630 = vadd.f32 0.0, %v3629
        %3631 = vdwg.mxu0
        %3632 = vmatpush.msra.mxu0 0.0
        %3633 = vmatpush.msra.mxu0 0.0
        %3634 = vmatpush.msra.mxu0 0.0
        %3635 = vmatpush.msra.mxu0 0.0
        %3636 = vmatpush.msra.mxu0 0.0
        %3637 = vmatpush.msra.mxu0 0.0
        %3638 = vmatpush.msra.mxu0 0.0
        %3639 = vmatpush.msra.mxu0 0.0
        %3640 = vmatpush.msra.mxu0 0.0
        %3641 = vmatpush.msra.mxu0 0.0
        %3642 = vmatpush.msra.mxu0 0.0
        %3643 = vmatpush.msra.mxu0 0.0
        %3644 = vmatpush.msra.mxu0 0.0
        %3645 = vmatpush.msra.mxu0 0.0
        %3646 = vmatpush.msra.mxu0 0.0
        %v3647 = vand.u32 %v3596, 4294901760
        %v3648 = vsub.f32 %v3596, %v3647
        %v3649 = vand.u32 %v3648, 4294901760
        %v3650 = vsub.f32 %v3648, %v3649
        %v3651 = vand.u32 %v3650, 4294901760
        %3652 = vmatpush.msra.mxu0 %v3651
        %v3653 = vand.u32 %v3590, 4294901760
        %3654 = vmatmul.f32.gmra.mxu0 %v3653
        %v3655 = vpop.f32.mrf.mxu0
        %v3656 = vadd.f32 %v3622, %v3655
        %v3657 = vand.u32 %v3593, 4294901760
        %3658 = vmatmul.f32.gmra.mxu0 %v3657
        %v3659 = vpop.f32.mrf.mxu0
        %v3660 = vadd.f32 %v3630, %v3659
        %3661 = vdwg.mxu0
        %3662 = vmatpush.msra.mxu0 0.0
        %3663 = vmatpush.msra.mxu0 0.0
        %3664 = vmatpush.msra.mxu0 0.0
        %3665 = vmatpush.msra.mxu0 0.0
        %3666 = vmatpush.msra.mxu0 0.0
        %3667 = vmatpush.msra.mxu0 0.0
        %3668 = vmatpush.msra.mxu0 0.0
        %3669 = vmatpush.msra.mxu0 0.0
        %3670 = vmatpush.msra.mxu0 0.0
        %3671 = vmatpush.msra.mxu0 0.0
        %3672 = vmatpush.msra.mxu0 0.0
        %3673 = vmatpush.msra.mxu0 0.0
        %3674 = vmatpush.msra.mxu0 0.0
        %3675 = vmatpush.msra.mxu0 0.0
        %3676 = vmatpush.msra.mxu0 0.0
        %v3677 = vand.u32 %v3596, 4294901760
        %v3678 = vsub.f32 %v3596, %v3677
        %3679 = vmatpush.msra.mxu0 %v3678
        %v3680 = vand.u32 %v3590, 4294901760
        %v3681 = vsub.f32 %v3590, %v3680
        %3682 = vmatmul.f32.gmra.mxu0 %v3681
        %v3683 = vpop.f32.mrf.mxu0
        %v3684 = vadd.f32 %v3656, %v3683
        %v3685 = vand.u32 %v3593, 4294901760
        %v3686 = vsub.f32 %v3593, %v3685
        %3687 = vmatmul.f32.gmra.mxu0 %v3686
        %v3688 = vpop.f32.mrf.mxu0
        %v3689 = vadd.f32 %v3660, %v3688
        %3690 = vdwg.mxu0
        %3691 = vmatpush.msra.mxu0 0.0
        %3692 = vmatpush.msra.mxu0 0.0
        %3693 = vmatpush.msra.mxu0 0.0
        %3694 = vmatpush.msra.mxu0 0.0
        %3695 = vmatpush.msra.mxu0 0.0
        %3696 = vmatpush.msra.mxu0 0.0
        %3697 = vmatpush.msra.mxu0 0.0
        %3698 = vmatpush.msra.mxu0 0.0
        %3699 = vmatpush.msra.mxu0 0.0
        %3700 = vmatpush.msra.mxu0 0.0
        %3701 = vmatpush.msra.mxu0 0.0
        %3702 = vmatpush.msra.mxu0 0.0
        %3703 = vmatpush.msra.mxu0 0.0
        %3704 = vmatpush.msra.mxu0 0.0
        %3705 = vmatpush.msra.mxu0 0.0
        %v3706 = vand.u32 %v3596, 4294901760
        %3707 = vmatpush.msra.mxu0 %v3706
        %v3708 = vand.u32 %v3590, 4294901760
        %v3709 = vsub.f32 %v3590, %v3708
        %v3710 = vand.u32 %v3709, 4294901760
        %3711 = vmatmul.f32.gmra.mxu0 %v3710
        %v3712 = vpop.f32.mrf.mxu0
        %v3713 = vadd.f32 %v3684, %v3712
        %v3714 = vand.u32 %v3593, 4294901760
        %v3715 = vsub.f32 %v3593, %v3714
        %v3716 = vand.u32 %v3715, 4294901760
        %3717 = vmatmul.f32.gmra.mxu0 %v3716
        %v3718 = vpop.f32.mrf.mxu0
        %v3719 = vadd.f32 %v3689, %v3718
        %3720 = vdwg.mxu0
        %3721 = vmatpush.msra.mxu0 0.0
        %3722 = vmatpush.msra.mxu0 0.0
        %3723 = vmatpush.msra.mxu0 0.0
        %3724 = vmatpush.msra.mxu0 0.0
        %3725 = vmatpush.msra.mxu0 0.0
        %3726 = vmatpush.msra.mxu0 0.0
        %3727 = vmatpush.msra.mxu0 0.0
        %3728 = vmatpush.msra.mxu0 0.0
        %3729 = vmatpush.msra.mxu0 0.0
        %3730 = vmatpush.msra.mxu0 0.0
        %3731 = vmatpush.msra.mxu0 0.0
        %3732 = vmatpush.msra.mxu0 0.0
        %3733 = vmatpush.msra.mxu0 0.0
        %3734 = vmatpush.msra.mxu0 0.0
        %3735 = vmatpush.msra.mxu0 0.0
        %v3736 = vand.u32 %v3596, 4294901760
        %v3737 = vsub.f32 %v3596, %v3736
        %v3738 = vand.u32 %v3737, 4294901760
        %3739 = vmatpush.msra.mxu0 %v3738
        %v3740 = vand.u32 %v3590, 4294901760
        %3741 = vmatmul.f32.gmra.mxu0 %v3740
        %v3742 = vpop.f32.mrf.mxu0
        %v3743 = vadd.f32 %v3713, %v3742
        %v3744 = vand.u32 %v3593, 4294901760
        %3745 = vmatmul.f32.gmra.mxu0 %v3744
        %v3746 = vpop.f32.mrf.mxu0
        %v3747 = vadd.f32 %v3719, %v3746
        %3748 = vdwg.mxu0
        %3749 = vmatpush.msra.mxu0 0.0
        %3750 = vmatpush.msra.mxu0 0.0
        %3751 = vmatpush.msra.mxu0 0.0
        %3752 = vmatpush.msra.mxu0 0.0
        %3753 = vmatpush.msra.mxu0 0.0
        %3754 = vmatpush.msra.mxu0 0.0
        %3755 = vmatpush.msra.mxu0 0.0
        %3756 = vmatpush.msra.mxu0 0.0
        %3757 = vmatpush.msra.mxu0 0.0
        %3758 = vmatpush.msra.mxu0 0.0
        %3759 = vmatpush.msra.mxu0 0.0
        %3760 = vmatpush.msra.mxu0 0.0
        %3761 = vmatpush.msra.mxu0 0.0
        %3762 = vmatpush.msra.mxu0 0.0
        %3763 = vmatpush.msra.mxu0 0.0
        %v3764 = vand.u32 %v3596, 4294901760
        %3765 = vmatpush.msra.mxu0 %v3764
        %v3766 = vand.u32 %v3590, 4294901760
        %3767 = vmatmul.f32.gmra.mxu0 %v3766
        %v3768 = vpop.f32.mrf.mxu0
        %v3769 = vadd.f32 %v3743, %v3768
        %v3770 = vand.u32 %v3593, 4294901760
        %3771 = vmatmul.f32.gmra.mxu0 %v3770
        %v3772 = vpop.f32.mrf.mxu0
        %v3773 = vadd.f32 %v3747, %v3772
        %3774 = vdwg.mxu0
        %v3776 = vsel %vm1541, %v1310, 0
        %v3779 = vsel %vm1541, %v1422, 0
        %v3782 = vsel %vm1548, %v1528, 0
        %3784 = vmatpush.msra.mxu0 0.0
        %3785 = vmatpush.msra.mxu0 0.0
        %3786 = vmatpush.msra.mxu0 0.0
        %3787 = vmatpush.msra.mxu0 0.0
        %3788 = vmatpush.msra.mxu0 0.0
        %3789 = vmatpush.msra.mxu0 0.0
        %3790 = vmatpush.msra.mxu0 0.0
        %3791 = vmatpush.msra.mxu0 0.0
        %3792 = vmatpush.msra.mxu0 0.0
        %3793 = vmatpush.msra.mxu0 0.0
        %3794 = vmatpush.msra.mxu0 0.0
        %3795 = vmatpush.msra.mxu0 0.0
        %3796 = vmatpush.msra.mxu0 0.0
        %3797 = vmatpush.msra.mxu0 0.0
        %3798 = vmatpush.msra.mxu0 0.0
        %v3799 = vand.u32 %v3782, 4294901760
        %3800 = vmatpush.msra.mxu0 %v3799
        %v3801 = vand.u32 %v3776, 4294901760
        %v3802 = vsub.f32 %v3776, %v3801
        %v3803 = vand.u32 %v3802, 4294901760
        %v3804 = vsub.f32 %v3802, %v3803
        %v3805 = vand.u32 %v3804, 4294901760
        %3806 = vmatmul.f32.gmra.mxu0 %v3805
        %v3807 = vpop.f32.mrf.mxu0
        %v3808 = vadd.f32 0.0, %v3807
        %v3809 = vand.u32 %v3779, 4294901760
        %v3810 = vsub.f32 %v3779, %v3809
        %v3811 = vand.u32 %v3810, 4294901760
        %v3812 = vsub.f32 %v3810, %v3811
        %v3813 = vand.u32 %v3812, 4294901760
        %3814 = vmatmul.f32.gmra.mxu0 %v3813
        %v3815 = vpop.f32.mrf.mxu0
        %v3816 = vadd.f32 0.0, %v3815
        %3817 = vdwg.mxu0
        %3818 = vmatpush.msra.mxu0 0.0
        %3819 = vmatpush.msra.mxu0 0.0
        %3820 = vmatpush.msra.mxu0 0.0
        %3821 = vmatpush.msra.mxu0 0.0
        %3822 = vmatpush.msra.mxu0 0.0
        %3823 = vmatpush.msra.mxu0 0.0
        %3824 = vmatpush.msra.mxu0 0.0
        %3825 = vmatpush.msra.mxu0 0.0
        %3826 = vmatpush.msra.mxu0 0.0
        %3827 = vmatpush.msra.mxu0 0.0
        %3828 = vmatpush.msra.mxu0 0.0
        %3829 = vmatpush.msra.mxu0 0.0
        %3830 = vmatpush.msra.mxu0 0.0
        %3831 = vmatpush.msra.mxu0 0.0
        %3832 = vmatpush.msra.mxu0 0.0
        %v3833 = vand.u32 %v3782, 4294901760
        %v3834 = vsub.f32 %v3782, %v3833
        %v3835 = vand.u32 %v3834, 4294901760
        %v3836 = vsub.f32 %v3834, %v3835
        %v3837 = vand.u32 %v3836, 4294901760
        %3838 = vmatpush.msra.mxu0 %v3837
        %v3839 = vand.u32 %v3776, 4294901760
        %3840 = vmatmul.f32.gmra.mxu0 %v3839
        %v3841 = vpop.f32.mrf.mxu0
        %v3842 = vadd.f32 %v3808, %v3841
        %v3843 = vand.u32 %v3779, 4294901760
        %3844 = vmatmul.f32.gmra.mxu0 %v3843
        %v3845 = vpop.f32.mrf.mxu0
        %v3846 = vadd.f32 %v3816, %v3845
        %3847 = vdwg.mxu0
        %3848 = vmatpush.msra.mxu0 0.0
        %3849 = vmatpush.msra.mxu0 0.0
        %3850 = vmatpush.msra.mxu0 0.0
        %3851 = vmatpush.msra.mxu0 0.0
        %3852 = vmatpush.msra.mxu0 0.0
        %3853 = vmatpush.msra.mxu0 0.0
        %3854 = vmatpush.msra.mxu0 0.0
        %3855 = vmatpush.msra.mxu0 0.0
        %3856 = vmatpush.msra.mxu0 0.0
        %3857 = vmatpush.msra.mxu0 0.0
        %3858 = vmatpush.msra.mxu0 0.0
        %3859 = vmatpush.msra.mxu0 0.0
        %3860 = vmatpush.msra.mxu0 0.0
        %3861 = vmatpush.msra.mxu0 0.0
        %3862 = vmatpush.msra.mxu0 0.0
        %v3863 = vand.u32 %v3782, 4294901760
        %v3864 = vsub.f32 %v3782, %v3863
        %3865 = vmatpush.msra.mxu0 %v3864
        %v3866 = vand.u32 %v3776, 4294901760
        %v3867 = vsub.f32 %v3776, %v3866
        %3868 = vmatmul.f32.gmra.mxu0 %v3867
        %v3869 = vpop.f32.mrf.mxu0
        %v3870 = vadd.f32 %v3842, %v3869
        %v3871 = vand.u32 %v3779, 4294901760
        %v3872 = vsub.f32 %v3779, %v3871
        %3873 = vmatmul.f32.gmra.mxu0 %v3872
        %v3874 = vpop.f32.mrf.mxu0
        %v3875 = vadd.f32 %v3846, %v3874
        %3876 = vdwg.mxu0
        %3877 = vmatpush.msra.mxu0 0.0
        %3878 = vmatpush.msra.mxu0 0.0
        %3879 = vmatpush.msra.mxu0 0.0
        %3880 = vmatpush.msra.mxu0 0.0
        %3881 = vmatpush.msra.mxu0 0.0
        %3882 = vmatpush.msra.mxu0 0.0
        %3883 = vmatpush.msra.mxu0 0.0
        %3884 = vmatpush.msra.mxu0 0.0
        %3885 = vmatpush.msra.mxu0 0.0
        %3886 = vmatpush.msra.mxu0 0.0
        %3887 = vmatpush.msra.mxu0 0.0
        %3888 = vmatpush.msra.mxu0 0.0
        %3889 = vmatpush.msra.mxu0 0.0
        %3890 = vmatpush.msra.mxu0 0.0
        %3891 = vmatpush.msra.mxu0 0.0
        %v3892 = vand.u32 %v3782, 4294901760
        %3893 = vmatpush.msra.mxu0 %v3892
        %v3894 = vand.u32 %v3776, 4294901760
        %v3895 = vsub.f32 %v3776, %v3894
        %v3896 = vand.u32 %v3895, 4294901760
        %3897 = vmatmul.f32.gmra.mxu0 %v3896
        %v3898 = vpop.f32.mrf.mxu0
        %v3899 = vadd.f32 %v3870, %v3898
        %v3900 = vand.u32 %v3779, 4294901760
        %v3901 = vsub.f32 %v3779, %v3900
        %v3902 = vand.u32 %v3901, 4294901760
        %3903 = vmatmul.f32.gmra.mxu0 %v3902
        %v3904 = vpop.f32.mrf.mxu0
        %v3905 = vadd.f32 %v3875, %v3904
        %3906 = vdwg.mxu0
        %3907 = vmatpush.msra.mxu0 0.0
        %3908 = vmatpush.msra.mxu0 0.0
        %3909 = vmatpush.msra.mxu0 0.0
        %3910 = vmatpush.msra.mxu0 0.0
        %3911 = vmatpush.msra.mxu0 0.0
        %3912 = vmatpush.msra.mxu0 0.0
        %3913 = vmatpush.msra.mxu0 0.0
        %3914 = vmatpush.msra.mxu0 0.0
        %3915 = vmatpush.msra.mxu0 0.0
        %3916 = vmatpush.msra.mxu0 0.0
        %3917 = vmatpush.msra.mxu0 0.0
        %3918 = vmatpush.msra.mxu0 0.0
        %3919 = vmatpush.msra.mxu0 0.0
        %3920 = vmatpush.msra.mxu0 0.0
        %3921 = vmatpush.msra.mxu0 0.0
        %v3922 = vand.u32 %v3782, 4294901760
        %v3923 = vsub.f32 %v3782, %v3922
        %v3924 = vand.u32 %v3923, 4294901760
        %3925 = vmatpush.msra.mxu0 %v3924
        %v3926 = vand.u32 %v3776, 4294901760
        %3927 = vmatmul.f32.gmra.mxu0 %v3926
        %v3928 = vpop.f32.mrf.mxu0
        %v3929 = vadd.f32 %v3899, %v3928
        %v3930 = vand.u32 %v3779, 4294901760
        %3931 = vmatmul.f32.gmra.mxu0 %v3930
        %v3932 = vpop.f32.mrf.mxu0
        %v3933 = vadd.f32 %v3905, %v3932
        %3934 = vdwg.mxu0
        %3935 = vmatpush.msra.mxu0 0.0
        %3936 = vmatpush.msra.mxu0 0.0
        %3937 = vmatpush.msra.mxu0 0.0
        %3938 = vmatpush.msra.mxu0 0.0
        %3939 = vmatpush.msra.mxu0 0.0
        %3940 = vmatpush.msra.mxu0 0.0
        %3941 = vmatpush.msra.mxu0 0.0
        %3942 = vmatpush.msra.mxu0 0.0
        %3943 = vmatpush.msra.mxu0 0.0
        %3944 = vmatpush.msra.mxu0 0.0
        %3945 = vmatpush.msra.mxu0 0.0
        %3946 = vmatpush.msra.mxu0 0.0
        %3947 = vmatpush.msra.mxu0 0.0
        %3948 = vmatpush.msra.mxu0 0.0
        %3949 = vmatpush.msra.mxu0 0.0
        %v3950 = vand.u32 %v3782, 4294901760
        %3951 = vmatpush.msra.mxu0 %v3950
        %v3952 = vand.u32 %v3776, 4294901760
        %3953 = vmatmul.f32.gmra.mxu0 %v3952
        %v3954 = vpop.f32.mrf.mxu0
        %v3955 = vadd.f32 %v3929, %v3954
        %v3956 = vand.u32 %v3779, 4294901760
        %3957 = vmatmul.f32.gmra.mxu0 %v3956
        %v3958 = vpop.f32.mrf.mxu0
        %v3959 = vadd.f32 %v3933, %v3958
        %3960 = vdwg.mxu0
        %v3962 = vsel %vm1541, %v1312, 0
        %v3965 = vsel %vm1541, %v1424, 0
        %v3968 = vsel %vm1548, %v1538, 0
        %3970 = vmatpush.msra.mxu0 0.0
        %3971 = vmatpush.msra.mxu0 0.0
        %3972 = vmatpush.msra.mxu0 0.0
        %3973 = vmatpush.msra.mxu0 0.0
        %3974 = vmatpush.msra.mxu0 0.0
        %3975 = vmatpush.msra.mxu0 0.0
        %3976 = vmatpush.msra.mxu0 0.0
        %3977 = vmatpush.msra.mxu0 0.0
        %3978 = vmatpush.msra.mxu0 0.0
        %3979 = vmatpush.msra.mxu0 0.0
        %3980 = vmatpush.msra.mxu0 0.0
        %3981 = vmatpush.msra.mxu0 0.0
        %3982 = vmatpush.msra.mxu0 0.0
        %3983 = vmatpush.msra.mxu0 0.0
        %3984 = vmatpush.msra.mxu0 0.0
        %v3985 = vand.u32 %v3968, 4294901760
        %3986 = vmatpush.msra.mxu0 %v3985
        %v3987 = vand.u32 %v3962, 4294901760
        %v3988 = vsub.f32 %v3962, %v3987
        %v3989 = vand.u32 %v3988, 4294901760
        %v3990 = vsub.f32 %v3988, %v3989
        %v3991 = vand.u32 %v3990, 4294901760
        %3992 = vmatmul.f32.gmra.mxu0 %v3991
        %v3993 = vpop.f32.mrf.mxu0
        %v3994 = vadd.f32 0.0, %v3993
        %v3995 = vand.u32 %v3965, 4294901760
        %v3996 = vsub.f32 %v3965, %v3995
        %v3997 = vand.u32 %v3996, 4294901760
        %v3998 = vsub.f32 %v3996, %v3997
        %v3999 = vand.u32 %v3998, 4294901760
        %4000 = vmatmul.f32.gmra.mxu0 %v3999
        %v4001 = vpop.f32.mrf.mxu0
        %v4002 = vadd.f32 0.0, %v4001
        %4003 = vdwg.mxu0
        %4004 = vmatpush.msra.mxu0 0.0
        %4005 = vmatpush.msra.mxu0 0.0
        %4006 = vmatpush.msra.mxu0 0.0
        %4007 = vmatpush.msra.mxu0 0.0
        %4008 = vmatpush.msra.mxu0 0.0
        %4009 = vmatpush.msra.mxu0 0.0
        %4010 = vmatpush.msra.mxu0 0.0
        %4011 = vmatpush.msra.mxu0 0.0
        %4012 = vmatpush.msra.mxu0 0.0
        %4013 = vmatpush.msra.mxu0 0.0
        %4014 = vmatpush.msra.mxu0 0.0
        %4015 = vmatpush.msra.mxu0 0.0
        %4016 = vmatpush.msra.mxu0 0.0
        %4017 = vmatpush.msra.mxu0 0.0
        %4018 = vmatpush.msra.mxu0 0.0
        %v4019 = vand.u32 %v3968, 4294901760
        %v4020 = vsub.f32 %v3968, %v4019
        %v4021 = vand.u32 %v4020, 4294901760
        %v4022 = vsub.f32 %v4020, %v4021
        %v4023 = vand.u32 %v4022, 4294901760
        %4024 = vmatpush.msra.mxu0 %v4023
        %v4025 = vand.u32 %v3962, 4294901760
        %4026 = vmatmul.f32.gmra.mxu0 %v4025
        %v4027 = vpop.f32.mrf.mxu0
        %v4028 = vadd.f32 %v3994, %v4027
        %v4029 = vand.u32 %v3965, 4294901760
        %4030 = vmatmul.f32.gmra.mxu0 %v4029
        %v4031 = vpop.f32.mrf.mxu0
        %v4032 = vadd.f32 %v4002, %v4031
        %4033 = vdwg.mxu0
        %4034 = vmatpush.msra.mxu0 0.0
        %4035 = vmatpush.msra.mxu0 0.0
        %4036 = vmatpush.msra.mxu0 0.0
        %4037 = vmatpush.msra.mxu0 0.0
        %4038 = vmatpush.msra.mxu0 0.0
        %4039 = vmatpush.msra.mxu0 0.0
        %4040 = vmatpush.msra.mxu0 0.0
        %4041 = vmatpush.msra.mxu0 0.0
        %4042 = vmatpush.msra.mxu0 0.0
        %4043 = vmatpush.msra.mxu0 0.0
        %4044 = vmatpush.msra.mxu0 0.0
        %4045 = vmatpush.msra.mxu0 0.0
        %4046 = vmatpush.msra.mxu0 0.0
        %4047 = vmatpush.msra.mxu0 0.0
        %4048 = vmatpush.msra.mxu0 0.0
        %v4049 = vand.u32 %v3968, 4294901760
        %v4050 = vsub.f32 %v3968, %v4049
        %4051 = vmatpush.msra.mxu0 %v4050
        %v4052 = vand.u32 %v3962, 4294901760
        %v4053 = vsub.f32 %v3962, %v4052
        %4054 = vmatmul.f32.gmra.mxu0 %v4053
        %v4055 = vpop.f32.mrf.mxu0
        %v4056 = vadd.f32 %v4028, %v4055
        %v4057 = vand.u32 %v3965, 4294901760
        %v4058 = vsub.f32 %v3965, %v4057
        %4059 = vmatmul.f32.gmra.mxu0 %v4058
        %v4060 = vpop.f32.mrf.mxu0
        %v4061 = vadd.f32 %v4032, %v4060
        %4062 = vdwg.mxu0
        %4063 = vmatpush.msra.mxu0 0.0
        %4064 = vmatpush.msra.mxu0 0.0
        %4065 = vmatpush.msra.mxu0 0.0
        %4066 = vmatpush.msra.mxu0 0.0
        %4067 = vmatpush.msra.mxu0 0.0
        %4068 = vmatpush.msra.mxu0 0.0
        %4069 = vmatpush.msra.mxu0 0.0
        %4070 = vmatpush.msra.mxu0 0.0
        %4071 = vmatpush.msra.mxu0 0.0
        %4072 = vmatpush.msra.mxu0 0.0
        %4073 = vmatpush.msra.mxu0 0.0
        %4074 = vmatpush.msra.mxu0 0.0
        %4075 = vmatpush.msra.mxu0 0.0
        %4076 = vmatpush.msra.mxu0 0.0
        %4077 = vmatpush.msra.mxu0 0.0
        %v4078 = vand.u32 %v3968, 4294901760
        %4079 = vmatpush.msra.mxu0 %v4078
        %v4080 = vand.u32 %v3962, 4294901760
        %v4081 = vsub.f32 %v3962, %v4080
        %v4082 = vand.u32 %v4081, 4294901760
        %4083 = vmatmul.f32.gmra.mxu0 %v4082
        %v4084 = vpop.f32.mrf.mxu0
        %v4085 = vadd.f32 %v4056, %v4084
        %v4086 = vand.u32 %v3965, 4294901760
        %v4087 = vsub.f32 %v3965, %v4086
        %v4088 = vand.u32 %v4087, 4294901760
        %4089 = vmatmul.f32.gmra.mxu0 %v4088
        %v4090 = vpop.f32.mrf.mxu0
        %v4091 = vadd.f32 %v4061, %v4090
        %4092 = vdwg.mxu0
        %4093 = vmatpush.msra.mxu0 0.0
        %4094 = vmatpush.msra.mxu0 0.0
        %4095 = vmatpush.msra.mxu0 0.0
        %4096 = vmatpush.msra.mxu0 0.0
        %4097 = vmatpush.msra.mxu0 0.0
        %4098 = vmatpush.msra.mxu0 0.0
        %4099 = vmatpush.msra.mxu0 0.0
        %4100 = vmatpush.msra.mxu0 0.0
        %4101 = vmatpush.msra.mxu0 0.0
        %4102 = vmatpush.msra.mxu0 0.0
        %4103 = vmatpush.msra.mxu0 0.0
        %4104 = vmatpush.msra.mxu0 0.0
        %4105 = vmatpush.msra.mxu0 0.0
        %4106 = vmatpush.msra.mxu0 0.0
        %4107 = vmatpush.msra.mxu0 0.0
        %v4108 = vand.u32 %v3968, 4294901760
        %v4109 = vsub.f32 %v3968, %v4108
        %v4110 = vand.u32 %v4109, 4294901760
        %4111 = vmatpush.msra.mxu0 %v4110
        %v4112 = vand.u32 %v3962, 4294901760
        %4113 = vmatmul.f32.gmra.mxu0 %v4112
        %v4114 = vpop.f32.mrf.mxu0
        %v4115 = vadd.f32 %v4085, %v4114
        %v4116 = vand.u32 %v3965, 4294901760
        %4117 = vmatmul.f32.gmra.mxu0 %v4116
        %v4118 = vpop.f32.mrf.mxu0
        %v4119 = vadd.f32 %v4091, %v4118
        %4120 = vdwg.mxu0
        %4121 = vmatpush.msra.mxu0 0.0
        %4122 = vmatpush.msra.mxu0 0.0
        %4123 = vmatpush.msra.mxu0 0.0
        %4124 = vmatpush.msra.mxu0 0.0
        %4125 = vmatpush.msra.mxu0 0.0
        %4126 = vmatpush.msra.mxu0 0.0
        %4127 = vmatpush.msra.mxu0 0.0
        %4128 = vmatpush.msra.mxu0 0.0
        %4129 = vmatpush.msra.mxu0 0.0
        %4130 = vmatpush.msra.mxu0 0.0
        %4131 = vmatpush.msra.mxu0 0.0
        %4132 = vmatpush.msra.mxu0 0.0
        %4133 = vmatpush.msra.mxu0 0.0
        %4134 = vmatpush.msra.mxu0 0.0
        %4135 = vmatpush.msra.mxu0 0.0
        %v4136 = vand.u32 %v3968, 4294901760
        %4137 = vmatpush.msra.mxu0 %v4136
        %v4138 = vand.u32 %v3962, 4294901760
        %4139 = vmatmul.f32.gmra.mxu0 %v4138
        %v4140 = vpop.f32.mrf.mxu0
        %v4141 = vadd.f32 %v4115, %v4140
        %v4142 = vand.u32 %v3965, 4294901760
        %4143 = vmatmul.f32.gmra.mxu0 %v4142
        %v4144 = vpop.f32.mrf.mxu0
        %v4145 = vadd.f32 %v4119, %v4144
        %4146 = vdwg.mxu0
        %v4148 = vsel %vm1541, %v1314, 0
        %v4151 = vsel %vm1541, %v1426, 0
        %v4154 = vsel %vm1548, %v1532, 0
        %4156 = vmatpush.msra.mxu0 0.0
        %4157 = vmatpush.msra.mxu0 0.0
        %4158 = vmatpush.msra.mxu0 0.0
        %4159 = vmatpush.msra.mxu0 0.0
        %4160 = vmatpush.msra.mxu0 0.0
        %4161 = vmatpush.msra.mxu0 0.0
        %4162 = vmatpush.msra.mxu0 0.0
        %4163 = vmatpush.msra.mxu0 0.0
        %4164 = vmatpush.msra.mxu0 0.0
        %4165 = vmatpush.msra.mxu0 0.0
        %4166 = vmatpush.msra.mxu0 0.0
        %4167 = vmatpush.msra.mxu0 0.0
        %4168 = vmatpush.msra.mxu0 0.0
        %4169 = vmatpush.msra.mxu0 0.0
        %4170 = vmatpush.msra.mxu0 0.0
        %v4171 = vand.u32 %v4154, 4294901760
        %4172 = vmatpush.msra.mxu0 %v4171
        %v4173 = vand.u32 %v4148, 4294901760
        %v4174 = vsub.f32 %v4148, %v4173
        %v4175 = vand.u32 %v4174, 4294901760
        %v4176 = vsub.f32 %v4174, %v4175
        %v4177 = vand.u32 %v4176, 4294901760
        %4178 = vmatmul.f32.gmra.mxu0 %v4177
        %v4179 = vpop.f32.mrf.mxu0
        %v4180 = vadd.f32 0.0, %v4179
        %v4181 = vand.u32 %v4151, 4294901760
        %v4182 = vsub.f32 %v4151, %v4181
        %v4183 = vand.u32 %v4182, 4294901760
        %v4184 = vsub.f32 %v4182, %v4183
        %v4185 = vand.u32 %v4184, 4294901760
        %4186 = vmatmul.f32.gmra.mxu0 %v4185
        %v4187 = vpop.f32.mrf.mxu0
        %v4188 = vadd.f32 0.0, %v4187
        %4189 = vdwg.mxu0
        %4190 = vmatpush.msra.mxu0 0.0
        %4191 = vmatpush.msra.mxu0 0.0
        %4192 = vmatpush.msra.mxu0 0.0
        %4193 = vmatpush.msra.mxu0 0.0
        %4194 = vmatpush.msra.mxu0 0.0
        %4195 = vmatpush.msra.mxu0 0.0
        %4196 = vmatpush.msra.mxu0 0.0
        %4197 = vmatpush.msra.mxu0 0.0
        %4198 = vmatpush.msra.mxu0 0.0
        %4199 = vmatpush.msra.mxu0 0.0
        %4200 = vmatpush.msra.mxu0 0.0
        %4201 = vmatpush.msra.mxu0 0.0
        %4202 = vmatpush.msra.mxu0 0.0
        %4203 = vmatpush.msra.mxu0 0.0
        %4204 = vmatpush.msra.mxu0 0.0
        %v4205 = vand.u32 %v4154, 4294901760
        %v4206 = vsub.f32 %v4154, %v4205
        %v4207 = vand.u32 %v4206, 4294901760
        %v4208 = vsub.f32 %v4206, %v4207
        %v4209 = vand.u32 %v4208, 4294901760
        %4210 = vmatpush.msra.mxu0 %v4209
        %v4211 = vand.u32 %v4148, 4294901760
        %4212 = vmatmul.f32.gmra.mxu0 %v4211
        %v4213 = vpop.f32.mrf.mxu0
        %v4214 = vadd.f32 %v4180, %v4213
        %v4215 = vand.u32 %v4151, 4294901760
        %4216 = vmatmul.f32.gmra.mxu0 %v4215
        %v4217 = vpop.f32.mrf.mxu0
        %v4218 = vadd.f32 %v4188, %v4217
        %4219 = vdwg.mxu0
        %4220 = vmatpush.msra.mxu0 0.0
        %4221 = vmatpush.msra.mxu0 0.0
        %4222 = vmatpush.msra.mxu0 0.0
        %4223 = vmatpush.msra.mxu0 0.0
        %4224 = vmatpush.msra.mxu0 0.0
        %4225 = vmatpush.msra.mxu0 0.0
        %4226 = vmatpush.msra.mxu0 0.0
        %4227 = vmatpush.msra.mxu0 0.0
        %4228 = vmatpush.msra.mxu0 0.0
        %4229 = vmatpush.msra.mxu0 0.0
        %4230 = vmatpush.msra.mxu0 0.0
        %4231 = vmatpush.msra.mxu0 0.0
        %4232 = vmatpush.msra.mxu0 0.0
        %4233 = vmatpush.msra.mxu0 0.0
        %4234 = vmatpush.msra.mxu0 0.0
        %v4235 = vand.u32 %v4154, 4294901760
        %v4236 = vsub.f32 %v4154, %v4235
        %4237 = vmatpush.msra.mxu0 %v4236
        %v4238 = vand.u32 %v4148, 4294901760
        %v4239 = vsub.f32 %v4148, %v4238
        %4240 = vmatmul.f32.gmra.mxu0 %v4239
        %v4241 = vpop.f32.mrf.mxu0
        %v4242 = vadd.f32 %v4214, %v4241
        %v4243 = vand.u32 %v4151, 4294901760
        %v4244 = vsub.f32 %v4151, %v4243
        %4245 = vmatmul.f32.gmra.mxu0 %v4244
        %v4246 = vpop.f32.mrf.mxu0
        %v4247 = vadd.f32 %v4218, %v4246
        %4248 = vdwg.mxu0
        %4249 = vmatpush.msra.mxu0 0.0
        %4250 = vmatpush.msra.mxu0 0.0
        %4251 = vmatpush.msra.mxu0 0.0
        %4252 = vmatpush.msra.mxu0 0.0
        %4253 = vmatpush.msra.mxu0 0.0
        %4254 = vmatpush.msra.mxu0 0.0
        %4255 = vmatpush.msra.mxu0 0.0
        %4256 = vmatpush.msra.mxu0 0.0
        %4257 = vmatpush.msra.mxu0 0.0
        %4258 = vmatpush.msra.mxu0 0.0
        %4259 = vmatpush.msra.mxu0 0.0
        %4260 = vmatpush.msra.mxu0 0.0
        %4261 = vmatpush.msra.mxu0 0.0
        %4262 = vmatpush.msra.mxu0 0.0
        %4263 = vmatpush.msra.mxu0 0.0
        %v4264 = vand.u32 %v4154, 4294901760
        %4265 = vmatpush.msra.mxu0 %v4264
        %v4266 = vand.u32 %v4148, 4294901760
        %v4267 = vsub.f32 %v4148, %v4266
        %v4268 = vand.u32 %v4267, 4294901760
        %4269 = vmatmul.f32.gmra.mxu0 %v4268
        %v4270 = vpop.f32.mrf.mxu0
        %v4271 = vadd.f32 %v4242, %v4270
        %v4272 = vand.u32 %v4151, 4294901760
        %v4273 = vsub.f32 %v4151, %v4272
        %v4274 = vand.u32 %v4273, 4294901760
        %4275 = vmatmul.f32.gmra.mxu0 %v4274
        %v4276 = vpop.f32.mrf.mxu0
        %v4277 = vadd.f32 %v4247, %v4276
        %4278 = vdwg.mxu0
        %4279 = vmatpush.msra.mxu0 0.0
        %4280 = vmatpush.msra.mxu0 0.0
        %4281 = vmatpush.msra.mxu0 0.0
        %4282 = vmatpush.msra.mxu0 0.0
        %4283 = vmatpush.msra.mxu0 0.0
        %4284 = vmatpush.msra.mxu0 0.0
        %4285 = vmatpush.msra.mxu0 0.0
        %4286 = vmatpush.msra.mxu0 0.0
        %4287 = vmatpush.msra.mxu0 0.0
        %4288 = vmatpush.msra.mxu0 0.0
        %4289 = vmatpush.msra.mxu0 0.0
        %4290 = vmatpush.msra.mxu0 0.0
        %4291 = vmatpush.msra.mxu0 0.0
        %4292 = vmatpush.msra.mxu0 0.0
        %4293 = vmatpush.msra.mxu0 0.0
        %v4294 = vand.u32 %v4154, 4294901760
        %v4295 = vsub.f32 %v4154, %v4294
        %v4296 = vand.u32 %v4295, 4294901760
        %4297 = vmatpush.msra.mxu0 %v4296
        %v4298 = vand.u32 %v4148, 4294901760
        %4299 = vmatmul.f32.gmra.mxu0 %v4298
        %v4300 = vpop.f32.mrf.mxu0
        %v4301 = vadd.f32 %v4271, %v4300
        %v4302 = vand.u32 %v4151, 4294901760
        %4303 = vmatmul.f32.gmra.mxu0 %v4302
        %v4304 = vpop.f32.mrf.mxu0
        %v4305 = vadd.f32 %v4277, %v4304
        %4306 = vdwg.mxu0
        %4307 = vmatpush.msra.mxu0 0.0
        %4308 = vmatpush.msra.mxu0 0.0
        %4309 = vmatpush.msra.mxu0 0.0
        %4310 = vmatpush.msra.mxu0 0.0
        %4311 = vmatpush.msra.mxu0 0.0
        %4312 = vmatpush.msra.mxu0 0.0
        %4313 = vmatpush.msra.mxu0 0.0
        %4314 = vmatpush.msra.mxu0 0.0
        %4315 = vmatpush.msra.mxu0 0.0
        %4316 = vmatpush.msra.mxu0 0.0
        %4317 = vmatpush.msra.mxu0 0.0
        %4318 = vmatpush.msra.mxu0 0.0
        %4319 = vmatpush.msra.mxu0 0.0
        %4320 = vmatpush.msra.mxu0 0.0
        %4321 = vmatpush.msra.mxu0 0.0
        %v4322 = vand.u32 %v4154, 4294901760
        %4323 = vmatpush.msra.mxu0 %v4322
        %v4324 = vand.u32 %v4148, 4294901760
        %4325 = vmatmul.f32.gmra.mxu0 %v4324
        %v4326 = vpop.f32.mrf.mxu0
        %v4327 = vadd.f32 %v4301, %v4326
        %v4328 = vand.u32 %v4151, 4294901760
        %4329 = vmatmul.f32.gmra.mxu0 %v4328
        %v4330 = vpop.f32.mrf.mxu0
        %v4331 = vadd.f32 %v4305, %v4330
        %4332 = vdwg.mxu0
        %v4334 = vsel %vm1541, %v1316, 0
        %v4337 = vsel %vm1541, %v1428, 0
        %v4340 = vsel %vm1548, %v1540, 0
        %4342 = vmatpush.msra.mxu0 0.0
        %4343 = vmatpush.msra.mxu0 0.0
        %4344 = vmatpush.msra.mxu0 0.0
        %4345 = vmatpush.msra.mxu0 0.0
        %4346 = vmatpush.msra.mxu0 0.0
        %4347 = vmatpush.msra.mxu0 0.0
        %4348 = vmatpush.msra.mxu0 0.0
        %4349 = vmatpush.msra.mxu0 0.0
        %4350 = vmatpush.msra.mxu0 0.0
        %4351 = vmatpush.msra.mxu0 0.0
        %4352 = vmatpush.msra.mxu0 0.0
        %4353 = vmatpush.msra.mxu0 0.0
        %4354 = vmatpush.msra.mxu0 0.0
        %4355 = vmatpush.msra.mxu0 0.0
        %4356 = vmatpush.msra.mxu0 0.0
        %v4357 = vand.u32 %v4340, 4294901760
        %4358 = vmatpush.msra.mxu0 %v4357
        %v4359 = vand.u32 %v4334, 4294901760
        %v4360 = vsub.f32 %v4334, %v4359
        %v4361 = vand.u32 %v4360, 4294901760
        %v4362 = vsub.f32 %v4360, %v4361
        %v4363 = vand.u32 %v4362, 4294901760
        %4364 = vmatmul.f32.gmra.mxu0 %v4363
        %v4365 = vpop.f32.mrf.mxu0
        %v4366 = vadd.f32 0.0, %v4365
        %v4367 = vand.u32 %v4337, 4294901760
        %v4368 = vsub.f32 %v4337, %v4367
        %v4369 = vand.u32 %v4368, 4294901760
        %v4370 = vsub.f32 %v4368, %v4369
        %v4371 = vand.u32 %v4370, 4294901760
        %4372 = vmatmul.f32.gmra.mxu0 %v4371
        %v4373 = vpop.f32.mrf.mxu0
        %v4374 = vadd.f32 0.0, %v4373
        %4375 = vdwg.mxu0
        %4376 = vmatpush.msra.mxu0 0.0
        %4377 = vmatpush.msra.mxu0 0.0
        %4378 = vmatpush.msra.mxu0 0.0
        %4379 = vmatpush.msra.mxu0 0.0
        %4380 = vmatpush.msra.mxu0 0.0
        %4381 = vmatpush.msra.mxu0 0.0
        %4382 = vmatpush.msra.mxu0 0.0
        %4383 = vmatpush.msra.mxu0 0.0
        %4384 = vmatpush.msra.mxu0 0.0
        %4385 = vmatpush.msra.mxu0 0.0
        %4386 = vmatpush.msra.mxu0 0.0
        %4387 = vmatpush.msra.mxu0 0.0
        %4388 = vmatpush.msra.mxu0 0.0
        %4389 = vmatpush.msra.mxu0 0.0
        %4390 = vmatpush.msra.mxu0 0.0
        %v4391 = vand.u32 %v4340, 4294901760
        %v4392 = vsub.f32 %v4340, %v4391
        %v4393 = vand.u32 %v4392, 4294901760
        %v4394 = vsub.f32 %v4392, %v4393
        %v4395 = vand.u32 %v4394, 4294901760
        %4396 = vmatpush.msra.mxu0 %v4395
        %v4397 = vand.u32 %v4334, 4294901760
        %4398 = vmatmul.f32.gmra.mxu0 %v4397
        %v4399 = vpop.f32.mrf.mxu0
        %v4400 = vadd.f32 %v4366, %v4399
        %v4401 = vand.u32 %v4337, 4294901760
        %4402 = vmatmul.f32.gmra.mxu0 %v4401
        %v4403 = vpop.f32.mrf.mxu0
        %v4404 = vadd.f32 %v4374, %v4403
        %4405 = vdwg.mxu0
        %4406 = vmatpush.msra.mxu0 0.0
        %4407 = vmatpush.msra.mxu0 0.0
        %4408 = vmatpush.msra.mxu0 0.0
        %4409 = vmatpush.msra.mxu0 0.0
        %4410 = vmatpush.msra.mxu0 0.0
        %4411 = vmatpush.msra.mxu0 0.0
        %4412 = vmatpush.msra.mxu0 0.0
        %4413 = vmatpush.msra.mxu0 0.0
        %4414 = vmatpush.msra.mxu0 0.0
        %4415 = vmatpush.msra.mxu0 0.0
        %4416 = vmatpush.msra.mxu0 0.0
        %4417 = vmatpush.msra.mxu0 0.0
        %4418 = vmatpush.msra.mxu0 0.0
        %4419 = vmatpush.msra.mxu0 0.0
        %4420 = vmatpush.msra.mxu0 0.0
        %v4421 = vand.u32 %v4340, 4294901760
        %v4422 = vsub.f32 %v4340, %v4421
        %4423 = vmatpush.msra.mxu0 %v4422
        %v4424 = vand.u32 %v4334, 4294901760
        %v4425 = vsub.f32 %v4334, %v4424
        %4426 = vmatmul.f32.gmra.mxu0 %v4425
        %v4427 = vpop.f32.mrf.mxu0
        %v4428 = vadd.f32 %v4400, %v4427
        %v4429 = vand.u32 %v4337, 4294901760
        %v4430 = vsub.f32 %v4337, %v4429
        %4431 = vmatmul.f32.gmra.mxu0 %v4430
        %v4432 = vpop.f32.mrf.mxu0
        %v4433 = vadd.f32 %v4404, %v4432
        %4434 = vdwg.mxu0
        %4435 = vmatpush.msra.mxu0 0.0
        %4436 = vmatpush.msra.mxu0 0.0
        %4437 = vmatpush.msra.mxu0 0.0
        %4438 = vmatpush.msra.mxu0 0.0
        %4439 = vmatpush.msra.mxu0 0.0
        %4440 = vmatpush.msra.mxu0 0.0
        %4441 = vmatpush.msra.mxu0 0.0
        %4442 = vmatpush.msra.mxu0 0.0
        %4443 = vmatpush.msra.mxu0 0.0
        %4444 = vmatpush.msra.mxu0 0.0
        %4445 = vmatpush.msra.mxu0 0.0
        %4446 = vmatpush.msra.mxu0 0.0
        %4447 = vmatpush.msra.mxu0 0.0
        %4448 = vmatpush.msra.mxu0 0.0
        %4449 = vmatpush.msra.mxu0 0.0
        %v4450 = vand.u32 %v4340, 4294901760
        %4451 = vmatpush.msra.mxu0 %v4450
        %v4452 = vand.u32 %v4334, 4294901760
        %v4453 = vsub.f32 %v4334, %v4452
        %v4454 = vand.u32 %v4453, 4294901760
        %4455 = vmatmul.f32.gmra.mxu0 %v4454
        %v4456 = vpop.f32.mrf.mxu0
        %v4457 = vadd.f32 %v4428, %v4456
        %v4458 = vand.u32 %v4337, 4294901760
        %v4459 = vsub.f32 %v4337, %v4458
        %v4460 = vand.u32 %v4459, 4294901760
        %4461 = vmatmul.f32.gmra.mxu0 %v4460
        %v4462 = vpop.f32.mrf.mxu0
        %v4463 = vadd.f32 %v4433, %v4462
        %4464 = vdwg.mxu0
        %4465 = vmatpush.msra.mxu0 0.0
        %4466 = vmatpush.msra.mxu0 0.0
        %4467 = vmatpush.msra.mxu0 0.0
        %4468 = vmatpush.msra.mxu0 0.0
        %4469 = vmatpush.msra.mxu0 0.0
        %4470 = vmatpush.msra.mxu0 0.0
        %4471 = vmatpush.msra.mxu0 0.0
        %4472 = vmatpush.msra.mxu0 0.0
        %4473 = vmatpush.msra.mxu0 0.0
        %4474 = vmatpush.msra.mxu0 0.0
        %4475 = vmatpush.msra.mxu0 0.0
        %4476 = vmatpush.msra.mxu0 0.0
        %4477 = vmatpush.msra.mxu0 0.0
        %4478 = vmatpush.msra.mxu0 0.0
        %4479 = vmatpush.msra.mxu0 0.0
        %v4480 = vand.u32 %v4340, 4294901760
        %v4481 = vsub.f32 %v4340, %v4480
        %v4482 = vand.u32 %v4481, 4294901760
        %4483 = vmatpush.msra.mxu0 %v4482
        %v4484 = vand.u32 %v4334, 4294901760
        %4485 = vmatmul.f32.gmra.mxu0 %v4484
        %v4486 = vpop.f32.mrf.mxu0
        %v4487 = vadd.f32 %v4457, %v4486
        %v4488 = vand.u32 %v4337, 4294901760
        %4489 = vmatmul.f32.gmra.mxu0 %v4488
        %v4490 = vpop.f32.mrf.mxu0
        %v4491 = vadd.f32 %v4463, %v4490
        %4492 = vdwg.mxu0
        %4493 = vmatpush.msra.mxu0 0.0
        %4494 = vmatpush.msra.mxu0 0.0
        %4495 = vmatpush.msra.mxu0 0.0
        %4496 = vmatpush.msra.mxu0 0.0
        %4497 = vmatpush.msra.mxu0 0.0
        %4498 = vmatpush.msra.mxu0 0.0
        %4499 = vmatpush.msra.mxu0 0.0
        %4500 = vmatpush.msra.mxu0 0.0
        %4501 = vmatpush.msra.mxu0 0.0
        %4502 = vmatpush.msra.mxu0 0.0
        %4503 = vmatpush.msra.mxu0 0.0
        %4504 = vmatpush.msra.mxu0 0.0
        %4505 = vmatpush.msra.mxu0 0.0
        %4506 = vmatpush.msra.mxu0 0.0
        %4507 = vmatpush.msra.mxu0 0.0
        %v4508 = vand.u32 %v4340, 4294901760
        %4509 = vmatpush.msra.mxu0 %v4508
        %v4510 = vand.u32 %v4334, 4294901760
        %4511 = vmatmul.f32.gmra.mxu0 %v4510
        %v4512 = vpop.f32.mrf.mxu0
        %v4513 = vadd.f32 %v4487, %v4512
        %v4514 = vand.u32 %v4337, 4294901760
        %4515 = vmatmul.f32.gmra.mxu0 %v4514
        %v4516 = vpop.f32.mrf.mxu0
        %v4517 = vadd.f32 %v4491, %v4516
        %4518 = vdwg.mxu0
        %v4519 = vlaneseq
        %v4520 = vshrl.u32 %v4519, 7
        %v4521 = vadd.s32 %v4520, 8
        %v4522 = vadd.s32 %v4520, 16
        %v4523 = vadd.s32 %v4520, 24
        %v4524 = vadd.s32 %v4520, 32
        %v4525 = vadd.s32 %v4520, 40
        %v4526 = vadd.s32 %v4520, 48
        %v4527 = vadd.s32 %v4520, 56
        %v4528 = vadd.s32 %v4520, 64
        %v4529 = vadd.s32 %v4520, 72
        %v4530 = vadd.s32 %v4520, 80
        %v4531 = vadd.s32 %v4520, 88
        %v4532 = vadd.s32 %v4520, 96
        %v4533 = vadd.s32 %v4520, 104
        %v4534 = vadd.s32 %v4520, 112
        %v4535 = vadd.s32 %v4520, 120
        %v4536 = vadd.s32 %v4520, 128
        %v4537 = vadd.s32 %v4520, 136
        %v4538 = vadd.s32 %v4520, 144
        %v4539 = vadd.s32 %v4520, 152
        %v4540 = vadd.s32 %v4520, 160
        %v4541 = vadd.s32 %v4520, 168
        %v4542 = vadd.s32 %v4520, 176
        %v4543 = vadd.s32 %v4520, 184
        %v4544 = vadd.s32 %v4520, 192
        %v4545 = vadd.s32 %v4520, 200
        %v4546 = vadd.s32 %v4520, 208
        %v4547 = vadd.s32 %v4520, 216
        %v4548 = vadd.s32 %v4520, 224
        %v4549 = vadd.s32 %v4520, 232
        %v4550 = vadd.s32 %v4520, 240
        %v4551 = vadd.s32 %v4520, 248
        %v4552 = vlaneseq
        %v4553 = vand.u32 %v4552, 127
        %vm4554 = vcmp.lt.s32.totalorder %v4520, 0
        %v4555 = vsub.s32 0, %v4520
        %v4556 = vsel %vm4554, %v4555, %v4520
        %v4557 = vshrl.u32 %v4556, 4
        %v4558 = vand.u32 %v4556, 15
        %v4559 = vsub.s32 0, %v4558
        %v4560 = vsel %vm4554, %v4559, %v4558
        %vm4561 = vcmp.lt.s32.totalorder %v4521, 0
        %v4562 = vsub.s32 0, %v4521
        %v4563 = vsel %vm4561, %v4562, %v4521
        %v4564 = vshrl.u32 %v4563, 4
        %v4565 = vand.u32 %v4563, 15
        %v4566 = vsub.s32 0, %v4565
        %v4567 = vsel %vm4561, %v4566, %v4565
        %vm4568 = vcmp.lt.s32.totalorder %v4522, 0
        %v4569 = vsub.s32 0, %v4522
        %v4570 = vsel %vm4568, %v4569, %v4522
        %v4571 = vshrl.u32 %v4570, 4
        %v4572 = vand.u32 %v4570, 15
        %v4573 = vsub.s32 0, %v4572
        %v4574 = vsel %vm4568, %v4573, %v4572
        %vm4575 = vcmp.lt.s32.totalorder %v4523, 0
        %v4576 = vsub.s32 0, %v4523
        %v4577 = vsel %vm4575, %v4576, %v4523
        %v4578 = vshrl.u32 %v4577, 4
        %v4579 = vand.u32 %v4577, 15
        %v4580 = vsub.s32 0, %v4579
        %v4581 = vsel %vm4575, %v4580, %v4579
        %vm4582 = vcmp.lt.s32.totalorder %v4524, 0
        %v4583 = vsub.s32 0, %v4524
        %v4584 = vsel %vm4582, %v4583, %v4524
        %v4585 = vshrl.u32 %v4584, 4
        %v4586 = vand.u32 %v4584, 15
        %v4587 = vsub.s32 0, %v4586
        %v4588 = vsel %vm4582, %v4587, %v4586
        %vm4589 = vcmp.lt.s32.totalorder %v4525, 0
        %v4590 = vsub.s32 0, %v4525
        %v4591 = vsel %vm4589, %v4590, %v4525
        %v4592 = vshrl.u32 %v4591, 4
        %v4593 = vand.u32 %v4591, 15
        %v4594 = vsub.s32 0, %v4593
        %v4595 = vsel %vm4589, %v4594, %v4593
        %vm4596 = vcmp.lt.s32.totalorder %v4526, 0
        %v4597 = vsub.s32 0, %v4526
        %v4598 = vsel %vm4596, %v4597, %v4526
        %v4599 = vshrl.u32 %v4598, 4
        %v4600 = vand.u32 %v4598, 15
        %v4601 = vsub.s32 0, %v4600
        %v4602 = vsel %vm4596, %v4601, %v4600
        %vm4603 = vcmp.lt.s32.totalorder %v4527, 0
        %v4604 = vsub.s32 0, %v4527
        %v4605 = vsel %vm4603, %v4604, %v4527
        %v4606 = vshrl.u32 %v4605, 4
        %v4607 = vand.u32 %v4605, 15
        %v4608 = vsub.s32 0, %v4607
        %v4609 = vsel %vm4603, %v4608, %v4607
        %vm4610 = vcmp.lt.s32.totalorder %v4528, 0
        %v4611 = vsub.s32 0, %v4528
        %v4612 = vsel %vm4610, %v4611, %v4528
        %v4613 = vshrl.u32 %v4612, 4
        %v4614 = vand.u32 %v4612, 15
        %v4615 = vsub.s32 0, %v4614
        %v4616 = vsel %vm4610, %v4615, %v4614
        %vm4617 = vcmp.lt.s32.totalorder %v4529, 0
        %v4618 = vsub.s32 0, %v4529
        %v4619 = vsel %vm4617, %v4618, %v4529
        %v4620 = vshrl.u32 %v4619, 4
        %v4621 = vand.u32 %v4619, 15
        %v4622 = vsub.s32 0, %v4621
        %v4623 = vsel %vm4617, %v4622, %v4621
        %vm4624 = vcmp.lt.s32.totalorder %v4530, 0
        %v4625 = vsub.s32 0, %v4530
        %v4626 = vsel %vm4624, %v4625, %v4530
        %v4627 = vshrl.u32 %v4626, 4
        %v4628 = vand.u32 %v4626, 15
        %v4629 = vsub.s32 0, %v4628
        %v4630 = vsel %vm4624, %v4629, %v4628
        %vm4631 = vcmp.lt.s32.totalorder %v4531, 0
        %v4632 = vsub.s32 0, %v4531
        %v4633 = vsel %vm4631, %v4632, %v4531
        %v4634 = vshrl.u32 %v4633, 4
        %v4635 = vand.u32 %v4633, 15
        %v4636 = vsub.s32 0, %v4635
        %v4637 = vsel %vm4631, %v4636, %v4635
        %vm4638 = vcmp.lt.s32.totalorder %v4532, 0
        %v4639 = vsub.s32 0, %v4532
        %v4640 = vsel %vm4638, %v4639, %v4532
        %v4641 = vshrl.u32 %v4640, 4
        %v4642 = vand.u32 %v4640, 15
        %v4643 = vsub.s32 0, %v4642
        %v4644 = vsel %vm4638, %v4643, %v4642
        %vm4645 = vcmp.lt.s32.totalorder %v4533, 0
        %v4646 = vsub.s32 0, %v4533
        %v4647 = vsel %vm4645, %v4646, %v4533
        %v4648 = vshrl.u32 %v4647, 4
        %v4649 = vand.u32 %v4647, 15
        %v4650 = vsub.s32 0, %v4649
        %v4651 = vsel %vm4645, %v4650, %v4649
        %vm4652 = vcmp.lt.s32.totalorder %v4534, 0
        %v4653 = vsub.s32 0, %v4534
        %v4654 = vsel %vm4652, %v4653, %v4534
        %v4655 = vshrl.u32 %v4654, 4
        %v4656 = vand.u32 %v4654, 15
        %v4657 = vsub.s32 0, %v4656
        %v4658 = vsel %vm4652, %v4657, %v4656
        %vm4659 = vcmp.lt.s32.totalorder %v4535, 0
        %v4660 = vsub.s32 0, %v4535
        %v4661 = vsel %vm4659, %v4660, %v4535
        %v4662 = vshrl.u32 %v4661, 4
        %v4663 = vand.u32 %v4661, 15
        %v4664 = vsub.s32 0, %v4663
        %v4665 = vsel %vm4659, %v4664, %v4663
        %vm4666 = vcmp.lt.s32.totalorder %v4536, 0
        %v4667 = vsub.s32 0, %v4536
        %v4668 = vsel %vm4666, %v4667, %v4536
        %v4669 = vshrl.u32 %v4668, 4
        %v4670 = vand.u32 %v4668, 15
        %v4671 = vsub.s32 0, %v4670
        %v4672 = vsel %vm4666, %v4671, %v4670
        %vm4673 = vcmp.lt.s32.totalorder %v4537, 0
        %v4674 = vsub.s32 0, %v4537
        %v4675 = vsel %vm4673, %v4674, %v4537
        %v4676 = vshrl.u32 %v4675, 4
        %v4677 = vand.u32 %v4675, 15
        %v4678 = vsub.s32 0, %v4677
        %v4679 = vsel %vm4673, %v4678, %v4677
        %vm4680 = vcmp.lt.s32.totalorder %v4538, 0
        %v4681 = vsub.s32 0, %v4538
        %v4682 = vsel %vm4680, %v4681, %v4538
        %v4683 = vshrl.u32 %v4682, 4
        %v4684 = vand.u32 %v4682, 15
        %v4685 = vsub.s32 0, %v4684
        %v4686 = vsel %vm4680, %v4685, %v4684
        %vm4687 = vcmp.lt.s32.totalorder %v4539, 0
        %v4688 = vsub.s32 0, %v4539
        %v4689 = vsel %vm4687, %v4688, %v4539
        %v4690 = vshrl.u32 %v4689, 4
        %v4691 = vand.u32 %v4689, 15
        %v4692 = vsub.s32 0, %v4691
        %v4693 = vsel %vm4687, %v4692, %v4691
        %vm4694 = vcmp.lt.s32.totalorder %v4540, 0
        %v4695 = vsub.s32 0, %v4540
        %v4696 = vsel %vm4694, %v4695, %v4540
        %v4697 = vshrl.u32 %v4696, 4
        %v4698 = vand.u32 %v4696, 15
        %v4699 = vsub.s32 0, %v4698
        %v4700 = vsel %vm4694, %v4699, %v4698
        %vm4701 = vcmp.lt.s32.totalorder %v4541, 0
        %v4702 = vsub.s32 0, %v4541
        %v4703 = vsel %vm4701, %v4702, %v4541
        %v4704 = vshrl.u32 %v4703, 4
        %v4705 = vand.u32 %v4703, 15
        %v4706 = vsub.s32 0, %v4705
        %v4707 = vsel %vm4701, %v4706, %v4705
        %vm4708 = vcmp.lt.s32.totalorder %v4542, 0
        %v4709 = vsub.s32 0, %v4542
        %v4710 = vsel %vm4708, %v4709, %v4542
        %v4711 = vshrl.u32 %v4710, 4
        %v4712 = vand.u32 %v4710, 15
        %v4713 = vsub.s32 0, %v4712
        %v4714 = vsel %vm4708, %v4713, %v4712
        %vm4715 = vcmp.lt.s32.totalorder %v4543, 0
        %v4716 = vsub.s32 0, %v4543
        %v4717 = vsel %vm4715, %v4716, %v4543
        %v4718 = vshrl.u32 %v4717, 4
        %v4719 = vand.u32 %v4717, 15
        %v4720 = vsub.s32 0, %v4719
        %v4721 = vsel %vm4715, %v4720, %v4719
        %vm4722 = vcmp.lt.s32.totalorder %v4544, 0
        %v4723 = vsub.s32 0, %v4544
        %v4724 = vsel %vm4722, %v4723, %v4544
        %v4725 = vshrl.u32 %v4724, 4
        %v4726 = vand.u32 %v4724, 15
        %v4727 = vsub.s32 0, %v4726
        %v4728 = vsel %vm4722, %v4727, %v4726
        %vm4729 = vcmp.lt.s32.totalorder %v4545, 0
        %v4730 = vsub.s32 0, %v4545
        %v4731 = vsel %vm4729, %v4730, %v4545
        %v4732 = vshrl.u32 %v4731, 4
        %v4733 = vand.u32 %v4731, 15
        %v4734 = vsub.s32 0, %v4733
        %v4735 = vsel %vm4729, %v4734, %v4733
        %vm4736 = vcmp.lt.s32.totalorder %v4546, 0
        %v4737 = vsub.s32 0, %v4546
        %v4738 = vsel %vm4736, %v4737, %v4546
        %v4739 = vshrl.u32 %v4738, 4
        %v4740 = vand.u32 %v4738, 15
        %v4741 = vsub.s32 0, %v4740
        %v4742 = vsel %vm4736, %v4741, %v4740
        %vm4743 = vcmp.lt.s32.totalorder %v4547, 0
        %v4744 = vsub.s32 0, %v4547
        %v4745 = vsel %vm4743, %v4744, %v4547
        %v4746 = vshrl.u32 %v4745, 4
        %v4747 = vand.u32 %v4745, 15
        %v4748 = vsub.s32 0, %v4747
        %v4749 = vsel %vm4743, %v4748, %v4747
        %vm4750 = vcmp.lt.s32.totalorder %v4548, 0
        %v4751 = vsub.s32 0, %v4548
        %v4752 = vsel %vm4750, %v4751, %v4548
        %v4753 = vshrl.u32 %v4752, 4
        %v4754 = vand.u32 %v4752, 15
        %v4755 = vsub.s32 0, %v4754
        %v4756 = vsel %vm4750, %v4755, %v4754
        %vm4757 = vcmp.lt.s32.totalorder %v4549, 0
        %v4758 = vsub.s32 0, %v4549
        %v4759 = vsel %vm4757, %v4758, %v4549
        %v4760 = vshrl.u32 %v4759, 4
        %v4761 = vand.u32 %v4759, 15
        %v4762 = vsub.s32 0, %v4761
        %v4763 = vsel %vm4757, %v4762, %v4761
        %vm4764 = vcmp.lt.s32.totalorder %v4550, 0
        %v4765 = vsub.s32 0, %v4550
        %v4766 = vsel %vm4764, %v4765, %v4550
        %v4767 = vshrl.u32 %v4766, 4
        %v4768 = vand.u32 %v4766, 15
        %v4769 = vsub.s32 0, %v4768
        %v4770 = vsel %vm4764, %v4769, %v4768
        %vm4771 = vcmp.lt.s32.totalorder %v4551, 0
        %v4772 = vsub.s32 0, %v4551
        %v4773 = vsel %vm4771, %v4772, %v4551
        %v4774 = vshrl.u32 %v4773, 4
        %v4775 = vand.u32 %v4773, 15
        %v4776 = vsub.s32 0, %v4775
        %v4777 = vsel %vm4771, %v4776, %v4775
        %vm4778 = vcmp.ne.s32.totalorder %v4560, 0
        %vm4779 = vcmp.ne.s32.totalorder %v4567, 0
        %vm4780 = vcmp.ne.s32.totalorder %v4574, 0
        %vm4781 = vcmp.ne.s32.totalorder %v4581, 0
        %vm4782 = vcmp.ne.s32.totalorder %v4588, 0
        %vm4783 = vcmp.ne.s32.totalorder %v4595, 0
        %vm4784 = vcmp.ne.s32.totalorder %v4602, 0
        %vm4785 = vcmp.ne.s32.totalorder %v4609, 0
        %vm4786 = vcmp.ne.s32.totalorder %v4616, 0
        %vm4787 = vcmp.ne.s32.totalorder %v4623, 0
        %vm4788 = vcmp.ne.s32.totalorder %v4630, 0
        %vm4789 = vcmp.ne.s32.totalorder %v4637, 0
        %vm4790 = vcmp.ne.s32.totalorder %v4644, 0
        %vm4791 = vcmp.ne.s32.totalorder %v4651, 0
        %vm4792 = vcmp.ne.s32.totalorder %v4658, 0
        %vm4793 = vcmp.ne.s32.totalorder %v4665, 0
        %vm4794 = vcmp.ne.s32.totalorder %v4672, 0
        %vm4795 = vcmp.ne.s32.totalorder %v4679, 0
        %vm4796 = vcmp.ne.s32.totalorder %v4686, 0
        %vm4797 = vcmp.ne.s32.totalorder %v4693, 0
        %vm4798 = vcmp.ne.s32.totalorder %v4700, 0
        %vm4799 = vcmp.ne.s32.totalorder %v4707, 0
        %vm4800 = vcmp.ne.s32.totalorder %v4714, 0
        %vm4801 = vcmp.ne.s32.totalorder %v4721, 0
        %vm4802 = vcmp.ne.s32.totalorder %v4728, 0
        %vm4803 = vcmp.ne.s32.totalorder %v4735, 0
        %vm4804 = vcmp.ne.s32.totalorder %v4742, 0
        %vm4805 = vcmp.ne.s32.totalorder %v4749, 0
        %vm4806 = vcmp.ne.s32.totalorder %v4756, 0
        %vm4807 = vcmp.ne.s32.totalorder %v4763, 0
        %vm4808 = vcmp.ne.s32.totalorder %v4770, 0
        %vm4809 = vcmp.ne.s32.totalorder %v4777, 0
        %vm4810 = vcmp.lt.s32.totalorder %v4560, 0
        %vm4811 = vcmp.lt.s32.totalorder %v4567, 0
        %vm4812 = vcmp.lt.s32.totalorder %v4574, 0
        %vm4813 = vcmp.lt.s32.totalorder %v4581, 0
        %vm4814 = vcmp.lt.s32.totalorder %v4588, 0
        %vm4815 = vcmp.lt.s32.totalorder %v4595, 0
        %vm4816 = vcmp.lt.s32.totalorder %v4602, 0
        %vm4817 = vcmp.lt.s32.totalorder %v4609, 0
        %vm4818 = vcmp.lt.s32.totalorder %v4616, 0
        %vm4819 = vcmp.lt.s32.totalorder %v4623, 0
        %vm4820 = vcmp.lt.s32.totalorder %v4630, 0
        %vm4821 = vcmp.lt.s32.totalorder %v4637, 0
        %vm4822 = vcmp.lt.s32.totalorder %v4644, 0
        %vm4823 = vcmp.lt.s32.totalorder %v4651, 0
        %vm4824 = vcmp.lt.s32.totalorder %v4658, 0
        %vm4825 = vcmp.lt.s32.totalorder %v4665, 0
        %vm4826 = vcmp.lt.s32.totalorder %v4672, 0
        %vm4827 = vcmp.lt.s32.totalorder %v4679, 0
        %vm4828 = vcmp.lt.s32.totalorder %v4686, 0
        %vm4829 = vcmp.lt.s32.totalorder %v4693, 0
        %vm4830 = vcmp.lt.s32.totalorder %v4700, 0
        %vm4831 = vcmp.lt.s32.totalorder %v4707, 0
        %vm4832 = vcmp.lt.s32.totalorder %v4714, 0
        %vm4833 = vcmp.lt.s32.totalorder %v4721, 0
        %vm4834 = vcmp.lt.s32.totalorder %v4728, 0
        %vm4835 = vcmp.lt.s32.totalorder %v4735, 0
        %vm4836 = vcmp.lt.s32.totalorder %v4742, 0
        %vm4837 = vcmp.lt.s32.totalorder %v4749, 0
        %vm4838 = vcmp.lt.s32.totalorder %v4756, 0
        %vm4839 = vcmp.lt.s32.totalorder %v4763, 0
        %vm4840 = vcmp.lt.s32.totalorder %v4770, 0
        %vm4841 = vcmp.lt.s32.totalorder %v4777, 0
        %vm4842 = vmand %vm4810, %vm4778
        %vm4843 = vmand %vm4811, %vm4779
        %vm4844 = vmand %vm4812, %vm4780
        %vm4845 = vmand %vm4813, %vm4781
        %vm4846 = vmand %vm4814, %vm4782
        %vm4847 = vmand %vm4815, %vm4783
        %vm4848 = vmand %vm4816, %vm4784
        %vm4849 = vmand %vm4817, %vm4785
        %vm4850 = vmand %vm4818, %vm4786
        %vm4851 = vmand %vm4819, %vm4787
        %vm4852 = vmand %vm4820, %vm4788
        %vm4853 = vmand %vm4821, %vm4789
        %vm4854 = vmand %vm4822, %vm4790
        %vm4855 = vmand %vm4823, %vm4791
        %vm4856 = vmand %vm4824, %vm4792
        %vm4857 = vmand %vm4825, %vm4793
        %vm4858 = vmand %vm4826, %vm4794
        %vm4859 = vmand %vm4827, %vm4795
        %vm4860 = vmand %vm4828, %vm4796
        %vm4861 = vmand %vm4829, %vm4797
        %vm4862 = vmand %vm4830, %vm4798
        %vm4863 = vmand %vm4831, %vm4799
        %vm4864 = vmand %vm4832, %vm4800
        %vm4865 = vmand %vm4833, %vm4801
        %vm4866 = vmand %vm4834, %vm4802
        %vm4867 = vmand %vm4835, %vm4803
        %vm4868 = vmand %vm4836, %vm4804
        %vm4869 = vmand %vm4837, %vm4805
        %vm4870 = vmand %vm4838, %vm4806
        %vm4871 = vmand %vm4839, %vm4807
        %vm4872 = vmand %vm4840, %vm4808
        %vm4873 = vmand %vm4841, %vm4809
        %v4874 = vadd.s32 %v4560, 16
        %v4875 = vadd.s32 %v4567, 16
        %v4876 = vadd.s32 %v4574, 16
        %v4877 = vadd.s32 %v4581, 16
        %v4878 = vadd.s32 %v4588, 16
        %v4879 = vadd.s32 %v4595, 16
        %v4880 = vadd.s32 %v4602, 16
        %v4881 = vadd.s32 %v4609, 16
        %v4882 = vadd.s32 %v4616, 16
        %v4883 = vadd.s32 %v4623, 16
        %v4884 = vadd.s32 %v4630, 16
        %v4885 = vadd.s32 %v4637, 16
        %v4886 = vadd.s32 %v4644, 16
        %v4887 = vadd.s32 %v4651, 16
        %v4888 = vadd.s32 %v4658, 16
        %v4889 = vadd.s32 %v4665, 16
        %v4890 = vadd.s32 %v4672, 16
        %v4891 = vadd.s32 %v4679, 16
        %v4892 = vadd.s32 %v4686, 16
        %v4893 = vadd.s32 %v4693, 16
        %v4894 = vadd.s32 %v4700, 16
        %v4895 = vadd.s32 %v4707, 16
        %v4896 = vadd.s32 %v4714, 16
        %v4897 = vadd.s32 %v4721, 16
        %v4898 = vadd.s32 %v4728, 16
        %v4899 = vadd.s32 %v4735, 16
        %v4900 = vadd.s32 %v4742, 16
        %v4901 = vadd.s32 %v4749, 16
        %v4902 = vadd.s32 %v4756, 16
        %v4903 = vadd.s32 %v4763, 16
        %v4904 = vadd.s32 %v4770, 16
        %v4905 = vadd.s32 %v4777, 16
        %v4906 = vsel %vm4842, %v4874, %v4560
        %v4907 = vsel %vm4843, %v4875, %v4567
        %v4908 = vsel %vm4844, %v4876, %v4574
        %v4909 = vsel %vm4845, %v4877, %v4581
        %v4910 = vsel %vm4846, %v4878, %v4588
        %v4911 = vsel %vm4847, %v4879, %v4595
        %v4912 = vsel %vm4848, %v4880, %v4602
        %v4913 = vsel %vm4849, %v4881, %v4609
        %v4914 = vsel %vm4850, %v4882, %v4616
        %v4915 = vsel %vm4851, %v4883, %v4623
        %v4916 = vsel %vm4852, %v4884, %v4630
        %v4917 = vsel %vm4853, %v4885, %v4637
        %v4918 = vsel %vm4854, %v4886, %v4644
        %v4919 = vsel %vm4855, %v4887, %v4651
        %v4920 = vsel %vm4856, %v4888, %v4658
        %v4921 = vsel %vm4857, %v4889, %v4665
        %v4922 = vsel %vm4858, %v4890, %v4672
        %v4923 = vsel %vm4859, %v4891, %v4679
        %v4924 = vsel %vm4860, %v4892, %v4686
        %v4925 = vsel %vm4861, %v4893, %v4693
        %v4926 = vsel %vm4862, %v4894, %v4700
        %v4927 = vsel %vm4863, %v4895, %v4707
        %v4928 = vsel %vm4864, %v4896, %v4714
        %v4929 = vsel %vm4865, %v4897, %v4721
        %v4930 = vsel %vm4866, %v4898, %v4728
        %v4931 = vsel %vm4867, %v4899, %v4735
        %v4932 = vsel %vm4868, %v4900, %v4742
        %v4933 = vsel %vm4869, %v4901, %v4749
        %v4934 = vsel %vm4870, %v4902, %v4756
        %v4935 = vsel %vm4871, %v4903, %v4763
        %v4936 = vsel %vm4872, %v4904, %v4770
        %v4937 = vsel %vm4873, %v4905, %v4777
        %v4938 = vsub.s32 %v4553, %v4906
        %v4939 = vsub.s32 %v4553, %v4907
        %v4940 = vsub.s32 %v4553, %v4908
        %v4941 = vsub.s32 %v4553, %v4909
        %v4942 = vsub.s32 %v4553, %v4910
        %v4943 = vsub.s32 %v4553, %v4911
        %v4944 = vsub.s32 %v4553, %v4912
        %v4945 = vsub.s32 %v4553, %v4913
        %v4946 = vsub.s32 %v4553, %v4914
        %v4947 = vsub.s32 %v4553, %v4915
        %v4948 = vsub.s32 %v4553, %v4916
        %v4949 = vsub.s32 %v4553, %v4917
        %v4950 = vsub.s32 %v4553, %v4918
        %v4951 = vsub.s32 %v4553, %v4919
        %v4952 = vsub.s32 %v4553, %v4920
        %v4953 = vsub.s32 %v4553, %v4921
        %v4954 = vsub.s32 %v4553, %v4922
        %v4955 = vsub.s32 %v4553, %v4923
        %v4956 = vsub.s32 %v4553, %v4924
        %v4957 = vsub.s32 %v4553, %v4925
        %v4958 = vsub.s32 %v4553, %v4926
        %v4959 = vsub.s32 %v4553, %v4927
        %v4960 = vsub.s32 %v4553, %v4928
        %v4961 = vsub.s32 %v4553, %v4929
        %v4962 = vsub.s32 %v4553, %v4930
        %v4963 = vsub.s32 %v4553, %v4931
        %v4964 = vsub.s32 %v4553, %v4932
        %v4965 = vsub.s32 %v4553, %v4933
        %v4966 = vsub.s32 %v4553, %v4934
        %v4967 = vsub.s32 %v4553, %v4935
        %v4968 = vsub.s32 %v4553, %v4936
        %v4969 = vsub.s32 %v4553, %v4937
        %vm4970 = vcmp.eq.s32.totalorder %v4938, 0
        %vm4971 = vcmp.eq.s32.totalorder %v4939, 0
        %vm4972 = vcmp.eq.s32.totalorder %v4940, 0
        %vm4973 = vcmp.eq.s32.totalorder %v4941, 0
        %vm4974 = vcmp.eq.s32.totalorder %v4942, 0
        %vm4975 = vcmp.eq.s32.totalorder %v4943, 0
        %vm4976 = vcmp.eq.s32.totalorder %v4944, 0
        %vm4977 = vcmp.eq.s32.totalorder %v4945, 0
        %vm4978 = vcmp.eq.s32.totalorder %v4946, 0
        %vm4979 = vcmp.eq.s32.totalorder %v4947, 0
        %vm4980 = vcmp.eq.s32.totalorder %v4948, 0
        %vm4981 = vcmp.eq.s32.totalorder %v4949, 0
        %vm4982 = vcmp.eq.s32.totalorder %v4950, 0
        %vm4983 = vcmp.eq.s32.totalorder %v4951, 0
        %vm4984 = vcmp.eq.s32.totalorder %v4952, 0
        %vm4985 = vcmp.eq.s32.totalorder %v4953, 0
        %vm4986 = vcmp.eq.s32.totalorder %v4954, 0
        %vm4987 = vcmp.eq.s32.totalorder %v4955, 0
        %vm4988 = vcmp.eq.s32.totalorder %v4956, 0
        %vm4989 = vcmp.eq.s32.totalorder %v4957, 0
        %vm4990 = vcmp.eq.s32.totalorder %v4958, 0
        %vm4991 = vcmp.eq.s32.totalorder %v4959, 0
        %vm4992 = vcmp.eq.s32.totalorder %v4960, 0
        %vm4993 = vcmp.eq.s32.totalorder %v4961, 0
        %vm4994 = vcmp.eq.s32.totalorder %v4962, 0
        %vm4995 = vcmp.eq.s32.totalorder %v4963, 0
        %vm4996 = vcmp.eq.s32.totalorder %v4964, 0
        %vm4997 = vcmp.eq.s32.totalorder %v4965, 0
        %vm4998 = vcmp.eq.s32.totalorder %v4966, 0
        %vm4999 = vcmp.eq.s32.totalorder %v4967, 0
        %vm5000 = vcmp.eq.s32.totalorder %v4968, 0
        %vm5001 = vcmp.eq.s32.totalorder %v4969, 0
        %v5002 = vsel %vm4970, %v1723, 0.0
        %v5003 = vsel %vm4971, %v1727, 0.0
        %v5004 = vsel %vm4972, %v1909, 0.0
        %v5005 = vsel %vm4973, %v1913, 0.0
        %v5006 = vsel %vm4974, %v2095, 0.0
        %v5007 = vsel %vm4975, %v2099, 0.0
        %v5008 = vsel %vm4976, %v2281, 0.0
        %v5009 = vsel %vm4977, %v2285, 0.0
        %v5010 = vsel %vm4978, %v2467, 0.0
        %v5011 = vsel %vm4979, %v2471, 0.0
        %v5012 = vsel %vm4980, %v2653, 0.0
        %v5013 = vsel %vm4981, %v2657, 0.0
        %v5014 = vsel %vm4982, %v2839, 0.0
        %v5015 = vsel %vm4983, %v2843, 0.0
        %v5016 = vsel %vm4984, %v3025, 0.0
        %v5017 = vsel %vm4985, %v3029, 0.0
        %v5018 = vsel %vm4986, %v3211, 0.0
        %v5019 = vsel %vm4987, %v3215, 0.0
        %v5020 = vsel %vm4988, %v3397, 0.0
        %v5021 = vsel %vm4989, %v3401, 0.0
        %v5022 = vsel %vm4990, %v3583, 0.0
        %v5023 = vsel %vm4991, %v3587, 0.0
        %v5024 = vsel %vm4992, %v3769, 0.0
        %v5025 = vsel %vm4993, %v3773, 0.0
        %v5026 = vsel %vm4994, %v3955, 0.0
        %v5027 = vsel %vm4995, %v3959, 0.0
        %v5028 = vsel %vm4996, %v4141, 0.0
        %v5029 = vsel %vm4997, %v4145, 0.0
        %v5030 = vsel %vm4998, %v4327, 0.0
        %v5031 = vsel %vm4999, %v4331, 0.0
        %v5032 = vsel %vm5000, %v4513, 0.0
        %v5033 = vsel %vm5001, %v4517, 0.0
        %vm5034 = vcmask 457728
        %v5035 = vsel %vm5034, %v5002, 0.0
        %5036 = vadd.xlane.f32.xlu0 %v5035
        %v5037 = vpop.xlane.xlu0 %5036
        %v5038 = vsel %vm5034, %v5003, 0.0
        %5039 = vadd.xlane.f32.xlu0 %v5038
        %v5040 = vpop.xlane.xlu0 %5039
        %v5041 = vsel %vm5034, %v5004, 0.0
        %5042 = vadd.xlane.f32.xlu0 %v5041
        %v5043 = vpop.xlane.xlu0 %5042
        %v5044 = vsel %vm5034, %v5005, 0.0
        %5045 = vadd.xlane.f32.xlu0 %v5044
        %v5046 = vpop.xlane.xlu0 %5045
        %v5047 = vsel %vm5034, %v5006, 0.0
        %5048 = vadd.xlane.f32.xlu0 %v5047
        %v5049 = vpop.xlane.xlu0 %5048
        %v5050 = vsel %vm5034, %v5007, 0.0
        %5051 = vadd.xlane.f32.xlu0 %v5050
        %v5052 = vpop.xlane.xlu0 %5051
        %v5053 = vsel %vm5034, %v5008, 0.0
        %5054 = vadd.xlane.f32.xlu0 %v5053
        %v5055 = vpop.xlane.xlu0 %5054
        %v5056 = vsel %vm5034, %v5009, 0.0
        %5057 = vadd.xlane.f32.xlu0 %v5056
        %v5058 = vpop.xlane.xlu0 %5057
        %v5059 = vsel %vm5034, %v5010, 0.0
        %5060 = vadd.xlane.f32.xlu0 %v5059
        %v5061 = vpop.xlane.xlu0 %5060
        %v5062 = vsel %vm5034, %v5011, 0.0
        %5063 = vadd.xlane.f32.xlu0 %v5062
        %v5064 = vpop.xlane.xlu0 %5063
        %v5065 = vsel %vm5034, %v5012, 0.0
        %5066 = vadd.xlane.f32.xlu0 %v5065
        %v5067 = vpop.xlane.xlu0 %5066
        %v5068 = vsel %vm5034, %v5013, 0.0
        %5069 = vadd.xlane.f32.xlu0 %v5068
        %v5070 = vpop.xlane.xlu0 %5069
        %v5071 = vsel %vm5034, %v5014, 0.0
        %5072 = vadd.xlane.f32.xlu0 %v5071
        %v5073 = vpop.xlane.xlu0 %5072
        %v5074 = vsel %vm5034, %v5015, 0.0
        %5075 = vadd.xlane.f32.xlu0 %v5074
        %v5076 = vpop.xlane.xlu0 %5075
        %v5077 = vsel %vm5034, %v5016, 0.0
        %5078 = vadd.xlane.f32.xlu0 %v5077
        %v5079 = vpop.xlane.xlu0 %5078
        %v5080 = vsel %vm5034, %v5017, 0.0
        %5081 = vadd.xlane.f32.xlu0 %v5080
        %v5082 = vpop.xlane.xlu0 %5081
        %v5083 = vsel %vm5034, %v5018, 0.0
        %5084 = vadd.xlane.f32.xlu0 %v5083
        %v5085 = vpop.xlane.xlu0 %5084
        %v5086 = vsel %vm5034, %v5019, 0.0
        %5087 = vadd.xlane.f32.xlu0 %v5086
        %v5088 = vpop.xlane.xlu0 %5087
        %v5089 = vsel %vm5034, %v5020, 0.0
        %5090 = vadd.xlane.f32.xlu0 %v5089
        %v5091 = vpop.xlane.xlu0 %5090
        %v5092 = vsel %vm5034, %v5021, 0.0
        %5093 = vadd.xlane.f32.xlu0 %v5092
        %v5094 = vpop.xlane.xlu0 %5093
        %v5095 = vsel %vm5034, %v5022, 0.0
        %5096 = vadd.xlane.f32.xlu0 %v5095
        %v5097 = vpop.xlane.xlu0 %5096
        %v5098 = vsel %vm5034, %v5023, 0.0
        %5099 = vadd.xlane.f32.xlu0 %v5098
        %v5100 = vpop.xlane.xlu0 %5099
        %v5101 = vsel %vm5034, %v5024, 0.0
        %5102 = vadd.xlane.f32.xlu0 %v5101
        %v5103 = vpop.xlane.xlu0 %5102
        %v5104 = vsel %vm5034, %v5025, 0.0
        %5105 = vadd.xlane.f32.xlu0 %v5104
        %v5106 = vpop.xlane.xlu0 %5105
        %v5107 = vsel %vm5034, %v5026, 0.0
        %5108 = vadd.xlane.f32.xlu0 %v5107
        %v5109 = vpop.xlane.xlu0 %5108
        %v5110 = vsel %vm5034, %v5027, 0.0
        %5111 = vadd.xlane.f32.xlu0 %v5110
        %v5112 = vpop.xlane.xlu0 %5111
        %v5113 = vsel %vm5034, %v5028, 0.0
        %5114 = vadd.xlane.f32.xlu0 %v5113
        %v5115 = vpop.xlane.xlu0 %5114
        %v5116 = vsel %vm5034, %v5029, 0.0
        %5117 = vadd.xlane.f32.xlu0 %v5116
        %v5118 = vpop.xlane.xlu0 %5117
        %v5119 = vsel %vm5034, %v5030, 0.0
        %5120 = vadd.xlane.f32.xlu0 %v5119
        %v5121 = vpop.xlane.xlu0 %5120
        %v5122 = vsel %vm5034, %v5031, 0.0
        %5123 = vadd.xlane.f32.xlu0 %v5122
        %v5124 = vpop.xlane.xlu0 %5123
        %v5125 = vsel %vm5034, %v5032, 0.0
        %5126 = vadd.xlane.f32.xlu0 %v5125
        %v5127 = vpop.xlane.xlu0 %5126
        %v5128 = vsel %vm5034, %v5033, 0.0
        %5129 = vadd.xlane.f32.xlu0 %v5128
        %v5130 = vpop.xlane.xlu0 %5129
        %vm5131 = vcmp.eq.s32.totalorder %v4938, 2
        %vm5132 = vcmp.eq.s32.totalorder %v4939, 2
        %vm5133 = vcmp.eq.s32.totalorder %v4940, 2
        %vm5134 = vcmp.eq.s32.totalorder %v4941, 2
        %vm5135 = vcmp.eq.s32.totalorder %v4942, 2
        %vm5136 = vcmp.eq.s32.totalorder %v4943, 2
        %vm5137 = vcmp.eq.s32.totalorder %v4944, 2
        %vm5138 = vcmp.eq.s32.totalorder %v4945, 2
        %vm5139 = vcmp.eq.s32.totalorder %v4946, 2
        %vm5140 = vcmp.eq.s32.totalorder %v4947, 2
        %vm5141 = vcmp.eq.s32.totalorder %v4948, 2
        %vm5142 = vcmp.eq.s32.totalorder %v4949, 2
        %vm5143 = vcmp.eq.s32.totalorder %v4950, 2
        %vm5144 = vcmp.eq.s32.totalorder %v4951, 2
        %vm5145 = vcmp.eq.s32.totalorder %v4952, 2
        %vm5146 = vcmp.eq.s32.totalorder %v4953, 2
        %vm5147 = vcmp.eq.s32.totalorder %v4954, 2
        %vm5148 = vcmp.eq.s32.totalorder %v4955, 2
        %vm5149 = vcmp.eq.s32.totalorder %v4956, 2
        %vm5150 = vcmp.eq.s32.totalorder %v4957, 2
        %vm5151 = vcmp.eq.s32.totalorder %v4958, 2
        %vm5152 = vcmp.eq.s32.totalorder %v4959, 2
        %vm5153 = vcmp.eq.s32.totalorder %v4960, 2
        %vm5154 = vcmp.eq.s32.totalorder %v4961, 2
        %vm5155 = vcmp.eq.s32.totalorder %v4962, 2
        %vm5156 = vcmp.eq.s32.totalorder %v4963, 2
        %vm5157 = vcmp.eq.s32.totalorder %v4964, 2
        %vm5158 = vcmp.eq.s32.totalorder %v4965, 2
        %vm5159 = vcmp.eq.s32.totalorder %v4966, 2
        %vm5160 = vcmp.eq.s32.totalorder %v4967, 2
        %vm5161 = vcmp.eq.s32.totalorder %v4968, 2
        %vm5162 = vcmp.eq.s32.totalorder %v4969, 2
        %v5163 = vsel %vm5131, %v1723, 0.0
        %v5164 = vsel %vm5132, %v1727, 0.0
        %v5165 = vsel %vm5133, %v1909, 0.0
        %v5166 = vsel %vm5134, %v1913, 0.0
        %v5167 = vsel %vm5135, %v2095, 0.0
        %v5168 = vsel %vm5136, %v2099, 0.0
        %v5169 = vsel %vm5137, %v2281, 0.0
        %v5170 = vsel %vm5138, %v2285, 0.0
        %v5171 = vsel %vm5139, %v2467, 0.0
        %v5172 = vsel %vm5140, %v2471, 0.0
        %v5173 = vsel %vm5141, %v2653, 0.0
        %v5174 = vsel %vm5142, %v2657, 0.0
        %v5175 = vsel %vm5143, %v2839, 0.0
        %v5176 = vsel %vm5144, %v2843, 0.0
        %v5177 = vsel %vm5145, %v3025, 0.0
        %v5178 = vsel %vm5146, %v3029, 0.0
        %v5179 = vsel %vm5147, %v3211, 0.0
        %v5180 = vsel %vm5148, %v3215, 0.0
        %v5181 = vsel %vm5149, %v3397, 0.0
        %v5182 = vsel %vm5150, %v3401, 0.0
        %v5183 = vsel %vm5151, %v3583, 0.0
        %v5184 = vsel %vm5152, %v3587, 0.0
        %v5185 = vsel %vm5153, %v3769, 0.0
        %v5186 = vsel %vm5154, %v3773, 0.0
        %v5187 = vsel %vm5155, %v3955, 0.0
        %v5188 = vsel %vm5156, %v3959, 0.0
        %v5189 = vsel %vm5157, %v4141, 0.0
        %v5190 = vsel %vm5158, %v4145, 0.0
        %v5191 = vsel %vm5159, %v4327, 0.0
        %v5192 = vsel %vm5160, %v4331, 0.0
        %v5193 = vsel %vm5161, %v4513, 0.0
        %v5194 = vsel %vm5162, %v4517, 0.0
        %v5195 = vsel %vm5034, %v5163, 0.0
        %5196 = vadd.xlane.f32.xlu0 %v5195
        %v5197 = vpop.xlane.xlu0 %5196
        %v5198 = vsel %vm5034, %v5164, 0.0
        %5199 = vadd.xlane.f32.xlu0 %v5198
        %v5200 = vpop.xlane.xlu0 %5199
        %v5201 = vsel %vm5034, %v5165, 0.0
        %5202 = vadd.xlane.f32.xlu0 %v5201
        %v5203 = vpop.xlane.xlu0 %5202
        %v5204 = vsel %vm5034, %v5166, 0.0
        %5205 = vadd.xlane.f32.xlu0 %v5204
        %v5206 = vpop.xlane.xlu0 %5205
        %v5207 = vsel %vm5034, %v5167, 0.0
        %5208 = vadd.xlane.f32.xlu0 %v5207
        %v5209 = vpop.xlane.xlu0 %5208
        %v5210 = vsel %vm5034, %v5168, 0.0
        %5211 = vadd.xlane.f32.xlu0 %v5210
        %v5212 = vpop.xlane.xlu0 %5211
        %v5213 = vsel %vm5034, %v5169, 0.0
        %5214 = vadd.xlane.f32.xlu0 %v5213
        %v5215 = vpop.xlane.xlu0 %5214
        %v5216 = vsel %vm5034, %v5170, 0.0
        %5217 = vadd.xlane.f32.xlu0 %v5216
        %v5218 = vpop.xlane.xlu0 %5217
        %v5219 = vsel %vm5034, %v5171, 0.0
        %5220 = vadd.xlane.f32.xlu0 %v5219
        %v5221 = vpop.xlane.xlu0 %5220
        %v5222 = vsel %vm5034, %v5172, 0.0
        %5223 = vadd.xlane.f32.xlu0 %v5222
        %v5224 = vpop.xlane.xlu0 %5223
        %v5225 = vsel %vm5034, %v5173, 0.0
        %5226 = vadd.xlane.f32.xlu0 %v5225
        %v5227 = vpop.xlane.xlu0 %5226
        %v5228 = vsel %vm5034, %v5174, 0.0
        %5229 = vadd.xlane.f32.xlu0 %v5228
        %v5230 = vpop.xlane.xlu0 %5229
        %v5231 = vsel %vm5034, %v5175, 0.0
        %5232 = vadd.xlane.f32.xlu0 %v5231
        %v5233 = vpop.xlane.xlu0 %5232
        %v5234 = vsel %vm5034, %v5176, 0.0
        %5235 = vadd.xlane.f32.xlu0 %v5234
        %v5236 = vpop.xlane.xlu0 %5235
        %v5237 = vsel %vm5034, %v5177, 0.0
        %5238 = vadd.xlane.f32.xlu0 %v5237
        %v5239 = vpop.xlane.xlu0 %5238
        %v5240 = vsel %vm5034, %v5178, 0.0
        %5241 = vadd.xlane.f32.xlu0 %v5240
        %v5242 = vpop.xlane.xlu0 %5241
        %v5243 = vsel %vm5034, %v5179, 0.0
        %5244 = vadd.xlane.f32.xlu0 %v5243
        %v5245 = vpop.xlane.xlu0 %5244
        %v5246 = vsel %vm5034, %v5180, 0.0
        %5247 = vadd.xlane.f32.xlu0 %v5246
        %v5248 = vpop.xlane.xlu0 %5247
        %v5249 = vsel %vm5034, %v5181, 0.0
        %5250 = vadd.xlane.f32.xlu0 %v5249
        %v5251 = vpop.xlane.xlu0 %5250
        %v5252 = vsel %vm5034, %v5182, 0.0
        %5253 = vadd.xlane.f32.xlu0 %v5252
        %v5254 = vpop.xlane.xlu0 %5253
        %v5255 = vsel %vm5034, %v5183, 0.0
        %5256 = vadd.xlane.f32.xlu0 %v5255
        %v5257 = vpop.xlane.xlu0 %5256
        %v5258 = vsel %vm5034, %v5184, 0.0
        %5259 = vadd.xlane.f32.xlu0 %v5258
        %v5260 = vpop.xlane.xlu0 %5259
        %v5261 = vsel %vm5034, %v5185, 0.0
        %5262 = vadd.xlane.f32.xlu0 %v5261
        %v5263 = vpop.xlane.xlu0 %5262
        %v5264 = vsel %vm5034, %v5186, 0.0
        %5265 = vadd.xlane.f32.xlu0 %v5264
        %v5266 = vpop.xlane.xlu0 %5265
        %v5267 = vsel %vm5034, %v5187, 0.0
        %5268 = vadd.xlane.f32.xlu0 %v5267
        %v5269 = vpop.xlane.xlu0 %5268
        %v5270 = vsel %vm5034, %v5188, 0.0
        %5271 = vadd.xlane.f32.xlu0 %v5270
        %v5272 = vpop.xlane.xlu0 %5271
        %v5273 = vsel %vm5034, %v5189, 0.0
        %5274 = vadd.xlane.f32.xlu0 %v5273
        %v5275 = vpop.xlane.xlu0 %5274
        %v5276 = vsel %vm5034, %v5190, 0.0
        %5277 = vadd.xlane.f32.xlu0 %v5276
        %v5278 = vpop.xlane.xlu0 %5277
        %v5279 = vsel %vm5034, %v5191, 0.0
        %5280 = vadd.xlane.f32.xlu0 %v5279
        %v5281 = vpop.xlane.xlu0 %5280
        %v5282 = vsel %vm5034, %v5192, 0.0
        %5283 = vadd.xlane.f32.xlu0 %v5282
        %v5284 = vpop.xlane.xlu0 %5283
        %v5285 = vsel %vm5034, %v5193, 0.0
        %5286 = vadd.xlane.f32.xlu0 %v5285
        %v5287 = vpop.xlane.xlu0 %5286
        %v5288 = vsel %vm5034, %v5194, 0.0
        %5289 = vadd.xlane.f32.xlu0 %v5288
        %v5290 = vpop.xlane.xlu0 %5289
        %vm5291 = vcmp.eq.s32.totalorder %v4938, 4
        %vm5292 = vcmp.eq.s32.totalorder %v4939, 4
        %vm5293 = vcmp.eq.s32.totalorder %v4940, 4
        %vm5294 = vcmp.eq.s32.totalorder %v4941, 4
        %vm5295 = vcmp.eq.s32.totalorder %v4942, 4
        %vm5296 = vcmp.eq.s32.totalorder %v4943, 4
        %vm5297 = vcmp.eq.s32.totalorder %v4944, 4
        %vm5298 = vcmp.eq.s32.totalorder %v4945, 4
        %vm5299 = vcmp.eq.s32.totalorder %v4946, 4
        %vm5300 = vcmp.eq.s32.totalorder %v4947, 4
        %vm5301 = vcmp.eq.s32.totalorder %v4948, 4
        %vm5302 = vcmp.eq.s32.totalorder %v4949, 4
        %vm5303 = vcmp.eq.s32.totalorder %v4950, 4
        %vm5304 = vcmp.eq.s32.totalorder %v4951, 4
        %vm5305 = vcmp.eq.s32.totalorder %v4952, 4
        %vm5306 = vcmp.eq.s32.totalorder %v4953, 4
        %vm5307 = vcmp.eq.s32.totalorder %v4954, 4
        %vm5308 = vcmp.eq.s32.totalorder %v4955, 4
        %vm5309 = vcmp.eq.s32.totalorder %v4956, 4
        %vm5310 = vcmp.eq.s32.totalorder %v4957, 4
        %vm5311 = vcmp.eq.s32.totalorder %v4958, 4
        %vm5312 = vcmp.eq.s32.totalorder %v4959, 4
        %vm5313 = vcmp.eq.s32.totalorder %v4960, 4
        %vm5314 = vcmp.eq.s32.totalorder %v4961, 4
        %vm5315 = vcmp.eq.s32.totalorder %v4962, 4
        %vm5316 = vcmp.eq.s32.totalorder %v4963, 4
        %vm5317 = vcmp.eq.s32.totalorder %v4964, 4
        %vm5318 = vcmp.eq.s32.totalorder %v4965, 4
        %vm5319 = vcmp.eq.s32.totalorder %v4966, 4
        %vm5320 = vcmp.eq.s32.totalorder %v4967, 4
        %vm5321 = vcmp.eq.s32.totalorder %v4968, 4
        %vm5322 = vcmp.eq.s32.totalorder %v4969, 4
        %v5323 = vsel %vm5291, %v1723, 0.0
        %v5324 = vsel %vm5292, %v1727, 0.0
        %v5325 = vsel %vm5293, %v1909, 0.0
        %v5326 = vsel %vm5294, %v1913, 0.0
        %v5327 = vsel %vm5295, %v2095, 0.0
        %v5328 = vsel %vm5296, %v2099, 0.0
        %v5329 = vsel %vm5297, %v2281, 0.0
        %v5330 = vsel %vm5298, %v2285, 0.0
        %v5331 = vsel %vm5299, %v2467, 0.0
        %v5332 = vsel %vm5300, %v2471, 0.0
        %v5333 = vsel %vm5301, %v2653, 0.0
        %v5334 = vsel %vm5302, %v2657, 0.0
        %v5335 = vsel %vm5303, %v2839, 0.0
        %v5336 = vsel %vm5304, %v2843, 0.0
        %v5337 = vsel %vm5305, %v3025, 0.0
        %v5338 = vsel %vm5306, %v3029, 0.0
        %v5339 = vsel %vm5307, %v3211, 0.0
        %v5340 = vsel %vm5308, %v3215, 0.0
        %v5341 = vsel %vm5309, %v3397, 0.0
        %v5342 = vsel %vm5310, %v3401, 0.0
        %v5343 = vsel %vm5311, %v3583, 0.0
        %v5344 = vsel %vm5312, %v3587, 0.0
        %v5345 = vsel %vm5313, %v3769, 0.0
        %v5346 = vsel %vm5314, %v3773, 0.0
        %v5347 = vsel %vm5315, %v3955, 0.0
        %v5348 = vsel %vm5316, %v3959, 0.0
        %v5349 = vsel %vm5317, %v4141, 0.0
        %v5350 = vsel %vm5318, %v4145, 0.0
        %v5351 = vsel %vm5319, %v4327, 0.0
        %v5352 = vsel %vm5320, %v4331, 0.0
        %v5353 = vsel %vm5321, %v4513, 0.0
        %v5354 = vsel %vm5322, %v4517, 0.0
        %v5355 = vsel %vm5034, %v5323, 0.0
        %5356 = vadd.xlane.f32.xlu0 %v5355
        %v5357 = vpop.xlane.xlu0 %5356
        %v5358 = vsel %vm5034, %v5324, 0.0
        %5359 = vadd.xlane.f32.xlu0 %v5358
        %v5360 = vpop.xlane.xlu0 %5359
        %v5361 = vsel %vm5034, %v5325, 0.0
        %5362 = vadd.xlane.f32.xlu0 %v5361
        %v5363 = vpop.xlane.xlu0 %5362
        %v5364 = vsel %vm5034, %v5326, 0.0
        %5365 = vadd.xlane.f32.xlu0 %v5364
        %v5366 = vpop.xlane.xlu0 %5365
        %v5367 = vsel %vm5034, %v5327, 0.0
        %5368 = vadd.xlane.f32.xlu0 %v5367
        %v5369 = vpop.xlane.xlu0 %5368
        %v5370 = vsel %vm5034, %v5328, 0.0
        %5371 = vadd.xlane.f32.xlu0 %v5370
        %v5372 = vpop.xlane.xlu0 %5371
        %v5373 = vsel %vm5034, %v5329, 0.0
        %5374 = vadd.xlane.f32.xlu0 %v5373
        %v5375 = vpop.xlane.xlu0 %5374
        %v5376 = vsel %vm5034, %v5330, 0.0
        %5377 = vadd.xlane.f32.xlu0 %v5376
        %v5378 = vpop.xlane.xlu0 %5377
        %v5379 = vsel %vm5034, %v5331, 0.0
        %5380 = vadd.xlane.f32.xlu0 %v5379
        %v5381 = vpop.xlane.xlu0 %5380
        %v5382 = vsel %vm5034, %v5332, 0.0
        %5383 = vadd.xlane.f32.xlu0 %v5382
        %v5384 = vpop.xlane.xlu0 %5383
        %v5385 = vsel %vm5034, %v5333, 0.0
        %5386 = vadd.xlane.f32.xlu0 %v5385
        %v5387 = vpop.xlane.xlu0 %5386
        %v5388 = vsel %vm5034, %v5334, 0.0
        %5389 = vadd.xlane.f32.xlu0 %v5388
        %v5390 = vpop.xlane.xlu0 %5389
        %v5391 = vsel %vm5034, %v5335, 0.0
        %5392 = vadd.xlane.f32.xlu0 %v5391
        %v5393 = vpop.xlane.xlu0 %5392
        %v5394 = vsel %vm5034, %v5336, 0.0
        %5395 = vadd.xlane.f32.xlu0 %v5394
        %v5396 = vpop.xlane.xlu0 %5395
        %v5397 = vsel %vm5034, %v5337, 0.0
        %5398 = vadd.xlane.f32.xlu0 %v5397
        %v5399 = vpop.xlane.xlu0 %5398
        %v5400 = vsel %vm5034, %v5338, 0.0
        %5401 = vadd.xlane.f32.xlu0 %v5400
        %v5402 = vpop.xlane.xlu0 %5401
        %v5403 = vsel %vm5034, %v5339, 0.0
        %5404 = vadd.xlane.f32.xlu0 %v5403
        %v5405 = vpop.xlane.xlu0 %5404
        %v5406 = vsel %vm5034, %v5340, 0.0
        %5407 = vadd.xlane.f32.xlu0 %v5406
        %v5408 = vpop.xlane.xlu0 %5407
        %v5409 = vsel %vm5034, %v5341, 0.0
        %5410 = vadd.xlane.f32.xlu0 %v5409
        %v5411 = vpop.xlane.xlu0 %5410
        %v5412 = vsel %vm5034, %v5342, 0.0
        %5413 = vadd.xlane.f32.xlu0 %v5412
        %v5414 = vpop.xlane.xlu0 %5413
        %v5415 = vsel %vm5034, %v5343, 0.0
        %5416 = vadd.xlane.f32.xlu0 %v5415
        %v5417 = vpop.xlane.xlu0 %5416
        %v5418 = vsel %vm5034, %v5344, 0.0
        %5419 = vadd.xlane.f32.xlu0 %v5418
        %v5420 = vpop.xlane.xlu0 %5419
        %v5421 = vsel %vm5034, %v5345, 0.0
        %5422 = vadd.xlane.f32.xlu0 %v5421
        %v5423 = vpop.xlane.xlu0 %5422
        %v5424 = vsel %vm5034, %v5346, 0.0
        %5425 = vadd.xlane.f32.xlu0 %v5424
        %v5426 = vpop.xlane.xlu0 %5425
        %v5427 = vsel %vm5034, %v5347, 0.0
        %5428 = vadd.xlane.f32.xlu0 %v5427
        %v5429 = vpop.xlane.xlu0 %5428
        %v5430 = vsel %vm5034, %v5348, 0.0
        %5431 = vadd.xlane.f32.xlu0 %v5430
        %v5432 = vpop.xlane.xlu0 %5431
        %v5433 = vsel %vm5034, %v5349, 0.0
        %5434 = vadd.xlane.f32.xlu0 %v5433
        %v5435 = vpop.xlane.xlu0 %5434
        %v5436 = vsel %vm5034, %v5350, 0.0
        %5437 = vadd.xlane.f32.xlu0 %v5436
        %v5438 = vpop.xlane.xlu0 %5437
        %v5439 = vsel %vm5034, %v5351, 0.0
        %5440 = vadd.xlane.f32.xlu0 %v5439
        %v5441 = vpop.xlane.xlu0 %5440
        %v5442 = vsel %vm5034, %v5352, 0.0
        %5443 = vadd.xlane.f32.xlu0 %v5442
        %v5444 = vpop.xlane.xlu0 %5443
        %v5445 = vsel %vm5034, %v5353, 0.0
        %5446 = vadd.xlane.f32.xlu0 %v5445
        %v5447 = vpop.xlane.xlu0 %5446
        %v5448 = vsel %vm5034, %v5354, 0.0
        %5449 = vadd.xlane.f32.xlu0 %v5448
        %v5450 = vpop.xlane.xlu0 %5449
        %vm5451 = vcmp.eq.s32.totalorder %v4938, 6
        %vm5452 = vcmp.eq.s32.totalorder %v4939, 6
        %vm5453 = vcmp.eq.s32.totalorder %v4940, 6
        %vm5454 = vcmp.eq.s32.totalorder %v4941, 6
        %vm5455 = vcmp.eq.s32.totalorder %v4942, 6
        %vm5456 = vcmp.eq.s32.totalorder %v4943, 6
        %vm5457 = vcmp.eq.s32.totalorder %v4944, 6
        %vm5458 = vcmp.eq.s32.totalorder %v4945, 6
        %vm5459 = vcmp.eq.s32.totalorder %v4946, 6
        %vm5460 = vcmp.eq.s32.totalorder %v4947, 6
        %vm5461 = vcmp.eq.s32.totalorder %v4948, 6
        %vm5462 = vcmp.eq.s32.totalorder %v4949, 6
        %vm5463 = vcmp.eq.s32.totalorder %v4950, 6
        %vm5464 = vcmp.eq.s32.totalorder %v4951, 6
        %vm5465 = vcmp.eq.s32.totalorder %v4952, 6
        %vm5466 = vcmp.eq.s32.totalorder %v4953, 6
        %vm5467 = vcmp.eq.s32.totalorder %v4954, 6
        %vm5468 = vcmp.eq.s32.totalorder %v4955, 6
        %vm5469 = vcmp.eq.s32.totalorder %v4956, 6
        %vm5470 = vcmp.eq.s32.totalorder %v4957, 6
        %vm5471 = vcmp.eq.s32.totalorder %v4958, 6
        %vm5472 = vcmp.eq.s32.totalorder %v4959, 6
        %vm5473 = vcmp.eq.s32.totalorder %v4960, 6
        %vm5474 = vcmp.eq.s32.totalorder %v4961, 6
        %vm5475 = vcmp.eq.s32.totalorder %v4962, 6
        %vm5476 = vcmp.eq.s32.totalorder %v4963, 6
        %vm5477 = vcmp.eq.s32.totalorder %v4964, 6
        %vm5478 = vcmp.eq.s32.totalorder %v4965, 6
        %vm5479 = vcmp.eq.s32.totalorder %v4966, 6
        %vm5480 = vcmp.eq.s32.totalorder %v4967, 6
        %vm5481 = vcmp.eq.s32.totalorder %v4968, 6
        %vm5482 = vcmp.eq.s32.totalorder %v4969, 6
        %v5483 = vsel %vm5451, %v1723, 0.0
        %v5484 = vsel %vm5452, %v1727, 0.0
        %v5485 = vsel %vm5453, %v1909, 0.0
        %v5486 = vsel %vm5454, %v1913, 0.0
        %v5487 = vsel %vm5455, %v2095, 0.0
        %v5488 = vsel %vm5456, %v2099, 0.0
        %v5489 = vsel %vm5457, %v2281, 0.0
        %v5490 = vsel %vm5458, %v2285, 0.0
        %v5491 = vsel %vm5459, %v2467, 0.0
        %v5492 = vsel %vm5460, %v2471, 0.0
        %v5493 = vsel %vm5461, %v2653, 0.0
        %v5494 = vsel %vm5462, %v2657, 0.0
        %v5495 = vsel %vm5463, %v2839, 0.0
        %v5496 = vsel %vm5464, %v2843, 0.0
        %v5497 = vsel %vm5465, %v3025, 0.0
        %v5498 = vsel %vm5466, %v3029, 0.0
        %v5499 = vsel %vm5467, %v3211, 0.0
        %v5500 = vsel %vm5468, %v3215, 0.0
        %v5501 = vsel %vm5469, %v3397, 0.0
        %v5502 = vsel %vm5470, %v3401, 0.0
        %v5503 = vsel %vm5471, %v3583, 0.0
        %v5504 = vsel %vm5472, %v3587, 0.0
        %v5505 = vsel %vm5473, %v3769, 0.0
        %v5506 = vsel %vm5474, %v3773, 0.0
        %v5507 = vsel %vm5475, %v3955, 0.0
        %v5508 = vsel %vm5476, %v3959, 0.0
        %v5509 = vsel %vm5477, %v4141, 0.0
        %v5510 = vsel %vm5478, %v4145, 0.0
        %v5511 = vsel %vm5479, %v4327, 0.0
        %v5512 = vsel %vm5480, %v4331, 0.0
        %v5513 = vsel %vm5481, %v4513, 0.0
        %v5514 = vsel %vm5482, %v4517, 0.0
        %v5515 = vsel %vm5034, %v5483, 0.0
        %5516 = vadd.xlane.f32.xlu0 %v5515
        %v5517 = vpop.xlane.xlu0 %5516
        %v5518 = vsel %vm5034, %v5484, 0.0
        %5519 = vadd.xlane.f32.xlu0 %v5518
        %v5520 = vpop.xlane.xlu0 %5519
        %v5521 = vsel %vm5034, %v5485, 0.0
        %5522 = vadd.xlane.f32.xlu0 %v5521
        %v5523 = vpop.xlane.xlu0 %5522
        %v5524 = vsel %vm5034, %v5486, 0.0
        %5525 = vadd.xlane.f32.xlu0 %v5524
        %v5526 = vpop.xlane.xlu0 %5525
        %v5527 = vsel %vm5034, %v5487, 0.0
        %5528 = vadd.xlane.f32.xlu0 %v5527
        %v5529 = vpop.xlane.xlu0 %5528
        %v5530 = vsel %vm5034, %v5488, 0.0
        %5531 = vadd.xlane.f32.xlu0 %v5530
        %v5532 = vpop.xlane.xlu0 %5531
        %v5533 = vsel %vm5034, %v5489, 0.0
        %5534 = vadd.xlane.f32.xlu0 %v5533
        %v5535 = vpop.xlane.xlu0 %5534
        %v5536 = vsel %vm5034, %v5490, 0.0
        %5537 = vadd.xlane.f32.xlu0 %v5536
        %v5538 = vpop.xlane.xlu0 %5537
        %v5539 = vsel %vm5034, %v5491, 0.0
        %5540 = vadd.xlane.f32.xlu0 %v5539
        %v5541 = vpop.xlane.xlu0 %5540
        %v5542 = vsel %vm5034, %v5492, 0.0
        %5543 = vadd.xlane.f32.xlu0 %v5542
        %v5544 = vpop.xlane.xlu0 %5543
        %v5545 = vsel %vm5034, %v5493, 0.0
        %5546 = vadd.xlane.f32.xlu0 %v5545
        %v5547 = vpop.xlane.xlu0 %5546
        %v5548 = vsel %vm5034, %v5494, 0.0
        %5549 = vadd.xlane.f32.xlu0 %v5548
        %v5550 = vpop.xlane.xlu0 %5549
        %v5551 = vsel %vm5034, %v5495, 0.0
        %5552 = vadd.xlane.f32.xlu0 %v5551
        %v5553 = vpop.xlane.xlu0 %5552
        %v5554 = vsel %vm5034, %v5496, 0.0
        %5555 = vadd.xlane.f32.xlu0 %v5554
        %v5556 = vpop.xlane.xlu0 %5555
        %v5557 = vsel %vm5034, %v5497, 0.0
        %5558 = vadd.xlane.f32.xlu0 %v5557
        %v5559 = vpop.xlane.xlu0 %5558
        %v5560 = vsel %vm5034, %v5498, 0.0
        %5561 = vadd.xlane.f32.xlu0 %v5560
        %v5562 = vpop.xlane.xlu0 %5561
        %v5563 = vsel %vm5034, %v5499, 0.0
        %5564 = vadd.xlane.f32.xlu0 %v5563
        %v5565 = vpop.xlane.xlu0 %5564
        %v5566 = vsel %vm5034, %v5500, 0.0
        %5567 = vadd.xlane.f32.xlu0 %v5566
        %v5568 = vpop.xlane.xlu0 %5567
        %v5569 = vsel %vm5034, %v5501, 0.0
        %5570 = vadd.xlane.f32.xlu0 %v5569
        %v5571 = vpop.xlane.xlu0 %5570
        %v5572 = vsel %vm5034, %v5502, 0.0
        %5573 = vadd.xlane.f32.xlu0 %v5572
        %v5574 = vpop.xlane.xlu0 %5573
        %v5575 = vsel %vm5034, %v5503, 0.0
        %5576 = vadd.xlane.f32.xlu0 %v5575
        %v5577 = vpop.xlane.xlu0 %5576
        %v5578 = vsel %vm5034, %v5504, 0.0
        %5579 = vadd.xlane.f32.xlu0 %v5578
        %v5580 = vpop.xlane.xlu0 %5579
        %v5581 = vsel %vm5034, %v5505, 0.0
        %5582 = vadd.xlane.f32.xlu0 %v5581
        %v5583 = vpop.xlane.xlu0 %5582
        %v5584 = vsel %vm5034, %v5506, 0.0
        %5585 = vadd.xlane.f32.xlu0 %v5584
        %v5586 = vpop.xlane.xlu0 %5585
        %v5587 = vsel %vm5034, %v5507, 0.0
        %5588 = vadd.xlane.f32.xlu0 %v5587
        %v5589 = vpop.xlane.xlu0 %5588
        %v5590 = vsel %vm5034, %v5508, 0.0
        %5591 = vadd.xlane.f32.xlu0 %v5590
        %v5592 = vpop.xlane.xlu0 %5591
        %v5593 = vsel %vm5034, %v5509, 0.0
        %5594 = vadd.xlane.f32.xlu0 %v5593
        %v5595 = vpop.xlane.xlu0 %5594
        %v5596 = vsel %vm5034, %v5510, 0.0
        %5597 = vadd.xlane.f32.xlu0 %v5596
        %v5598 = vpop.xlane.xlu0 %5597
        %v5599 = vsel %vm5034, %v5511, 0.0
        %5600 = vadd.xlane.f32.xlu0 %v5599
        %v5601 = vpop.xlane.xlu0 %5600
        %v5602 = vsel %vm5034, %v5512, 0.0
        %5603 = vadd.xlane.f32.xlu0 %v5602
        %v5604 = vpop.xlane.xlu0 %5603
        %v5605 = vsel %vm5034, %v5513, 0.0
        %5606 = vadd.xlane.f32.xlu0 %v5605
        %v5607 = vpop.xlane.xlu0 %5606
        %v5608 = vsel %vm5034, %v5514, 0.0
        %5609 = vadd.xlane.f32.xlu0 %v5608
        %v5610 = vpop.xlane.xlu0 %5609
        %vm5611 = vcmp.eq.s32.totalorder %v4938, 8
        %vm5612 = vcmp.eq.s32.totalorder %v4939, 8
        %vm5613 = vcmp.eq.s32.totalorder %v4940, 8
        %vm5614 = vcmp.eq.s32.totalorder %v4941, 8
        %vm5615 = vcmp.eq.s32.totalorder %v4942, 8
        %vm5616 = vcmp.eq.s32.totalorder %v4943, 8
        %vm5617 = vcmp.eq.s32.totalorder %v4944, 8
        %vm5618 = vcmp.eq.s32.totalorder %v4945, 8
        %vm5619 = vcmp.eq.s32.totalorder %v4946, 8
        %vm5620 = vcmp.eq.s32.totalorder %v4947, 8
        %vm5621 = vcmp.eq.s32.totalorder %v4948, 8
        %vm5622 = vcmp.eq.s32.totalorder %v4949, 8
        %vm5623 = vcmp.eq.s32.totalorder %v4950, 8
        %vm5624 = vcmp.eq.s32.totalorder %v4951, 8
        %vm5625 = vcmp.eq.s32.totalorder %v4952, 8
        %vm5626 = vcmp.eq.s32.totalorder %v4953, 8
        %vm5627 = vcmp.eq.s32.totalorder %v4954, 8
        %vm5628 = vcmp.eq.s32.totalorder %v4955, 8
        %vm5629 = vcmp.eq.s32.totalorder %v4956, 8
        %vm5630 = vcmp.eq.s32.totalorder %v4957, 8
        %vm5631 = vcmp.eq.s32.totalorder %v4958, 8
        %vm5632 = vcmp.eq.s32.totalorder %v4959, 8
        %vm5633 = vcmp.eq.s32.totalorder %v4960, 8
        %vm5634 = vcmp.eq.s32.totalorder %v4961, 8
        %vm5635 = vcmp.eq.s32.totalorder %v4962, 8
        %vm5636 = vcmp.eq.s32.totalorder %v4963, 8
        %vm5637 = vcmp.eq.s32.totalorder %v4964, 8
        %vm5638 = vcmp.eq.s32.totalorder %v4965, 8
        %vm5639 = vcmp.eq.s32.totalorder %v4966, 8
        %vm5640 = vcmp.eq.s32.totalorder %v4967, 8
        %vm5641 = vcmp.eq.s32.totalorder %v4968, 8
        %vm5642 = vcmp.eq.s32.totalorder %v4969, 8
        %v5643 = vsel %vm5611, %v1723, 0.0
        %v5644 = vsel %vm5612, %v1727, 0.0
        %v5645 = vsel %vm5613, %v1909, 0.0
        %v5646 = vsel %vm5614, %v1913, 0.0
        %v5647 = vsel %vm5615, %v2095, 0.0
        %v5648 = vsel %vm5616, %v2099, 0.0
        %v5649 = vsel %vm5617, %v2281, 0.0
        %v5650 = vsel %vm5618, %v2285, 0.0
        %v5651 = vsel %vm5619, %v2467, 0.0
        %v5652 = vsel %vm5620, %v2471, 0.0
        %v5653 = vsel %vm5621, %v2653, 0.0
        %v5654 = vsel %vm5622, %v2657, 0.0
        %v5655 = vsel %vm5623, %v2839, 0.0
        %v5656 = vsel %vm5624, %v2843, 0.0
        %v5657 = vsel %vm5625, %v3025, 0.0
        %v5658 = vsel %vm5626, %v3029, 0.0
        %v5659 = vsel %vm5627, %v3211, 0.0
        %v5660 = vsel %vm5628, %v3215, 0.0
        %v5661 = vsel %vm5629, %v3397, 0.0
        %v5662 = vsel %vm5630, %v3401, 0.0
        %v5663 = vsel %vm5631, %v3583, 0.0
        %v5664 = vsel %vm5632, %v3587, 0.0
        %v5665 = vsel %vm5633, %v3769, 0.0
        %v5666 = vsel %vm5634, %v3773, 0.0
        %v5667 = vsel %vm5635, %v3955, 0.0
        %v5668 = vsel %vm5636, %v3959, 0.0
        %v5669 = vsel %vm5637, %v4141, 0.0
        %v5670 = vsel %vm5638, %v4145, 0.0
        %v5671 = vsel %vm5639, %v4327, 0.0
        %v5672 = vsel %vm5640, %v4331, 0.0
        %v5673 = vsel %vm5641, %v4513, 0.0
        %v5674 = vsel %vm5642, %v4517, 0.0
        %v5675 = vsel %vm5034, %v5643, 0.0
        %5676 = vadd.xlane.f32.xlu0 %v5675
        %v5677 = vpop.xlane.xlu0 %5676
        %v5678 = vsel %vm5034, %v5644, 0.0
        %5679 = vadd.xlane.f32.xlu0 %v5678
        %v5680 = vpop.xlane.xlu0 %5679
        %v5681 = vsel %vm5034, %v5645, 0.0
        %5682 = vadd.xlane.f32.xlu0 %v5681
        %v5683 = vpop.xlane.xlu0 %5682
        %v5684 = vsel %vm5034, %v5646, 0.0
        %5685 = vadd.xlane.f32.xlu0 %v5684
        %v5686 = vpop.xlane.xlu0 %5685
        %v5687 = vsel %vm5034, %v5647, 0.0
        %5688 = vadd.xlane.f32.xlu0 %v5687
        %v5689 = vpop.xlane.xlu0 %5688
        %v5690 = vsel %vm5034, %v5648, 0.0
        %5691 = vadd.xlane.f32.xlu0 %v5690
        %v5692 = vpop.xlane.xlu0 %5691
        %v5693 = vsel %vm5034, %v5649, 0.0
        %5694 = vadd.xlane.f32.xlu0 %v5693
        %v5695 = vpop.xlane.xlu0 %5694
        %v5696 = vsel %vm5034, %v5650, 0.0
        %5697 = vadd.xlane.f32.xlu0 %v5696
        %v5698 = vpop.xlane.xlu0 %5697
        %v5699 = vsel %vm5034, %v5651, 0.0
        %5700 = vadd.xlane.f32.xlu0 %v5699
        %v5701 = vpop.xlane.xlu0 %5700
        %v5702 = vsel %vm5034, %v5652, 0.0
        %5703 = vadd.xlane.f32.xlu0 %v5702
        %v5704 = vpop.xlane.xlu0 %5703
        %v5705 = vsel %vm5034, %v5653, 0.0
        %5706 = vadd.xlane.f32.xlu0 %v5705
        %v5707 = vpop.xlane.xlu0 %5706
        %v5708 = vsel %vm5034, %v5654, 0.0
        %5709 = vadd.xlane.f32.xlu0 %v5708
        %v5710 = vpop.xlane.xlu0 %5709
        %v5711 = vsel %vm5034, %v5655, 0.0
        %5712 = vadd.xlane.f32.xlu0 %v5711
        %v5713 = vpop.xlane.xlu0 %5712
        %v5714 = vsel %vm5034, %v5656, 0.0
        %5715 = vadd.xlane.f32.xlu0 %v5714
        %v5716 = vpop.xlane.xlu0 %5715
        %v5717 = vsel %vm5034, %v5657, 0.0
        %5718 = vadd.xlane.f32.xlu0 %v5717
        %v5719 = vpop.xlane.xlu0 %5718
        %v5720 = vsel %vm5034, %v5658, 0.0
        %5721 = vadd.xlane.f32.xlu0 %v5720
        %v5722 = vpop.xlane.xlu0 %5721
        %v5723 = vsel %vm5034, %v5659, 0.0
        %5724 = vadd.xlane.f32.xlu0 %v5723
        %v5725 = vpop.xlane.xlu0 %5724
        %v5726 = vsel %vm5034, %v5660, 0.0
        %5727 = vadd.xlane.f32.xlu0 %v5726
        %v5728 = vpop.xlane.xlu0 %5727
        %v5729 = vsel %vm5034, %v5661, 0.0
        %5730 = vadd.xlane.f32.xlu0 %v5729
        %v5731 = vpop.xlane.xlu0 %5730
        %v5732 = vsel %vm5034, %v5662, 0.0
        %5733 = vadd.xlane.f32.xlu0 %v5732
        %v5734 = vpop.xlane.xlu0 %5733
        %v5735 = vsel %vm5034, %v5663, 0.0
        %5736 = vadd.xlane.f32.xlu0 %v5735
        %v5737 = vpop.xlane.xlu0 %5736
        %v5738 = vsel %vm5034, %v5664, 0.0
        %5739 = vadd.xlane.f32.xlu0 %v5738
        %v5740 = vpop.xlane.xlu0 %5739
        %v5741 = vsel %vm5034, %v5665, 0.0
        %5742 = vadd.xlane.f32.xlu0 %v5741
        %v5743 = vpop.xlane.xlu0 %5742
        %v5744 = vsel %vm5034, %v5666, 0.0
        %5745 = vadd.xlane.f32.xlu0 %v5744
        %v5746 = vpop.xlane.xlu0 %5745
        %v5747 = vsel %vm5034, %v5667, 0.0
        %5748 = vadd.xlane.f32.xlu0 %v5747
        %v5749 = vpop.xlane.xlu0 %5748
        %v5750 = vsel %vm5034, %v5668, 0.0
        %5751 = vadd.xlane.f32.xlu0 %v5750
        %v5752 = vpop.xlane.xlu0 %5751
        %v5753 = vsel %vm5034, %v5669, 0.0
        %5754 = vadd.xlane.f32.xlu0 %v5753
        %v5755 = vpop.xlane.xlu0 %5754
        %v5756 = vsel %vm5034, %v5670, 0.0
        %5757 = vadd.xlane.f32.xlu0 %v5756
        %v5758 = vpop.xlane.xlu0 %5757
        %v5759 = vsel %vm5034, %v5671, 0.0
        %5760 = vadd.xlane.f32.xlu0 %v5759
        %v5761 = vpop.xlane.xlu0 %5760
        %v5762 = vsel %vm5034, %v5672, 0.0
        %5763 = vadd.xlane.f32.xlu0 %v5762
        %v5764 = vpop.xlane.xlu0 %5763
        %v5765 = vsel %vm5034, %v5673, 0.0
        %5766 = vadd.xlane.f32.xlu0 %v5765
        %v5767 = vpop.xlane.xlu0 %5766
        %v5768 = vsel %vm5034, %v5674, 0.0
        %5769 = vadd.xlane.f32.xlu0 %v5768
        %v5770 = vpop.xlane.xlu0 %5769
        %vm5771 = vcmp.eq.s32.totalorder %v4938, 10
        %vm5772 = vcmp.eq.s32.totalorder %v4939, 10
        %vm5773 = vcmp.eq.s32.totalorder %v4940, 10
        %vm5774 = vcmp.eq.s32.totalorder %v4941, 10
        %vm5775 = vcmp.eq.s32.totalorder %v4942, 10
        %vm5776 = vcmp.eq.s32.totalorder %v4943, 10
        %vm5777 = vcmp.eq.s32.totalorder %v4944, 10
        %vm5778 = vcmp.eq.s32.totalorder %v4945, 10
        %vm5779 = vcmp.eq.s32.totalorder %v4946, 10
        %vm5780 = vcmp.eq.s32.totalorder %v4947, 10
        %vm5781 = vcmp.eq.s32.totalorder %v4948, 10
        %vm5782 = vcmp.eq.s32.totalorder %v4949, 10
        %vm5783 = vcmp.eq.s32.totalorder %v4950, 10
        %vm5784 = vcmp.eq.s32.totalorder %v4951, 10
        %vm5785 = vcmp.eq.s32.totalorder %v4952, 10
        %vm5786 = vcmp.eq.s32.totalorder %v4953, 10
        %vm5787 = vcmp.eq.s32.totalorder %v4954, 10
        %vm5788 = vcmp.eq.s32.totalorder %v4955, 10
        %vm5789 = vcmp.eq.s32.totalorder %v4956, 10
        %vm5790 = vcmp.eq.s32.totalorder %v4957, 10
        %vm5791 = vcmp.eq.s32.totalorder %v4958, 10
        %vm5792 = vcmp.eq.s32.totalorder %v4959, 10
        %vm5793 = vcmp.eq.s32.totalorder %v4960, 10
        %vm5794 = vcmp.eq.s32.totalorder %v4961, 10
        %vm5795 = vcmp.eq.s32.totalorder %v4962, 10
        %vm5796 = vcmp.eq.s32.totalorder %v4963, 10
        %vm5797 = vcmp.eq.s32.totalorder %v4964, 10
        %vm5798 = vcmp.eq.s32.totalorder %v4965, 10
        %vm5799 = vcmp.eq.s32.totalorder %v4966, 10
        %vm5800 = vcmp.eq.s32.totalorder %v4967, 10
        %vm5801 = vcmp.eq.s32.totalorder %v4968, 10
        %vm5802 = vcmp.eq.s32.totalorder %v4969, 10
        %v5803 = vsel %vm5771, %v1723, 0.0
        %v5804 = vsel %vm5772, %v1727, 0.0
        %v5805 = vsel %vm5773, %v1909, 0.0
        %v5806 = vsel %vm5774, %v1913, 0.0
        %v5807 = vsel %vm5775, %v2095, 0.0
        %v5808 = vsel %vm5776, %v2099, 0.0
        %v5809 = vsel %vm5777, %v2281, 0.0
        %v5810 = vsel %vm5778, %v2285, 0.0
        %v5811 = vsel %vm5779, %v2467, 0.0
        %v5812 = vsel %vm5780, %v2471, 0.0
        %v5813 = vsel %vm5781, %v2653, 0.0
        %v5814 = vsel %vm5782, %v2657, 0.0
        %v5815 = vsel %vm5783, %v2839, 0.0
        %v5816 = vsel %vm5784, %v2843, 0.0
        %v5817 = vsel %vm5785, %v3025, 0.0
        %v5818 = vsel %vm5786, %v3029, 0.0
        %v5819 = vsel %vm5787, %v3211, 0.0
        %v5820 = vsel %vm5788, %v3215, 0.0
        %v5821 = vsel %vm5789, %v3397, 0.0
        %v5822 = vsel %vm5790, %v3401, 0.0
        %v5823 = vsel %vm5791, %v3583, 0.0
        %v5824 = vsel %vm5792, %v3587, 0.0
        %v5825 = vsel %vm5793, %v3769, 0.0
        %v5826 = vsel %vm5794, %v3773, 0.0
        %v5827 = vsel %vm5795, %v3955, 0.0
        %v5828 = vsel %vm5796, %v3959, 0.0
        %v5829 = vsel %vm5797, %v4141, 0.0
        %v5830 = vsel %vm5798, %v4145, 0.0
        %v5831 = vsel %vm5799, %v4327, 0.0
        %v5832 = vsel %vm5800, %v4331, 0.0
        %v5833 = vsel %vm5801, %v4513, 0.0
        %v5834 = vsel %vm5802, %v4517, 0.0
        %v5835 = vsel %vm5034, %v5803, 0.0
        %5836 = vadd.xlane.f32.xlu0 %v5835
        %v5837 = vpop.xlane.xlu0 %5836
        %v5838 = vsel %vm5034, %v5804, 0.0
        %5839 = vadd.xlane.f32.xlu0 %v5838
        %v5840 = vpop.xlane.xlu0 %5839
        %v5841 = vsel %vm5034, %v5805, 0.0
        %5842 = vadd.xlane.f32.xlu0 %v5841
        %v5843 = vpop.xlane.xlu0 %5842
        %v5844 = vsel %vm5034, %v5806, 0.0
        %5845 = vadd.xlane.f32.xlu0 %v5844
        %v5846 = vpop.xlane.xlu0 %5845
        %v5847 = vsel %vm5034, %v5807, 0.0
        %5848 = vadd.xlane.f32.xlu0 %v5847
        %v5849 = vpop.xlane.xlu0 %5848
        %v5850 = vsel %vm5034, %v5808, 0.0
        %5851 = vadd.xlane.f32.xlu0 %v5850
        %v5852 = vpop.xlane.xlu0 %5851
        %v5853 = vsel %vm5034, %v5809, 0.0
        %5854 = vadd.xlane.f32.xlu0 %v5853
        %v5855 = vpop.xlane.xlu0 %5854
        %v5856 = vsel %vm5034, %v5810, 0.0
        %5857 = vadd.xlane.f32.xlu0 %v5856
        %v5858 = vpop.xlane.xlu0 %5857
        %v5859 = vsel %vm5034, %v5811, 0.0
        %5860 = vadd.xlane.f32.xlu0 %v5859
        %v5861 = vpop.xlane.xlu0 %5860
        %v5862 = vsel %vm5034, %v5812, 0.0
        %5863 = vadd.xlane.f32.xlu0 %v5862
        %v5864 = vpop.xlane.xlu0 %5863
        %v5865 = vsel %vm5034, %v5813, 0.0
        %5866 = vadd.xlane.f32.xlu0 %v5865
        %v5867 = vpop.xlane.xlu0 %5866
        %v5868 = vsel %vm5034, %v5814, 0.0
        %5869 = vadd.xlane.f32.xlu0 %v5868
        %v5870 = vpop.xlane.xlu0 %5869
        %v5871 = vsel %vm5034, %v5815, 0.0
        %5872 = vadd.xlane.f32.xlu0 %v5871
        %v5873 = vpop.xlane.xlu0 %5872
        %v5874 = vsel %vm5034, %v5816, 0.0
        %5875 = vadd.xlane.f32.xlu0 %v5874
        %v5876 = vpop.xlane.xlu0 %5875
        %v5877 = vsel %vm5034, %v5817, 0.0
        %5878 = vadd.xlane.f32.xlu0 %v5877
        %v5879 = vpop.xlane.xlu0 %5878
        %v5880 = vsel %vm5034, %v5818, 0.0
        %5881 = vadd.xlane.f32.xlu0 %v5880
        %v5882 = vpop.xlane.xlu0 %5881
        %v5883 = vsel %vm5034, %v5819, 0.0
        %5884 = vadd.xlane.f32.xlu0 %v5883
        %v5885 = vpop.xlane.xlu0 %5884
        %v5886 = vsel %vm5034, %v5820, 0.0
        %5887 = vadd.xlane.f32.xlu0 %v5886
        %v5888 = vpop.xlane.xlu0 %5887
        %v5889 = vsel %vm5034, %v5821, 0.0
        %5890 = vadd.xlane.f32.xlu0 %v5889
        %v5891 = vpop.xlane.xlu0 %5890
        %v5892 = vsel %vm5034, %v5822, 0.0
        %5893 = vadd.xlane.f32.xlu0 %v5892
        %v5894 = vpop.xlane.xlu0 %5893
        %v5895 = vsel %vm5034, %v5823, 0.0
        %5896 = vadd.xlane.f32.xlu0 %v5895
        %v5897 = vpop.xlane.xlu0 %5896
        %v5898 = vsel %vm5034, %v5824, 0.0
        %5899 = vadd.xlane.f32.xlu0 %v5898
        %v5900 = vpop.xlane.xlu0 %5899
        %v5901 = vsel %vm5034, %v5825, 0.0
        %5902 = vadd.xlane.f32.xlu0 %v5901
        %v5903 = vpop.xlane.xlu0 %5902
        %v5904 = vsel %vm5034, %v5826, 0.0
        %5905 = vadd.xlane.f32.xlu0 %v5904
        %v5906 = vpop.xlane.xlu0 %5905
        %v5907 = vsel %vm5034, %v5827, 0.0
        %5908 = vadd.xlane.f32.xlu0 %v5907
        %v5909 = vpop.xlane.xlu0 %5908
        %v5910 = vsel %vm5034, %v5828, 0.0
        %5911 = vadd.xlane.f32.xlu0 %v5910
        %v5912 = vpop.xlane.xlu0 %5911
        %v5913 = vsel %vm5034, %v5829, 0.0
        %5914 = vadd.xlane.f32.xlu0 %v5913
        %v5915 = vpop.xlane.xlu0 %5914
        %v5916 = vsel %vm5034, %v5830, 0.0
        %5917 = vadd.xlane.f32.xlu0 %v5916
        %v5918 = vpop.xlane.xlu0 %5917
        %v5919 = vsel %vm5034, %v5831, 0.0
        %5920 = vadd.xlane.f32.xlu0 %v5919
        %v5921 = vpop.xlane.xlu0 %5920
        %v5922 = vsel %vm5034, %v5832, 0.0
        %5923 = vadd.xlane.f32.xlu0 %v5922
        %v5924 = vpop.xlane.xlu0 %5923
        %v5925 = vsel %vm5034, %v5833, 0.0
        %5926 = vadd.xlane.f32.xlu0 %v5925
        %v5927 = vpop.xlane.xlu0 %5926
        %v5928 = vsel %vm5034, %v5834, 0.0
        %5929 = vadd.xlane.f32.xlu0 %v5928
        %v5930 = vpop.xlane.xlu0 %5929
        %vm5931 = vcmp.eq.s32.totalorder %v4938, 12
        %vm5932 = vcmp.eq.s32.totalorder %v4939, 12
        %vm5933 = vcmp.eq.s32.totalorder %v4940, 12
        %vm5934 = vcmp.eq.s32.totalorder %v4941, 12
        %vm5935 = vcmp.eq.s32.totalorder %v4942, 12
        %vm5936 = vcmp.eq.s32.totalorder %v4943, 12
        %vm5937 = vcmp.eq.s32.totalorder %v4944, 12
        %vm5938 = vcmp.eq.s32.totalorder %v4945, 12
        %vm5939 = vcmp.eq.s32.totalorder %v4946, 12
        %vm5940 = vcmp.eq.s32.totalorder %v4947, 12
        %vm5941 = vcmp.eq.s32.totalorder %v4948, 12
        %vm5942 = vcmp.eq.s32.totalorder %v4949, 12
        %vm5943 = vcmp.eq.s32.totalorder %v4950, 12
        %vm5944 = vcmp.eq.s32.totalorder %v4951, 12
        %vm5945 = vcmp.eq.s32.totalorder %v4952, 12
        %vm5946 = vcmp.eq.s32.totalorder %v4953, 12
        %vm5947 = vcmp.eq.s32.totalorder %v4954, 12
        %vm5948 = vcmp.eq.s32.totalorder %v4955, 12
        %vm5949 = vcmp.eq.s32.totalorder %v4956, 12
        %vm5950 = vcmp.eq.s32.totalorder %v4957, 12
        %vm5951 = vcmp.eq.s32.totalorder %v4958, 12
        %vm5952 = vcmp.eq.s32.totalorder %v4959, 12
        %vm5953 = vcmp.eq.s32.totalorder %v4960, 12
        %vm5954 = vcmp.eq.s32.totalorder %v4961, 12
        %vm5955 = vcmp.eq.s32.totalorder %v4962, 12
        %vm5956 = vcmp.eq.s32.totalorder %v4963, 12
        %vm5957 = vcmp.eq.s32.totalorder %v4964, 12
        %vm5958 = vcmp.eq.s32.totalorder %v4965, 12
        %vm5959 = vcmp.eq.s32.totalorder %v4966, 12
        %vm5960 = vcmp.eq.s32.totalorder %v4967, 12
        %vm5961 = vcmp.eq.s32.totalorder %v4968, 12
        %vm5962 = vcmp.eq.s32.totalorder %v4969, 12
        %v5963 = vsel %vm5931, %v1723, 0.0
        %v5964 = vsel %vm5932, %v1727, 0.0
        %v5965 = vsel %vm5933, %v1909, 0.0
        %v5966 = vsel %vm5934, %v1913, 0.0
        %v5967 = vsel %vm5935, %v2095, 0.0
        %v5968 = vsel %vm5936, %v2099, 0.0
        %v5969 = vsel %vm5937, %v2281, 0.0
        %v5970 = vsel %vm5938, %v2285, 0.0
        %v5971 = vsel %vm5939, %v2467, 0.0
        %v5972 = vsel %vm5940, %v2471, 0.0
        %v5973 = vsel %vm5941, %v2653, 0.0
        %v5974 = vsel %vm5942, %v2657, 0.0
        %v5975 = vsel %vm5943, %v2839, 0.0
        %v5976 = vsel %vm5944, %v2843, 0.0
        %v5977 = vsel %vm5945, %v3025, 0.0
        %v5978 = vsel %vm5946, %v3029, 0.0
        %v5979 = vsel %vm5947, %v3211, 0.0
        %v5980 = vsel %vm5948, %v3215, 0.0
        %v5981 = vsel %vm5949, %v3397, 0.0
        %v5982 = vsel %vm5950, %v3401, 0.0
        %v5983 = vsel %vm5951, %v3583, 0.0
        %v5984 = vsel %vm5952, %v3587, 0.0
        %v5985 = vsel %vm5953, %v3769, 0.0
        %v5986 = vsel %vm5954, %v3773, 0.0
        %v5987 = vsel %vm5955, %v3955, 0.0
        %v5988 = vsel %vm5956, %v3959, 0.0
        %v5989 = vsel %vm5957, %v4141, 0.0
        %v5990 = vsel %vm5958, %v4145, 0.0
        %v5991 = vsel %vm5959, %v4327, 0.0
        %v5992 = vsel %vm5960, %v4331, 0.0
        %v5993 = vsel %vm5961, %v4513, 0.0
        %v5994 = vsel %vm5962, %v4517, 0.0
        %v5995 = vsel %vm5034, %v5963, 0.0
        %5996 = vadd.xlane.f32.xlu0 %v5995
        %v5997 = vpop.xlane.xlu0 %5996
        %v5998 = vsel %vm5034, %v5964, 0.0
        %5999 = vadd.xlane.f32.xlu0 %v5998
        %v6000 = vpop.xlane.xlu0 %5999
        %v6001 = vsel %vm5034, %v5965, 0.0
        %6002 = vadd.xlane.f32.xlu0 %v6001
        %v6003 = vpop.xlane.xlu0 %6002
        %v6004 = vsel %vm5034, %v5966, 0.0
        %6005 = vadd.xlane.f32.xlu0 %v6004
        %v6006 = vpop.xlane.xlu0 %6005
        %v6007 = vsel %vm5034, %v5967, 0.0
        %6008 = vadd.xlane.f32.xlu0 %v6007
        %v6009 = vpop.xlane.xlu0 %6008
        %v6010 = vsel %vm5034, %v5968, 0.0
        %6011 = vadd.xlane.f32.xlu0 %v6010
        %v6012 = vpop.xlane.xlu0 %6011
        %v6013 = vsel %vm5034, %v5969, 0.0
        %6014 = vadd.xlane.f32.xlu0 %v6013
        %v6015 = vpop.xlane.xlu0 %6014
        %v6016 = vsel %vm5034, %v5970, 0.0
        %6017 = vadd.xlane.f32.xlu0 %v6016
        %v6018 = vpop.xlane.xlu0 %6017
        %v6019 = vsel %vm5034, %v5971, 0.0
        %6020 = vadd.xlane.f32.xlu0 %v6019
        %v6021 = vpop.xlane.xlu0 %6020
        %v6022 = vsel %vm5034, %v5972, 0.0
        %6023 = vadd.xlane.f32.xlu0 %v6022
        %v6024 = vpop.xlane.xlu0 %6023
        %v6025 = vsel %vm5034, %v5973, 0.0
        %6026 = vadd.xlane.f32.xlu0 %v6025
        %v6027 = vpop.xlane.xlu0 %6026
        %v6028 = vsel %vm5034, %v5974, 0.0
        %6029 = vadd.xlane.f32.xlu0 %v6028
        %v6030 = vpop.xlane.xlu0 %6029
        %v6031 = vsel %vm5034, %v5975, 0.0
        %6032 = vadd.xlane.f32.xlu0 %v6031
        %v6033 = vpop.xlane.xlu0 %6032
        %v6034 = vsel %vm5034, %v5976, 0.0
        %6035 = vadd.xlane.f32.xlu0 %v6034
        %v6036 = vpop.xlane.xlu0 %6035
        %v6037 = vsel %vm5034, %v5977, 0.0
        %6038 = vadd.xlane.f32.xlu0 %v6037
        %v6039 = vpop.xlane.xlu0 %6038
        %v6040 = vsel %vm5034, %v5978, 0.0
        %6041 = vadd.xlane.f32.xlu0 %v6040
        %v6042 = vpop.xlane.xlu0 %6041
        %v6043 = vsel %vm5034, %v5979, 0.0
        %6044 = vadd.xlane.f32.xlu0 %v6043
        %v6045 = vpop.xlane.xlu0 %6044
        %v6046 = vsel %vm5034, %v5980, 0.0
        %6047 = vadd.xlane.f32.xlu0 %v6046
        %v6048 = vpop.xlane.xlu0 %6047
        %v6049 = vsel %vm5034, %v5981, 0.0
        %6050 = vadd.xlane.f32.xlu0 %v6049
        %v6051 = vpop.xlane.xlu0 %6050
        %v6052 = vsel %vm5034, %v5982, 0.0
        %6053 = vadd.xlane.f32.xlu0 %v6052
        %v6054 = vpop.xlane.xlu0 %6053
        %v6055 = vsel %vm5034, %v5983, 0.0
        %6056 = vadd.xlane.f32.xlu0 %v6055
        %v6057 = vpop.xlane.xlu0 %6056
        %v6058 = vsel %vm5034, %v5984, 0.0
        %6059 = vadd.xlane.f32.xlu0 %v6058
        %v6060 = vpop.xlane.xlu0 %6059
        %v6061 = vsel %vm5034, %v5985, 0.0
        %6062 = vadd.xlane.f32.xlu0 %v6061
        %v6063 = vpop.xlane.xlu0 %6062
        %v6064 = vsel %vm5034, %v5986, 0.0
        %6065 = vadd.xlane.f32.xlu0 %v6064
        %v6066 = vpop.xlane.xlu0 %6065
        %v6067 = vsel %vm5034, %v5987, 0.0
        %6068 = vadd.xlane.f32.xlu0 %v6067
        %v6069 = vpop.xlane.xlu0 %6068
        %v6070 = vsel %vm5034, %v5988, 0.0
        %6071 = vadd.xlane.f32.xlu0 %v6070
        %v6072 = vpop.xlane.xlu0 %6071
        %v6073 = vsel %vm5034, %v5989, 0.0
        %6074 = vadd.xlane.f32.xlu0 %v6073
        %v6075 = vpop.xlane.xlu0 %6074
        %v6076 = vsel %vm5034, %v5990, 0.0
        %6077 = vadd.xlane.f32.xlu0 %v6076
        %v6078 = vpop.xlane.xlu0 %6077
        %v6079 = vsel %vm5034, %v5991, 0.0
        %6080 = vadd.xlane.f32.xlu0 %v6079
        %v6081 = vpop.xlane.xlu0 %6080
        %v6082 = vsel %vm5034, %v5992, 0.0
        %6083 = vadd.xlane.f32.xlu0 %v6082
        %v6084 = vpop.xlane.xlu0 %6083
        %v6085 = vsel %vm5034, %v5993, 0.0
        %6086 = vadd.xlane.f32.xlu0 %v6085
        %v6087 = vpop.xlane.xlu0 %6086
        %v6088 = vsel %vm5034, %v5994, 0.0
        %6089 = vadd.xlane.f32.xlu0 %v6088
        %v6090 = vpop.xlane.xlu0 %6089
        %vm6091 = vcmp.eq.s32.totalorder %v4938, 14
        %vm6092 = vcmp.eq.s32.totalorder %v4939, 14
        %vm6093 = vcmp.eq.s32.totalorder %v4940, 14
        %vm6094 = vcmp.eq.s32.totalorder %v4941, 14
        %vm6095 = vcmp.eq.s32.totalorder %v4942, 14
        %vm6096 = vcmp.eq.s32.totalorder %v4943, 14
        %vm6097 = vcmp.eq.s32.totalorder %v4944, 14
        %vm6098 = vcmp.eq.s32.totalorder %v4945, 14
        %vm6099 = vcmp.eq.s32.totalorder %v4946, 14
        %vm6100 = vcmp.eq.s32.totalorder %v4947, 14
        %vm6101 = vcmp.eq.s32.totalorder %v4948, 14
        %vm6102 = vcmp.eq.s32.totalorder %v4949, 14
        %vm6103 = vcmp.eq.s32.totalorder %v4950, 14
        %vm6104 = vcmp.eq.s32.totalorder %v4951, 14
        %vm6105 = vcmp.eq.s32.totalorder %v4952, 14
        %vm6106 = vcmp.eq.s32.totalorder %v4953, 14
        %vm6107 = vcmp.eq.s32.totalorder %v4954, 14
        %vm6108 = vcmp.eq.s32.totalorder %v4955, 14
        %vm6109 = vcmp.eq.s32.totalorder %v4956, 14
        %vm6110 = vcmp.eq.s32.totalorder %v4957, 14
        %vm6111 = vcmp.eq.s32.totalorder %v4958, 14
        %vm6112 = vcmp.eq.s32.totalorder %v4959, 14
        %vm6113 = vcmp.eq.s32.totalorder %v4960, 14
        %vm6114 = vcmp.eq.s32.totalorder %v4961, 14
        %vm6115 = vcmp.eq.s32.totalorder %v4962, 14
        %vm6116 = vcmp.eq.s32.totalorder %v4963, 14
        %vm6117 = vcmp.eq.s32.totalorder %v4964, 14
        %vm6118 = vcmp.eq.s32.totalorder %v4965, 14
        %vm6119 = vcmp.eq.s32.totalorder %v4966, 14
        %vm6120 = vcmp.eq.s32.totalorder %v4967, 14
        %vm6121 = vcmp.eq.s32.totalorder %v4968, 14
        %vm6122 = vcmp.eq.s32.totalorder %v4969, 14
        %v6123 = vsel %vm6091, %v1723, 0.0
        %v6124 = vsel %vm6092, %v1727, 0.0
        %v6125 = vsel %vm6093, %v1909, 0.0
        %v6126 = vsel %vm6094, %v1913, 0.0
        %v6127 = vsel %vm6095, %v2095, 0.0
        %v6128 = vsel %vm6096, %v2099, 0.0
        %v6129 = vsel %vm6097, %v2281, 0.0
        %v6130 = vsel %vm6098, %v2285, 0.0
        %v6131 = vsel %vm6099, %v2467, 0.0
        %v6132 = vsel %vm6100, %v2471, 0.0
        %v6133 = vsel %vm6101, %v2653, 0.0
        %v6134 = vsel %vm6102, %v2657, 0.0
        %v6135 = vsel %vm6103, %v2839, 0.0
        %v6136 = vsel %vm6104, %v2843, 0.0
        %v6137 = vsel %vm6105, %v3025, 0.0
        %v6138 = vsel %vm6106, %v3029, 0.0
        %v6139 = vsel %vm6107, %v3211, 0.0
        %v6140 = vsel %vm6108, %v3215, 0.0
        %v6141 = vsel %vm6109, %v3397, 0.0
        %v6142 = vsel %vm6110, %v3401, 0.0
        %v6143 = vsel %vm6111, %v3583, 0.0
        %v6144 = vsel %vm6112, %v3587, 0.0
        %v6145 = vsel %vm6113, %v3769, 0.0
        %v6146 = vsel %vm6114, %v3773, 0.0
        %v6147 = vsel %vm6115, %v3955, 0.0
        %v6148 = vsel %vm6116, %v3959, 0.0
        %v6149 = vsel %vm6117, %v4141, 0.0
        %v6150 = vsel %vm6118, %v4145, 0.0
        %v6151 = vsel %vm6119, %v4327, 0.0
        %v6152 = vsel %vm6120, %v4331, 0.0
        %v6153 = vsel %vm6121, %v4513, 0.0
        %v6154 = vsel %vm6122, %v4517, 0.0
        %v6155 = vsel %vm5034, %v6123, 0.0
        %6156 = vadd.xlane.f32.xlu0 %v6155
        %v6157 = vpop.xlane.xlu0 %6156
        %v6158 = vsel %vm5034, %v6124, 0.0
        %6159 = vadd.xlane.f32.xlu0 %v6158
        %v6160 = vpop.xlane.xlu0 %6159
        %v6161 = vsel %vm5034, %v6125, 0.0
        %6162 = vadd.xlane.f32.xlu0 %v6161
        %v6163 = vpop.xlane.xlu0 %6162
        %v6164 = vsel %vm5034, %v6126, 0.0
        %6165 = vadd.xlane.f32.xlu0 %v6164
        %v6166 = vpop.xlane.xlu0 %6165
        %v6167 = vsel %vm5034, %v6127, 0.0
        %6168 = vadd.xlane.f32.xlu0 %v6167
        %v6169 = vpop.xlane.xlu0 %6168
        %v6170 = vsel %vm5034, %v6128, 0.0
        %6171 = vadd.xlane.f32.xlu0 %v6170
        %v6172 = vpop.xlane.xlu0 %6171
        %v6173 = vsel %vm5034, %v6129, 0.0
        %6174 = vadd.xlane.f32.xlu0 %v6173
        %v6175 = vpop.xlane.xlu0 %6174
        %v6176 = vsel %vm5034, %v6130, 0.0
        %6177 = vadd.xlane.f32.xlu0 %v6176
        %v6178 = vpop.xlane.xlu0 %6177
        %v6179 = vsel %vm5034, %v6131, 0.0
        %6180 = vadd.xlane.f32.xlu0 %v6179
        %v6181 = vpop.xlane.xlu0 %6180
        %v6182 = vsel %vm5034, %v6132, 0.0
        %6183 = vadd.xlane.f32.xlu0 %v6182
        %v6184 = vpop.xlane.xlu0 %6183
        %v6185 = vsel %vm5034, %v6133, 0.0
        %6186 = vadd.xlane.f32.xlu0 %v6185
        %v6187 = vpop.xlane.xlu0 %6186
        %v6188 = vsel %vm5034, %v6134, 0.0
        %6189 = vadd.xlane.f32.xlu0 %v6188
        %v6190 = vpop.xlane.xlu0 %6189
        %v6191 = vsel %vm5034, %v6135, 0.0
        %6192 = vadd.xlane.f32.xlu0 %v6191
        %v6193 = vpop.xlane.xlu0 %6192
        %v6194 = vsel %vm5034, %v6136, 0.0
        %6195 = vadd.xlane.f32.xlu0 %v6194
        %v6196 = vpop.xlane.xlu0 %6195
        %v6197 = vsel %vm5034, %v6137, 0.0
        %6198 = vadd.xlane.f32.xlu0 %v6197
        %v6199 = vpop.xlane.xlu0 %6198
        %v6200 = vsel %vm5034, %v6138, 0.0
        %6201 = vadd.xlane.f32.xlu0 %v6200
        %v6202 = vpop.xlane.xlu0 %6201
        %v6203 = vsel %vm5034, %v6139, 0.0
        %6204 = vadd.xlane.f32.xlu0 %v6203
        %v6205 = vpop.xlane.xlu0 %6204
        %v6206 = vsel %vm5034, %v6140, 0.0
        %6207 = vadd.xlane.f32.xlu0 %v6206
        %v6208 = vpop.xlane.xlu0 %6207
        %v6209 = vsel %vm5034, %v6141, 0.0
        %6210 = vadd.xlane.f32.xlu0 %v6209
        %v6211 = vpop.xlane.xlu0 %6210
        %v6212 = vsel %vm5034, %v6142, 0.0
        %6213 = vadd.xlane.f32.xlu0 %v6212
        %v6214 = vpop.xlane.xlu0 %6213
        %v6215 = vsel %vm5034, %v6143, 0.0
        %6216 = vadd.xlane.f32.xlu0 %v6215
        %v6217 = vpop.xlane.xlu0 %6216
        %v6218 = vsel %vm5034, %v6144, 0.0
        %6219 = vadd.xlane.f32.xlu0 %v6218
        %v6220 = vpop.xlane.xlu0 %6219
        %v6221 = vsel %vm5034, %v6145, 0.0
        %6222 = vadd.xlane.f32.xlu0 %v6221
        %v6223 = vpop.xlane.xlu0 %6222
        %v6224 = vsel %vm5034, %v6146, 0.0
        %6225 = vadd.xlane.f32.xlu0 %v6224
        %v6226 = vpop.xlane.xlu0 %6225
        %v6227 = vsel %vm5034, %v6147, 0.0
        %6228 = vadd.xlane.f32.xlu0 %v6227
        %v6229 = vpop.xlane.xlu0 %6228
        %v6230 = vsel %vm5034, %v6148, 0.0
        %6231 = vadd.xlane.f32.xlu0 %v6230
        %v6232 = vpop.xlane.xlu0 %6231
        %v6233 = vsel %vm5034, %v6149, 0.0
        %6234 = vadd.xlane.f32.xlu0 %v6233
        %v6235 = vpop.xlane.xlu0 %6234
        %v6236 = vsel %vm5034, %v6150, 0.0
        %6237 = vadd.xlane.f32.xlu0 %v6236
        %v6238 = vpop.xlane.xlu0 %6237
        %v6239 = vsel %vm5034, %v6151, 0.0
        %6240 = vadd.xlane.f32.xlu0 %v6239
        %v6241 = vpop.xlane.xlu0 %6240
        %v6242 = vsel %vm5034, %v6152, 0.0
        %6243 = vadd.xlane.f32.xlu0 %v6242
        %v6244 = vpop.xlane.xlu0 %6243
        %v6245 = vsel %vm5034, %v6153, 0.0
        %6246 = vadd.xlane.f32.xlu0 %v6245
        %v6247 = vpop.xlane.xlu0 %6246
        %v6248 = vsel %vm5034, %v6154, 0.0
        %6249 = vadd.xlane.f32.xlu0 %v6248
        %v6250 = vpop.xlane.xlu0 %6249
        %vm6251 = vcmp.eq.s32.totalorder %v4938, 16
        %vm6252 = vcmp.eq.s32.totalorder %v4939, 16
        %vm6253 = vcmp.eq.s32.totalorder %v4940, 16
        %vm6254 = vcmp.eq.s32.totalorder %v4941, 16
        %vm6255 = vcmp.eq.s32.totalorder %v4942, 16
        %vm6256 = vcmp.eq.s32.totalorder %v4943, 16
        %vm6257 = vcmp.eq.s32.totalorder %v4944, 16
        %vm6258 = vcmp.eq.s32.totalorder %v4945, 16
        %vm6259 = vcmp.eq.s32.totalorder %v4946, 16
        %vm6260 = vcmp.eq.s32.totalorder %v4947, 16
        %vm6261 = vcmp.eq.s32.totalorder %v4948, 16
        %vm6262 = vcmp.eq.s32.totalorder %v4949, 16
        %vm6263 = vcmp.eq.s32.totalorder %v4950, 16
        %vm6264 = vcmp.eq.s32.totalorder %v4951, 16
        %vm6265 = vcmp.eq.s32.totalorder %v4952, 16
        %vm6266 = vcmp.eq.s32.totalorder %v4953, 16
        %vm6267 = vcmp.eq.s32.totalorder %v4954, 16
        %vm6268 = vcmp.eq.s32.totalorder %v4955, 16
        %vm6269 = vcmp.eq.s32.totalorder %v4956, 16
        %vm6270 = vcmp.eq.s32.totalorder %v4957, 16
        %vm6271 = vcmp.eq.s32.totalorder %v4958, 16
        %vm6272 = vcmp.eq.s32.totalorder %v4959, 16
        %vm6273 = vcmp.eq.s32.totalorder %v4960, 16
        %vm6274 = vcmp.eq.s32.totalorder %v4961, 16
        %vm6275 = vcmp.eq.s32.totalorder %v4962, 16
        %vm6276 = vcmp.eq.s32.totalorder %v4963, 16
        %vm6277 = vcmp.eq.s32.totalorder %v4964, 16
        %vm6278 = vcmp.eq.s32.totalorder %v4965, 16
        %vm6279 = vcmp.eq.s32.totalorder %v4966, 16
        %vm6280 = vcmp.eq.s32.totalorder %v4967, 16
        %vm6281 = vcmp.eq.s32.totalorder %v4968, 16
        %vm6282 = vcmp.eq.s32.totalorder %v4969, 16
        %v6283 = vsel %vm6251, %v1723, 0.0
        %v6284 = vsel %vm6252, %v1727, 0.0
        %v6285 = vsel %vm6253, %v1909, 0.0
        %v6286 = vsel %vm6254, %v1913, 0.0
        %v6287 = vsel %vm6255, %v2095, 0.0
        %v6288 = vsel %vm6256, %v2099, 0.0
        %v6289 = vsel %vm6257, %v2281, 0.0
        %v6290 = vsel %vm6258, %v2285, 0.0
        %v6291 = vsel %vm6259, %v2467, 0.0
        %v6292 = vsel %vm6260, %v2471, 0.0
        %v6293 = vsel %vm6261, %v2653, 0.0
        %v6294 = vsel %vm6262, %v2657, 0.0
        %v6295 = vsel %vm6263, %v2839, 0.0
        %v6296 = vsel %vm6264, %v2843, 0.0
        %v6297 = vsel %vm6265, %v3025, 0.0
        %v6298 = vsel %vm6266, %v3029, 0.0
        %v6299 = vsel %vm6267, %v3211, 0.0
        %v6300 = vsel %vm6268, %v3215, 0.0
        %v6301 = vsel %vm6269, %v3397, 0.0
        %v6302 = vsel %vm6270, %v3401, 0.0
        %v6303 = vsel %vm6271, %v3583, 0.0
        %v6304 = vsel %vm6272, %v3587, 0.0
        %v6305 = vsel %vm6273, %v3769, 0.0
        %v6306 = vsel %vm6274, %v3773, 0.0
        %v6307 = vsel %vm6275, %v3955, 0.0
        %v6308 = vsel %vm6276, %v3959, 0.0
        %v6309 = vsel %vm6277, %v4141, 0.0
        %v6310 = vsel %vm6278, %v4145, 0.0
        %v6311 = vsel %vm6279, %v4327, 0.0
        %v6312 = vsel %vm6280, %v4331, 0.0
        %v6313 = vsel %vm6281, %v4513, 0.0
        %v6314 = vsel %vm6282, %v4517, 0.0
        %v6315 = vsel %vm5034, %v6283, 0.0
        %6316 = vadd.xlane.f32.xlu0 %v6315
        %v6317 = vpop.xlane.xlu0 %6316
        %v6318 = vsel %vm5034, %v6284, 0.0
        %6319 = vadd.xlane.f32.xlu0 %v6318
        %v6320 = vpop.xlane.xlu0 %6319
        %v6321 = vsel %vm5034, %v6285, 0.0
        %6322 = vadd.xlane.f32.xlu0 %v6321
        %v6323 = vpop.xlane.xlu0 %6322
        %v6324 = vsel %vm5034, %v6286, 0.0
        %6325 = vadd.xlane.f32.xlu0 %v6324
        %v6326 = vpop.xlane.xlu0 %6325
        %v6327 = vsel %vm5034, %v6287, 0.0
        %6328 = vadd.xlane.f32.xlu0 %v6327
        %v6329 = vpop.xlane.xlu0 %6328
        %v6330 = vsel %vm5034, %v6288, 0.0
        %6331 = vadd.xlane.f32.xlu0 %v6330
        %v6332 = vpop.xlane.xlu0 %6331
        %v6333 = vsel %vm5034, %v6289, 0.0
        %6334 = vadd.xlane.f32.xlu0 %v6333
        %v6335 = vpop.xlane.xlu0 %6334
        %v6336 = vsel %vm5034, %v6290, 0.0
        %6337 = vadd.xlane.f32.xlu0 %v6336
        %v6338 = vpop.xlane.xlu0 %6337
        %v6339 = vsel %vm5034, %v6291, 0.0
        %6340 = vadd.xlane.f32.xlu0 %v6339
        %v6341 = vpop.xlane.xlu0 %6340
        %v6342 = vsel %vm5034, %v6292, 0.0
        %6343 = vadd.xlane.f32.xlu0 %v6342
        %v6344 = vpop.xlane.xlu0 %6343
        %v6345 = vsel %vm5034, %v6293, 0.0
        %6346 = vadd.xlane.f32.xlu0 %v6345
        %v6347 = vpop.xlane.xlu0 %6346
        %v6348 = vsel %vm5034, %v6294, 0.0
        %6349 = vadd.xlane.f32.xlu0 %v6348
        %v6350 = vpop.xlane.xlu0 %6349
        %v6351 = vsel %vm5034, %v6295, 0.0
        %6352 = vadd.xlane.f32.xlu0 %v6351
        %v6353 = vpop.xlane.xlu0 %6352
        %v6354 = vsel %vm5034, %v6296, 0.0
        %6355 = vadd.xlane.f32.xlu0 %v6354
        %v6356 = vpop.xlane.xlu0 %6355
        %v6357 = vsel %vm5034, %v6297, 0.0
        %6358 = vadd.xlane.f32.xlu0 %v6357
        %v6359 = vpop.xlane.xlu0 %6358
        %v6360 = vsel %vm5034, %v6298, 0.0
        %6361 = vadd.xlane.f32.xlu0 %v6360
        %v6362 = vpop.xlane.xlu0 %6361
        %v6363 = vsel %vm5034, %v6299, 0.0
        %6364 = vadd.xlane.f32.xlu0 %v6363
        %v6365 = vpop.xlane.xlu0 %6364
        %v6366 = vsel %vm5034, %v6300, 0.0
        %6367 = vadd.xlane.f32.xlu0 %v6366
        %v6368 = vpop.xlane.xlu0 %6367
        %v6369 = vsel %vm5034, %v6301, 0.0
        %6370 = vadd.xlane.f32.xlu0 %v6369
        %v6371 = vpop.xlane.xlu0 %6370
        %v6372 = vsel %vm5034, %v6302, 0.0
        %6373 = vadd.xlane.f32.xlu0 %v6372
        %v6374 = vpop.xlane.xlu0 %6373
        %v6375 = vsel %vm5034, %v6303, 0.0
        %6376 = vadd.xlane.f32.xlu0 %v6375
        %v6377 = vpop.xlane.xlu0 %6376
        %v6378 = vsel %vm5034, %v6304, 0.0
        %6379 = vadd.xlane.f32.xlu0 %v6378
        %v6380 = vpop.xlane.xlu0 %6379
        %v6381 = vsel %vm5034, %v6305, 0.0
        %6382 = vadd.xlane.f32.xlu0 %v6381
        %v6383 = vpop.xlane.xlu0 %6382
        %v6384 = vsel %vm5034, %v6306, 0.0
        %6385 = vadd.xlane.f32.xlu0 %v6384
        %v6386 = vpop.xlane.xlu0 %6385
        %v6387 = vsel %vm5034, %v6307, 0.0
        %6388 = vadd.xlane.f32.xlu0 %v6387
        %v6389 = vpop.xlane.xlu0 %6388
        %v6390 = vsel %vm5034, %v6308, 0.0
        %6391 = vadd.xlane.f32.xlu0 %v6390
        %v6392 = vpop.xlane.xlu0 %6391
        %v6393 = vsel %vm5034, %v6309, 0.0
        %6394 = vadd.xlane.f32.xlu0 %v6393
        %v6395 = vpop.xlane.xlu0 %6394
        %v6396 = vsel %vm5034, %v6310, 0.0
        %6397 = vadd.xlane.f32.xlu0 %v6396
        %v6398 = vpop.xlane.xlu0 %6397
        %v6399 = vsel %vm5034, %v6311, 0.0
        %6400 = vadd.xlane.f32.xlu0 %v6399
        %v6401 = vpop.xlane.xlu0 %6400
        %v6402 = vsel %vm5034, %v6312, 0.0
        %6403 = vadd.xlane.f32.xlu0 %v6402
        %v6404 = vpop.xlane.xlu0 %6403
        %v6405 = vsel %vm5034, %v6313, 0.0
        %6406 = vadd.xlane.f32.xlu0 %v6405
        %v6407 = vpop.xlane.xlu0 %6406
        %v6408 = vsel %vm5034, %v6314, 0.0
        %6409 = vadd.xlane.f32.xlu0 %v6408
        %v6410 = vpop.xlane.xlu0 %6409
        %vm6411 = vcmp.eq.s32.totalorder %v4938, 18
        %vm6412 = vcmp.eq.s32.totalorder %v4939, 18
        %vm6413 = vcmp.eq.s32.totalorder %v4940, 18
        %vm6414 = vcmp.eq.s32.totalorder %v4941, 18
        %vm6415 = vcmp.eq.s32.totalorder %v4942, 18
        %vm6416 = vcmp.eq.s32.totalorder %v4943, 18
        %vm6417 = vcmp.eq.s32.totalorder %v4944, 18
        %vm6418 = vcmp.eq.s32.totalorder %v4945, 18
        %vm6419 = vcmp.eq.s32.totalorder %v4946, 18
        %vm6420 = vcmp.eq.s32.totalorder %v4947, 18
        %vm6421 = vcmp.eq.s32.totalorder %v4948, 18
        %vm6422 = vcmp.eq.s32.totalorder %v4949, 18
        %vm6423 = vcmp.eq.s32.totalorder %v4950, 18
        %vm6424 = vcmp.eq.s32.totalorder %v4951, 18
        %vm6425 = vcmp.eq.s32.totalorder %v4952, 18
        %vm6426 = vcmp.eq.s32.totalorder %v4953, 18
        %vm6427 = vcmp.eq.s32.totalorder %v4954, 18
        %vm6428 = vcmp.eq.s32.totalorder %v4955, 18
        %vm6429 = vcmp.eq.s32.totalorder %v4956, 18
        %vm6430 = vcmp.eq.s32.totalorder %v4957, 18
        %vm6431 = vcmp.eq.s32.totalorder %v4958, 18
        %vm6432 = vcmp.eq.s32.totalorder %v4959, 18
        %vm6433 = vcmp.eq.s32.totalorder %v4960, 18
        %vm6434 = vcmp.eq.s32.totalorder %v4961, 18
        %vm6435 = vcmp.eq.s32.totalorder %v4962, 18
        %vm6436 = vcmp.eq.s32.totalorder %v4963, 18
        %vm6437 = vcmp.eq.s32.totalorder %v4964, 18
        %vm6438 = vcmp.eq.s32.totalorder %v4965, 18
        %vm6439 = vcmp.eq.s32.totalorder %v4966, 18
        %vm6440 = vcmp.eq.s32.totalorder %v4967, 18
        %vm6441 = vcmp.eq.s32.totalorder %v4968, 18
        %vm6442 = vcmp.eq.s32.totalorder %v4969, 18
        %v6443 = vsel %vm6411, %v1723, 0.0
        %v6444 = vsel %vm6412, %v1727, 0.0
        %v6445 = vsel %vm6413, %v1909, 0.0
        %v6446 = vsel %vm6414, %v1913, 0.0
        %v6447 = vsel %vm6415, %v2095, 0.0
        %v6448 = vsel %vm6416, %v2099, 0.0
        %v6449 = vsel %vm6417, %v2281, 0.0
        %v6450 = vsel %vm6418, %v2285, 0.0
        %v6451 = vsel %vm6419, %v2467, 0.0
        %v6452 = vsel %vm6420, %v2471, 0.0
        %v6453 = vsel %vm6421, %v2653, 0.0
        %v6454 = vsel %vm6422, %v2657, 0.0
        %v6455 = vsel %vm6423, %v2839, 0.0
        %v6456 = vsel %vm6424, %v2843, 0.0
        %v6457 = vsel %vm6425, %v3025, 0.0
        %v6458 = vsel %vm6426, %v3029, 0.0
        %v6459 = vsel %vm6427, %v3211, 0.0
        %v6460 = vsel %vm6428, %v3215, 0.0
        %v6461 = vsel %vm6429, %v3397, 0.0
        %v6462 = vsel %vm6430, %v3401, 0.0
        %v6463 = vsel %vm6431, %v3583, 0.0
        %v6464 = vsel %vm6432, %v3587, 0.0
        %v6465 = vsel %vm6433, %v3769, 0.0
        %v6466 = vsel %vm6434, %v3773, 0.0
        %v6467 = vsel %vm6435, %v3955, 0.0
        %v6468 = vsel %vm6436, %v3959, 0.0
        %v6469 = vsel %vm6437, %v4141, 0.0
        %v6470 = vsel %vm6438, %v4145, 0.0
        %v6471 = vsel %vm6439, %v4327, 0.0
        %v6472 = vsel %vm6440, %v4331, 0.0
        %v6473 = vsel %vm6441, %v4513, 0.0
        %v6474 = vsel %vm6442, %v4517, 0.0
        %v6475 = vsel %vm5034, %v6443, 0.0
        %6476 = vadd.xlane.f32.xlu0 %v6475
        %v6477 = vpop.xlane.xlu0 %6476
        %v6478 = vsel %vm5034, %v6444, 0.0
        %6479 = vadd.xlane.f32.xlu0 %v6478
        %v6480 = vpop.xlane.xlu0 %6479
        %v6481 = vsel %vm5034, %v6445, 0.0
        %6482 = vadd.xlane.f32.xlu0 %v6481
        %v6483 = vpop.xlane.xlu0 %6482
        %v6484 = vsel %vm5034, %v6446, 0.0
        %6485 = vadd.xlane.f32.xlu0 %v6484
        %v6486 = vpop.xlane.xlu0 %6485
        %v6487 = vsel %vm5034, %v6447, 0.0
        %6488 = vadd.xlane.f32.xlu0 %v6487
        %v6489 = vpop.xlane.xlu0 %6488
        %v6490 = vsel %vm5034, %v6448, 0.0
        %6491 = vadd.xlane.f32.xlu0 %v6490
        %v6492 = vpop.xlane.xlu0 %6491
        %v6493 = vsel %vm5034, %v6449, 0.0
        %6494 = vadd.xlane.f32.xlu0 %v6493
        %v6495 = vpop.xlane.xlu0 %6494
        %v6496 = vsel %vm5034, %v6450, 0.0
        %6497 = vadd.xlane.f32.xlu0 %v6496
        %v6498 = vpop.xlane.xlu0 %6497
        %v6499 = vsel %vm5034, %v6451, 0.0
        %6500 = vadd.xlane.f32.xlu0 %v6499
        %v6501 = vpop.xlane.xlu0 %6500
        %v6502 = vsel %vm5034, %v6452, 0.0
        %6503 = vadd.xlane.f32.xlu0 %v6502
        %v6504 = vpop.xlane.xlu0 %6503
        %v6505 = vsel %vm5034, %v6453, 0.0
        %6506 = vadd.xlane.f32.xlu0 %v6505
        %v6507 = vpop.xlane.xlu0 %6506
        %v6508 = vsel %vm5034, %v6454, 0.0
        %6509 = vadd.xlane.f32.xlu0 %v6508
        %v6510 = vpop.xlane.xlu0 %6509
        %v6511 = vsel %vm5034, %v6455, 0.0
        %6512 = vadd.xlane.f32.xlu0 %v6511
        %v6513 = vpop.xlane.xlu0 %6512
        %v6514 = vsel %vm5034, %v6456, 0.0
        %6515 = vadd.xlane.f32.xlu0 %v6514
        %v6516 = vpop.xlane.xlu0 %6515
        %v6517 = vsel %vm5034, %v6457, 0.0
        %6518 = vadd.xlane.f32.xlu0 %v6517
        %v6519 = vpop.xlane.xlu0 %6518
        %v6520 = vsel %vm5034, %v6458, 0.0
        %6521 = vadd.xlane.f32.xlu0 %v6520
        %v6522 = vpop.xlane.xlu0 %6521
        %v6523 = vsel %vm5034, %v6459, 0.0
        %6524 = vadd.xlane.f32.xlu0 %v6523
        %v6525 = vpop.xlane.xlu0 %6524
        %v6526 = vsel %vm5034, %v6460, 0.0
        %6527 = vadd.xlane.f32.xlu0 %v6526
        %v6528 = vpop.xlane.xlu0 %6527
        %v6529 = vsel %vm5034, %v6461, 0.0
        %6530 = vadd.xlane.f32.xlu0 %v6529
        %v6531 = vpop.xlane.xlu0 %6530
        %v6532 = vsel %vm5034, %v6462, 0.0
        %6533 = vadd.xlane.f32.xlu0 %v6532
        %v6534 = vpop.xlane.xlu0 %6533
        %v6535 = vsel %vm5034, %v6463, 0.0
        %6536 = vadd.xlane.f32.xlu0 %v6535
        %v6537 = vpop.xlane.xlu0 %6536
        %v6538 = vsel %vm5034, %v6464, 0.0
        %6539 = vadd.xlane.f32.xlu0 %v6538
        %v6540 = vpop.xlane.xlu0 %6539
        %v6541 = vsel %vm5034, %v6465, 0.0
        %6542 = vadd.xlane.f32.xlu0 %v6541
        %v6543 = vpop.xlane.xlu0 %6542
        %v6544 = vsel %vm5034, %v6466, 0.0
        %6545 = vadd.xlane.f32.xlu0 %v6544
        %v6546 = vpop.xlane.xlu0 %6545
        %v6547 = vsel %vm5034, %v6467, 0.0
        %6548 = vadd.xlane.f32.xlu0 %v6547
        %v6549 = vpop.xlane.xlu0 %6548
        %v6550 = vsel %vm5034, %v6468, 0.0
        %6551 = vadd.xlane.f32.xlu0 %v6550
        %v6552 = vpop.xlane.xlu0 %6551
        %v6553 = vsel %vm5034, %v6469, 0.0
        %6554 = vadd.xlane.f32.xlu0 %v6553
        %v6555 = vpop.xlane.xlu0 %6554
        %v6556 = vsel %vm5034, %v6470, 0.0
        %6557 = vadd.xlane.f32.xlu0 %v6556
        %v6558 = vpop.xlane.xlu0 %6557
        %v6559 = vsel %vm5034, %v6471, 0.0
        %6560 = vadd.xlane.f32.xlu0 %v6559
        %v6561 = vpop.xlane.xlu0 %6560
        %v6562 = vsel %vm5034, %v6472, 0.0
        %6563 = vadd.xlane.f32.xlu0 %v6562
        %v6564 = vpop.xlane.xlu0 %6563
        %v6565 = vsel %vm5034, %v6473, 0.0
        %6566 = vadd.xlane.f32.xlu0 %v6565
        %v6567 = vpop.xlane.xlu0 %6566
        %v6568 = vsel %vm5034, %v6474, 0.0
        %6569 = vadd.xlane.f32.xlu0 %v6568
        %v6570 = vpop.xlane.xlu0 %6569
        %vm6571 = vcmp.eq.s32.totalorder %v4938, 20
        %vm6572 = vcmp.eq.s32.totalorder %v4939, 20
        %vm6573 = vcmp.eq.s32.totalorder %v4940, 20
        %vm6574 = vcmp.eq.s32.totalorder %v4941, 20
        %vm6575 = vcmp.eq.s32.totalorder %v4942, 20
        %vm6576 = vcmp.eq.s32.totalorder %v4943, 20
        %vm6577 = vcmp.eq.s32.totalorder %v4944, 20
        %vm6578 = vcmp.eq.s32.totalorder %v4945, 20
        %vm6579 = vcmp.eq.s32.totalorder %v4946, 20
        %vm6580 = vcmp.eq.s32.totalorder %v4947, 20
        %vm6581 = vcmp.eq.s32.totalorder %v4948, 20
        %vm6582 = vcmp.eq.s32.totalorder %v4949, 20
        %vm6583 = vcmp.eq.s32.totalorder %v4950, 20
        %vm6584 = vcmp.eq.s32.totalorder %v4951, 20
        %vm6585 = vcmp.eq.s32.totalorder %v4952, 20
        %vm6586 = vcmp.eq.s32.totalorder %v4953, 20
        %vm6587 = vcmp.eq.s32.totalorder %v4954, 20
        %vm6588 = vcmp.eq.s32.totalorder %v4955, 20
        %vm6589 = vcmp.eq.s32.totalorder %v4956, 20
        %vm6590 = vcmp.eq.s32.totalorder %v4957, 20
        %vm6591 = vcmp.eq.s32.totalorder %v4958, 20
        %vm6592 = vcmp.eq.s32.totalorder %v4959, 20
        %vm6593 = vcmp.eq.s32.totalorder %v4960, 20
        %vm6594 = vcmp.eq.s32.totalorder %v4961, 20
        %vm6595 = vcmp.eq.s32.totalorder %v4962, 20
        %vm6596 = vcmp.eq.s32.totalorder %v4963, 20
        %vm6597 = vcmp.eq.s32.totalorder %v4964, 20
        %vm6598 = vcmp.eq.s32.totalorder %v4965, 20
        %vm6599 = vcmp.eq.s32.totalorder %v4966, 20
        %vm6600 = vcmp.eq.s32.totalorder %v4967, 20
        %vm6601 = vcmp.eq.s32.totalorder %v4968, 20
        %vm6602 = vcmp.eq.s32.totalorder %v4969, 20
        %v6603 = vsel %vm6571, %v1723, 0.0
        %v6604 = vsel %vm6572, %v1727, 0.0
        %v6605 = vsel %vm6573, %v1909, 0.0
        %v6606 = vsel %vm6574, %v1913, 0.0
        %v6607 = vsel %vm6575, %v2095, 0.0
        %v6608 = vsel %vm6576, %v2099, 0.0
        %v6609 = vsel %vm6577, %v2281, 0.0
        %v6610 = vsel %vm6578, %v2285, 0.0
        %v6611 = vsel %vm6579, %v2467, 0.0
        %v6612 = vsel %vm6580, %v2471, 0.0
        %v6613 = vsel %vm6581, %v2653, 0.0
        %v6614 = vsel %vm6582, %v2657, 0.0
        %v6615 = vsel %vm6583, %v2839, 0.0
        %v6616 = vsel %vm6584, %v2843, 0.0
        %v6617 = vsel %vm6585, %v3025, 0.0
        %v6618 = vsel %vm6586, %v3029, 0.0
        %v6619 = vsel %vm6587, %v3211, 0.0
        %v6620 = vsel %vm6588, %v3215, 0.0
        %v6621 = vsel %vm6589, %v3397, 0.0
        %v6622 = vsel %vm6590, %v3401, 0.0
        %v6623 = vsel %vm6591, %v3583, 0.0
        %v6624 = vsel %vm6592, %v3587, 0.0
        %v6625 = vsel %vm6593, %v3769, 0.0
        %v6626 = vsel %vm6594, %v3773, 0.0
        %v6627 = vsel %vm6595, %v3955, 0.0
        %v6628 = vsel %vm6596, %v3959, 0.0
        %v6629 = vsel %vm6597, %v4141, 0.0
        %v6630 = vsel %vm6598, %v4145, 0.0
        %v6631 = vsel %vm6599, %v4327, 0.0
        %v6632 = vsel %vm6600, %v4331, 0.0
        %v6633 = vsel %vm6601, %v4513, 0.0
        %v6634 = vsel %vm6602, %v4517, 0.0
        %v6635 = vsel %vm5034, %v6603, 0.0
        %6636 = vadd.xlane.f32.xlu0 %v6635
        %v6637 = vpop.xlane.xlu0 %6636
        %v6638 = vsel %vm5034, %v6604, 0.0
        %6639 = vadd.xlane.f32.xlu0 %v6638
        %v6640 = vpop.xlane.xlu0 %6639
        %v6641 = vsel %vm5034, %v6605, 0.0
        %6642 = vadd.xlane.f32.xlu0 %v6641
        %v6643 = vpop.xlane.xlu0 %6642
        %v6644 = vsel %vm5034, %v6606, 0.0
        %6645 = vadd.xlane.f32.xlu0 %v6644
        %v6646 = vpop.xlane.xlu0 %6645
        %v6647 = vsel %vm5034, %v6607, 0.0
        %6648 = vadd.xlane.f32.xlu0 %v6647
        %v6649 = vpop.xlane.xlu0 %6648
        %v6650 = vsel %vm5034, %v6608, 0.0
        %6651 = vadd.xlane.f32.xlu0 %v6650
        %v6652 = vpop.xlane.xlu0 %6651
        %v6653 = vsel %vm5034, %v6609, 0.0
        %6654 = vadd.xlane.f32.xlu0 %v6653
        %v6655 = vpop.xlane.xlu0 %6654
        %v6656 = vsel %vm5034, %v6610, 0.0
        %6657 = vadd.xlane.f32.xlu0 %v6656
        %v6658 = vpop.xlane.xlu0 %6657
        %v6659 = vsel %vm5034, %v6611, 0.0
        %6660 = vadd.xlane.f32.xlu0 %v6659
        %v6661 = vpop.xlane.xlu0 %6660
        %v6662 = vsel %vm5034, %v6612, 0.0
        %6663 = vadd.xlane.f32.xlu0 %v6662
        %v6664 = vpop.xlane.xlu0 %6663
        %v6665 = vsel %vm5034, %v6613, 0.0
        %6666 = vadd.xlane.f32.xlu0 %v6665
        %v6667 = vpop.xlane.xlu0 %6666
        %v6668 = vsel %vm5034, %v6614, 0.0
        %6669 = vadd.xlane.f32.xlu0 %v6668
        %v6670 = vpop.xlane.xlu0 %6669
        %v6671 = vsel %vm5034, %v6615, 0.0
        %6672 = vadd.xlane.f32.xlu0 %v6671
        %v6673 = vpop.xlane.xlu0 %6672
        %v6674 = vsel %vm5034, %v6616, 0.0
        %6675 = vadd.xlane.f32.xlu0 %v6674
        %v6676 = vpop.xlane.xlu0 %6675
        %v6677 = vsel %vm5034, %v6617, 0.0
        %6678 = vadd.xlane.f32.xlu0 %v6677
        %v6679 = vpop.xlane.xlu0 %6678
        %v6680 = vsel %vm5034, %v6618, 0.0
        %6681 = vadd.xlane.f32.xlu0 %v6680
        %v6682 = vpop.xlane.xlu0 %6681
        %v6683 = vsel %vm5034, %v6619, 0.0
        %6684 = vadd.xlane.f32.xlu0 %v6683
        %v6685 = vpop.xlane.xlu0 %6684
        %v6686 = vsel %vm5034, %v6620, 0.0
        %6687 = vadd.xlane.f32.xlu0 %v6686
        %v6688 = vpop.xlane.xlu0 %6687
        %v6689 = vsel %vm5034, %v6621, 0.0
        %6690 = vadd.xlane.f32.xlu0 %v6689
        %v6691 = vpop.xlane.xlu0 %6690
        %v6692 = vsel %vm5034, %v6622, 0.0
        %6693 = vadd.xlane.f32.xlu0 %v6692
        %v6694 = vpop.xlane.xlu0 %6693
        %v6695 = vsel %vm5034, %v6623, 0.0
        %6696 = vadd.xlane.f32.xlu0 %v6695
        %v6697 = vpop.xlane.xlu0 %6696
        %v6698 = vsel %vm5034, %v6624, 0.0
        %6699 = vadd.xlane.f32.xlu0 %v6698
        %v6700 = vpop.xlane.xlu0 %6699
        %v6701 = vsel %vm5034, %v6625, 0.0
        %6702 = vadd.xlane.f32.xlu0 %v6701
        %v6703 = vpop.xlane.xlu0 %6702
        %v6704 = vsel %vm5034, %v6626, 0.0
        %6705 = vadd.xlane.f32.xlu0 %v6704
        %v6706 = vpop.xlane.xlu0 %6705
        %v6707 = vsel %vm5034, %v6627, 0.0
        %6708 = vadd.xlane.f32.xlu0 %v6707
        %v6709 = vpop.xlane.xlu0 %6708
        %v6710 = vsel %vm5034, %v6628, 0.0
        %6711 = vadd.xlane.f32.xlu0 %v6710
        %v6712 = vpop.xlane.xlu0 %6711
        %v6713 = vsel %vm5034, %v6629, 0.0
        %6714 = vadd.xlane.f32.xlu0 %v6713
        %v6715 = vpop.xlane.xlu0 %6714
        %v6716 = vsel %vm5034, %v6630, 0.0
        %6717 = vadd.xlane.f32.xlu0 %v6716
        %v6718 = vpop.xlane.xlu0 %6717
        %v6719 = vsel %vm5034, %v6631, 0.0
        %6720 = vadd.xlane.f32.xlu0 %v6719
        %v6721 = vpop.xlane.xlu0 %6720
        %v6722 = vsel %vm5034, %v6632, 0.0
        %6723 = vadd.xlane.f32.xlu0 %v6722
        %v6724 = vpop.xlane.xlu0 %6723
        %v6725 = vsel %vm5034, %v6633, 0.0
        %6726 = vadd.xlane.f32.xlu0 %v6725
        %v6727 = vpop.xlane.xlu0 %6726
        %v6728 = vsel %vm5034, %v6634, 0.0
        %6729 = vadd.xlane.f32.xlu0 %v6728
        %v6730 = vpop.xlane.xlu0 %6729
        %vm6731 = vcmp.eq.s32.totalorder %v4938, 22
        %vm6732 = vcmp.eq.s32.totalorder %v4939, 22
        %vm6733 = vcmp.eq.s32.totalorder %v4940, 22
        %vm6734 = vcmp.eq.s32.totalorder %v4941, 22
        %vm6735 = vcmp.eq.s32.totalorder %v4942, 22
        %vm6736 = vcmp.eq.s32.totalorder %v4943, 22
        %vm6737 = vcmp.eq.s32.totalorder %v4944, 22
        %vm6738 = vcmp.eq.s32.totalorder %v4945, 22
        %vm6739 = vcmp.eq.s32.totalorder %v4946, 22
        %vm6740 = vcmp.eq.s32.totalorder %v4947, 22
        %vm6741 = vcmp.eq.s32.totalorder %v4948, 22
        %vm6742 = vcmp.eq.s32.totalorder %v4949, 22
        %vm6743 = vcmp.eq.s32.totalorder %v4950, 22
        %vm6744 = vcmp.eq.s32.totalorder %v4951, 22
        %vm6745 = vcmp.eq.s32.totalorder %v4952, 22
        %vm6746 = vcmp.eq.s32.totalorder %v4953, 22
        %vm6747 = vcmp.eq.s32.totalorder %v4954, 22
        %vm6748 = vcmp.eq.s32.totalorder %v4955, 22
        %vm6749 = vcmp.eq.s32.totalorder %v4956, 22
        %vm6750 = vcmp.eq.s32.totalorder %v4957, 22
        %vm6751 = vcmp.eq.s32.totalorder %v4958, 22
        %vm6752 = vcmp.eq.s32.totalorder %v4959, 22
        %vm6753 = vcmp.eq.s32.totalorder %v4960, 22
        %vm6754 = vcmp.eq.s32.totalorder %v4961, 22
        %vm6755 = vcmp.eq.s32.totalorder %v4962, 22
        %vm6756 = vcmp.eq.s32.totalorder %v4963, 22
        %vm6757 = vcmp.eq.s32.totalorder %v4964, 22
        %vm6758 = vcmp.eq.s32.totalorder %v4965, 22
        %vm6759 = vcmp.eq.s32.totalorder %v4966, 22
        %vm6760 = vcmp.eq.s32.totalorder %v4967, 22
        %vm6761 = vcmp.eq.s32.totalorder %v4968, 22
        %vm6762 = vcmp.eq.s32.totalorder %v4969, 22
        %v6763 = vsel %vm6731, %v1723, 0.0
        %v6764 = vsel %vm6732, %v1727, 0.0
        %v6765 = vsel %vm6733, %v1909, 0.0
        %v6766 = vsel %vm6734, %v1913, 0.0
        %v6767 = vsel %vm6735, %v2095, 0.0
        %v6768 = vsel %vm6736, %v2099, 0.0
        %v6769 = vsel %vm6737, %v2281, 0.0
        %v6770 = vsel %vm6738, %v2285, 0.0
        %v6771 = vsel %vm6739, %v2467, 0.0
        %v6772 = vsel %vm6740, %v2471, 0.0
        %v6773 = vsel %vm6741, %v2653, 0.0
        %v6774 = vsel %vm6742, %v2657, 0.0
        %v6775 = vsel %vm6743, %v2839, 0.0
        %v6776 = vsel %vm6744, %v2843, 0.0
        %v6777 = vsel %vm6745, %v3025, 0.0
        %v6778 = vsel %vm6746, %v3029, 0.0
        %v6779 = vsel %vm6747, %v3211, 0.0
        %v6780 = vsel %vm6748, %v3215, 0.0
        %v6781 = vsel %vm6749, %v3397, 0.0
        %v6782 = vsel %vm6750, %v3401, 0.0
        %v6783 = vsel %vm6751, %v3583, 0.0
        %v6784 = vsel %vm6752, %v3587, 0.0
        %v6785 = vsel %vm6753, %v3769, 0.0
        %v6786 = vsel %vm6754, %v3773, 0.0
        %v6787 = vsel %vm6755, %v3955, 0.0
        %v6788 = vsel %vm6756, %v3959, 0.0
        %v6789 = vsel %vm6757, %v4141, 0.0
        %v6790 = vsel %vm6758, %v4145, 0.0
        %v6791 = vsel %vm6759, %v4327, 0.0
        %v6792 = vsel %vm6760, %v4331, 0.0
        %v6793 = vsel %vm6761, %v4513, 0.0
        %v6794 = vsel %vm6762, %v4517, 0.0
        %v6795 = vsel %vm5034, %v6763, 0.0
        %6796 = vadd.xlane.f32.xlu0 %v6795
        %v6797 = vpop.xlane.xlu0 %6796
        %v6798 = vsel %vm5034, %v6764, 0.0
        %6799 = vadd.xlane.f32.xlu0 %v6798
        %v6800 = vpop.xlane.xlu0 %6799
        %v6801 = vsel %vm5034, %v6765, 0.0
        %6802 = vadd.xlane.f32.xlu0 %v6801
        %v6803 = vpop.xlane.xlu0 %6802
        %v6804 = vsel %vm5034, %v6766, 0.0
        %6805 = vadd.xlane.f32.xlu0 %v6804
        %v6806 = vpop.xlane.xlu0 %6805
        %v6807 = vsel %vm5034, %v6767, 0.0
        %6808 = vadd.xlane.f32.xlu0 %v6807
        %v6809 = vpop.xlane.xlu0 %6808
        %v6810 = vsel %vm5034, %v6768, 0.0
        %6811 = vadd.xlane.f32.xlu0 %v6810
        %v6812 = vpop.xlane.xlu0 %6811
        %v6813 = vsel %vm5034, %v6769, 0.0
        %6814 = vadd.xlane.f32.xlu0 %v6813
        %v6815 = vpop.xlane.xlu0 %6814
        %v6816 = vsel %vm5034, %v6770, 0.0
        %6817 = vadd.xlane.f32.xlu0 %v6816
        %v6818 = vpop.xlane.xlu0 %6817
        %v6819 = vsel %vm5034, %v6771, 0.0
        %6820 = vadd.xlane.f32.xlu0 %v6819
        %v6821 = vpop.xlane.xlu0 %6820
        %v6822 = vsel %vm5034, %v6772, 0.0
        %6823 = vadd.xlane.f32.xlu0 %v6822
        %v6824 = vpop.xlane.xlu0 %6823
        %v6825 = vsel %vm5034, %v6773, 0.0
        %6826 = vadd.xlane.f32.xlu0 %v6825
        %v6827 = vpop.xlane.xlu0 %6826
        %v6828 = vsel %vm5034, %v6774, 0.0
        %6829 = vadd.xlane.f32.xlu0 %v6828
        %v6830 = vpop.xlane.xlu0 %6829
        %v6831 = vsel %vm5034, %v6775, 0.0
        %6832 = vadd.xlane.f32.xlu0 %v6831
        %v6833 = vpop.xlane.xlu0 %6832
        %v6834 = vsel %vm5034, %v6776, 0.0
        %6835 = vadd.xlane.f32.xlu0 %v6834
        %v6836 = vpop.xlane.xlu0 %6835
        %v6837 = vsel %vm5034, %v6777, 0.0
        %6838 = vadd.xlane.f32.xlu0 %v6837
        %v6839 = vpop.xlane.xlu0 %6838
        %v6840 = vsel %vm5034, %v6778, 0.0
        %6841 = vadd.xlane.f32.xlu0 %v6840
        %v6842 = vpop.xlane.xlu0 %6841
        %v6843 = vsel %vm5034, %v6779, 0.0
        %6844 = vadd.xlane.f32.xlu0 %v6843
        %v6845 = vpop.xlane.xlu0 %6844
        %v6846 = vsel %vm5034, %v6780, 0.0
        %6847 = vadd.xlane.f32.xlu0 %v6846
        %v6848 = vpop.xlane.xlu0 %6847
        %v6849 = vsel %vm5034, %v6781, 0.0
        %6850 = vadd.xlane.f32.xlu0 %v6849
        %v6851 = vpop.xlane.xlu0 %6850
        %v6852 = vsel %vm5034, %v6782, 0.0
        %6853 = vadd.xlane.f32.xlu0 %v6852
        %v6854 = vpop.xlane.xlu0 %6853
        %v6855 = vsel %vm5034, %v6783, 0.0
        %6856 = vadd.xlane.f32.xlu0 %v6855
        %v6857 = vpop.xlane.xlu0 %6856
        %v6858 = vsel %vm5034, %v6784, 0.0
        %6859 = vadd.xlane.f32.xlu0 %v6858
        %v6860 = vpop.xlane.xlu0 %6859
        %v6861 = vsel %vm5034, %v6785, 0.0
        %6862 = vadd.xlane.f32.xlu0 %v6861
        %v6863 = vpop.xlane.xlu0 %6862
        %v6864 = vsel %vm5034, %v6786, 0.0
        %6865 = vadd.xlane.f32.xlu0 %v6864
        %v6866 = vpop.xlane.xlu0 %6865
        %v6867 = vsel %vm5034, %v6787, 0.0
        %6868 = vadd.xlane.f32.xlu0 %v6867
        %v6869 = vpop.xlane.xlu0 %6868
        %v6870 = vsel %vm5034, %v6788, 0.0
        %6871 = vadd.xlane.f32.xlu0 %v6870
        %v6872 = vpop.xlane.xlu0 %6871
        %v6873 = vsel %vm5034, %v6789, 0.0
        %6874 = vadd.xlane.f32.xlu0 %v6873
        %v6875 = vpop.xlane.xlu0 %6874
        %v6876 = vsel %vm5034, %v6790, 0.0
        %6877 = vadd.xlane.f32.xlu0 %v6876
        %v6878 = vpop.xlane.xlu0 %6877
        %v6879 = vsel %vm5034, %v6791, 0.0
        %6880 = vadd.xlane.f32.xlu0 %v6879
        %v6881 = vpop.xlane.xlu0 %6880
        %v6882 = vsel %vm5034, %v6792, 0.0
        %6883 = vadd.xlane.f32.xlu0 %v6882
        %v6884 = vpop.xlane.xlu0 %6883
        %v6885 = vsel %vm5034, %v6793, 0.0
        %6886 = vadd.xlane.f32.xlu0 %v6885
        %v6887 = vpop.xlane.xlu0 %6886
        %v6888 = vsel %vm5034, %v6794, 0.0
        %6889 = vadd.xlane.f32.xlu0 %v6888
        %v6890 = vpop.xlane.xlu0 %6889
        %vm6891 = vcmp.eq.s32.totalorder %v4938, 24
        %vm6892 = vcmp.eq.s32.totalorder %v4939, 24
        %vm6893 = vcmp.eq.s32.totalorder %v4940, 24
        %vm6894 = vcmp.eq.s32.totalorder %v4941, 24
        %vm6895 = vcmp.eq.s32.totalorder %v4942, 24
        %vm6896 = vcmp.eq.s32.totalorder %v4943, 24
        %vm6897 = vcmp.eq.s32.totalorder %v4944, 24
        %vm6898 = vcmp.eq.s32.totalorder %v4945, 24
        %vm6899 = vcmp.eq.s32.totalorder %v4946, 24
        %vm6900 = vcmp.eq.s32.totalorder %v4947, 24
        %vm6901 = vcmp.eq.s32.totalorder %v4948, 24
        %vm6902 = vcmp.eq.s32.totalorder %v4949, 24
        %vm6903 = vcmp.eq.s32.totalorder %v4950, 24
        %vm6904 = vcmp.eq.s32.totalorder %v4951, 24
        %vm6905 = vcmp.eq.s32.totalorder %v4952, 24
        %vm6906 = vcmp.eq.s32.totalorder %v4953, 24
        %vm6907 = vcmp.eq.s32.totalorder %v4954, 24
        %vm6908 = vcmp.eq.s32.totalorder %v4955, 24
        %vm6909 = vcmp.eq.s32.totalorder %v4956, 24
        %vm6910 = vcmp.eq.s32.totalorder %v4957, 24
        %vm6911 = vcmp.eq.s32.totalorder %v4958, 24
        %vm6912 = vcmp.eq.s32.totalorder %v4959, 24
        %vm6913 = vcmp.eq.s32.totalorder %v4960, 24
        %vm6914 = vcmp.eq.s32.totalorder %v4961, 24
        %vm6915 = vcmp.eq.s32.totalorder %v4962, 24
        %vm6916 = vcmp.eq.s32.totalorder %v4963, 24
        %vm6917 = vcmp.eq.s32.totalorder %v4964, 24
        %vm6918 = vcmp.eq.s32.totalorder %v4965, 24
        %vm6919 = vcmp.eq.s32.totalorder %v4966, 24
        %vm6920 = vcmp.eq.s32.totalorder %v4967, 24
        %vm6921 = vcmp.eq.s32.totalorder %v4968, 24
        %vm6922 = vcmp.eq.s32.totalorder %v4969, 24
        %v6923 = vsel %vm6891, %v1723, 0.0
        %v6924 = vsel %vm6892, %v1727, 0.0
        %v6925 = vsel %vm6893, %v1909, 0.0
        %v6926 = vsel %vm6894, %v1913, 0.0
        %v6927 = vsel %vm6895, %v2095, 0.0
        %v6928 = vsel %vm6896, %v2099, 0.0
        %v6929 = vsel %vm6897, %v2281, 0.0
        %v6930 = vsel %vm6898, %v2285, 0.0
        %v6931 = vsel %vm6899, %v2467, 0.0
        %v6932 = vsel %vm6900, %v2471, 0.0
        %v6933 = vsel %vm6901, %v2653, 0.0
        %v6934 = vsel %vm6902, %v2657, 0.0
        %v6935 = vsel %vm6903, %v2839, 0.0
        %v6936 = vsel %vm6904, %v2843, 0.0
        %v6937 = vsel %vm6905, %v3025, 0.0
        %v6938 = vsel %vm6906, %v3029, 0.0
        %v6939 = vsel %vm6907, %v3211, 0.0
        %v6940 = vsel %vm6908, %v3215, 0.0
        %v6941 = vsel %vm6909, %v3397, 0.0
        %v6942 = vsel %vm6910, %v3401, 0.0
        %v6943 = vsel %vm6911, %v3583, 0.0
        %v6944 = vsel %vm6912, %v3587, 0.0
        %v6945 = vsel %vm6913, %v3769, 0.0
        %v6946 = vsel %vm6914, %v3773, 0.0
        %v6947 = vsel %vm6915, %v3955, 0.0
        %v6948 = vsel %vm6916, %v3959, 0.0
        %v6949 = vsel %vm6917, %v4141, 0.0
        %v6950 = vsel %vm6918, %v4145, 0.0
        %v6951 = vsel %vm6919, %v4327, 0.0
        %v6952 = vsel %vm6920, %v4331, 0.0
        %v6953 = vsel %vm6921, %v4513, 0.0
        %v6954 = vsel %vm6922, %v4517, 0.0
        %v6955 = vsel %vm5034, %v6923, 0.0
        %6956 = vadd.xlane.f32.xlu0 %v6955
        %v6957 = vpop.xlane.xlu0 %6956
        %v6958 = vsel %vm5034, %v6924, 0.0
        %6959 = vadd.xlane.f32.xlu0 %v6958
        %v6960 = vpop.xlane.xlu0 %6959
        %v6961 = vsel %vm5034, %v6925, 0.0
        %6962 = vadd.xlane.f32.xlu0 %v6961
        %v6963 = vpop.xlane.xlu0 %6962
        %v6964 = vsel %vm5034, %v6926, 0.0
        %6965 = vadd.xlane.f32.xlu0 %v6964
        %v6966 = vpop.xlane.xlu0 %6965
        %v6967 = vsel %vm5034, %v6927, 0.0
        %6968 = vadd.xlane.f32.xlu0 %v6967
        %v6969 = vpop.xlane.xlu0 %6968
        %v6970 = vsel %vm5034, %v6928, 0.0
        %6971 = vadd.xlane.f32.xlu0 %v6970
        %v6972 = vpop.xlane.xlu0 %6971
        %v6973 = vsel %vm5034, %v6929, 0.0
        %6974 = vadd.xlane.f32.xlu0 %v6973
        %v6975 = vpop.xlane.xlu0 %6974
        %v6976 = vsel %vm5034, %v6930, 0.0
        %6977 = vadd.xlane.f32.xlu0 %v6976
        %v6978 = vpop.xlane.xlu0 %6977
        %v6979 = vsel %vm5034, %v6931, 0.0
        %6980 = vadd.xlane.f32.xlu0 %v6979
        %v6981 = vpop.xlane.xlu0 %6980
        %v6982 = vsel %vm5034, %v6932, 0.0
        %6983 = vadd.xlane.f32.xlu0 %v6982
        %v6984 = vpop.xlane.xlu0 %6983
        %v6985 = vsel %vm5034, %v6933, 0.0
        %6986 = vadd.xlane.f32.xlu0 %v6985
        %v6987 = vpop.xlane.xlu0 %6986
        %v6988 = vsel %vm5034, %v6934, 0.0
        %6989 = vadd.xlane.f32.xlu0 %v6988
        %v6990 = vpop.xlane.xlu0 %6989
        %v6991 = vsel %vm5034, %v6935, 0.0
        %6992 = vadd.xlane.f32.xlu0 %v6991
        %v6993 = vpop.xlane.xlu0 %6992
        %v6994 = vsel %vm5034, %v6936, 0.0
        %6995 = vadd.xlane.f32.xlu0 %v6994
        %v6996 = vpop.xlane.xlu0 %6995
        %v6997 = vsel %vm5034, %v6937, 0.0
        %6998 = vadd.xlane.f32.xlu0 %v6997
        %v6999 = vpop.xlane.xlu0 %6998
        %v7000 = vsel %vm5034, %v6938, 0.0
        %7001 = vadd.xlane.f32.xlu0 %v7000
        %v7002 = vpop.xlane.xlu0 %7001
        %v7003 = vsel %vm5034, %v6939, 0.0
        %7004 = vadd.xlane.f32.xlu0 %v7003
        %v7005 = vpop.xlane.xlu0 %7004
        %v7006 = vsel %vm5034, %v6940, 0.0
        %7007 = vadd.xlane.f32.xlu0 %v7006
        %v7008 = vpop.xlane.xlu0 %7007
        %v7009 = vsel %vm5034, %v6941, 0.0
        %7010 = vadd.xlane.f32.xlu0 %v7009
        %v7011 = vpop.xlane.xlu0 %7010
        %v7012 = vsel %vm5034, %v6942, 0.0
        %7013 = vadd.xlane.f32.xlu0 %v7012
        %v7014 = vpop.xlane.xlu0 %7013
        %v7015 = vsel %vm5034, %v6943, 0.0
        %7016 = vadd.xlane.f32.xlu0 %v7015
        %v7017 = vpop.xlane.xlu0 %7016
        %v7018 = vsel %vm5034, %v6944, 0.0
        %7019 = vadd.xlane.f32.xlu0 %v7018
        %v7020 = vpop.xlane.xlu0 %7019
        %v7021 = vsel %vm5034, %v6945, 0.0
        %7022 = vadd.xlane.f32.xlu0 %v7021
        %v7023 = vpop.xlane.xlu0 %7022
        %v7024 = vsel %vm5034, %v6946, 0.0
        %7025 = vadd.xlane.f32.xlu0 %v7024
        %v7026 = vpop.xlane.xlu0 %7025
        %v7027 = vsel %vm5034, %v6947, 0.0
        %7028 = vadd.xlane.f32.xlu0 %v7027
        %v7029 = vpop.xlane.xlu0 %7028
        %v7030 = vsel %vm5034, %v6948, 0.0
        %7031 = vadd.xlane.f32.xlu0 %v7030
        %v7032 = vpop.xlane.xlu0 %7031
        %v7033 = vsel %vm5034, %v6949, 0.0
        %7034 = vadd.xlane.f32.xlu0 %v7033
        %v7035 = vpop.xlane.xlu0 %7034
        %v7036 = vsel %vm5034, %v6950, 0.0
        %7037 = vadd.xlane.f32.xlu0 %v7036
        %v7038 = vpop.xlane.xlu0 %7037
        %v7039 = vsel %vm5034, %v6951, 0.0
        %7040 = vadd.xlane.f32.xlu0 %v7039
        %v7041 = vpop.xlane.xlu0 %7040
        %v7042 = vsel %vm5034, %v6952, 0.0
        %7043 = vadd.xlane.f32.xlu0 %v7042
        %v7044 = vpop.xlane.xlu0 %7043
        %v7045 = vsel %vm5034, %v6953, 0.0
        %7046 = vadd.xlane.f32.xlu0 %v7045
        %v7047 = vpop.xlane.xlu0 %7046
        %v7048 = vsel %vm5034, %v6954, 0.0
        %7049 = vadd.xlane.f32.xlu0 %v7048
        %v7050 = vpop.xlane.xlu0 %7049
        %vm7051 = vcmp.eq.s32.totalorder %v4938, 26
        %vm7052 = vcmp.eq.s32.totalorder %v4939, 26
        %vm7053 = vcmp.eq.s32.totalorder %v4940, 26
        %vm7054 = vcmp.eq.s32.totalorder %v4941, 26
        %vm7055 = vcmp.eq.s32.totalorder %v4942, 26
        %vm7056 = vcmp.eq.s32.totalorder %v4943, 26
        %vm7057 = vcmp.eq.s32.totalorder %v4944, 26
        %vm7058 = vcmp.eq.s32.totalorder %v4945, 26
        %vm7059 = vcmp.eq.s32.totalorder %v4946, 26
        %vm7060 = vcmp.eq.s32.totalorder %v4947, 26
        %vm7061 = vcmp.eq.s32.totalorder %v4948, 26
        %vm7062 = vcmp.eq.s32.totalorder %v4949, 26
        %vm7063 = vcmp.eq.s32.totalorder %v4950, 26
        %vm7064 = vcmp.eq.s32.totalorder %v4951, 26
        %vm7065 = vcmp.eq.s32.totalorder %v4952, 26
        %vm7066 = vcmp.eq.s32.totalorder %v4953, 26
        %vm7067 = vcmp.eq.s32.totalorder %v4954, 26
        %vm7068 = vcmp.eq.s32.totalorder %v4955, 26
        %vm7069 = vcmp.eq.s32.totalorder %v4956, 26
        %vm7070 = vcmp.eq.s32.totalorder %v4957, 26
        %vm7071 = vcmp.eq.s32.totalorder %v4958, 26
        %vm7072 = vcmp.eq.s32.totalorder %v4959, 26
        %vm7073 = vcmp.eq.s32.totalorder %v4960, 26
        %vm7074 = vcmp.eq.s32.totalorder %v4961, 26
        %vm7075 = vcmp.eq.s32.totalorder %v4962, 26
        %vm7076 = vcmp.eq.s32.totalorder %v4963, 26
        %vm7077 = vcmp.eq.s32.totalorder %v4964, 26
        %vm7078 = vcmp.eq.s32.totalorder %v4965, 26
        %vm7079 = vcmp.eq.s32.totalorder %v4966, 26
        %vm7080 = vcmp.eq.s32.totalorder %v4967, 26
        %vm7081 = vcmp.eq.s32.totalorder %v4968, 26
        %vm7082 = vcmp.eq.s32.totalorder %v4969, 26
        %v7083 = vsel %vm7051, %v1723, 0.0
        %v7084 = vsel %vm7052, %v1727, 0.0
        %v7085 = vsel %vm7053, %v1909, 0.0
        %v7086 = vsel %vm7054, %v1913, 0.0
        %v7087 = vsel %vm7055, %v2095, 0.0
        %v7088 = vsel %vm7056, %v2099, 0.0
        %v7089 = vsel %vm7057, %v2281, 0.0
        %v7090 = vsel %vm7058, %v2285, 0.0
        %v7091 = vsel %vm7059, %v2467, 0.0
        %v7092 = vsel %vm7060, %v2471, 0.0
        %v7093 = vsel %vm7061, %v2653, 0.0
        %v7094 = vsel %vm7062, %v2657, 0.0
        %v7095 = vsel %vm7063, %v2839, 0.0
        %v7096 = vsel %vm7064, %v2843, 0.0
        %v7097 = vsel %vm7065, %v3025, 0.0
        %v7098 = vsel %vm7066, %v3029, 0.0
        %v7099 = vsel %vm7067, %v3211, 0.0
        %v7100 = vsel %vm7068, %v3215, 0.0
        %v7101 = vsel %vm7069, %v3397, 0.0
        %v7102 = vsel %vm7070, %v3401, 0.0
        %v7103 = vsel %vm7071, %v3583, 0.0
        %v7104 = vsel %vm7072, %v3587, 0.0
        %v7105 = vsel %vm7073, %v3769, 0.0
        %v7106 = vsel %vm7074, %v3773, 0.0
        %v7107 = vsel %vm7075, %v3955, 0.0
        %v7108 = vsel %vm7076, %v3959, 0.0
        %v7109 = vsel %vm7077, %v4141, 0.0
        %v7110 = vsel %vm7078, %v4145, 0.0
        %v7111 = vsel %vm7079, %v4327, 0.0
        %v7112 = vsel %vm7080, %v4331, 0.0
        %v7113 = vsel %vm7081, %v4513, 0.0
        %v7114 = vsel %vm7082, %v4517, 0.0
        %v7115 = vsel %vm5034, %v7083, 0.0
        %7116 = vadd.xlane.f32.xlu0 %v7115
        %v7117 = vpop.xlane.xlu0 %7116
        %v7118 = vsel %vm5034, %v7084, 0.0
        %7119 = vadd.xlane.f32.xlu0 %v7118
        %v7120 = vpop.xlane.xlu0 %7119
        %v7121 = vsel %vm5034, %v7085, 0.0
        %7122 = vadd.xlane.f32.xlu0 %v7121
        %v7123 = vpop.xlane.xlu0 %7122
        %v7124 = vsel %vm5034, %v7086, 0.0
        %7125 = vadd.xlane.f32.xlu0 %v7124
        %v7126 = vpop.xlane.xlu0 %7125
        %v7127 = vsel %vm5034, %v7087, 0.0
        %7128 = vadd.xlane.f32.xlu0 %v7127
        %v7129 = vpop.xlane.xlu0 %7128
        %v7130 = vsel %vm5034, %v7088, 0.0
        %7131 = vadd.xlane.f32.xlu0 %v7130
        %v7132 = vpop.xlane.xlu0 %7131
        %v7133 = vsel %vm5034, %v7089, 0.0
        %7134 = vadd.xlane.f32.xlu0 %v7133
        %v7135 = vpop.xlane.xlu0 %7134
        %v7136 = vsel %vm5034, %v7090, 0.0
        %7137 = vadd.xlane.f32.xlu0 %v7136
        %v7138 = vpop.xlane.xlu0 %7137
        %v7139 = vsel %vm5034, %v7091, 0.0
        %7140 = vadd.xlane.f32.xlu0 %v7139
        %v7141 = vpop.xlane.xlu0 %7140
        %v7142 = vsel %vm5034, %v7092, 0.0
        %7143 = vadd.xlane.f32.xlu0 %v7142
        %v7144 = vpop.xlane.xlu0 %7143
        %v7145 = vsel %vm5034, %v7093, 0.0
        %7146 = vadd.xlane.f32.xlu0 %v7145
        %v7147 = vpop.xlane.xlu0 %7146
        %v7148 = vsel %vm5034, %v7094, 0.0
        %7149 = vadd.xlane.f32.xlu0 %v7148
        %v7150 = vpop.xlane.xlu0 %7149
        %v7151 = vsel %vm5034, %v7095, 0.0
        %7152 = vadd.xlane.f32.xlu0 %v7151
        %v7153 = vpop.xlane.xlu0 %7152
        %v7154 = vsel %vm5034, %v7096, 0.0
        %7155 = vadd.xlane.f32.xlu0 %v7154
        %v7156 = vpop.xlane.xlu0 %7155
        %v7157 = vsel %vm5034, %v7097, 0.0
        %7158 = vadd.xlane.f32.xlu0 %v7157
        %v7159 = vpop.xlane.xlu0 %7158
        %v7160 = vsel %vm5034, %v7098, 0.0
        %7161 = vadd.xlane.f32.xlu0 %v7160
        %v7162 = vpop.xlane.xlu0 %7161
        %v7163 = vsel %vm5034, %v7099, 0.0
        %7164 = vadd.xlane.f32.xlu0 %v7163
        %v7165 = vpop.xlane.xlu0 %7164
        %v7166 = vsel %vm5034, %v7100, 0.0
        %7167 = vadd.xlane.f32.xlu0 %v7166
        %v7168 = vpop.xlane.xlu0 %7167
        %v7169 = vsel %vm5034, %v7101, 0.0
        %7170 = vadd.xlane.f32.xlu0 %v7169
        %v7171 = vpop.xlane.xlu0 %7170
        %v7172 = vsel %vm5034, %v7102, 0.0
        %7173 = vadd.xlane.f32.xlu0 %v7172
        %v7174 = vpop.xlane.xlu0 %7173
        %v7175 = vsel %vm5034, %v7103, 0.0
        %7176 = vadd.xlane.f32.xlu0 %v7175
        %v7177 = vpop.xlane.xlu0 %7176
        %v7178 = vsel %vm5034, %v7104, 0.0
        %7179 = vadd.xlane.f32.xlu0 %v7178
        %v7180 = vpop.xlane.xlu0 %7179
        %v7181 = vsel %vm5034, %v7105, 0.0
        %7182 = vadd.xlane.f32.xlu0 %v7181
        %v7183 = vpop.xlane.xlu0 %7182
        %v7184 = vsel %vm5034, %v7106, 0.0
        %7185 = vadd.xlane.f32.xlu0 %v7184
        %v7186 = vpop.xlane.xlu0 %7185
        %v7187 = vsel %vm5034, %v7107, 0.0
        %7188 = vadd.xlane.f32.xlu0 %v7187
        %v7189 = vpop.xlane.xlu0 %7188
        %v7190 = vsel %vm5034, %v7108, 0.0
        %7191 = vadd.xlane.f32.xlu0 %v7190
        %v7192 = vpop.xlane.xlu0 %7191
        %v7193 = vsel %vm5034, %v7109, 0.0
        %7194 = vadd.xlane.f32.xlu0 %v7193
        %v7195 = vpop.xlane.xlu0 %7194
        %v7196 = vsel %vm5034, %v7110, 0.0
        %7197 = vadd.xlane.f32.xlu0 %v7196
        %v7198 = vpop.xlane.xlu0 %7197
        %v7199 = vsel %vm5034, %v7111, 0.0
        %7200 = vadd.xlane.f32.xlu0 %v7199
        %v7201 = vpop.xlane.xlu0 %7200
        %v7202 = vsel %vm5034, %v7112, 0.0
        %7203 = vadd.xlane.f32.xlu0 %v7202
        %v7204 = vpop.xlane.xlu0 %7203
        %v7205 = vsel %vm5034, %v7113, 0.0
        %7206 = vadd.xlane.f32.xlu0 %v7205
        %v7207 = vpop.xlane.xlu0 %7206
        %v7208 = vsel %vm5034, %v7114, 0.0
        %7209 = vadd.xlane.f32.xlu0 %v7208
        %v7210 = vpop.xlane.xlu0 %7209
        %vm7211 = vcmp.eq.s32.totalorder %v4938, 28
        %vm7212 = vcmp.eq.s32.totalorder %v4939, 28
        %vm7213 = vcmp.eq.s32.totalorder %v4940, 28
        %vm7214 = vcmp.eq.s32.totalorder %v4941, 28
        %vm7215 = vcmp.eq.s32.totalorder %v4942, 28
        %vm7216 = vcmp.eq.s32.totalorder %v4943, 28
        %vm7217 = vcmp.eq.s32.totalorder %v4944, 28
        %vm7218 = vcmp.eq.s32.totalorder %v4945, 28
        %vm7219 = vcmp.eq.s32.totalorder %v4946, 28
        %vm7220 = vcmp.eq.s32.totalorder %v4947, 28
        %vm7221 = vcmp.eq.s32.totalorder %v4948, 28
        %vm7222 = vcmp.eq.s32.totalorder %v4949, 28
        %vm7223 = vcmp.eq.s32.totalorder %v4950, 28
        %vm7224 = vcmp.eq.s32.totalorder %v4951, 28
        %vm7225 = vcmp.eq.s32.totalorder %v4952, 28
        %vm7226 = vcmp.eq.s32.totalorder %v4953, 28
        %vm7227 = vcmp.eq.s32.totalorder %v4954, 28
        %vm7228 = vcmp.eq.s32.totalorder %v4955, 28
        %vm7229 = vcmp.eq.s32.totalorder %v4956, 28
        %vm7230 = vcmp.eq.s32.totalorder %v4957, 28
        %vm7231 = vcmp.eq.s32.totalorder %v4958, 28
        %vm7232 = vcmp.eq.s32.totalorder %v4959, 28
        %vm7233 = vcmp.eq.s32.totalorder %v4960, 28
        %vm7234 = vcmp.eq.s32.totalorder %v4961, 28
        %vm7235 = vcmp.eq.s32.totalorder %v4962, 28
        %vm7236 = vcmp.eq.s32.totalorder %v4963, 28
        %vm7237 = vcmp.eq.s32.totalorder %v4964, 28
        %vm7238 = vcmp.eq.s32.totalorder %v4965, 28
        %vm7239 = vcmp.eq.s32.totalorder %v4966, 28
        %vm7240 = vcmp.eq.s32.totalorder %v4967, 28
        %vm7241 = vcmp.eq.s32.totalorder %v4968, 28
        %vm7242 = vcmp.eq.s32.totalorder %v4969, 28
        %v7243 = vsel %vm7211, %v1723, 0.0
        %v7244 = vsel %vm7212, %v1727, 0.0
        %v7245 = vsel %vm7213, %v1909, 0.0
        %v7246 = vsel %vm7214, %v1913, 0.0
        %v7247 = vsel %vm7215, %v2095, 0.0
        %v7248 = vsel %vm7216, %v2099, 0.0
        %v7249 = vsel %vm7217, %v2281, 0.0
        %v7250 = vsel %vm7218, %v2285, 0.0
        %v7251 = vsel %vm7219, %v2467, 0.0
        %v7252 = vsel %vm7220, %v2471, 0.0
        %v7253 = vsel %vm7221, %v2653, 0.0
        %v7254 = vsel %vm7222, %v2657, 0.0
        %v7255 = vsel %vm7223, %v2839, 0.0
        %v7256 = vsel %vm7224, %v2843, 0.0
        %v7257 = vsel %vm7225, %v3025, 0.0
        %v7258 = vsel %vm7226, %v3029, 0.0
        %v7259 = vsel %vm7227, %v3211, 0.0
        %v7260 = vsel %vm7228, %v3215, 0.0
        %v7261 = vsel %vm7229, %v3397, 0.0
        %v7262 = vsel %vm7230, %v3401, 0.0
        %v7263 = vsel %vm7231, %v3583, 0.0
        %v7264 = vsel %vm7232, %v3587, 0.0
        %v7265 = vsel %vm7233, %v3769, 0.0
        %v7266 = vsel %vm7234, %v3773, 0.0
        %v7267 = vsel %vm7235, %v3955, 0.0
        %v7268 = vsel %vm7236, %v3959, 0.0
        %v7269 = vsel %vm7237, %v4141, 0.0
        %v7270 = vsel %vm7238, %v4145, 0.0
        %v7271 = vsel %vm7239, %v4327, 0.0
        %v7272 = vsel %vm7240, %v4331, 0.0
        %v7273 = vsel %vm7241, %v4513, 0.0
        %v7274 = vsel %vm7242, %v4517, 0.0
        %v7275 = vsel %vm5034, %v7243, 0.0
        %7276 = vadd.xlane.f32.xlu0 %v7275
        %v7277 = vpop.xlane.xlu0 %7276
        %v7278 = vsel %vm5034, %v7244, 0.0
        %7279 = vadd.xlane.f32.xlu0 %v7278
        %v7280 = vpop.xlane.xlu0 %7279
        %v7281 = vsel %vm5034, %v7245, 0.0
        %7282 = vadd.xlane.f32.xlu0 %v7281
        %v7283 = vpop.xlane.xlu0 %7282
        %v7284 = vsel %vm5034, %v7246, 0.0
        %7285 = vadd.xlane.f32.xlu0 %v7284
        %v7286 = vpop.xlane.xlu0 %7285
        %v7287 = vsel %vm5034, %v7247, 0.0
        %7288 = vadd.xlane.f32.xlu0 %v7287
        %v7289 = vpop.xlane.xlu0 %7288
        %v7290 = vsel %vm5034, %v7248, 0.0
        %7291 = vadd.xlane.f32.xlu0 %v7290
        %v7292 = vpop.xlane.xlu0 %7291
        %v7293 = vsel %vm5034, %v7249, 0.0
        %7294 = vadd.xlane.f32.xlu0 %v7293
        %v7295 = vpop.xlane.xlu0 %7294
        %v7296 = vsel %vm5034, %v7250, 0.0
        %7297 = vadd.xlane.f32.xlu0 %v7296
        %v7298 = vpop.xlane.xlu0 %7297
        %v7299 = vsel %vm5034, %v7251, 0.0
        %7300 = vadd.xlane.f32.xlu0 %v7299
        %v7301 = vpop.xlane.xlu0 %7300
        %v7302 = vsel %vm5034, %v7252, 0.0
        %7303 = vadd.xlane.f32.xlu0 %v7302
        %v7304 = vpop.xlane.xlu0 %7303
        %v7305 = vsel %vm5034, %v7253, 0.0
        %7306 = vadd.xlane.f32.xlu0 %v7305
        %v7307 = vpop.xlane.xlu0 %7306
        %v7308 = vsel %vm5034, %v7254, 0.0
        %7309 = vadd.xlane.f32.xlu0 %v7308
        %v7310 = vpop.xlane.xlu0 %7309
        %v7311 = vsel %vm5034, %v7255, 0.0
        %7312 = vadd.xlane.f32.xlu0 %v7311
        %v7313 = vpop.xlane.xlu0 %7312
        %v7314 = vsel %vm5034, %v7256, 0.0
        %7315 = vadd.xlane.f32.xlu0 %v7314
        %v7316 = vpop.xlane.xlu0 %7315
        %v7317 = vsel %vm5034, %v7257, 0.0
        %7318 = vadd.xlane.f32.xlu0 %v7317
        %v7319 = vpop.xlane.xlu0 %7318
        %v7320 = vsel %vm5034, %v7258, 0.0
        %7321 = vadd.xlane.f32.xlu0 %v7320
        %v7322 = vpop.xlane.xlu0 %7321
        %v7323 = vsel %vm5034, %v7259, 0.0
        %7324 = vadd.xlane.f32.xlu0 %v7323
        %v7325 = vpop.xlane.xlu0 %7324
        %v7326 = vsel %vm5034, %v7260, 0.0
        %7327 = vadd.xlane.f32.xlu0 %v7326
        %v7328 = vpop.xlane.xlu0 %7327
        %v7329 = vsel %vm5034, %v7261, 0.0
        %7330 = vadd.xlane.f32.xlu0 %v7329
        %v7331 = vpop.xlane.xlu0 %7330
        %v7332 = vsel %vm5034, %v7262, 0.0
        %7333 = vadd.xlane.f32.xlu0 %v7332
        %v7334 = vpop.xlane.xlu0 %7333
        %v7335 = vsel %vm5034, %v7263, 0.0
        %7336 = vadd.xlane.f32.xlu0 %v7335
        %v7337 = vpop.xlane.xlu0 %7336
        %v7338 = vsel %vm5034, %v7264, 0.0
        %7339 = vadd.xlane.f32.xlu0 %v7338
        %v7340 = vpop.xlane.xlu0 %7339
        %v7341 = vsel %vm5034, %v7265, 0.0
        %7342 = vadd.xlane.f32.xlu0 %v7341
        %v7343 = vpop.xlane.xlu0 %7342
        %v7344 = vsel %vm5034, %v7266, 0.0
        %7345 = vadd.xlane.f32.xlu0 %v7344
        %v7346 = vpop.xlane.xlu0 %7345
        %v7347 = vsel %vm5034, %v7267, 0.0
        %7348 = vadd.xlane.f32.xlu0 %v7347
        %v7349 = vpop.xlane.xlu0 %7348
        %v7350 = vsel %vm5034, %v7268, 0.0
        %7351 = vadd.xlane.f32.xlu0 %v7350
        %v7352 = vpop.xlane.xlu0 %7351
        %v7353 = vsel %vm5034, %v7269, 0.0
        %7354 = vadd.xlane.f32.xlu0 %v7353
        %v7355 = vpop.xlane.xlu0 %7354
        %v7356 = vsel %vm5034, %v7270, 0.0
        %7357 = vadd.xlane.f32.xlu0 %v7356
        %v7358 = vpop.xlane.xlu0 %7357
        %v7359 = vsel %vm5034, %v7271, 0.0
        %7360 = vadd.xlane.f32.xlu0 %v7359
        %v7361 = vpop.xlane.xlu0 %7360
        %v7362 = vsel %vm5034, %v7272, 0.0
        %7363 = vadd.xlane.f32.xlu0 %v7362
        %v7364 = vpop.xlane.xlu0 %7363
        %v7365 = vsel %vm5034, %v7273, 0.0
        %7366 = vadd.xlane.f32.xlu0 %v7365
        %v7367 = vpop.xlane.xlu0 %7366
        %v7368 = vsel %vm5034, %v7274, 0.0
        %7369 = vadd.xlane.f32.xlu0 %v7368
        %v7370 = vpop.xlane.xlu0 %7369
        %vm7371 = vcmp.eq.s32.totalorder %v4938, 30
        %vm7372 = vcmp.eq.s32.totalorder %v4939, 30
        %vm7373 = vcmp.eq.s32.totalorder %v4940, 30
        %vm7374 = vcmp.eq.s32.totalorder %v4941, 30
        %vm7375 = vcmp.eq.s32.totalorder %v4942, 30
        %vm7376 = vcmp.eq.s32.totalorder %v4943, 30
        %vm7377 = vcmp.eq.s32.totalorder %v4944, 30
        %vm7378 = vcmp.eq.s32.totalorder %v4945, 30
        %vm7379 = vcmp.eq.s32.totalorder %v4946, 30
        %vm7380 = vcmp.eq.s32.totalorder %v4947, 30
        %vm7381 = vcmp.eq.s32.totalorder %v4948, 30
        %vm7382 = vcmp.eq.s32.totalorder %v4949, 30
        %vm7383 = vcmp.eq.s32.totalorder %v4950, 30
        %vm7384 = vcmp.eq.s32.totalorder %v4951, 30
        %vm7385 = vcmp.eq.s32.totalorder %v4952, 30
        %vm7386 = vcmp.eq.s32.totalorder %v4953, 30
        %vm7387 = vcmp.eq.s32.totalorder %v4954, 30
        %vm7388 = vcmp.eq.s32.totalorder %v4955, 30
        %vm7389 = vcmp.eq.s32.totalorder %v4956, 30
        %vm7390 = vcmp.eq.s32.totalorder %v4957, 30
        %vm7391 = vcmp.eq.s32.totalorder %v4958, 30
        %vm7392 = vcmp.eq.s32.totalorder %v4959, 30
        %vm7393 = vcmp.eq.s32.totalorder %v4960, 30
        %vm7394 = vcmp.eq.s32.totalorder %v4961, 30
        %vm7395 = vcmp.eq.s32.totalorder %v4962, 30
        %vm7396 = vcmp.eq.s32.totalorder %v4963, 30
        %vm7397 = vcmp.eq.s32.totalorder %v4964, 30
        %vm7398 = vcmp.eq.s32.totalorder %v4965, 30
        %vm7399 = vcmp.eq.s32.totalorder %v4966, 30
        %vm7400 = vcmp.eq.s32.totalorder %v4967, 30
        %vm7401 = vcmp.eq.s32.totalorder %v4968, 30
        %vm7402 = vcmp.eq.s32.totalorder %v4969, 30
        %v7403 = vsel %vm7371, %v1723, 0.0
        %v7404 = vsel %vm7372, %v1727, 0.0
        %v7405 = vsel %vm7373, %v1909, 0.0
        %v7406 = vsel %vm7374, %v1913, 0.0
        %v7407 = vsel %vm7375, %v2095, 0.0
        %v7408 = vsel %vm7376, %v2099, 0.0
        %v7409 = vsel %vm7377, %v2281, 0.0
        %v7410 = vsel %vm7378, %v2285, 0.0
        %v7411 = vsel %vm7379, %v2467, 0.0
        %v7412 = vsel %vm7380, %v2471, 0.0
        %v7413 = vsel %vm7381, %v2653, 0.0
        %v7414 = vsel %vm7382, %v2657, 0.0
        %v7415 = vsel %vm7383, %v2839, 0.0
        %v7416 = vsel %vm7384, %v2843, 0.0
        %v7417 = vsel %vm7385, %v3025, 0.0
        %v7418 = vsel %vm7386, %v3029, 0.0
        %v7419 = vsel %vm7387, %v3211, 0.0
        %v7420 = vsel %vm7388, %v3215, 0.0
        %v7421 = vsel %vm7389, %v3397, 0.0
        %v7422 = vsel %vm7390, %v3401, 0.0
        %v7423 = vsel %vm7391, %v3583, 0.0
        %v7424 = vsel %vm7392, %v3587, 0.0
        %v7425 = vsel %vm7393, %v3769, 0.0
        %v7426 = vsel %vm7394, %v3773, 0.0
        %v7427 = vsel %vm7395, %v3955, 0.0
        %v7428 = vsel %vm7396, %v3959, 0.0
        %v7429 = vsel %vm7397, %v4141, 0.0
        %v7430 = vsel %vm7398, %v4145, 0.0
        %v7431 = vsel %vm7399, %v4327, 0.0
        %v7432 = vsel %vm7400, %v4331, 0.0
        %v7433 = vsel %vm7401, %v4513, 0.0
        %v7434 = vsel %vm7402, %v4517, 0.0
        %v7435 = vsel %vm5034, %v7403, 0.0
        %7436 = vadd.xlane.f32.xlu0 %v7435
        %v7437 = vpop.xlane.xlu0 %7436
        %v7438 = vsel %vm5034, %v7404, 0.0
        %7439 = vadd.xlane.f32.xlu0 %v7438
        %v7440 = vpop.xlane.xlu0 %7439
        %v7441 = vsel %vm5034, %v7405, 0.0
        %7442 = vadd.xlane.f32.xlu0 %v7441
        %v7443 = vpop.xlane.xlu0 %7442
        %v7444 = vsel %vm5034, %v7406, 0.0
        %7445 = vadd.xlane.f32.xlu0 %v7444
        %v7446 = vpop.xlane.xlu0 %7445
        %v7447 = vsel %vm5034, %v7407, 0.0
        %7448 = vadd.xlane.f32.xlu0 %v7447
        %v7449 = vpop.xlane.xlu0 %7448
        %v7450 = vsel %vm5034, %v7408, 0.0
        %7451 = vadd.xlane.f32.xlu0 %v7450
        %v7452 = vpop.xlane.xlu0 %7451
        %v7453 = vsel %vm5034, %v7409, 0.0
        %7454 = vadd.xlane.f32.xlu0 %v7453
        %v7455 = vpop.xlane.xlu0 %7454
        %v7456 = vsel %vm5034, %v7410, 0.0
        %7457 = vadd.xlane.f32.xlu0 %v7456
        %v7458 = vpop.xlane.xlu0 %7457
        %v7459 = vsel %vm5034, %v7411, 0.0
        %7460 = vadd.xlane.f32.xlu0 %v7459
        %v7461 = vpop.xlane.xlu0 %7460
        %v7462 = vsel %vm5034, %v7412, 0.0
        %7463 = vadd.xlane.f32.xlu0 %v7462
        %v7464 = vpop.xlane.xlu0 %7463
        %v7465 = vsel %vm5034, %v7413, 0.0
        %7466 = vadd.xlane.f32.xlu0 %v7465
        %v7467 = vpop.xlane.xlu0 %7466
        %v7468 = vsel %vm5034, %v7414, 0.0
        %7469 = vadd.xlane.f32.xlu0 %v7468
        %v7470 = vpop.xlane.xlu0 %7469
        %v7471 = vsel %vm5034, %v7415, 0.0
        %7472 = vadd.xlane.f32.xlu0 %v7471
        %v7473 = vpop.xlane.xlu0 %7472
        %v7474 = vsel %vm5034, %v7416, 0.0
        %7475 = vadd.xlane.f32.xlu0 %v7474
        %v7476 = vpop.xlane.xlu0 %7475
        %v7477 = vsel %vm5034, %v7417, 0.0
        %7478 = vadd.xlane.f32.xlu0 %v7477
        %v7479 = vpop.xlane.xlu0 %7478
        %v7480 = vsel %vm5034, %v7418, 0.0
        %7481 = vadd.xlane.f32.xlu0 %v7480
        %v7482 = vpop.xlane.xlu0 %7481
        %v7483 = vsel %vm5034, %v7419, 0.0
        %7484 = vadd.xlane.f32.xlu0 %v7483
        %v7485 = vpop.xlane.xlu0 %7484
        %v7486 = vsel %vm5034, %v7420, 0.0
        %7487 = vadd.xlane.f32.xlu0 %v7486
        %v7488 = vpop.xlane.xlu0 %7487
        %v7489 = vsel %vm5034, %v7421, 0.0
        %7490 = vadd.xlane.f32.xlu0 %v7489
        %v7491 = vpop.xlane.xlu0 %7490
        %v7492 = vsel %vm5034, %v7422, 0.0
        %7493 = vadd.xlane.f32.xlu0 %v7492
        %v7494 = vpop.xlane.xlu0 %7493
        %v7495 = vsel %vm5034, %v7423, 0.0
        %7496 = vadd.xlane.f32.xlu0 %v7495
        %v7497 = vpop.xlane.xlu0 %7496
        %v7498 = vsel %vm5034, %v7424, 0.0
        %7499 = vadd.xlane.f32.xlu0 %v7498
        %v7500 = vpop.xlane.xlu0 %7499
        %v7501 = vsel %vm5034, %v7425, 0.0
        %7502 = vadd.xlane.f32.xlu0 %v7501
        %v7503 = vpop.xlane.xlu0 %7502
        %v7504 = vsel %vm5034, %v7426, 0.0
        %7505 = vadd.xlane.f32.xlu0 %v7504
        %v7506 = vpop.xlane.xlu0 %7505
        %v7507 = vsel %vm5034, %v7427, 0.0
        %7508 = vadd.xlane.f32.xlu0 %v7507
        %v7509 = vpop.xlane.xlu0 %7508
        %v7510 = vsel %vm5034, %v7428, 0.0
        %7511 = vadd.xlane.f32.xlu0 %v7510
        %v7512 = vpop.xlane.xlu0 %7511
        %v7513 = vsel %vm5034, %v7429, 0.0
        %7514 = vadd.xlane.f32.xlu0 %v7513
        %v7515 = vpop.xlane.xlu0 %7514
        %v7516 = vsel %vm5034, %v7430, 0.0
        %7517 = vadd.xlane.f32.xlu0 %v7516
        %v7518 = vpop.xlane.xlu0 %7517
        %v7519 = vsel %vm5034, %v7431, 0.0
        %7520 = vadd.xlane.f32.xlu0 %v7519
        %v7521 = vpop.xlane.xlu0 %7520
        %v7522 = vsel %vm5034, %v7432, 0.0
        %7523 = vadd.xlane.f32.xlu0 %v7522
        %v7524 = vpop.xlane.xlu0 %7523
        %v7525 = vsel %vm5034, %v7433, 0.0
        %7526 = vadd.xlane.f32.xlu0 %v7525
        %v7527 = vpop.xlane.xlu0 %7526
        %v7528 = vsel %vm5034, %v7434, 0.0
        %7529 = vadd.xlane.f32.xlu0 %v7528
        %v7530 = vpop.xlane.xlu0 %7529
        %vm7531 = vcmp.eq.s32.totalorder %v4938, 32
        %vm7532 = vcmp.eq.s32.totalorder %v4939, 32
        %vm7533 = vcmp.eq.s32.totalorder %v4940, 32
        %vm7534 = vcmp.eq.s32.totalorder %v4941, 32
        %vm7535 = vcmp.eq.s32.totalorder %v4942, 32
        %vm7536 = vcmp.eq.s32.totalorder %v4943, 32
        %vm7537 = vcmp.eq.s32.totalorder %v4944, 32
        %vm7538 = vcmp.eq.s32.totalorder %v4945, 32
        %vm7539 = vcmp.eq.s32.totalorder %v4946, 32
        %vm7540 = vcmp.eq.s32.totalorder %v4947, 32
        %vm7541 = vcmp.eq.s32.totalorder %v4948, 32
        %vm7542 = vcmp.eq.s32.totalorder %v4949, 32
        %vm7543 = vcmp.eq.s32.totalorder %v4950, 32
        %vm7544 = vcmp.eq.s32.totalorder %v4951, 32
        %vm7545 = vcmp.eq.s32.totalorder %v4952, 32
        %vm7546 = vcmp.eq.s32.totalorder %v4953, 32
        %vm7547 = vcmp.eq.s32.totalorder %v4954, 32
        %vm7548 = vcmp.eq.s32.totalorder %v4955, 32
        %vm7549 = vcmp.eq.s32.totalorder %v4956, 32
        %vm7550 = vcmp.eq.s32.totalorder %v4957, 32
        %vm7551 = vcmp.eq.s32.totalorder %v4958, 32
        %vm7552 = vcmp.eq.s32.totalorder %v4959, 32
        %vm7553 = vcmp.eq.s32.totalorder %v4960, 32
        %vm7554 = vcmp.eq.s32.totalorder %v4961, 32
        %vm7555 = vcmp.eq.s32.totalorder %v4962, 32
        %vm7556 = vcmp.eq.s32.totalorder %v4963, 32
        %vm7557 = vcmp.eq.s32.totalorder %v4964, 32
        %vm7558 = vcmp.eq.s32.totalorder %v4965, 32
        %vm7559 = vcmp.eq.s32.totalorder %v4966, 32
        %vm7560 = vcmp.eq.s32.totalorder %v4967, 32
        %vm7561 = vcmp.eq.s32.totalorder %v4968, 32
        %vm7562 = vcmp.eq.s32.totalorder %v4969, 32
        %v7563 = vsel %vm7531, %v1723, 0.0
        %v7564 = vsel %vm7532, %v1727, 0.0
        %v7565 = vsel %vm7533, %v1909, 0.0
        %v7566 = vsel %vm7534, %v1913, 0.0
        %v7567 = vsel %vm7535, %v2095, 0.0
        %v7568 = vsel %vm7536, %v2099, 0.0
        %v7569 = vsel %vm7537, %v2281, 0.0
        %v7570 = vsel %vm7538, %v2285, 0.0
        %v7571 = vsel %vm7539, %v2467, 0.0
        %v7572 = vsel %vm7540, %v2471, 0.0
        %v7573 = vsel %vm7541, %v2653, 0.0
        %v7574 = vsel %vm7542, %v2657, 0.0
        %v7575 = vsel %vm7543, %v2839, 0.0
        %v7576 = vsel %vm7544, %v2843, 0.0
        %v7577 = vsel %vm7545, %v3025, 0.0
        %v7578 = vsel %vm7546, %v3029, 0.0
        %v7579 = vsel %vm7547, %v3211, 0.0
        %v7580 = vsel %vm7548, %v3215, 0.0
        %v7581 = vsel %vm7549, %v3397, 0.0
        %v7582 = vsel %vm7550, %v3401, 0.0
        %v7583 = vsel %vm7551, %v3583, 0.0
        %v7584 = vsel %vm7552, %v3587, 0.0
        %v7585 = vsel %vm7553, %v3769, 0.0
        %v7586 = vsel %vm7554, %v3773, 0.0
        %v7587 = vsel %vm7555, %v3955, 0.0
        %v7588 = vsel %vm7556, %v3959, 0.0
        %v7589 = vsel %vm7557, %v4141, 0.0
        %v7590 = vsel %vm7558, %v4145, 0.0
        %v7591 = vsel %vm7559, %v4327, 0.0
        %v7592 = vsel %vm7560, %v4331, 0.0
        %v7593 = vsel %vm7561, %v4513, 0.0
        %v7594 = vsel %vm7562, %v4517, 0.0
        %v7595 = vsel %vm5034, %v7563, 0.0
        %7596 = vadd.xlane.f32.xlu0 %v7595
        %v7597 = vpop.xlane.xlu0 %7596
        %v7598 = vsel %vm5034, %v7564, 0.0
        %7599 = vadd.xlane.f32.xlu0 %v7598
        %v7600 = vpop.xlane.xlu0 %7599
        %v7601 = vsel %vm5034, %v7565, 0.0
        %7602 = vadd.xlane.f32.xlu0 %v7601
        %v7603 = vpop.xlane.xlu0 %7602
        %v7604 = vsel %vm5034, %v7566, 0.0
        %7605 = vadd.xlane.f32.xlu0 %v7604
        %v7606 = vpop.xlane.xlu0 %7605
        %v7607 = vsel %vm5034, %v7567, 0.0
        %7608 = vadd.xlane.f32.xlu0 %v7607
        %v7609 = vpop.xlane.xlu0 %7608
        %v7610 = vsel %vm5034, %v7568, 0.0
        %7611 = vadd.xlane.f32.xlu0 %v7610
        %v7612 = vpop.xlane.xlu0 %7611
        %v7613 = vsel %vm5034, %v7569, 0.0
        %7614 = vadd.xlane.f32.xlu0 %v7613
        %v7615 = vpop.xlane.xlu0 %7614
        %v7616 = vsel %vm5034, %v7570, 0.0
        %7617 = vadd.xlane.f32.xlu0 %v7616
        %v7618 = vpop.xlane.xlu0 %7617
        %v7619 = vsel %vm5034, %v7571, 0.0
        %7620 = vadd.xlane.f32.xlu0 %v7619
        %v7621 = vpop.xlane.xlu0 %7620
        %v7622 = vsel %vm5034, %v7572, 0.0
        %7623 = vadd.xlane.f32.xlu0 %v7622
        %v7624 = vpop.xlane.xlu0 %7623
        %v7625 = vsel %vm5034, %v7573, 0.0
        %7626 = vadd.xlane.f32.xlu0 %v7625
        %v7627 = vpop.xlane.xlu0 %7626
        %v7628 = vsel %vm5034, %v7574, 0.0
        %7629 = vadd.xlane.f32.xlu0 %v7628
        %v7630 = vpop.xlane.xlu0 %7629
        %v7631 = vsel %vm5034, %v7575, 0.0
        %7632 = vadd.xlane.f32.xlu0 %v7631
        %v7633 = vpop.xlane.xlu0 %7632
        %v7634 = vsel %vm5034, %v7576, 0.0
        %7635 = vadd.xlane.f32.xlu0 %v7634
        %v7636 = vpop.xlane.xlu0 %7635
        %v7637 = vsel %vm5034, %v7577, 0.0
        %7638 = vadd.xlane.f32.xlu0 %v7637
        %v7639 = vpop.xlane.xlu0 %7638
        %v7640 = vsel %vm5034, %v7578, 0.0
        %7641 = vadd.xlane.f32.xlu0 %v7640
        %v7642 = vpop.xlane.xlu0 %7641
        %v7643 = vsel %vm5034, %v7579, 0.0
        %7644 = vadd.xlane.f32.xlu0 %v7643
        %v7645 = vpop.xlane.xlu0 %7644
        %v7646 = vsel %vm5034, %v7580, 0.0
        %7647 = vadd.xlane.f32.xlu0 %v7646
        %v7648 = vpop.xlane.xlu0 %7647
        %v7649 = vsel %vm5034, %v7581, 0.0
        %7650 = vadd.xlane.f32.xlu0 %v7649
        %v7651 = vpop.xlane.xlu0 %7650
        %v7652 = vsel %vm5034, %v7582, 0.0
        %7653 = vadd.xlane.f32.xlu0 %v7652
        %v7654 = vpop.xlane.xlu0 %7653
        %v7655 = vsel %vm5034, %v7583, 0.0
        %7656 = vadd.xlane.f32.xlu0 %v7655
        %v7657 = vpop.xlane.xlu0 %7656
        %v7658 = vsel %vm5034, %v7584, 0.0
        %7659 = vadd.xlane.f32.xlu0 %v7658
        %v7660 = vpop.xlane.xlu0 %7659
        %v7661 = vsel %vm5034, %v7585, 0.0
        %7662 = vadd.xlane.f32.xlu0 %v7661
        %v7663 = vpop.xlane.xlu0 %7662
        %v7664 = vsel %vm5034, %v7586, 0.0
        %7665 = vadd.xlane.f32.xlu0 %v7664
        %v7666 = vpop.xlane.xlu0 %7665
        %v7667 = vsel %vm5034, %v7587, 0.0
        %7668 = vadd.xlane.f32.xlu0 %v7667
        %v7669 = vpop.xlane.xlu0 %7668
        %v7670 = vsel %vm5034, %v7588, 0.0
        %7671 = vadd.xlane.f32.xlu0 %v7670
        %v7672 = vpop.xlane.xlu0 %7671
        %v7673 = vsel %vm5034, %v7589, 0.0
        %7674 = vadd.xlane.f32.xlu0 %v7673
        %v7675 = vpop.xlane.xlu0 %7674
        %v7676 = vsel %vm5034, %v7590, 0.0
        %7677 = vadd.xlane.f32.xlu0 %v7676
        %v7678 = vpop.xlane.xlu0 %7677
        %v7679 = vsel %vm5034, %v7591, 0.0
        %7680 = vadd.xlane.f32.xlu0 %v7679
        %v7681 = vpop.xlane.xlu0 %7680
        %v7682 = vsel %vm5034, %v7592, 0.0
        %7683 = vadd.xlane.f32.xlu0 %v7682
        %v7684 = vpop.xlane.xlu0 %7683
        %v7685 = vsel %vm5034, %v7593, 0.0
        %7686 = vadd.xlane.f32.xlu0 %v7685
        %v7687 = vpop.xlane.xlu0 %7686
        %v7688 = vsel %vm5034, %v7594, 0.0
        %7689 = vadd.xlane.f32.xlu0 %v7688
        %v7690 = vpop.xlane.xlu0 %7689
        %vm7691 = vcmp.eq.s32.totalorder %v4938, 34
        %vm7692 = vcmp.eq.s32.totalorder %v4939, 34
        %vm7693 = vcmp.eq.s32.totalorder %v4940, 34
        %vm7694 = vcmp.eq.s32.totalorder %v4941, 34
        %vm7695 = vcmp.eq.s32.totalorder %v4942, 34
        %vm7696 = vcmp.eq.s32.totalorder %v4943, 34
        %vm7697 = vcmp.eq.s32.totalorder %v4944, 34
        %vm7698 = vcmp.eq.s32.totalorder %v4945, 34
        %vm7699 = vcmp.eq.s32.totalorder %v4946, 34
        %vm7700 = vcmp.eq.s32.totalorder %v4947, 34
        %vm7701 = vcmp.eq.s32.totalorder %v4948, 34
        %vm7702 = vcmp.eq.s32.totalorder %v4949, 34
        %vm7703 = vcmp.eq.s32.totalorder %v4950, 34
        %vm7704 = vcmp.eq.s32.totalorder %v4951, 34
        %vm7705 = vcmp.eq.s32.totalorder %v4952, 34
        %vm7706 = vcmp.eq.s32.totalorder %v4953, 34
        %vm7707 = vcmp.eq.s32.totalorder %v4954, 34
        %vm7708 = vcmp.eq.s32.totalorder %v4955, 34
        %vm7709 = vcmp.eq.s32.totalorder %v4956, 34
        %vm7710 = vcmp.eq.s32.totalorder %v4957, 34
        %vm7711 = vcmp.eq.s32.totalorder %v4958, 34
        %vm7712 = vcmp.eq.s32.totalorder %v4959, 34
        %vm7713 = vcmp.eq.s32.totalorder %v4960, 34
        %vm7714 = vcmp.eq.s32.totalorder %v4961, 34
        %vm7715 = vcmp.eq.s32.totalorder %v4962, 34
        %vm7716 = vcmp.eq.s32.totalorder %v4963, 34
        %vm7717 = vcmp.eq.s32.totalorder %v4964, 34
        %vm7718 = vcmp.eq.s32.totalorder %v4965, 34
        %vm7719 = vcmp.eq.s32.totalorder %v4966, 34
        %vm7720 = vcmp.eq.s32.totalorder %v4967, 34
        %vm7721 = vcmp.eq.s32.totalorder %v4968, 34
        %vm7722 = vcmp.eq.s32.totalorder %v4969, 34
        %v7723 = vsel %vm7691, %v1723, 0.0
        %v7724 = vsel %vm7692, %v1727, 0.0
        %v7725 = vsel %vm7693, %v1909, 0.0
        %v7726 = vsel %vm7694, %v1913, 0.0
        %v7727 = vsel %vm7695, %v2095, 0.0
        %v7728 = vsel %vm7696, %v2099, 0.0
        %v7729 = vsel %vm7697, %v2281, 0.0
        %v7730 = vsel %vm7698, %v2285, 0.0
        %v7731 = vsel %vm7699, %v2467, 0.0
        %v7732 = vsel %vm7700, %v2471, 0.0
        %v7733 = vsel %vm7701, %v2653, 0.0
        %v7734 = vsel %vm7702, %v2657, 0.0
        %v7735 = vsel %vm7703, %v2839, 0.0
        %v7736 = vsel %vm7704, %v2843, 0.0
        %v7737 = vsel %vm7705, %v3025, 0.0
        %v7738 = vsel %vm7706, %v3029, 0.0
        %v7739 = vsel %vm7707, %v3211, 0.0
        %v7740 = vsel %vm7708, %v3215, 0.0
        %v7741 = vsel %vm7709, %v3397, 0.0
        %v7742 = vsel %vm7710, %v3401, 0.0
        %v7743 = vsel %vm7711, %v3583, 0.0
        %v7744 = vsel %vm7712, %v3587, 0.0
        %v7745 = vsel %vm7713, %v3769, 0.0
        %v7746 = vsel %vm7714, %v3773, 0.0
        %v7747 = vsel %vm7715, %v3955, 0.0
        %v7748 = vsel %vm7716, %v3959, 0.0
        %v7749 = vsel %vm7717, %v4141, 0.0
        %v7750 = vsel %vm7718, %v4145, 0.0
        %v7751 = vsel %vm7719, %v4327, 0.0
        %v7752 = vsel %vm7720, %v4331, 0.0
        %v7753 = vsel %vm7721, %v4513, 0.0
        %v7754 = vsel %vm7722, %v4517, 0.0
        %v7755 = vsel %vm5034, %v7723, 0.0
        %7756 = vadd.xlane.f32.xlu0 %v7755
        %v7757 = vpop.xlane.xlu0 %7756
        %v7758 = vsel %vm5034, %v7724, 0.0
        %7759 = vadd.xlane.f32.xlu0 %v7758
        %v7760 = vpop.xlane.xlu0 %7759
        %v7761 = vsel %vm5034, %v7725, 0.0
        %7762 = vadd.xlane.f32.xlu0 %v7761
        %v7763 = vpop.xlane.xlu0 %7762
        %v7764 = vsel %vm5034, %v7726, 0.0
        %7765 = vadd.xlane.f32.xlu0 %v7764
        %v7766 = vpop.xlane.xlu0 %7765
        %v7767 = vsel %vm5034, %v7727, 0.0
        %7768 = vadd.xlane.f32.xlu0 %v7767
        %v7769 = vpop.xlane.xlu0 %7768
        %v7770 = vsel %vm5034, %v7728, 0.0
        %7771 = vadd.xlane.f32.xlu0 %v7770
        %v7772 = vpop.xlane.xlu0 %7771
        %v7773 = vsel %vm5034, %v7729, 0.0
        %7774 = vadd.xlane.f32.xlu0 %v7773
        %v7775 = vpop.xlane.xlu0 %7774
        %v7776 = vsel %vm5034, %v7730, 0.0
        %7777 = vadd.xlane.f32.xlu0 %v7776
        %v7778 = vpop.xlane.xlu0 %7777
        %v7779 = vsel %vm5034, %v7731, 0.0
        %7780 = vadd.xlane.f32.xlu0 %v7779
        %v7781 = vpop.xlane.xlu0 %7780
        %v7782 = vsel %vm5034, %v7732, 0.0
        %7783 = vadd.xlane.f32.xlu0 %v7782
        %v7784 = vpop.xlane.xlu0 %7783
        %v7785 = vsel %vm5034, %v7733, 0.0
        %7786 = vadd.xlane.f32.xlu0 %v7785
        %v7787 = vpop.xlane.xlu0 %7786
        %v7788 = vsel %vm5034, %v7734, 0.0
        %7789 = vadd.xlane.f32.xlu0 %v7788
        %v7790 = vpop.xlane.xlu0 %7789
        %v7791 = vsel %vm5034, %v7735, 0.0
        %7792 = vadd.xlane.f32.xlu0 %v7791
        %v7793 = vpop.xlane.xlu0 %7792
        %v7794 = vsel %vm5034, %v7736, 0.0
        %7795 = vadd.xlane.f32.xlu0 %v7794
        %v7796 = vpop.xlane.xlu0 %7795
        %v7797 = vsel %vm5034, %v7737, 0.0
        %7798 = vadd.xlane.f32.xlu0 %v7797
        %v7799 = vpop.xlane.xlu0 %7798
        %v7800 = vsel %vm5034, %v7738, 0.0
        %7801 = vadd.xlane.f32.xlu0 %v7800
        %v7802 = vpop.xlane.xlu0 %7801
        %v7803 = vsel %vm5034, %v7739, 0.0
        %7804 = vadd.xlane.f32.xlu0 %v7803
        %v7805 = vpop.xlane.xlu0 %7804
        %v7806 = vsel %vm5034, %v7740, 0.0
        %7807 = vadd.xlane.f32.xlu0 %v7806
        %v7808 = vpop.xlane.xlu0 %7807
        %v7809 = vsel %vm5034, %v7741, 0.0
        %7810 = vadd.xlane.f32.xlu0 %v7809
        %v7811 = vpop.xlane.xlu0 %7810
        %v7812 = vsel %vm5034, %v7742, 0.0
        %7813 = vadd.xlane.f32.xlu0 %v7812
        %v7814 = vpop.xlane.xlu0 %7813
        %v7815 = vsel %vm5034, %v7743, 0.0
        %7816 = vadd.xlane.f32.xlu0 %v7815
        %v7817 = vpop.xlane.xlu0 %7816
        %v7818 = vsel %vm5034, %v7744, 0.0
        %7819 = vadd.xlane.f32.xlu0 %v7818
        %v7820 = vpop.xlane.xlu0 %7819
        %v7821 = vsel %vm5034, %v7745, 0.0
        %7822 = vadd.xlane.f32.xlu0 %v7821
        %v7823 = vpop.xlane.xlu0 %7822
        %v7824 = vsel %vm5034, %v7746, 0.0
        %7825 = vadd.xlane.f32.xlu0 %v7824
        %v7826 = vpop.xlane.xlu0 %7825
        %v7827 = vsel %vm5034, %v7747, 0.0
        %7828 = vadd.xlane.f32.xlu0 %v7827
        %v7829 = vpop.xlane.xlu0 %7828
        %v7830 = vsel %vm5034, %v7748, 0.0
        %7831 = vadd.xlane.f32.xlu0 %v7830
        %v7832 = vpop.xlane.xlu0 %7831
        %v7833 = vsel %vm5034, %v7749, 0.0
        %7834 = vadd.xlane.f32.xlu0 %v7833
        %v7835 = vpop.xlane.xlu0 %7834
        %v7836 = vsel %vm5034, %v7750, 0.0
        %7837 = vadd.xlane.f32.xlu0 %v7836
        %v7838 = vpop.xlane.xlu0 %7837
        %v7839 = vsel %vm5034, %v7751, 0.0
        %7840 = vadd.xlane.f32.xlu0 %v7839
        %v7841 = vpop.xlane.xlu0 %7840
        %v7842 = vsel %vm5034, %v7752, 0.0
        %7843 = vadd.xlane.f32.xlu0 %v7842
        %v7844 = vpop.xlane.xlu0 %7843
        %v7845 = vsel %vm5034, %v7753, 0.0
        %7846 = vadd.xlane.f32.xlu0 %v7845
        %v7847 = vpop.xlane.xlu0 %7846
        %v7848 = vsel %vm5034, %v7754, 0.0
        %7849 = vadd.xlane.f32.xlu0 %v7848
        %v7850 = vpop.xlane.xlu0 %7849
        %vm7851 = vcmp.eq.s32.totalorder %v4938, 36
        %vm7852 = vcmp.eq.s32.totalorder %v4939, 36
        %vm7853 = vcmp.eq.s32.totalorder %v4940, 36
        %vm7854 = vcmp.eq.s32.totalorder %v4941, 36
        %vm7855 = vcmp.eq.s32.totalorder %v4942, 36
        %vm7856 = vcmp.eq.s32.totalorder %v4943, 36
        %vm7857 = vcmp.eq.s32.totalorder %v4944, 36
        %vm7858 = vcmp.eq.s32.totalorder %v4945, 36
        %vm7859 = vcmp.eq.s32.totalorder %v4946, 36
        %vm7860 = vcmp.eq.s32.totalorder %v4947, 36
        %vm7861 = vcmp.eq.s32.totalorder %v4948, 36
        %vm7862 = vcmp.eq.s32.totalorder %v4949, 36
        %vm7863 = vcmp.eq.s32.totalorder %v4950, 36
        %vm7864 = vcmp.eq.s32.totalorder %v4951, 36
        %vm7865 = vcmp.eq.s32.totalorder %v4952, 36
        %vm7866 = vcmp.eq.s32.totalorder %v4953, 36
        %vm7867 = vcmp.eq.s32.totalorder %v4954, 36
        %vm7868 = vcmp.eq.s32.totalorder %v4955, 36
        %vm7869 = vcmp.eq.s32.totalorder %v4956, 36
        %vm7870 = vcmp.eq.s32.totalorder %v4957, 36
        %vm7871 = vcmp.eq.s32.totalorder %v4958, 36
        %vm7872 = vcmp.eq.s32.totalorder %v4959, 36
        %vm7873 = vcmp.eq.s32.totalorder %v4960, 36
        %vm7874 = vcmp.eq.s32.totalorder %v4961, 36
        %vm7875 = vcmp.eq.s32.totalorder %v4962, 36
        %vm7876 = vcmp.eq.s32.totalorder %v4963, 36
        %vm7877 = vcmp.eq.s32.totalorder %v4964, 36
        %vm7878 = vcmp.eq.s32.totalorder %v4965, 36
        %vm7879 = vcmp.eq.s32.totalorder %v4966, 36
        %vm7880 = vcmp.eq.s32.totalorder %v4967, 36
        %vm7881 = vcmp.eq.s32.totalorder %v4968, 36
        %vm7882 = vcmp.eq.s32.totalorder %v4969, 36
        %v7883 = vsel %vm7851, %v1723, 0.0
        %v7884 = vsel %vm7852, %v1727, 0.0
        %v7885 = vsel %vm7853, %v1909, 0.0
        %v7886 = vsel %vm7854, %v1913, 0.0
        %v7887 = vsel %vm7855, %v2095, 0.0
        %v7888 = vsel %vm7856, %v2099, 0.0
        %v7889 = vsel %vm7857, %v2281, 0.0
        %v7890 = vsel %vm7858, %v2285, 0.0
        %v7891 = vsel %vm7859, %v2467, 0.0
        %v7892 = vsel %vm7860, %v2471, 0.0
        %v7893 = vsel %vm7861, %v2653, 0.0
        %v7894 = vsel %vm7862, %v2657, 0.0
        %v7895 = vsel %vm7863, %v2839, 0.0
        %v7896 = vsel %vm7864, %v2843, 0.0
        %v7897 = vsel %vm7865, %v3025, 0.0
        %v7898 = vsel %vm7866, %v3029, 0.0
        %v7899 = vsel %vm7867, %v3211, 0.0
        %v7900 = vsel %vm7868, %v3215, 0.0
        %v7901 = vsel %vm7869, %v3397, 0.0
        %v7902 = vsel %vm7870, %v3401, 0.0
        %v7903 = vsel %vm7871, %v3583, 0.0
        %v7904 = vsel %vm7872, %v3587, 0.0
        %v7905 = vsel %vm7873, %v3769, 0.0
        %v7906 = vsel %vm7874, %v3773, 0.0
        %v7907 = vsel %vm7875, %v3955, 0.0
        %v7908 = vsel %vm7876, %v3959, 0.0
        %v7909 = vsel %vm7877, %v4141, 0.0
        %v7910 = vsel %vm7878, %v4145, 0.0
        %v7911 = vsel %vm7879, %v4327, 0.0
        %v7912 = vsel %vm7880, %v4331, 0.0
        %v7913 = vsel %vm7881, %v4513, 0.0
        %v7914 = vsel %vm7882, %v4517, 0.0
        %v7915 = vsel %vm5034, %v7883, 0.0
        %7916 = vadd.xlane.f32.xlu0 %v7915
        %v7917 = vpop.xlane.xlu0 %7916
        %v7918 = vsel %vm5034, %v7884, 0.0
        %7919 = vadd.xlane.f32.xlu0 %v7918
        %v7920 = vpop.xlane.xlu0 %7919
        %v7921 = vsel %vm5034, %v7885, 0.0
        %7922 = vadd.xlane.f32.xlu0 %v7921
        %v7923 = vpop.xlane.xlu0 %7922
        %v7924 = vsel %vm5034, %v7886, 0.0
        %7925 = vadd.xlane.f32.xlu0 %v7924
        %v7926 = vpop.xlane.xlu0 %7925
        %v7927 = vsel %vm5034, %v7887, 0.0
        %7928 = vadd.xlane.f32.xlu0 %v7927
        %v7929 = vpop.xlane.xlu0 %7928
        %v7930 = vsel %vm5034, %v7888, 0.0
        %7931 = vadd.xlane.f32.xlu0 %v7930
        %v7932 = vpop.xlane.xlu0 %7931
        %v7933 = vsel %vm5034, %v7889, 0.0
        %7934 = vadd.xlane.f32.xlu0 %v7933
        %v7935 = vpop.xlane.xlu0 %7934
        %v7936 = vsel %vm5034, %v7890, 0.0
        %7937 = vadd.xlane.f32.xlu0 %v7936
        %v7938 = vpop.xlane.xlu0 %7937
        %v7939 = vsel %vm5034, %v7891, 0.0
        %7940 = vadd.xlane.f32.xlu0 %v7939
        %v7941 = vpop.xlane.xlu0 %7940
        %v7942 = vsel %vm5034, %v7892, 0.0
        %7943 = vadd.xlane.f32.xlu0 %v7942
        %v7944 = vpop.xlane.xlu0 %7943
        %v7945 = vsel %vm5034, %v7893, 0.0
        %7946 = vadd.xlane.f32.xlu0 %v7945
        %v7947 = vpop.xlane.xlu0 %7946
        %v7948 = vsel %vm5034, %v7894, 0.0
        %7949 = vadd.xlane.f32.xlu0 %v7948
        %v7950 = vpop.xlane.xlu0 %7949
        %v7951 = vsel %vm5034, %v7895, 0.0
        %7952 = vadd.xlane.f32.xlu0 %v7951
        %v7953 = vpop.xlane.xlu0 %7952
        %v7954 = vsel %vm5034, %v7896, 0.0
        %7955 = vadd.xlane.f32.xlu0 %v7954
        %v7956 = vpop.xlane.xlu0 %7955
        %v7957 = vsel %vm5034, %v7897, 0.0
        %7958 = vadd.xlane.f32.xlu0 %v7957
        %v7959 = vpop.xlane.xlu0 %7958
        %v7960 = vsel %vm5034, %v7898, 0.0
        %7961 = vadd.xlane.f32.xlu0 %v7960
        %v7962 = vpop.xlane.xlu0 %7961
        %v7963 = vsel %vm5034, %v7899, 0.0
        %7964 = vadd.xlane.f32.xlu0 %v7963
        %v7965 = vpop.xlane.xlu0 %7964
        %v7966 = vsel %vm5034, %v7900, 0.0
        %7967 = vadd.xlane.f32.xlu0 %v7966
        %v7968 = vpop.xlane.xlu0 %7967
        %v7969 = vsel %vm5034, %v7901, 0.0
        %7970 = vadd.xlane.f32.xlu0 %v7969
        %v7971 = vpop.xlane.xlu0 %7970
        %v7972 = vsel %vm5034, %v7902, 0.0
        %7973 = vadd.xlane.f32.xlu0 %v7972
        %v7974 = vpop.xlane.xlu0 %7973
        %v7975 = vsel %vm5034, %v7903, 0.0
        %7976 = vadd.xlane.f32.xlu0 %v7975
        %v7977 = vpop.xlane.xlu0 %7976
        %v7978 = vsel %vm5034, %v7904, 0.0
        %7979 = vadd.xlane.f32.xlu0 %v7978
        %v7980 = vpop.xlane.xlu0 %7979
        %v7981 = vsel %vm5034, %v7905, 0.0
        %7982 = vadd.xlane.f32.xlu0 %v7981
        %v7983 = vpop.xlane.xlu0 %7982
        %v7984 = vsel %vm5034, %v7906, 0.0
        %7985 = vadd.xlane.f32.xlu0 %v7984
        %v7986 = vpop.xlane.xlu0 %7985
        %v7987 = vsel %vm5034, %v7907, 0.0
        %7988 = vadd.xlane.f32.xlu0 %v7987
        %v7989 = vpop.xlane.xlu0 %7988
        %v7990 = vsel %vm5034, %v7908, 0.0
        %7991 = vadd.xlane.f32.xlu0 %v7990
        %v7992 = vpop.xlane.xlu0 %7991
        %v7993 = vsel %vm5034, %v7909, 0.0
        %7994 = vadd.xlane.f32.xlu0 %v7993
        %v7995 = vpop.xlane.xlu0 %7994
        %v7996 = vsel %vm5034, %v7910, 0.0
        %7997 = vadd.xlane.f32.xlu0 %v7996
        %v7998 = vpop.xlane.xlu0 %7997
        %v7999 = vsel %vm5034, %v7911, 0.0
        %8000 = vadd.xlane.f32.xlu0 %v7999
        %v8001 = vpop.xlane.xlu0 %8000
        %v8002 = vsel %vm5034, %v7912, 0.0
        %8003 = vadd.xlane.f32.xlu0 %v8002
        %v8004 = vpop.xlane.xlu0 %8003
        %v8005 = vsel %vm5034, %v7913, 0.0
        %8006 = vadd.xlane.f32.xlu0 %v8005
        %v8007 = vpop.xlane.xlu0 %8006
        %v8008 = vsel %vm5034, %v7914, 0.0
        %8009 = vadd.xlane.f32.xlu0 %v8008
        %v8010 = vpop.xlane.xlu0 %8009
        %vm8011 = vcmp.eq.s32.totalorder %v4938, 38
        %vm8012 = vcmp.eq.s32.totalorder %v4939, 38
        %vm8013 = vcmp.eq.s32.totalorder %v4940, 38
        %vm8014 = vcmp.eq.s32.totalorder %v4941, 38
        %vm8015 = vcmp.eq.s32.totalorder %v4942, 38
        %vm8016 = vcmp.eq.s32.totalorder %v4943, 38
        %vm8017 = vcmp.eq.s32.totalorder %v4944, 38
        %vm8018 = vcmp.eq.s32.totalorder %v4945, 38
        %vm8019 = vcmp.eq.s32.totalorder %v4946, 38
        %vm8020 = vcmp.eq.s32.totalorder %v4947, 38
        %vm8021 = vcmp.eq.s32.totalorder %v4948, 38
        %vm8022 = vcmp.eq.s32.totalorder %v4949, 38
        %vm8023 = vcmp.eq.s32.totalorder %v4950, 38
        %vm8024 = vcmp.eq.s32.totalorder %v4951, 38
        %vm8025 = vcmp.eq.s32.totalorder %v4952, 38
        %vm8026 = vcmp.eq.s32.totalorder %v4953, 38
        %vm8027 = vcmp.eq.s32.totalorder %v4954, 38
        %vm8028 = vcmp.eq.s32.totalorder %v4955, 38
        %vm8029 = vcmp.eq.s32.totalorder %v4956, 38
        %vm8030 = vcmp.eq.s32.totalorder %v4957, 38
        %vm8031 = vcmp.eq.s32.totalorder %v4958, 38
        %vm8032 = vcmp.eq.s32.totalorder %v4959, 38
        %vm8033 = vcmp.eq.s32.totalorder %v4960, 38
        %vm8034 = vcmp.eq.s32.totalorder %v4961, 38
        %vm8035 = vcmp.eq.s32.totalorder %v4962, 38
        %vm8036 = vcmp.eq.s32.totalorder %v4963, 38
        %vm8037 = vcmp.eq.s32.totalorder %v4964, 38
        %vm8038 = vcmp.eq.s32.totalorder %v4965, 38
        %vm8039 = vcmp.eq.s32.totalorder %v4966, 38
        %vm8040 = vcmp.eq.s32.totalorder %v4967, 38
        %vm8041 = vcmp.eq.s32.totalorder %v4968, 38
        %vm8042 = vcmp.eq.s32.totalorder %v4969, 38
        %v8043 = vsel %vm8011, %v1723, 0.0
        %v8044 = vsel %vm8012, %v1727, 0.0
        %v8045 = vsel %vm8013, %v1909, 0.0
        %v8046 = vsel %vm8014, %v1913, 0.0
        %v8047 = vsel %vm8015, %v2095, 0.0
        %v8048 = vsel %vm8016, %v2099, 0.0
        %v8049 = vsel %vm8017, %v2281, 0.0
        %v8050 = vsel %vm8018, %v2285, 0.0
        %v8051 = vsel %vm8019, %v2467, 0.0
        %v8052 = vsel %vm8020, %v2471, 0.0
        %v8053 = vsel %vm8021, %v2653, 0.0
        %v8054 = vsel %vm8022, %v2657, 0.0
        %v8055 = vsel %vm8023, %v2839, 0.0
        %v8056 = vsel %vm8024, %v2843, 0.0
        %v8057 = vsel %vm8025, %v3025, 0.0
        %v8058 = vsel %vm8026, %v3029, 0.0
        %v8059 = vsel %vm8027, %v3211, 0.0
        %v8060 = vsel %vm8028, %v3215, 0.0
        %v8061 = vsel %vm8029, %v3397, 0.0
        %v8062 = vsel %vm8030, %v3401, 0.0
        %v8063 = vsel %vm8031, %v3583, 0.0
        %v8064 = vsel %vm8032, %v3587, 0.0
        %v8065 = vsel %vm8033, %v3769, 0.0
        %v8066 = vsel %vm8034, %v3773, 0.0
        %v8067 = vsel %vm8035, %v3955, 0.0
        %v8068 = vsel %vm8036, %v3959, 0.0
        %v8069 = vsel %vm8037, %v4141, 0.0
        %v8070 = vsel %vm8038, %v4145, 0.0
        %v8071 = vsel %vm8039, %v4327, 0.0
        %v8072 = vsel %vm8040, %v4331, 0.0
        %v8073 = vsel %vm8041, %v4513, 0.0
        %v8074 = vsel %vm8042, %v4517, 0.0
        %v8075 = vsel %vm5034, %v8043, 0.0
        %8076 = vadd.xlane.f32.xlu0 %v8075
        %v8077 = vpop.xlane.xlu0 %8076
        %v8078 = vsel %vm5034, %v8044, 0.0
        %8079 = vadd.xlane.f32.xlu0 %v8078
        %v8080 = vpop.xlane.xlu0 %8079
        %v8081 = vsel %vm5034, %v8045, 0.0
        %8082 = vadd.xlane.f32.xlu0 %v8081
        %v8083 = vpop.xlane.xlu0 %8082
        %v8084 = vsel %vm5034, %v8046, 0.0
        %8085 = vadd.xlane.f32.xlu0 %v8084
        %v8086 = vpop.xlane.xlu0 %8085
        %v8087 = vsel %vm5034, %v8047, 0.0
        %8088 = vadd.xlane.f32.xlu0 %v8087
        %v8089 = vpop.xlane.xlu0 %8088
        %v8090 = vsel %vm5034, %v8048, 0.0
        %8091 = vadd.xlane.f32.xlu0 %v8090
        %v8092 = vpop.xlane.xlu0 %8091
        %v8093 = vsel %vm5034, %v8049, 0.0
        %8094 = vadd.xlane.f32.xlu0 %v8093
        %v8095 = vpop.xlane.xlu0 %8094
        %v8096 = vsel %vm5034, %v8050, 0.0
        %8097 = vadd.xlane.f32.xlu0 %v8096
        %v8098 = vpop.xlane.xlu0 %8097
        %v8099 = vsel %vm5034, %v8051, 0.0
        %8100 = vadd.xlane.f32.xlu0 %v8099
        %v8101 = vpop.xlane.xlu0 %8100
        %v8102 = vsel %vm5034, %v8052, 0.0
        %8103 = vadd.xlane.f32.xlu0 %v8102
        %v8104 = vpop.xlane.xlu0 %8103
        %v8105 = vsel %vm5034, %v8053, 0.0
        %8106 = vadd.xlane.f32.xlu0 %v8105
        %v8107 = vpop.xlane.xlu0 %8106
        %v8108 = vsel %vm5034, %v8054, 0.0
        %8109 = vadd.xlane.f32.xlu0 %v8108
        %v8110 = vpop.xlane.xlu0 %8109
        %v8111 = vsel %vm5034, %v8055, 0.0
        %8112 = vadd.xlane.f32.xlu0 %v8111
        %v8113 = vpop.xlane.xlu0 %8112
        %v8114 = vsel %vm5034, %v8056, 0.0
        %8115 = vadd.xlane.f32.xlu0 %v8114
        %v8116 = vpop.xlane.xlu0 %8115
        %v8117 = vsel %vm5034, %v8057, 0.0
        %8118 = vadd.xlane.f32.xlu0 %v8117
        %v8119 = vpop.xlane.xlu0 %8118
        %v8120 = vsel %vm5034, %v8058, 0.0
        %8121 = vadd.xlane.f32.xlu0 %v8120
        %v8122 = vpop.xlane.xlu0 %8121
        %v8123 = vsel %vm5034, %v8059, 0.0
        %8124 = vadd.xlane.f32.xlu0 %v8123
        %v8125 = vpop.xlane.xlu0 %8124
        %v8126 = vsel %vm5034, %v8060, 0.0
        %8127 = vadd.xlane.f32.xlu0 %v8126
        %v8128 = vpop.xlane.xlu0 %8127
        %v8129 = vsel %vm5034, %v8061, 0.0
        %8130 = vadd.xlane.f32.xlu0 %v8129
        %v8131 = vpop.xlane.xlu0 %8130
        %v8132 = vsel %vm5034, %v8062, 0.0
        %8133 = vadd.xlane.f32.xlu0 %v8132
        %v8134 = vpop.xlane.xlu0 %8133
        %v8135 = vsel %vm5034, %v8063, 0.0
        %8136 = vadd.xlane.f32.xlu0 %v8135
        %v8137 = vpop.xlane.xlu0 %8136
        %v8138 = vsel %vm5034, %v8064, 0.0
        %8139 = vadd.xlane.f32.xlu0 %v8138
        %v8140 = vpop.xlane.xlu0 %8139
        %v8141 = vsel %vm5034, %v8065, 0.0
        %8142 = vadd.xlane.f32.xlu0 %v8141
        %v8143 = vpop.xlane.xlu0 %8142
        %v8144 = vsel %vm5034, %v8066, 0.0
        %8145 = vadd.xlane.f32.xlu0 %v8144
        %v8146 = vpop.xlane.xlu0 %8145
        %v8147 = vsel %vm5034, %v8067, 0.0
        %8148 = vadd.xlane.f32.xlu0 %v8147
        %v8149 = vpop.xlane.xlu0 %8148
        %v8150 = vsel %vm5034, %v8068, 0.0
        %8151 = vadd.xlane.f32.xlu0 %v8150
        %v8152 = vpop.xlane.xlu0 %8151
        %v8153 = vsel %vm5034, %v8069, 0.0
        %8154 = vadd.xlane.f32.xlu0 %v8153
        %v8155 = vpop.xlane.xlu0 %8154
        %v8156 = vsel %vm5034, %v8070, 0.0
        %8157 = vadd.xlane.f32.xlu0 %v8156
        %v8158 = vpop.xlane.xlu0 %8157
        %v8159 = vsel %vm5034, %v8071, 0.0
        %8160 = vadd.xlane.f32.xlu0 %v8159
        %v8161 = vpop.xlane.xlu0 %8160
        %v8162 = vsel %vm5034, %v8072, 0.0
        %8163 = vadd.xlane.f32.xlu0 %v8162
        %v8164 = vpop.xlane.xlu0 %8163
        %v8165 = vsel %vm5034, %v8073, 0.0
        %8166 = vadd.xlane.f32.xlu0 %v8165
        %v8167 = vpop.xlane.xlu0 %8166
        %v8168 = vsel %vm5034, %v8074, 0.0
        %8169 = vadd.xlane.f32.xlu0 %v8168
        %v8170 = vpop.xlane.xlu0 %8169
        %vm8171 = vcmp.eq.s32.totalorder %v4938, 40
        %vm8172 = vcmp.eq.s32.totalorder %v4939, 40
        %vm8173 = vcmp.eq.s32.totalorder %v4940, 40
        %vm8174 = vcmp.eq.s32.totalorder %v4941, 40
        %vm8175 = vcmp.eq.s32.totalorder %v4942, 40
        %vm8176 = vcmp.eq.s32.totalorder %v4943, 40
        %vm8177 = vcmp.eq.s32.totalorder %v4944, 40
        %vm8178 = vcmp.eq.s32.totalorder %v4945, 40
        %vm8179 = vcmp.eq.s32.totalorder %v4946, 40
        %vm8180 = vcmp.eq.s32.totalorder %v4947, 40
        %vm8181 = vcmp.eq.s32.totalorder %v4948, 40
        %vm8182 = vcmp.eq.s32.totalorder %v4949, 40
        %vm8183 = vcmp.eq.s32.totalorder %v4950, 40
        %vm8184 = vcmp.eq.s32.totalorder %v4951, 40
        %vm8185 = vcmp.eq.s32.totalorder %v4952, 40
        %vm8186 = vcmp.eq.s32.totalorder %v4953, 40
        %vm8187 = vcmp.eq.s32.totalorder %v4954, 40
        %vm8188 = vcmp.eq.s32.totalorder %v4955, 40
        %vm8189 = vcmp.eq.s32.totalorder %v4956, 40
        %vm8190 = vcmp.eq.s32.totalorder %v4957, 40
        %vm8191 = vcmp.eq.s32.totalorder %v4958, 40
        %vm8192 = vcmp.eq.s32.totalorder %v4959, 40
        %vm8193 = vcmp.eq.s32.totalorder %v4960, 40
        %vm8194 = vcmp.eq.s32.totalorder %v4961, 40
        %vm8195 = vcmp.eq.s32.totalorder %v4962, 40
        %vm8196 = vcmp.eq.s32.totalorder %v4963, 40
        %vm8197 = vcmp.eq.s32.totalorder %v4964, 40
        %vm8198 = vcmp.eq.s32.totalorder %v4965, 40
        %vm8199 = vcmp.eq.s32.totalorder %v4966, 40
        %vm8200 = vcmp.eq.s32.totalorder %v4967, 40
        %vm8201 = vcmp.eq.s32.totalorder %v4968, 40
        %vm8202 = vcmp.eq.s32.totalorder %v4969, 40
        %v8203 = vsel %vm8171, %v1723, 0.0
        %v8204 = vsel %vm8172, %v1727, 0.0
        %v8205 = vsel %vm8173, %v1909, 0.0
        %v8206 = vsel %vm8174, %v1913, 0.0
        %v8207 = vsel %vm8175, %v2095, 0.0
        %v8208 = vsel %vm8176, %v2099, 0.0
        %v8209 = vsel %vm8177, %v2281, 0.0
        %v8210 = vsel %vm8178, %v2285, 0.0
        %v8211 = vsel %vm8179, %v2467, 0.0
        %v8212 = vsel %vm8180, %v2471, 0.0
        %v8213 = vsel %vm8181, %v2653, 0.0
        %v8214 = vsel %vm8182, %v2657, 0.0
        %v8215 = vsel %vm8183, %v2839, 0.0
        %v8216 = vsel %vm8184, %v2843, 0.0
        %v8217 = vsel %vm8185, %v3025, 0.0
        %v8218 = vsel %vm8186, %v3029, 0.0
        %v8219 = vsel %vm8187, %v3211, 0.0
        %v8220 = vsel %vm8188, %v3215, 0.0
        %v8221 = vsel %vm8189, %v3397, 0.0
        %v8222 = vsel %vm8190, %v3401, 0.0
        %v8223 = vsel %vm8191, %v3583, 0.0
        %v8224 = vsel %vm8192, %v3587, 0.0
        %v8225 = vsel %vm8193, %v3769, 0.0
        %v8226 = vsel %vm8194, %v3773, 0.0
        %v8227 = vsel %vm8195, %v3955, 0.0
        %v8228 = vsel %vm8196, %v3959, 0.0
        %v8229 = vsel %vm8197, %v4141, 0.0
        %v8230 = vsel %vm8198, %v4145, 0.0
        %v8231 = vsel %vm8199, %v4327, 0.0
        %v8232 = vsel %vm8200, %v4331, 0.0
        %v8233 = vsel %vm8201, %v4513, 0.0
        %v8234 = vsel %vm8202, %v4517, 0.0
        %v8235 = vsel %vm5034, %v8203, 0.0
        %8236 = vadd.xlane.f32.xlu0 %v8235
        %v8237 = vpop.xlane.xlu0 %8236
        %v8238 = vsel %vm5034, %v8204, 0.0
        %8239 = vadd.xlane.f32.xlu0 %v8238
        %v8240 = vpop.xlane.xlu0 %8239
        %v8241 = vsel %vm5034, %v8205, 0.0
        %8242 = vadd.xlane.f32.xlu0 %v8241
        %v8243 = vpop.xlane.xlu0 %8242
        %v8244 = vsel %vm5034, %v8206, 0.0
        %8245 = vadd.xlane.f32.xlu0 %v8244
        %v8246 = vpop.xlane.xlu0 %8245
        %v8247 = vsel %vm5034, %v8207, 0.0
        %8248 = vadd.xlane.f32.xlu0 %v8247
        %v8249 = vpop.xlane.xlu0 %8248
        %v8250 = vsel %vm5034, %v8208, 0.0
        %8251 = vadd.xlane.f32.xlu0 %v8250
        %v8252 = vpop.xlane.xlu0 %8251
        %v8253 = vsel %vm5034, %v8209, 0.0
        %8254 = vadd.xlane.f32.xlu0 %v8253
        %v8255 = vpop.xlane.xlu0 %8254
        %v8256 = vsel %vm5034, %v8210, 0.0
        %8257 = vadd.xlane.f32.xlu0 %v8256
        %v8258 = vpop.xlane.xlu0 %8257
        %v8259 = vsel %vm5034, %v8211, 0.0
        %8260 = vadd.xlane.f32.xlu0 %v8259
        %v8261 = vpop.xlane.xlu0 %8260
        %v8262 = vsel %vm5034, %v8212, 0.0
        %8263 = vadd.xlane.f32.xlu0 %v8262
        %v8264 = vpop.xlane.xlu0 %8263
        %v8265 = vsel %vm5034, %v8213, 0.0
        %8266 = vadd.xlane.f32.xlu0 %v8265
        %v8267 = vpop.xlane.xlu0 %8266
        %v8268 = vsel %vm5034, %v8214, 0.0
        %8269 = vadd.xlane.f32.xlu0 %v8268
        %v8270 = vpop.xlane.xlu0 %8269
        %v8271 = vsel %vm5034, %v8215, 0.0
        %8272 = vadd.xlane.f32.xlu0 %v8271
        %v8273 = vpop.xlane.xlu0 %8272
        %v8274 = vsel %vm5034, %v8216, 0.0
        %8275 = vadd.xlane.f32.xlu0 %v8274
        %v8276 = vpop.xlane.xlu0 %8275
        %v8277 = vsel %vm5034, %v8217, 0.0
        %8278 = vadd.xlane.f32.xlu0 %v8277
        %v8279 = vpop.xlane.xlu0 %8278
        %v8280 = vsel %vm5034, %v8218, 0.0
        %8281 = vadd.xlane.f32.xlu0 %v8280
        %v8282 = vpop.xlane.xlu0 %8281
        %v8283 = vsel %vm5034, %v8219, 0.0
        %8284 = vadd.xlane.f32.xlu0 %v8283
        %v8285 = vpop.xlane.xlu0 %8284
        %v8286 = vsel %vm5034, %v8220, 0.0
        %8287 = vadd.xlane.f32.xlu0 %v8286
        %v8288 = vpop.xlane.xlu0 %8287
        %v8289 = vsel %vm5034, %v8221, 0.0
        %8290 = vadd.xlane.f32.xlu0 %v8289
        %v8291 = vpop.xlane.xlu0 %8290
        %v8292 = vsel %vm5034, %v8222, 0.0
        %8293 = vadd.xlane.f32.xlu0 %v8292
        %v8294 = vpop.xlane.xlu0 %8293
        %v8295 = vsel %vm5034, %v8223, 0.0
        %8296 = vadd.xlane.f32.xlu0 %v8295
        %v8297 = vpop.xlane.xlu0 %8296
        %v8298 = vsel %vm5034, %v8224, 0.0
        %8299 = vadd.xlane.f32.xlu0 %v8298
        %v8300 = vpop.xlane.xlu0 %8299
        %v8301 = vsel %vm5034, %v8225, 0.0
        %8302 = vadd.xlane.f32.xlu0 %v8301
        %v8303 = vpop.xlane.xlu0 %8302
        %v8304 = vsel %vm5034, %v8226, 0.0
        %8305 = vadd.xlane.f32.xlu0 %v8304
        %v8306 = vpop.xlane.xlu0 %8305
        %v8307 = vsel %vm5034, %v8227, 0.0
        %8308 = vadd.xlane.f32.xlu0 %v8307
        %v8309 = vpop.xlane.xlu0 %8308
        %v8310 = vsel %vm5034, %v8228, 0.0
        %8311 = vadd.xlane.f32.xlu0 %v8310
        %v8312 = vpop.xlane.xlu0 %8311
        %v8313 = vsel %vm5034, %v8229, 0.0
        %8314 = vadd.xlane.f32.xlu0 %v8313
        %v8315 = vpop.xlane.xlu0 %8314
        %v8316 = vsel %vm5034, %v8230, 0.0
        %8317 = vadd.xlane.f32.xlu0 %v8316
        %v8318 = vpop.xlane.xlu0 %8317
        %v8319 = vsel %vm5034, %v8231, 0.0
        %8320 = vadd.xlane.f32.xlu0 %v8319
        %v8321 = vpop.xlane.xlu0 %8320
        %v8322 = vsel %vm5034, %v8232, 0.0
        %8323 = vadd.xlane.f32.xlu0 %v8322
        %v8324 = vpop.xlane.xlu0 %8323
        %v8325 = vsel %vm5034, %v8233, 0.0
        %8326 = vadd.xlane.f32.xlu0 %v8325
        %v8327 = vpop.xlane.xlu0 %8326
        %v8328 = vsel %vm5034, %v8234, 0.0
        %8329 = vadd.xlane.f32.xlu0 %v8328
        %v8330 = vpop.xlane.xlu0 %8329
        %v8363 = vperm.slane %v5037, %v4553
        %v8364 = vadd.s32 %v4553, 4294967288
        %v8365 = vperm.slane %v5040, %v8364
        %vm8366 = vcmask 130112
        %v8367 = vsel %vm8366, %v8365, %v8363
        %v8368 = vadd.s32 %v4553, 4294967280
        %v8369 = vperm.slane %v5043, %v8368
        %vm8370 = vcmask 195712
        %v8371 = vsel %vm8370, %v8369, %v8367
        %v8372 = vadd.s32 %v4553, 4294967272
        %v8373 = vperm.slane %v5046, %v8372
        %vm8374 = vcmask 261312
        %v8375 = vsel %vm8374, %v8373, %v8371
        %v8376 = vadd.s32 %v4553, 4294967264
        %v8377 = vperm.slane %v5049, %v8376
        %vm8378 = vcmask 326912
        %v8379 = vsel %vm8378, %v8377, %v8375
        %v8380 = vadd.s32 %v4553, 4294967256
        %v8381 = vperm.slane %v5052, %v8380
        %vm8382 = vcmask 392512
        %v8383 = vsel %vm8382, %v8381, %v8379
        %v8384 = vadd.s32 %v4553, 4294967248
        %v8385 = vperm.slane %v5055, %v8384
        %vm8386 = vcmask 458112
        %v8387 = vsel %vm8386, %v8385, %v8383
        %v8388 = vadd.s32 %v4553, 4294967240
        %v8389 = vperm.slane %v5058, %v8388
        %vm8390 = vcmask 523712
        %v8391 = vsel %vm8390, %v8389, %v8387
        %v8392 = vadd.s32 %v4553, 4294967232
        %v8393 = vperm.slane %v5061, %v8392
        %vm8394 = vcmask 589312
        %v8395 = vsel %vm8394, %v8393, %v8391
        %v8396 = vadd.s32 %v4553, 4294967224
        %v8397 = vperm.slane %v5064, %v8396
        %vm8398 = vcmask 654912
        %v8399 = vsel %vm8398, %v8397, %v8395
        %v8400 = vadd.s32 %v4553, 4294967216
        %v8401 = vperm.slane %v5067, %v8400
        %vm8402 = vcmask 720512
        %v8403 = vsel %vm8402, %v8401, %v8399
        %v8404 = vadd.s32 %v4553, 4294967208
        %v8405 = vperm.slane %v5070, %v8404
        %vm8406 = vcmask 786112
        %v8407 = vsel %vm8406, %v8405, %v8403
        %v8408 = vadd.s32 %v4553, 4294967200
        %v8409 = vperm.slane %v5073, %v8408
        %vm8410 = vcmask 851712
        %v8411 = vsel %vm8410, %v8409, %v8407
        %v8412 = vadd.s32 %v4553, 4294967192
        %v8413 = vperm.slane %v5076, %v8412
        %vm8414 = vcmask 917312
        %v8415 = vsel %vm8414, %v8413, %v8411
        %v8416 = vadd.s32 %v4553, 4294967184
        %v8417 = vperm.slane %v5079, %v8416
        %vm8418 = vcmask 982912
        %v8419 = vsel %vm8418, %v8417, %v8415
        %v8420 = vadd.s32 %v4553, 4294967176
        %v8421 = vperm.slane %v5082, %v8420
        %vm8422 = vcmask 1048512
        %v8423 = vsel %vm8422, %v8421, %v8419
        %v8424 = vperm.slane %v5085, %v4553
        %v8425 = vperm.slane %v5088, %v8364
        %v8426 = vsel %vm8366, %v8425, %v8424
        %v8427 = vperm.slane %v5091, %v8368
        %v8428 = vsel %vm8370, %v8427, %v8426
        %v8429 = vperm.slane %v5094, %v8372
        %v8430 = vsel %vm8374, %v8429, %v8428
        %v8431 = vperm.slane %v5097, %v8376
        %v8432 = vsel %vm8378, %v8431, %v8430
        %v8433 = vperm.slane %v5100, %v8380
        %v8434 = vsel %vm8382, %v8433, %v8432
        %v8435 = vperm.slane %v5103, %v8384
        %v8436 = vsel %vm8386, %v8435, %v8434
        %v8437 = vperm.slane %v5106, %v8388
        %v8438 = vsel %vm8390, %v8437, %v8436
        %v8439 = vperm.slane %v5109, %v8392
        %v8440 = vsel %vm8394, %v8439, %v8438
        %v8441 = vperm.slane %v5112, %v8396
        %v8442 = vsel %vm8398, %v8441, %v8440
        %v8443 = vperm.slane %v5115, %v8400
        %v8444 = vsel %vm8402, %v8443, %v8442
        %v8445 = vperm.slane %v5118, %v8404
        %v8446 = vsel %vm8406, %v8445, %v8444
        %v8447 = vperm.slane %v5121, %v8408
        %v8448 = vsel %vm8410, %v8447, %v8446
        %v8449 = vperm.slane %v5124, %v8412
        %v8450 = vsel %vm8414, %v8449, %v8448
        %v8451 = vperm.slane %v5127, %v8416
        %v8452 = vsel %vm8418, %v8451, %v8450
        %v8453 = vperm.slane %v5130, %v8420
        %v8454 = vsel %vm8422, %v8453, %v8452
        %v8489 = vperm.slane %v5197, %v4553
        %v8490 = vperm.slane %v5200, %v8364
        %v8491 = vsel %vm8366, %v8490, %v8489
        %v8492 = vperm.slane %v5203, %v8368
        %v8493 = vsel %vm8370, %v8492, %v8491
        %v8494 = vperm.slane %v5206, %v8372
        %v8495 = vsel %vm8374, %v8494, %v8493
        %v8496 = vperm.slane %v5209, %v8376
        %v8497 = vsel %vm8378, %v8496, %v8495
        %v8498 = vperm.slane %v5212, %v8380
        %v8499 = vsel %vm8382, %v8498, %v8497
        %v8500 = vperm.slane %v5215, %v8384
        %v8501 = vsel %vm8386, %v8500, %v8499
        %v8502 = vperm.slane %v5218, %v8388
        %v8503 = vsel %vm8390, %v8502, %v8501
        %v8504 = vperm.slane %v5221, %v8392
        %v8505 = vsel %vm8394, %v8504, %v8503
        %v8506 = vperm.slane %v5224, %v8396
        %v8507 = vsel %vm8398, %v8506, %v8505
        %v8508 = vperm.slane %v5227, %v8400
        %v8509 = vsel %vm8402, %v8508, %v8507
        %v8510 = vperm.slane %v5230, %v8404
        %v8511 = vsel %vm8406, %v8510, %v8509
        %v8512 = vperm.slane %v5233, %v8408
        %v8513 = vsel %vm8410, %v8512, %v8511
        %v8514 = vperm.slane %v5236, %v8412
        %v8515 = vsel %vm8414, %v8514, %v8513
        %v8516 = vperm.slane %v5239, %v8416
        %v8517 = vsel %vm8418, %v8516, %v8515
        %v8518 = vperm.slane %v5242, %v8420
        %v8519 = vsel %vm8422, %v8518, %v8517
        %v8520 = vperm.slane %v5245, %v4553
        %v8521 = vperm.slane %v5248, %v8364
        %v8522 = vsel %vm8366, %v8521, %v8520
        %v8523 = vperm.slane %v5251, %v8368
        %v8524 = vsel %vm8370, %v8523, %v8522
        %v8525 = vperm.slane %v5254, %v8372
        %v8526 = vsel %vm8374, %v8525, %v8524
        %v8527 = vperm.slane %v5257, %v8376
        %v8528 = vsel %vm8378, %v8527, %v8526
        %v8529 = vperm.slane %v5260, %v8380
        %v8530 = vsel %vm8382, %v8529, %v8528
        %v8531 = vperm.slane %v5263, %v8384
        %v8532 = vsel %vm8386, %v8531, %v8530
        %v8533 = vperm.slane %v5266, %v8388
        %v8534 = vsel %vm8390, %v8533, %v8532
        %v8535 = vperm.slane %v5269, %v8392
        %v8536 = vsel %vm8394, %v8535, %v8534
        %v8537 = vperm.slane %v5272, %v8396
        %v8538 = vsel %vm8398, %v8537, %v8536
        %v8539 = vperm.slane %v5275, %v8400
        %v8540 = vsel %vm8402, %v8539, %v8538
        %v8541 = vperm.slane %v5278, %v8404
        %v8542 = vsel %vm8406, %v8541, %v8540
        %v8543 = vperm.slane %v5281, %v8408
        %v8544 = vsel %vm8410, %v8543, %v8542
        %v8545 = vperm.slane %v5284, %v8412
        %v8546 = vsel %vm8414, %v8545, %v8544
        %v8547 = vperm.slane %v5287, %v8416
        %v8548 = vsel %vm8418, %v8547, %v8546
        %v8549 = vperm.slane %v5290, %v8420
        %v8550 = vsel %vm8422, %v8549, %v8548
        %v8585 = vperm.slane %v5357, %v4553
        %v8586 = vperm.slane %v5360, %v8364
        %v8587 = vsel %vm8366, %v8586, %v8585
        %v8588 = vperm.slane %v5363, %v8368
        %v8589 = vsel %vm8370, %v8588, %v8587
        %v8590 = vperm.slane %v5366, %v8372
        %v8591 = vsel %vm8374, %v8590, %v8589
        %v8592 = vperm.slane %v5369, %v8376
        %v8593 = vsel %vm8378, %v8592, %v8591
        %v8594 = vperm.slane %v5372, %v8380
        %v8595 = vsel %vm8382, %v8594, %v8593
        %v8596 = vperm.slane %v5375, %v8384
        %v8597 = vsel %vm8386, %v8596, %v8595
        %v8598 = vperm.slane %v5378, %v8388
        %v8599 = vsel %vm8390, %v8598, %v8597
        %v8600 = vperm.slane %v5381, %v8392
        %v8601 = vsel %vm8394, %v8600, %v8599
        %v8602 = vperm.slane %v5384, %v8396
        %v8603 = vsel %vm8398, %v8602, %v8601
        %v8604 = vperm.slane %v5387, %v8400
        %v8605 = vsel %vm8402, %v8604, %v8603
        %v8606 = vperm.slane %v5390, %v8404
        %v8607 = vsel %vm8406, %v8606, %v8605
        %v8608 = vperm.slane %v5393, %v8408
        %v8609 = vsel %vm8410, %v8608, %v8607
        %v8610 = vperm.slane %v5396, %v8412
        %v8611 = vsel %vm8414, %v8610, %v8609
        %v8612 = vperm.slane %v5399, %v8416
        %v8613 = vsel %vm8418, %v8612, %v8611
        %v8614 = vperm.slane %v5402, %v8420
        %v8615 = vsel %vm8422, %v8614, %v8613
        %v8616 = vperm.slane %v5405, %v4553
        %v8617 = vperm.slane %v5408, %v8364
        %v8618 = vsel %vm8366, %v8617, %v8616
        %v8619 = vperm.slane %v5411, %v8368
        %v8620 = vsel %vm8370, %v8619, %v8618
        %v8621 = vperm.slane %v5414, %v8372
        %v8622 = vsel %vm8374, %v8621, %v8620
        %v8623 = vperm.slane %v5417, %v8376
        %v8624 = vsel %vm8378, %v8623, %v8622
        %v8625 = vperm.slane %v5420, %v8380
        %v8626 = vsel %vm8382, %v8625, %v8624
        %v8627 = vperm.slane %v5423, %v8384
        %v8628 = vsel %vm8386, %v8627, %v8626
        %v8629 = vperm.slane %v5426, %v8388
        %v8630 = vsel %vm8390, %v8629, %v8628
        %v8631 = vperm.slane %v5429, %v8392
        %v8632 = vsel %vm8394, %v8631, %v8630
        %v8633 = vperm.slane %v5432, %v8396
        %v8634 = vsel %vm8398, %v8633, %v8632
        %v8635 = vperm.slane %v5435, %v8400
        %v8636 = vsel %vm8402, %v8635, %v8634
        %v8637 = vperm.slane %v5438, %v8404
        %v8638 = vsel %vm8406, %v8637, %v8636
        %v8639 = vperm.slane %v5441, %v8408
        %v8640 = vsel %vm8410, %v8639, %v8638
        %v8641 = vperm.slane %v5444, %v8412
        %v8642 = vsel %vm8414, %v8641, %v8640
        %v8643 = vperm.slane %v5447, %v8416
        %v8644 = vsel %vm8418, %v8643, %v8642
        %v8645 = vperm.slane %v5450, %v8420
        %v8646 = vsel %vm8422, %v8645, %v8644
        %v8681 = vperm.slane %v5517, %v4553
        %v8682 = vperm.slane %v5520, %v8364
        %v8683 = vsel %vm8366, %v8682, %v8681
        %v8684 = vperm.slane %v5523, %v8368
        %v8685 = vsel %vm8370, %v8684, %v8683
        %v8686 = vperm.slane %v5526, %v8372
        %v8687 = vsel %vm8374, %v8686, %v8685
        %v8688 = vperm.slane %v5529, %v8376
        %v8689 = vsel %vm8378, %v8688, %v8687
        %v8690 = vperm.slane %v5532, %v8380
        %v8691 = vsel %vm8382, %v8690, %v8689
        %v8692 = vperm.slane %v5535, %v8384
        %v8693 = vsel %vm8386, %v8692, %v8691
        %v8694 = vperm.slane %v5538, %v8388
        %v8695 = vsel %vm8390, %v8694, %v8693
        %v8696 = vperm.slane %v5541, %v8392
        %v8697 = vsel %vm8394, %v8696, %v8695
        %v8698 = vperm.slane %v5544, %v8396
        %v8699 = vsel %vm8398, %v8698, %v8697
        %v8700 = vperm.slane %v5547, %v8400
        %v8701 = vsel %vm8402, %v8700, %v8699
        %v8702 = vperm.slane %v5550, %v8404
        %v8703 = vsel %vm8406, %v8702, %v8701
        %v8704 = vperm.slane %v5553, %v8408
        %v8705 = vsel %vm8410, %v8704, %v8703
        %v8706 = vperm.slane %v5556, %v8412
        %v8707 = vsel %vm8414, %v8706, %v8705
        %v8708 = vperm.slane %v5559, %v8416
        %v8709 = vsel %vm8418, %v8708, %v8707
        %v8710 = vperm.slane %v5562, %v8420
        %v8711 = vsel %vm8422, %v8710, %v8709
        %v8712 = vperm.slane %v5565, %v4553
        %v8713 = vperm.slane %v5568, %v8364
        %v8714 = vsel %vm8366, %v8713, %v8712
        %v8715 = vperm.slane %v5571, %v8368
        %v8716 = vsel %vm8370, %v8715, %v8714
        %v8717 = vperm.slane %v5574, %v8372
        %v8718 = vsel %vm8374, %v8717, %v8716
        %v8719 = vperm.slane %v5577, %v8376
        %v8720 = vsel %vm8378, %v8719, %v8718
        %v8721 = vperm.slane %v5580, %v8380
        %v8722 = vsel %vm8382, %v8721, %v8720
        %v8723 = vperm.slane %v5583, %v8384
        %v8724 = vsel %vm8386, %v8723, %v8722
        %v8725 = vperm.slane %v5586, %v8388
        %v8726 = vsel %vm8390, %v8725, %v8724
        %v8727 = vperm.slane %v5589, %v8392
        %v8728 = vsel %vm8394, %v8727, %v8726
        %v8729 = vperm.slane %v5592, %v8396
        %v8730 = vsel %vm8398, %v8729, %v8728
        %v8731 = vperm.slane %v5595, %v8400
        %v8732 = vsel %vm8402, %v8731, %v8730
        %v8733 = vperm.slane %v5598, %v8404
        %v8734 = vsel %vm8406, %v8733, %v8732
        %v8735 = vperm.slane %v5601, %v8408
        %v8736 = vsel %vm8410, %v8735, %v8734
        %v8737 = vperm.slane %v5604, %v8412
        %v8738 = vsel %vm8414, %v8737, %v8736
        %v8739 = vperm.slane %v5607, %v8416
        %v8740 = vsel %vm8418, %v8739, %v8738
        %v8741 = vperm.slane %v5610, %v8420
        %v8742 = vsel %vm8422, %v8741, %v8740
        %v8777 = vperm.slane %v5677, %v4553
        %v8778 = vperm.slane %v5680, %v8364
        %v8779 = vsel %vm8366, %v8778, %v8777
        %v8780 = vperm.slane %v5683, %v8368
        %v8781 = vsel %vm8370, %v8780, %v8779
        %v8782 = vperm.slane %v5686, %v8372
        %v8783 = vsel %vm8374, %v8782, %v8781
        %v8784 = vperm.slane %v5689, %v8376
        %v8785 = vsel %vm8378, %v8784, %v8783
        %v8786 = vperm.slane %v5692, %v8380
        %v8787 = vsel %vm8382, %v8786, %v8785
        %v8788 = vperm.slane %v5695, %v8384
        %v8789 = vsel %vm8386, %v8788, %v8787
        %v8790 = vperm.slane %v5698, %v8388
        %v8791 = vsel %vm8390, %v8790, %v8789
        %v8792 = vperm.slane %v5701, %v8392
        %v8793 = vsel %vm8394, %v8792, %v8791
        %v8794 = vperm.slane %v5704, %v8396
        %v8795 = vsel %vm8398, %v8794, %v8793
        %v8796 = vperm.slane %v5707, %v8400
        %v8797 = vsel %vm8402, %v8796, %v8795
        %v8798 = vperm.slane %v5710, %v8404
        %v8799 = vsel %vm8406, %v8798, %v8797
        %v8800 = vperm.slane %v5713, %v8408
        %v8801 = vsel %vm8410, %v8800, %v8799
        %v8802 = vperm.slane %v5716, %v8412
        %v8803 = vsel %vm8414, %v8802, %v8801
        %v8804 = vperm.slane %v5719, %v8416
        %v8805 = vsel %vm8418, %v8804, %v8803
        %v8806 = vperm.slane %v5722, %v8420
        %v8807 = vsel %vm8422, %v8806, %v8805
        %v8808 = vperm.slane %v5725, %v4553
        %v8809 = vperm.slane %v5728, %v8364
        %v8810 = vsel %vm8366, %v8809, %v8808
        %v8811 = vperm.slane %v5731, %v8368
        %v8812 = vsel %vm8370, %v8811, %v8810
        %v8813 = vperm.slane %v5734, %v8372
        %v8814 = vsel %vm8374, %v8813, %v8812
        %v8815 = vperm.slane %v5737, %v8376
        %v8816 = vsel %vm8378, %v8815, %v8814
        %v8817 = vperm.slane %v5740, %v8380
        %v8818 = vsel %vm8382, %v8817, %v8816
        %v8819 = vperm.slane %v5743, %v8384
        %v8820 = vsel %vm8386, %v8819, %v8818
        %v8821 = vperm.slane %v5746, %v8388
        %v8822 = vsel %vm8390, %v8821, %v8820
        %v8823 = vperm.slane %v5749, %v8392
        %v8824 = vsel %vm8394, %v8823, %v8822
        %v8825 = vperm.slane %v5752, %v8396
        %v8826 = vsel %vm8398, %v8825, %v8824
        %v8827 = vperm.slane %v5755, %v8400
        %v8828 = vsel %vm8402, %v8827, %v8826
        %v8829 = vperm.slane %v5758, %v8404
        %v8830 = vsel %vm8406, %v8829, %v8828
        %v8831 = vperm.slane %v5761, %v8408
        %v8832 = vsel %vm8410, %v8831, %v8830
        %v8833 = vperm.slane %v5764, %v8412
        %v8834 = vsel %vm8414, %v8833, %v8832
        %v8835 = vperm.slane %v5767, %v8416
        %v8836 = vsel %vm8418, %v8835, %v8834
        %v8837 = vperm.slane %v5770, %v8420
        %v8838 = vsel %vm8422, %v8837, %v8836
        %v8873 = vperm.slane %v5837, %v4553
        %v8874 = vperm.slane %v5840, %v8364
        %v8875 = vsel %vm8366, %v8874, %v8873
        %v8876 = vperm.slane %v5843, %v8368
        %v8877 = vsel %vm8370, %v8876, %v8875
        %v8878 = vperm.slane %v5846, %v8372
        %v8879 = vsel %vm8374, %v8878, %v8877
        %v8880 = vperm.slane %v5849, %v8376
        %v8881 = vsel %vm8378, %v8880, %v8879
        %v8882 = vperm.slane %v5852, %v8380
        %v8883 = vsel %vm8382, %v8882, %v8881
        %v8884 = vperm.slane %v5855, %v8384
        %v8885 = vsel %vm8386, %v8884, %v8883
        %v8886 = vperm.slane %v5858, %v8388
        %v8887 = vsel %vm8390, %v8886, %v8885
        %v8888 = vperm.slane %v5861, %v8392
        %v8889 = vsel %vm8394, %v8888, %v8887
        %v8890 = vperm.slane %v5864, %v8396
        %v8891 = vsel %vm8398, %v8890, %v8889
        %v8892 = vperm.slane %v5867, %v8400
        %v8893 = vsel %vm8402, %v8892, %v8891
        %v8894 = vperm.slane %v5870, %v8404
        %v8895 = vsel %vm8406, %v8894, %v8893
        %v8896 = vperm.slane %v5873, %v8408
        %v8897 = vsel %vm8410, %v8896, %v8895
        %v8898 = vperm.slane %v5876, %v8412
        %v8899 = vsel %vm8414, %v8898, %v8897
        %v8900 = vperm.slane %v5879, %v8416
        %v8901 = vsel %vm8418, %v8900, %v8899
        %v8902 = vperm.slane %v5882, %v8420
        %v8903 = vsel %vm8422, %v8902, %v8901
        %v8904 = vperm.slane %v5885, %v4553
        %v8905 = vperm.slane %v5888, %v8364
        %v8906 = vsel %vm8366, %v8905, %v8904
        %v8907 = vperm.slane %v5891, %v8368
        %v8908 = vsel %vm8370, %v8907, %v8906
        %v8909 = vperm.slane %v5894, %v8372
        %v8910 = vsel %vm8374, %v8909, %v8908
        %v8911 = vperm.slane %v5897, %v8376
        %v8912 = vsel %vm8378, %v8911, %v8910
        %v8913 = vperm.slane %v5900, %v8380
        %v8914 = vsel %vm8382, %v8913, %v8912
        %v8915 = vperm.slane %v5903, %v8384
        %v8916 = vsel %vm8386, %v8915, %v8914
        %v8917 = vperm.slane %v5906, %v8388
        %v8918 = vsel %vm8390, %v8917, %v8916
        %v8919 = vperm.slane %v5909, %v8392
        %v8920 = vsel %vm8394, %v8919, %v8918
        %v8921 = vperm.slane %v5912, %v8396
        %v8922 = vsel %vm8398, %v8921, %v8920
        %v8923 = vperm.slane %v5915, %v8400
        %v8924 = vsel %vm8402, %v8923, %v8922
        %v8925 = vperm.slane %v5918, %v8404
        %v8926 = vsel %vm8406, %v8925, %v8924
        %v8927 = vperm.slane %v5921, %v8408
        %v8928 = vsel %vm8410, %v8927, %v8926
        %v8929 = vperm.slane %v5924, %v8412
        %v8930 = vsel %vm8414, %v8929, %v8928
        %v8931 = vperm.slane %v5927, %v8416
        %v8932 = vsel %vm8418, %v8931, %v8930
        %v8933 = vperm.slane %v5930, %v8420
        %v8934 = vsel %vm8422, %v8933, %v8932
        %v8969 = vperm.slane %v5997, %v4553
        %v8970 = vperm.slane %v6000, %v8364
        %v8971 = vsel %vm8366, %v8970, %v8969
        %v8972 = vperm.slane %v6003, %v8368
        %v8973 = vsel %vm8370, %v8972, %v8971
        %v8974 = vperm.slane %v6006, %v8372
        %v8975 = vsel %vm8374, %v8974, %v8973
        %v8976 = vperm.slane %v6009, %v8376
        %v8977 = vsel %vm8378, %v8976, %v8975
        %v8978 = vperm.slane %v6012, %v8380
        %v8979 = vsel %vm8382, %v8978, %v8977
        %v8980 = vperm.slane %v6015, %v8384
        %v8981 = vsel %vm8386, %v8980, %v8979
        %v8982 = vperm.slane %v6018, %v8388
        %v8983 = vsel %vm8390, %v8982, %v8981
        %v8984 = vperm.slane %v6021, %v8392
        %v8985 = vsel %vm8394, %v8984, %v8983
        %v8986 = vperm.slane %v6024, %v8396
        %v8987 = vsel %vm8398, %v8986, %v8985
        %v8988 = vperm.slane %v6027, %v8400
        %v8989 = vsel %vm8402, %v8988, %v8987
        %v8990 = vperm.slane %v6030, %v8404
        %v8991 = vsel %vm8406, %v8990, %v8989
        %v8992 = vperm.slane %v6033, %v8408
        %v8993 = vsel %vm8410, %v8992, %v8991
        %v8994 = vperm.slane %v6036, %v8412
        %v8995 = vsel %vm8414, %v8994, %v8993
        %v8996 = vperm.slane %v6039, %v8416
        %v8997 = vsel %vm8418, %v8996, %v8995
        %v8998 = vperm.slane %v6042, %v8420
        %v8999 = vsel %vm8422, %v8998, %v8997
        %v9000 = vperm.slane %v6045, %v4553
        %v9001 = vperm.slane %v6048, %v8364
        %v9002 = vsel %vm8366, %v9001, %v9000
        %v9003 = vperm.slane %v6051, %v8368
        %v9004 = vsel %vm8370, %v9003, %v9002
        %v9005 = vperm.slane %v6054, %v8372
        %v9006 = vsel %vm8374, %v9005, %v9004
        %v9007 = vperm.slane %v6057, %v8376
        %v9008 = vsel %vm8378, %v9007, %v9006
        %v9009 = vperm.slane %v6060, %v8380
        %v9010 = vsel %vm8382, %v9009, %v9008
        %v9011 = vperm.slane %v6063, %v8384
        %v9012 = vsel %vm8386, %v9011, %v9010
        %v9013 = vperm.slane %v6066, %v8388
        %v9014 = vsel %vm8390, %v9013, %v9012
        %v9015 = vperm.slane %v6069, %v8392
        %v9016 = vsel %vm8394, %v9015, %v9014
        %v9017 = vperm.slane %v6072, %v8396
        %v9018 = vsel %vm8398, %v9017, %v9016
        %v9019 = vperm.slane %v6075, %v8400
        %v9020 = vsel %vm8402, %v9019, %v9018
        %v9021 = vperm.slane %v6078, %v8404
        %v9022 = vsel %vm8406, %v9021, %v9020
        %v9023 = vperm.slane %v6081, %v8408
        %v9024 = vsel %vm8410, %v9023, %v9022
        %v9025 = vperm.slane %v6084, %v8412
        %v9026 = vsel %vm8414, %v9025, %v9024
        %v9027 = vperm.slane %v6087, %v8416
        %v9028 = vsel %vm8418, %v9027, %v9026
        %v9029 = vperm.slane %v6090, %v8420
        %v9030 = vsel %vm8422, %v9029, %v9028
        %v9065 = vperm.slane %v6157, %v4553
        %v9066 = vperm.slane %v6160, %v8364
        %v9067 = vsel %vm8366, %v9066, %v9065
        %v9068 = vperm.slane %v6163, %v8368
        %v9069 = vsel %vm8370, %v9068, %v9067
        %v9070 = vperm.slane %v6166, %v8372
        %v9071 = vsel %vm8374, %v9070, %v9069
        %v9072 = vperm.slane %v6169, %v8376
        %v9073 = vsel %vm8378, %v9072, %v9071
        %v9074 = vperm.slane %v6172, %v8380
        %v9075 = vsel %vm8382, %v9074, %v9073
        %v9076 = vperm.slane %v6175, %v8384
        %v9077 = vsel %vm8386, %v9076, %v9075
        %v9078 = vperm.slane %v6178, %v8388
        %v9079 = vsel %vm8390, %v9078, %v9077
        %v9080 = vperm.slane %v6181, %v8392
        %v9081 = vsel %vm8394, %v9080, %v9079
        %v9082 = vperm.slane %v6184, %v8396
        %v9083 = vsel %vm8398, %v9082, %v9081
        %v9084 = vperm.slane %v6187, %v8400
        %v9085 = vsel %vm8402, %v9084, %v9083
        %v9086 = vperm.slane %v6190, %v8404
        %v9087 = vsel %vm8406, %v9086, %v9085
        %v9088 = vperm.slane %v6193, %v8408
        %v9089 = vsel %vm8410, %v9088, %v9087
        %v9090 = vperm.slane %v6196, %v8412
        %v9091 = vsel %vm8414, %v9090, %v9089
        %v9092 = vperm.slane %v6199, %v8416
        %v9093 = vsel %vm8418, %v9092, %v9091
        %v9094 = vperm.slane %v6202, %v8420
        %v9095 = vsel %vm8422, %v9094, %v9093
        %v9096 = vperm.slane %v6205, %v4553
        %v9097 = vperm.slane %v6208, %v8364
        %v9098 = vsel %vm8366, %v9097, %v9096
        %v9099 = vperm.slane %v6211, %v8368
        %v9100 = vsel %vm8370, %v9099, %v9098
        %v9101 = vperm.slane %v6214, %v8372
        %v9102 = vsel %vm8374, %v9101, %v9100
        %v9103 = vperm.slane %v6217, %v8376
        %v9104 = vsel %vm8378, %v9103, %v9102
        %v9105 = vperm.slane %v6220, %v8380
        %v9106 = vsel %vm8382, %v9105, %v9104
        %v9107 = vperm.slane %v6223, %v8384
        %v9108 = vsel %vm8386, %v9107, %v9106
        %v9109 = vperm.slane %v6226, %v8388
        %v9110 = vsel %vm8390, %v9109, %v9108
        %v9111 = vperm.slane %v6229, %v8392
        %v9112 = vsel %vm8394, %v9111, %v9110
        %v9113 = vperm.slane %v6232, %v8396
        %v9114 = vsel %vm8398, %v9113, %v9112
        %v9115 = vperm.slane %v6235, %v8400
        %v9116 = vsel %vm8402, %v9115, %v9114
        %v9117 = vperm.slane %v6238, %v8404
        %v9118 = vsel %vm8406, %v9117, %v9116
        %v9119 = vperm.slane %v6241, %v8408
        %v9120 = vsel %vm8410, %v9119, %v9118
        %v9121 = vperm.slane %v6244, %v8412
        %v9122 = vsel %vm8414, %v9121, %v9120
        %v9123 = vperm.slane %v6247, %v8416
        %v9124 = vsel %vm8418, %v9123, %v9122
        %v9125 = vperm.slane %v6250, %v8420
        %v9126 = vsel %vm8422, %v9125, %v9124
        %v9161 = vperm.slane %v6317, %v4553
        %v9162 = vperm.slane %v6320, %v8364
        %v9163 = vsel %vm8366, %v9162, %v9161
        %v9164 = vperm.slane %v6323, %v8368
        %v9165 = vsel %vm8370, %v9164, %v9163
        %v9166 = vperm.slane %v6326, %v8372
        %v9167 = vsel %vm8374, %v9166, %v9165
        %v9168 = vperm.slane %v6329, %v8376
        %v9169 = vsel %vm8378, %v9168, %v9167
        %v9170 = vperm.slane %v6332, %v8380
        %v9171 = vsel %vm8382, %v9170, %v9169
        %v9172 = vperm.slane %v6335, %v8384
        %v9173 = vsel %vm8386, %v9172, %v9171
        %v9174 = vperm.slane %v6338, %v8388
        %v9175 = vsel %vm8390, %v9174, %v9173
        %v9176 = vperm.slane %v6341, %v8392
        %v9177 = vsel %vm8394, %v9176, %v9175
        %v9178 = vperm.slane %v6344, %v8396
        %v9179 = vsel %vm8398, %v9178, %v9177
        %v9180 = vperm.slane %v6347, %v8400
        %v9181 = vsel %vm8402, %v9180, %v9179
        %v9182 = vperm.slane %v6350, %v8404
        %v9183 = vsel %vm8406, %v9182, %v9181
        %v9184 = vperm.slane %v6353, %v8408
        %v9185 = vsel %vm8410, %v9184, %v9183
        %v9186 = vperm.slane %v6356, %v8412
        %v9187 = vsel %vm8414, %v9186, %v9185
        %v9188 = vperm.slane %v6359, %v8416
        %v9189 = vsel %vm8418, %v9188, %v9187
        %v9190 = vperm.slane %v6362, %v8420
        %v9191 = vsel %vm8422, %v9190, %v9189
        %v9192 = vperm.slane %v6365, %v4553
        %v9193 = vperm.slane %v6368, %v8364
        %v9194 = vsel %vm8366, %v9193, %v9192
        %v9195 = vperm.slane %v6371, %v8368
        %v9196 = vsel %vm8370, %v9195, %v9194
        %v9197 = vperm.slane %v6374, %v8372
        %v9198 = vsel %vm8374, %v9197, %v9196
        %v9199 = vperm.slane %v6377, %v8376
        %v9200 = vsel %vm8378, %v9199, %v9198
        %v9201 = vperm.slane %v6380, %v8380
        %v9202 = vsel %vm8382, %v9201, %v9200
        %v9203 = vperm.slane %v6383, %v8384
        %v9204 = vsel %vm8386, %v9203, %v9202
        %v9205 = vperm.slane %v6386, %v8388
        %v9206 = vsel %vm8390, %v9205, %v9204
        %v9207 = vperm.slane %v6389, %v8392
        %v9208 = vsel %vm8394, %v9207, %v9206
        %v9209 = vperm.slane %v6392, %v8396
        %v9210 = vsel %vm8398, %v9209, %v9208
        %v9211 = vperm.slane %v6395, %v8400
        %v9212 = vsel %vm8402, %v9211, %v9210
        %v9213 = vperm.slane %v6398, %v8404
        %v9214 = vsel %vm8406, %v9213, %v9212
        %v9215 = vperm.slane %v6401, %v8408
        %v9216 = vsel %vm8410, %v9215, %v9214
        %v9217 = vperm.slane %v6404, %v8412
        %v9218 = vsel %vm8414, %v9217, %v9216
        %v9219 = vperm.slane %v6407, %v8416
        %v9220 = vsel %vm8418, %v9219, %v9218
        %v9221 = vperm.slane %v6410, %v8420
        %v9222 = vsel %vm8422, %v9221, %v9220
        %v9257 = vperm.slane %v6477, %v4553
        %v9258 = vperm.slane %v6480, %v8364
        %v9259 = vsel %vm8366, %v9258, %v9257
        %v9260 = vperm.slane %v6483, %v8368
        %v9261 = vsel %vm8370, %v9260, %v9259
        %v9262 = vperm.slane %v6486, %v8372
        %v9263 = vsel %vm8374, %v9262, %v9261
        %v9264 = vperm.slane %v6489, %v8376
        %v9265 = vsel %vm8378, %v9264, %v9263
        %v9266 = vperm.slane %v6492, %v8380
        %v9267 = vsel %vm8382, %v9266, %v9265
        %v9268 = vperm.slane %v6495, %v8384
        %v9269 = vsel %vm8386, %v9268, %v9267
        %v9270 = vperm.slane %v6498, %v8388
        %v9271 = vsel %vm8390, %v9270, %v9269
        %v9272 = vperm.slane %v6501, %v8392
        %v9273 = vsel %vm8394, %v9272, %v9271
        %v9274 = vperm.slane %v6504, %v8396
        %v9275 = vsel %vm8398, %v9274, %v9273
        %v9276 = vperm.slane %v6507, %v8400
        %v9277 = vsel %vm8402, %v9276, %v9275
        %v9278 = vperm.slane %v6510, %v8404
        %v9279 = vsel %vm8406, %v9278, %v9277
        %v9280 = vperm.slane %v6513, %v8408
        %v9281 = vsel %vm8410, %v9280, %v9279
        %v9282 = vperm.slane %v6516, %v8412
        %v9283 = vsel %vm8414, %v9282, %v9281
        %v9284 = vperm.slane %v6519, %v8416
        %v9285 = vsel %vm8418, %v9284, %v9283
        %v9286 = vperm.slane %v6522, %v8420
        %v9287 = vsel %vm8422, %v9286, %v9285
        %v9288 = vperm.slane %v6525, %v4553
        %v9289 = vperm.slane %v6528, %v8364
        %v9290 = vsel %vm8366, %v9289, %v9288
        %v9291 = vperm.slane %v6531, %v8368
        %v9292 = vsel %vm8370, %v9291, %v9290
        %v9293 = vperm.slane %v6534, %v8372
        %v9294 = vsel %vm8374, %v9293, %v9292
        %v9295 = vperm.slane %v6537, %v8376
        %v9296 = vsel %vm8378, %v9295, %v9294
        %v9297 = vperm.slane %v6540, %v8380
        %v9298 = vsel %vm8382, %v9297, %v9296
        %v9299 = vperm.slane %v6543, %v8384
        %v9300 = vsel %vm8386, %v9299, %v9298
        %v9301 = vperm.slane %v6546, %v8388
        %v9302 = vsel %vm8390, %v9301, %v9300
        %v9303 = vperm.slane %v6549, %v8392
        %v9304 = vsel %vm8394, %v9303, %v9302
        %v9305 = vperm.slane %v6552, %v8396
        %v9306 = vsel %vm8398, %v9305, %v9304
        %v9307 = vperm.slane %v6555, %v8400
        %v9308 = vsel %vm8402, %v9307, %v9306
        %v9309 = vperm.slane %v6558, %v8404
        %v9310 = vsel %vm8406, %v9309, %v9308
        %v9311 = vperm.slane %v6561, %v8408
        %v9312 = vsel %vm8410, %v9311, %v9310
        %v9313 = vperm.slane %v6564, %v8412
        %v9314 = vsel %vm8414, %v9313, %v9312
        %v9315 = vperm.slane %v6567, %v8416
        %v9316 = vsel %vm8418, %v9315, %v9314
        %v9317 = vperm.slane %v6570, %v8420
        %v9318 = vsel %vm8422, %v9317, %v9316
        %v9353 = vperm.slane %v6637, %v4553
        %v9354 = vperm.slane %v6640, %v8364
        %v9355 = vsel %vm8366, %v9354, %v9353
        %v9356 = vperm.slane %v6643, %v8368
        %v9357 = vsel %vm8370, %v9356, %v9355
        %v9358 = vperm.slane %v6646, %v8372
        %v9359 = vsel %vm8374, %v9358, %v9357
        %v9360 = vperm.slane %v6649, %v8376
        %v9361 = vsel %vm8378, %v9360, %v9359
        %v9362 = vperm.slane %v6652, %v8380
        %v9363 = vsel %vm8382, %v9362, %v9361
        %v9364 = vperm.slane %v6655, %v8384
        %v9365 = vsel %vm8386, %v9364, %v9363
        %v9366 = vperm.slane %v6658, %v8388
        %v9367 = vsel %vm8390, %v9366, %v9365
        %v9368 = vperm.slane %v6661, %v8392
        %v9369 = vsel %vm8394, %v9368, %v9367
        %v9370 = vperm.slane %v6664, %v8396
        %v9371 = vsel %vm8398, %v9370, %v9369
        %v9372 = vperm.slane %v6667, %v8400
        %v9373 = vsel %vm8402, %v9372, %v9371
        %v9374 = vperm.slane %v6670, %v8404
        %v9375 = vsel %vm8406, %v9374, %v9373
        %v9376 = vperm.slane %v6673, %v8408
        %v9377 = vsel %vm8410, %v9376, %v9375
        %v9378 = vperm.slane %v6676, %v8412
        %v9379 = vsel %vm8414, %v9378, %v9377
        %v9380 = vperm.slane %v6679, %v8416
        %v9381 = vsel %vm8418, %v9380, %v9379
        %v9382 = vperm.slane %v6682, %v8420
        %v9383 = vsel %vm8422, %v9382, %v9381
        %v9384 = vperm.slane %v6685, %v4553
        %v9385 = vperm.slane %v6688, %v8364
        %v9386 = vsel %vm8366, %v9385, %v9384
        %v9387 = vperm.slane %v6691, %v8368
        %v9388 = vsel %vm8370, %v9387, %v9386
        %v9389 = vperm.slane %v6694, %v8372
        %v9390 = vsel %vm8374, %v9389, %v9388
        %v9391 = vperm.slane %v6697, %v8376
        %v9392 = vsel %vm8378, %v9391, %v9390
        %v9393 = vperm.slane %v6700, %v8380
        %v9394 = vsel %vm8382, %v9393, %v9392
        %v9395 = vperm.slane %v6703, %v8384
        %v9396 = vsel %vm8386, %v9395, %v9394
        %v9397 = vperm.slane %v6706, %v8388
        %v9398 = vsel %vm8390, %v9397, %v9396
        %v9399 = vperm.slane %v6709, %v8392
        %v9400 = vsel %vm8394, %v9399, %v9398
        %v9401 = vperm.slane %v6712, %v8396
        %v9402 = vsel %vm8398, %v9401, %v9400
        %v9403 = vperm.slane %v6715, %v8400
        %v9404 = vsel %vm8402, %v9403, %v9402
        %v9405 = vperm.slane %v6718, %v8404
        %v9406 = vsel %vm8406, %v9405, %v9404
        %v9407 = vperm.slane %v6721, %v8408
        %v9408 = vsel %vm8410, %v9407, %v9406
        %v9409 = vperm.slane %v6724, %v8412
        %v9410 = vsel %vm8414, %v9409, %v9408
        %v9411 = vperm.slane %v6727, %v8416
        %v9412 = vsel %vm8418, %v9411, %v9410
        %v9413 = vperm.slane %v6730, %v8420
        %v9414 = vsel %vm8422, %v9413, %v9412
        %v9449 = vperm.slane %v6797, %v4553
        %v9450 = vperm.slane %v6800, %v8364
        %v9451 = vsel %vm8366, %v9450, %v9449
        %v9452 = vperm.slane %v6803, %v8368
        %v9453 = vsel %vm8370, %v9452, %v9451
        %v9454 = vperm.slane %v6806, %v8372
        %v9455 = vsel %vm8374, %v9454, %v9453
        %v9456 = vperm.slane %v6809, %v8376
        %v9457 = vsel %vm8378, %v9456, %v9455
        %v9458 = vperm.slane %v6812, %v8380
        %v9459 = vsel %vm8382, %v9458, %v9457
        %v9460 = vperm.slane %v6815, %v8384
        %v9461 = vsel %vm8386, %v9460, %v9459
        %v9462 = vperm.slane %v6818, %v8388
        %v9463 = vsel %vm8390, %v9462, %v9461
        %v9464 = vperm.slane %v6821, %v8392
        %v9465 = vsel %vm8394, %v9464, %v9463
        %v9466 = vperm.slane %v6824, %v8396
        %v9467 = vsel %vm8398, %v9466, %v9465
        %v9468 = vperm.slane %v6827, %v8400
        %v9469 = vsel %vm8402, %v9468, %v9467
        %v9470 = vperm.slane %v6830, %v8404
        %v9471 = vsel %vm8406, %v9470, %v9469
        %v9472 = vperm.slane %v6833, %v8408
        %v9473 = vsel %vm8410, %v9472, %v9471
        %v9474 = vperm.slane %v6836, %v8412
        %v9475 = vsel %vm8414, %v9474, %v9473
        %v9476 = vperm.slane %v6839, %v8416
        %v9477 = vsel %vm8418, %v9476, %v9475
        %v9478 = vperm.slane %v6842, %v8420
        %v9479 = vsel %vm8422, %v9478, %v9477
        %v9480 = vperm.slane %v6845, %v4553
        %v9481 = vperm.slane %v6848, %v8364
        %v9482 = vsel %vm8366, %v9481, %v9480
        %v9483 = vperm.slane %v6851, %v8368
        %v9484 = vsel %vm8370, %v9483, %v9482
        %v9485 = vperm.slane %v6854, %v8372
        %v9486 = vsel %vm8374, %v9485, %v9484
        %v9487 = vperm.slane %v6857, %v8376
        %v9488 = vsel %vm8378, %v9487, %v9486
        %v9489 = vperm.slane %v6860, %v8380
        %v9490 = vsel %vm8382, %v9489, %v9488
        %v9491 = vperm.slane %v6863, %v8384
        %v9492 = vsel %vm8386, %v9491, %v9490
        %v9493 = vperm.slane %v6866, %v8388
        %v9494 = vsel %vm8390, %v9493, %v9492
        %v9495 = vperm.slane %v6869, %v8392
        %v9496 = vsel %vm8394, %v9495, %v9494
        %v9497 = vperm.slane %v6872, %v8396
        %v9498 = vsel %vm8398, %v9497, %v9496
        %v9499 = vperm.slane %v6875, %v8400
        %v9500 = vsel %vm8402, %v9499, %v9498
        %v9501 = vperm.slane %v6878, %v8404
        %v9502 = vsel %vm8406, %v9501, %v9500
        %v9503 = vperm.slane %v6881, %v8408
        %v9504 = vsel %vm8410, %v9503, %v9502
        %v9505 = vperm.slane %v6884, %v8412
        %v9506 = vsel %vm8414, %v9505, %v9504
        %v9507 = vperm.slane %v6887, %v8416
        %v9508 = vsel %vm8418, %v9507, %v9506
        %v9509 = vperm.slane %v6890, %v8420
        %v9510 = vsel %vm8422, %v9509, %v9508
        %v9545 = vperm.slane %v6957, %v4553
        %v9546 = vperm.slane %v6960, %v8364
        %v9547 = vsel %vm8366, %v9546, %v9545
        %v9548 = vperm.slane %v6963, %v8368
        %v9549 = vsel %vm8370, %v9548, %v9547
        %v9550 = vperm.slane %v6966, %v8372
        %v9551 = vsel %vm8374, %v9550, %v9549
        %v9552 = vperm.slane %v6969, %v8376
        %v9553 = vsel %vm8378, %v9552, %v9551
        %v9554 = vperm.slane %v6972, %v8380
        %v9555 = vsel %vm8382, %v9554, %v9553
        %v9556 = vperm.slane %v6975, %v8384
        %v9557 = vsel %vm8386, %v9556, %v9555
        %v9558 = vperm.slane %v6978, %v8388
        %v9559 = vsel %vm8390, %v9558, %v9557
        %v9560 = vperm.slane %v6981, %v8392
        %v9561 = vsel %vm8394, %v9560, %v9559
        %v9562 = vperm.slane %v6984, %v8396
        %v9563 = vsel %vm8398, %v9562, %v9561
        %v9564 = vperm.slane %v6987, %v8400
        %v9565 = vsel %vm8402, %v9564, %v9563
        %v9566 = vperm.slane %v6990, %v8404
        %v9567 = vsel %vm8406, %v9566, %v9565
        %v9568 = vperm.slane %v6993, %v8408
        %v9569 = vsel %vm8410, %v9568, %v9567
        %v9570 = vperm.slane %v6996, %v8412
        %v9571 = vsel %vm8414, %v9570, %v9569
        %v9572 = vperm.slane %v6999, %v8416
        %v9573 = vsel %vm8418, %v9572, %v9571
        %v9574 = vperm.slane %v7002, %v8420
        %v9575 = vsel %vm8422, %v9574, %v9573
        %v9576 = vperm.slane %v7005, %v4553
        %v9577 = vperm.slane %v7008, %v8364
        %v9578 = vsel %vm8366, %v9577, %v9576
        %v9579 = vperm.slane %v7011, %v8368
        %v9580 = vsel %vm8370, %v9579, %v9578
        %v9581 = vperm.slane %v7014, %v8372
        %v9582 = vsel %vm8374, %v9581, %v9580
        %v9583 = vperm.slane %v7017, %v8376
        %v9584 = vsel %vm8378, %v9583, %v9582
        %v9585 = vperm.slane %v7020, %v8380
        %v9586 = vsel %vm8382, %v9585, %v9584
        %v9587 = vperm.slane %v7023, %v8384
        %v9588 = vsel %vm8386, %v9587, %v9586
        %v9589 = vperm.slane %v7026, %v8388
        %v9590 = vsel %vm8390, %v9589, %v9588
        %v9591 = vperm.slane %v7029, %v8392
        %v9592 = vsel %vm8394, %v9591, %v9590
        %v9593 = vperm.slane %v7032, %v8396
        %v9594 = vsel %vm8398, %v9593, %v9592
        %v9595 = vperm.slane %v7035, %v8400
        %v9596 = vsel %vm8402, %v9595, %v9594
        %v9597 = vperm.slane %v7038, %v8404
        %v9598 = vsel %vm8406, %v9597, %v9596
        %v9599 = vperm.slane %v7041, %v8408
        %v9600 = vsel %vm8410, %v9599, %v9598
        %v9601 = vperm.slane %v7044, %v8412
        %v9602 = vsel %vm8414, %v9601, %v9600
        %v9603 = vperm.slane %v7047, %v8416
        %v9604 = vsel %vm8418, %v9603, %v9602
        %v9605 = vperm.slane %v7050, %v8420
        %v9606 = vsel %vm8422, %v9605, %v9604
        %v9641 = vperm.slane %v7117, %v4553
        %v9642 = vperm.slane %v7120, %v8364
        %v9643 = vsel %vm8366, %v9642, %v9641
        %v9644 = vperm.slane %v7123, %v8368
        %v9645 = vsel %vm8370, %v9644, %v9643
        %v9646 = vperm.slane %v7126, %v8372
        %v9647 = vsel %vm8374, %v9646, %v9645
        %v9648 = vperm.slane %v7129, %v8376
        %v9649 = vsel %vm8378, %v9648, %v9647
        %v9650 = vperm.slane %v7132, %v8380
        %v9651 = vsel %vm8382, %v9650, %v9649
        %v9652 = vperm.slane %v7135, %v8384
        %v9653 = vsel %vm8386, %v9652, %v9651
        %v9654 = vperm.slane %v7138, %v8388
        %v9655 = vsel %vm8390, %v9654, %v9653
        %v9656 = vperm.slane %v7141, %v8392
        %v9657 = vsel %vm8394, %v9656, %v9655
        %v9658 = vperm.slane %v7144, %v8396
        %v9659 = vsel %vm8398, %v9658, %v9657
        %v9660 = vperm.slane %v7147, %v8400
        %v9661 = vsel %vm8402, %v9660, %v9659
        %v9662 = vperm.slane %v7150, %v8404
        %v9663 = vsel %vm8406, %v9662, %v9661
        %v9664 = vperm.slane %v7153, %v8408
        %v9665 = vsel %vm8410, %v9664, %v9663
        %v9666 = vperm.slane %v7156, %v8412
        %v9667 = vsel %vm8414, %v9666, %v9665
        %v9668 = vperm.slane %v7159, %v8416
        %v9669 = vsel %vm8418, %v9668, %v9667
        %v9670 = vperm.slane %v7162, %v8420
        %v9671 = vsel %vm8422, %v9670, %v9669
        %v9672 = vperm.slane %v7165, %v4553
        %v9673 = vperm.slane %v7168, %v8364
        %v9674 = vsel %vm8366, %v9673, %v9672
        %v9675 = vperm.slane %v7171, %v8368
        %v9676 = vsel %vm8370, %v9675, %v9674
        %v9677 = vperm.slane %v7174, %v8372
        %v9678 = vsel %vm8374, %v9677, %v9676
        %v9679 = vperm.slane %v7177, %v8376
        %v9680 = vsel %vm8378, %v9679, %v9678
        %v9681 = vperm.slane %v7180, %v8380
        %v9682 = vsel %vm8382, %v9681, %v9680
        %v9683 = vperm.slane %v7183, %v8384
        %v9684 = vsel %vm8386, %v9683, %v9682
        %v9685 = vperm.slane %v7186, %v8388
        %v9686 = vsel %vm8390, %v9685, %v9684
        %v9687 = vperm.slane %v7189, %v8392
        %v9688 = vsel %vm8394, %v9687, %v9686
        %v9689 = vperm.slane %v7192, %v8396
        %v9690 = vsel %vm8398, %v9689, %v9688
        %v9691 = vperm.slane %v7195, %v8400
        %v9692 = vsel %vm8402, %v9691, %v9690
        %v9693 = vperm.slane %v7198, %v8404
        %v9694 = vsel %vm8406, %v9693, %v9692
        %v9695 = vperm.slane %v7201, %v8408
        %v9696 = vsel %vm8410, %v9695, %v9694
        %v9697 = vperm.slane %v7204, %v8412
        %v9698 = vsel %vm8414, %v9697, %v9696
        %v9699 = vperm.slane %v7207, %v8416
        %v9700 = vsel %vm8418, %v9699, %v9698
        %v9701 = vperm.slane %v7210, %v8420
        %v9702 = vsel %vm8422, %v9701, %v9700
        %v9737 = vperm.slane %v7277, %v4553
        %v9738 = vperm.slane %v7280, %v8364
        %v9739 = vsel %vm8366, %v9738, %v9737
        %v9740 = vperm.slane %v7283, %v8368
        %v9741 = vsel %vm8370, %v9740, %v9739
        %v9742 = vperm.slane %v7286, %v8372
        %v9743 = vsel %vm8374, %v9742, %v9741
        %v9744 = vperm.slane %v7289, %v8376
        %v9745 = vsel %vm8378, %v9744, %v9743
        %v9746 = vperm.slane %v7292, %v8380
        %v9747 = vsel %vm8382, %v9746, %v9745
        %v9748 = vperm.slane %v7295, %v8384
        %v9749 = vsel %vm8386, %v9748, %v9747
        %v9750 = vperm.slane %v7298, %v8388
        %v9751 = vsel %vm8390, %v9750, %v9749
        %v9752 = vperm.slane %v7301, %v8392
        %v9753 = vsel %vm8394, %v9752, %v9751
        %v9754 = vperm.slane %v7304, %v8396
        %v9755 = vsel %vm8398, %v9754, %v9753
        %v9756 = vperm.slane %v7307, %v8400
        %v9757 = vsel %vm8402, %v9756, %v9755
        %v9758 = vperm.slane %v7310, %v8404
        %v9759 = vsel %vm8406, %v9758, %v9757
        %v9760 = vperm.slane %v7313, %v8408
        %v9761 = vsel %vm8410, %v9760, %v9759
        %v9762 = vperm.slane %v7316, %v8412
        %v9763 = vsel %vm8414, %v9762, %v9761
        %v9764 = vperm.slane %v7319, %v8416
        %v9765 = vsel %vm8418, %v9764, %v9763
        %v9766 = vperm.slane %v7322, %v8420
        %v9767 = vsel %vm8422, %v9766, %v9765
        %v9768 = vperm.slane %v7325, %v4553
        %v9769 = vperm.slane %v7328, %v8364
        %v9770 = vsel %vm8366, %v9769, %v9768
        %v9771 = vperm.slane %v7331, %v8368
        %v9772 = vsel %vm8370, %v9771, %v9770
        %v9773 = vperm.slane %v7334, %v8372
        %v9774 = vsel %vm8374, %v9773, %v9772
        %v9775 = vperm.slane %v7337, %v8376
        %v9776 = vsel %vm8378, %v9775, %v9774
        %v9777 = vperm.slane %v7340, %v8380
        %v9778 = vsel %vm8382, %v9777, %v9776
        %v9779 = vperm.slane %v7343, %v8384
        %v9780 = vsel %vm8386, %v9779, %v9778
        %v9781 = vperm.slane %v7346, %v8388
        %v9782 = vsel %vm8390, %v9781, %v9780
        %v9783 = vperm.slane %v7349, %v8392
        %v9784 = vsel %vm8394, %v9783, %v9782
        %v9785 = vperm.slane %v7352, %v8396
        %v9786 = vsel %vm8398, %v9785, %v9784
        %v9787 = vperm.slane %v7355, %v8400
        %v9788 = vsel %vm8402, %v9787, %v9786
        %v9789 = vperm.slane %v7358, %v8404
        %v9790 = vsel %vm8406, %v9789, %v9788
        %v9791 = vperm.slane %v7361, %v8408
        %v9792 = vsel %vm8410, %v9791, %v9790
        %v9793 = vperm.slane %v7364, %v8412
        %v9794 = vsel %vm8414, %v9793, %v9792
        %v9795 = vperm.slane %v7367, %v8416
        %v9796 = vsel %vm8418, %v9795, %v9794
        %v9797 = vperm.slane %v7370, %v8420
        %v9798 = vsel %vm8422, %v9797, %v9796
        %v9833 = vperm.slane %v7437, %v4553
        %v9834 = vperm.slane %v7440, %v8364
        %v9835 = vsel %vm8366, %v9834, %v9833
        %v9836 = vperm.slane %v7443, %v8368
        %v9837 = vsel %vm8370, %v9836, %v9835
        %v9838 = vperm.slane %v7446, %v8372
        %v9839 = vsel %vm8374, %v9838, %v9837
        %v9840 = vperm.slane %v7449, %v8376
        %v9841 = vsel %vm8378, %v9840, %v9839
        %v9842 = vperm.slane %v7452, %v8380
        %v9843 = vsel %vm8382, %v9842, %v9841
        %v9844 = vperm.slane %v7455, %v8384
        %v9845 = vsel %vm8386, %v9844, %v9843
        %v9846 = vperm.slane %v7458, %v8388
        %v9847 = vsel %vm8390, %v9846, %v9845
        %v9848 = vperm.slane %v7461, %v8392
        %v9849 = vsel %vm8394, %v9848, %v9847
        %v9850 = vperm.slane %v7464, %v8396
        %v9851 = vsel %vm8398, %v9850, %v9849
        %v9852 = vperm.slane %v7467, %v8400
        %v9853 = vsel %vm8402, %v9852, %v9851
        %v9854 = vperm.slane %v7470, %v8404
        %v9855 = vsel %vm8406, %v9854, %v9853
        %v9856 = vperm.slane %v7473, %v8408
        %v9857 = vsel %vm8410, %v9856, %v9855
        %v9858 = vperm.slane %v7476, %v8412
        %v9859 = vsel %vm8414, %v9858, %v9857
        %v9860 = vperm.slane %v7479, %v8416
        %v9861 = vsel %vm8418, %v9860, %v9859
        %v9862 = vperm.slane %v7482, %v8420
        %v9863 = vsel %vm8422, %v9862, %v9861
        %v9864 = vperm.slane %v7485, %v4553
        %v9865 = vperm.slane %v7488, %v8364
        %v9866 = vsel %vm8366, %v9865, %v9864
        %v9867 = vperm.slane %v7491, %v8368
        %v9868 = vsel %vm8370, %v9867, %v9866
        %v9869 = vperm.slane %v7494, %v8372
        %v9870 = vsel %vm8374, %v9869, %v9868
        %v9871 = vperm.slane %v7497, %v8376
        %v9872 = vsel %vm8378, %v9871, %v9870
        %v9873 = vperm.slane %v7500, %v8380
        %v9874 = vsel %vm8382, %v9873, %v9872
        %v9875 = vperm.slane %v7503, %v8384
        %v9876 = vsel %vm8386, %v9875, %v9874
        %v9877 = vperm.slane %v7506, %v8388
        %v9878 = vsel %vm8390, %v9877, %v9876
        %v9879 = vperm.slane %v7509, %v8392
        %v9880 = vsel %vm8394, %v9879, %v9878
        %v9881 = vperm.slane %v7512, %v8396
        %v9882 = vsel %vm8398, %v9881, %v9880
        %v9883 = vperm.slane %v7515, %v8400
        %v9884 = vsel %vm8402, %v9883, %v9882
        %v9885 = vperm.slane %v7518, %v8404
        %v9886 = vsel %vm8406, %v9885, %v9884
        %v9887 = vperm.slane %v7521, %v8408
        %v9888 = vsel %vm8410, %v9887, %v9886
        %v9889 = vperm.slane %v7524, %v8412
        %v9890 = vsel %vm8414, %v9889, %v9888
        %v9891 = vperm.slane %v7527, %v8416
        %v9892 = vsel %vm8418, %v9891, %v9890
        %v9893 = vperm.slane %v7530, %v8420
        %v9894 = vsel %vm8422, %v9893, %v9892
        %vm9897 = vcmask 1040384
        %v9898 = vsel %vm9897, %v8423, %v8519
        %v9899 = vsel %vm9897, %v8454, %v8550
        %vm9900 = vcmask 1041408
        %v9901 = vsel %vm9900, %v9898, %v8615
        %v9902 = vsel %vm9900, %v9899, %v8646
        %vm9903 = vcmask 1042432
        %v9904 = vsel %vm9903, %v9901, %v8711
        %v9905 = vsel %vm9903, %v9902, %v8742
        %v9906 = vsel %vm1548, %v9904, %v8807
        %v9907 = vsel %vm1548, %v9905, %v8838
        %vm9908 = vcmask 1044480
        %v9909 = vsel %vm9908, %v9906, %v8903
        %v9910 = vsel %vm9908, %v9907, %v8934
        %vm9911 = vcmask 1045504
        %v9912 = vsel %vm9911, %v9909, %v8999
        %v9913 = vsel %vm9911, %v9910, %v9030
        %vm9914 = vcmask 1046528
        %v9915 = vsel %vm9914, %v9912, %v9095
        %v9916 = vsel %vm9914, %v9913, %v9126
        %v9917 = vsel %vm9897, %v9191, %v9287
        %v9918 = vsel %vm9897, %v9222, %v9318
        %v9919 = vsel %vm9900, %v9917, %v9383
        %v9920 = vsel %vm9900, %v9918, %v9414
        %v9921 = vsel %vm9903, %v9919, %v9479
        %v9922 = vsel %vm9903, %v9920, %v9510
        %v9923 = vsel %vm1548, %v9921, %v9575
        %v9924 = vsel %vm1548, %v9922, %v9606
        %v9925 = vsel %vm9908, %v9923, %v9671
        %v9926 = vsel %vm9908, %v9924, %v9702
        %v9927 = vsel %vm9911, %v9925, %v9767
        %v9928 = vsel %vm9911, %v9926, %v9798
        %v9929 = vsel %vm9914, %v9927, %v9863
        %v9930 = vsel %vm9914, %v9928, %v9894
        %v9963 = vperm.slane %v7597, %v4553
        %v9964 = vperm.slane %v7600, %v8364
        %v9965 = vsel %vm8366, %v9964, %v9963
        %v9966 = vperm.slane %v7603, %v8368
        %v9967 = vsel %vm8370, %v9966, %v9965
        %v9968 = vperm.slane %v7606, %v8372
        %v9969 = vsel %vm8374, %v9968, %v9967
        %v9970 = vperm.slane %v7609, %v8376
        %v9971 = vsel %vm8378, %v9970, %v9969
        %v9972 = vperm.slane %v7612, %v8380
        %v9973 = vsel %vm8382, %v9972, %v9971
        %v9974 = vperm.slane %v7615, %v8384
        %v9975 = vsel %vm8386, %v9974, %v9973
        %v9976 = vperm.slane %v7618, %v8388
        %v9977 = vsel %vm8390, %v9976, %v9975
        %v9978 = vperm.slane %v7621, %v8392
        %v9979 = vsel %vm8394, %v9978, %v9977
        %v9980 = vperm.slane %v7624, %v8396
        %v9981 = vsel %vm8398, %v9980, %v9979
        %v9982 = vperm.slane %v7627, %v8400
        %v9983 = vsel %vm8402, %v9982, %v9981
        %v9984 = vperm.slane %v7630, %v8404
        %v9985 = vsel %vm8406, %v9984, %v9983
        %v9986 = vperm.slane %v7633, %v8408
        %v9987 = vsel %vm8410, %v9986, %v9985
        %v9988 = vperm.slane %v7636, %v8412
        %v9989 = vsel %vm8414, %v9988, %v9987
        %v9990 = vperm.slane %v7639, %v8416
        %v9991 = vsel %vm8418, %v9990, %v9989
        %v9992 = vperm.slane %v7642, %v8420
        %v9993 = vsel %vm8422, %v9992, %v9991
        %v9994 = vperm.slane %v7645, %v4553
        %v9995 = vperm.slane %v7648, %v8364
        %v9996 = vsel %vm8366, %v9995, %v9994
        %v9997 = vperm.slane %v7651, %v8368
        %v9998 = vsel %vm8370, %v9997, %v9996
        %v9999 = vperm.slane %v7654, %v8372
        %v10000 = vsel %vm8374, %v9999, %v9998
        %v10001 = vperm.slane %v7657, %v8376
        %v10002 = vsel %vm8378, %v10001, %v10000
        %v10003 = vperm.slane %v7660, %v8380
        %v10004 = vsel %vm8382, %v10003, %v10002
        %v10005 = vperm.slane %v7663, %v8384
        %v10006 = vsel %vm8386, %v10005, %v10004
        %v10007 = vperm.slane %v7666, %v8388
        %v10008 = vsel %vm8390, %v10007, %v10006
        %v10009 = vperm.slane %v7669, %v8392
        %v10010 = vsel %vm8394, %v10009, %v10008
        %v10011 = vperm.slane %v7672, %v8396
        %v10012 = vsel %vm8398, %v10011, %v10010
        %v10013 = vperm.slane %v7675, %v8400
        %v10014 = vsel %vm8402, %v10013, %v10012
        %v10015 = vperm.slane %v7678, %v8404
        %v10016 = vsel %vm8406, %v10015, %v10014
        %v10017 = vperm.slane %v7681, %v8408
        %v10018 = vsel %vm8410, %v10017, %v10016
        %v10019 = vperm.slane %v7684, %v8412
        %v10020 = vsel %vm8414, %v10019, %v10018
        %v10021 = vperm.slane %v7687, %v8416
        %v10022 = vsel %vm8418, %v10021, %v10020
        %v10023 = vperm.slane %v7690, %v8420
        %v10024 = vsel %vm8422, %v10023, %v10022
        %v10059 = vperm.slane %v7757, %v4553
        %v10060 = vperm.slane %v7760, %v8364
        %v10061 = vsel %vm8366, %v10060, %v10059
        %v10062 = vperm.slane %v7763, %v8368
        %v10063 = vsel %vm8370, %v10062, %v10061
        %v10064 = vperm.slane %v7766, %v8372
        %v10065 = vsel %vm8374, %v10064, %v10063
        %v10066 = vperm.slane %v7769, %v8376
        %v10067 = vsel %vm8378, %v10066, %v10065
        %v10068 = vperm.slane %v7772, %v8380
        %v10069 = vsel %vm8382, %v10068, %v10067
        %v10070 = vperm.slane %v7775, %v8384
        %v10071 = vsel %vm8386, %v10070, %v10069
        %v10072 = vperm.slane %v7778, %v8388
        %v10073 = vsel %vm8390, %v10072, %v10071
        %v10074 = vperm.slane %v7781, %v8392
        %v10075 = vsel %vm8394, %v10074, %v10073
        %v10076 = vperm.slane %v7784, %v8396
        %v10077 = vsel %vm8398, %v10076, %v10075
        %v10078 = vperm.slane %v7787, %v8400
        %v10079 = vsel %vm8402, %v10078, %v10077
        %v10080 = vperm.slane %v7790, %v8404
        %v10081 = vsel %vm8406, %v10080, %v10079
        %v10082 = vperm.slane %v7793, %v8408
        %v10083 = vsel %vm8410, %v10082, %v10081
        %v10084 = vperm.slane %v7796, %v8412
        %v10085 = vsel %vm8414, %v10084, %v10083
        %v10086 = vperm.slane %v7799, %v8416
        %v10087 = vsel %vm8418, %v10086, %v10085
        %v10088 = vperm.slane %v7802, %v8420
        %v10089 = vsel %vm8422, %v10088, %v10087
        %v10090 = vperm.slane %v7805, %v4553
        %v10091 = vperm.slane %v7808, %v8364
        %v10092 = vsel %vm8366, %v10091, %v10090
        %v10093 = vperm.slane %v7811, %v8368
        %v10094 = vsel %vm8370, %v10093, %v10092
        %v10095 = vperm.slane %v7814, %v8372
        %v10096 = vsel %vm8374, %v10095, %v10094
        %v10097 = vperm.slane %v7817, %v8376
        %v10098 = vsel %vm8378, %v10097, %v10096
        %v10099 = vperm.slane %v7820, %v8380
        %v10100 = vsel %vm8382, %v10099, %v10098
        %v10101 = vperm.slane %v7823, %v8384
        %v10102 = vsel %vm8386, %v10101, %v10100
        %v10103 = vperm.slane %v7826, %v8388
        %v10104 = vsel %vm8390, %v10103, %v10102
        %v10105 = vperm.slane %v7829, %v8392
        %v10106 = vsel %vm8394, %v10105, %v10104
        %v10107 = vperm.slane %v7832, %v8396
        %v10108 = vsel %vm8398, %v10107, %v10106
        %v10109 = vperm.slane %v7835, %v8400
        %v10110 = vsel %vm8402, %v10109, %v10108
        %v10111 = vperm.slane %v7838, %v8404
        %v10112 = vsel %vm8406, %v10111, %v10110
        %v10113 = vperm.slane %v7841, %v8408
        %v10114 = vsel %vm8410, %v10113, %v10112
        %v10115 = vperm.slane %v7844, %v8412
        %v10116 = vsel %vm8414, %v10115, %v10114
        %v10117 = vperm.slane %v7847, %v8416
        %v10118 = vsel %vm8418, %v10117, %v10116
        %v10119 = vperm.slane %v7850, %v8420
        %v10120 = vsel %vm8422, %v10119, %v10118
        %v10155 = vperm.slane %v7917, %v4553
        %v10156 = vperm.slane %v7920, %v8364
        %v10157 = vsel %vm8366, %v10156, %v10155
        %v10158 = vperm.slane %v7923, %v8368
        %v10159 = vsel %vm8370, %v10158, %v10157
        %v10160 = vperm.slane %v7926, %v8372
        %v10161 = vsel %vm8374, %v10160, %v10159
        %v10162 = vperm.slane %v7929, %v8376
        %v10163 = vsel %vm8378, %v10162, %v10161
        %v10164 = vperm.slane %v7932, %v8380
        %v10165 = vsel %vm8382, %v10164, %v10163
        %v10166 = vperm.slane %v7935, %v8384
        %v10167 = vsel %vm8386, %v10166, %v10165
        %v10168 = vperm.slane %v7938, %v8388
        %v10169 = vsel %vm8390, %v10168, %v10167
        %v10170 = vperm.slane %v7941, %v8392
        %v10171 = vsel %vm8394, %v10170, %v10169
        %v10172 = vperm.slane %v7944, %v8396
        %v10173 = vsel %vm8398, %v10172, %v10171
        %v10174 = vperm.slane %v7947, %v8400
        %v10175 = vsel %vm8402, %v10174, %v10173
        %v10176 = vperm.slane %v7950, %v8404
        %v10177 = vsel %vm8406, %v10176, %v10175
        %v10178 = vperm.slane %v7953, %v8408
        %v10179 = vsel %vm8410, %v10178, %v10177
        %v10180 = vperm.slane %v7956, %v8412
        %v10181 = vsel %vm8414, %v10180, %v10179
        %v10182 = vperm.slane %v7959, %v8416
        %v10183 = vsel %vm8418, %v10182, %v10181
        %v10184 = vperm.slane %v7962, %v8420
        %v10185 = vsel %vm8422, %v10184, %v10183
        %v10186 = vperm.slane %v7965, %v4553
        %v10187 = vperm.slane %v7968, %v8364
        %v10188 = vsel %vm8366, %v10187, %v10186
        %v10189 = vperm.slane %v7971, %v8368
        %v10190 = vsel %vm8370, %v10189, %v10188
        %v10191 = vperm.slane %v7974, %v8372
        %v10192 = vsel %vm8374, %v10191, %v10190
        %v10193 = vperm.slane %v7977, %v8376
        %v10194 = vsel %vm8378, %v10193, %v10192
        %v10195 = vperm.slane %v7980, %v8380
        %v10196 = vsel %vm8382, %v10195, %v10194
        %v10197 = vperm.slane %v7983, %v8384
        %v10198 = vsel %vm8386, %v10197, %v10196
        %v10199 = vperm.slane %v7986, %v8388
        %v10200 = vsel %vm8390, %v10199, %v10198
        %v10201 = vperm.slane %v7989, %v8392
        %v10202 = vsel %vm8394, %v10201, %v10200
        %v10203 = vperm.slane %v7992, %v8396
        %v10204 = vsel %vm8398, %v10203, %v10202
        %v10205 = vperm.slane %v7995, %v8400
        %v10206 = vsel %vm8402, %v10205, %v10204
        %v10207 = vperm.slane %v7998, %v8404
        %v10208 = vsel %vm8406, %v10207, %v10206
        %v10209 = vperm.slane %v8001, %v8408
        %v10210 = vsel %vm8410, %v10209, %v10208
        %v10211 = vperm.slane %v8004, %v8412
        %v10212 = vsel %vm8414, %v10211, %v10210
        %v10213 = vperm.slane %v8007, %v8416
        %v10214 = vsel %vm8418, %v10213, %v10212
        %v10215 = vperm.slane %v8010, %v8420
        %v10216 = vsel %vm8422, %v10215, %v10214
        %v10251 = vperm.slane %v8077, %v4553
        %v10252 = vperm.slane %v8080, %v8364
        %v10253 = vsel %vm8366, %v10252, %v10251
        %v10254 = vperm.slane %v8083, %v8368
        %v10255 = vsel %vm8370, %v10254, %v10253
        %v10256 = vperm.slane %v8086, %v8372
        %v10257 = vsel %vm8374, %v10256, %v10255
        %v10258 = vperm.slane %v8089, %v8376
        %v10259 = vsel %vm8378, %v10258, %v10257
        %v10260 = vperm.slane %v8092, %v8380
        %v10261 = vsel %vm8382, %v10260, %v10259
        %v10262 = vperm.slane %v8095, %v8384
        %v10263 = vsel %vm8386, %v10262, %v10261
        %v10264 = vperm.slane %v8098, %v8388
        %v10265 = vsel %vm8390, %v10264, %v10263
        %v10266 = vperm.slane %v8101, %v8392
        %v10267 = vsel %vm8394, %v10266, %v10265
        %v10268 = vperm.slane %v8104, %v8396
        %v10269 = vsel %vm8398, %v10268, %v10267
        %v10270 = vperm.slane %v8107, %v8400
        %v10271 = vsel %vm8402, %v10270, %v10269
        %v10272 = vperm.slane %v8110, %v8404
        %v10273 = vsel %vm8406, %v10272, %v10271
        %v10274 = vperm.slane %v8113, %v8408
        %v10275 = vsel %vm8410, %v10274, %v10273
        %v10276 = vperm.slane %v8116, %v8412
        %v10277 = vsel %vm8414, %v10276, %v10275
        %v10278 = vperm.slane %v8119, %v8416
        %v10279 = vsel %vm8418, %v10278, %v10277
        %v10280 = vperm.slane %v8122, %v8420
        %v10281 = vsel %vm8422, %v10280, %v10279
        %v10282 = vperm.slane %v8125, %v4553
        %v10283 = vperm.slane %v8128, %v8364
        %v10284 = vsel %vm8366, %v10283, %v10282
        %v10285 = vperm.slane %v8131, %v8368
        %v10286 = vsel %vm8370, %v10285, %v10284
        %v10287 = vperm.slane %v8134, %v8372
        %v10288 = vsel %vm8374, %v10287, %v10286
        %v10289 = vperm.slane %v8137, %v8376
        %v10290 = vsel %vm8378, %v10289, %v10288
        %v10291 = vperm.slane %v8140, %v8380
        %v10292 = vsel %vm8382, %v10291, %v10290
        %v10293 = vperm.slane %v8143, %v8384
        %v10294 = vsel %vm8386, %v10293, %v10292
        %v10295 = vperm.slane %v8146, %v8388
        %v10296 = vsel %vm8390, %v10295, %v10294
        %v10297 = vperm.slane %v8149, %v8392
        %v10298 = vsel %vm8394, %v10297, %v10296
        %v10299 = vperm.slane %v8152, %v8396
        %v10300 = vsel %vm8398, %v10299, %v10298
        %v10301 = vperm.slane %v8155, %v8400
        %v10302 = vsel %vm8402, %v10301, %v10300
        %v10303 = vperm.slane %v8158, %v8404
        %v10304 = vsel %vm8406, %v10303, %v10302
        %v10305 = vperm.slane %v8161, %v8408
        %v10306 = vsel %vm8410, %v10305, %v10304
        %v10307 = vperm.slane %v8164, %v8412
        %v10308 = vsel %vm8414, %v10307, %v10306
        %v10309 = vperm.slane %v8167, %v8416
        %v10310 = vsel %vm8418, %v10309, %v10308
        %v10311 = vperm.slane %v8170, %v8420
        %v10312 = vsel %vm8422, %v10311, %v10310
        %v10347 = vperm.slane %v8237, %v4553
        %v10348 = vperm.slane %v8240, %v8364
        %v10349 = vsel %vm8366, %v10348, %v10347
        %v10350 = vperm.slane %v8243, %v8368
        %v10351 = vsel %vm8370, %v10350, %v10349
        %v10352 = vperm.slane %v8246, %v8372
        %v10353 = vsel %vm8374, %v10352, %v10351
        %v10354 = vperm.slane %v8249, %v8376
        %v10355 = vsel %vm8378, %v10354, %v10353
        %v10356 = vperm.slane %v8252, %v8380
        %v10357 = vsel %vm8382, %v10356, %v10355
        %v10358 = vperm.slane %v8255, %v8384
        %v10359 = vsel %vm8386, %v10358, %v10357
        %v10360 = vperm.slane %v8258, %v8388
        %v10361 = vsel %vm8390, %v10360, %v10359
        %v10362 = vperm.slane %v8261, %v8392
        %v10363 = vsel %vm8394, %v10362, %v10361
        %v10364 = vperm.slane %v8264, %v8396
        %v10365 = vsel %vm8398, %v10364, %v10363
        %v10366 = vperm.slane %v8267, %v8400
        %v10367 = vsel %vm8402, %v10366, %v10365
        %v10368 = vperm.slane %v8270, %v8404
        %v10369 = vsel %vm8406, %v10368, %v10367
        %v10370 = vperm.slane %v8273, %v8408
        %v10371 = vsel %vm8410, %v10370, %v10369
        %v10372 = vperm.slane %v8276, %v8412
        %v10373 = vsel %vm8414, %v10372, %v10371
        %v10374 = vperm.slane %v8279, %v8416
        %v10375 = vsel %vm8418, %v10374, %v10373
        %v10376 = vperm.slane %v8282, %v8420
        %v10377 = vsel %vm8422, %v10376, %v10375
        %v10378 = vperm.slane %v8285, %v4553
        %v10379 = vperm.slane %v8288, %v8364
        %v10380 = vsel %vm8366, %v10379, %v10378
        %v10381 = vperm.slane %v8291, %v8368
        %v10382 = vsel %vm8370, %v10381, %v10380
        %v10383 = vperm.slane %v8294, %v8372
        %v10384 = vsel %vm8374, %v10383, %v10382
        %v10385 = vperm.slane %v8297, %v8376
        %v10386 = vsel %vm8378, %v10385, %v10384
        %v10387 = vperm.slane %v8300, %v8380
        %v10388 = vsel %vm8382, %v10387, %v10386
        %v10389 = vperm.slane %v8303, %v8384
        %v10390 = vsel %vm8386, %v10389, %v10388
        %v10391 = vperm.slane %v8306, %v8388
        %v10392 = vsel %vm8390, %v10391, %v10390
        %v10393 = vperm.slane %v8309, %v8392
        %v10394 = vsel %vm8394, %v10393, %v10392
        %v10395 = vperm.slane %v8312, %v8396
        %v10396 = vsel %vm8398, %v10395, %v10394
        %v10397 = vperm.slane %v8315, %v8400
        %v10398 = vsel %vm8402, %v10397, %v10396
        %v10399 = vperm.slane %v8318, %v8404
        %v10400 = vsel %vm8406, %v10399, %v10398
        %v10401 = vperm.slane %v8321, %v8408
        %v10402 = vsel %vm8410, %v10401, %v10400
        %v10403 = vperm.slane %v8324, %v8412
        %v10404 = vsel %vm8414, %v10403, %v10402
        %v10405 = vperm.slane %v8327, %v8416
        %v10406 = vsel %vm8418, %v10405, %v10404
        %v10407 = vperm.slane %v8330, %v8420
        %v10408 = vsel %vm8422, %v10407, %v10406
        %v10411 = vsel %vm9897, %v9993, %v10089
        %v10412 = vsel %vm9897, %v10024, %v10120
        %v10413 = vsel %vm9900, %v10411, %v10185
        %v10414 = vsel %vm9900, %v10412, %v10216
        %v10415 = vsel %vm9903, %v10413, %v10281
        %v10416 = vsel %vm9903, %v10414, %v10312
        %v10417 = vsel %vm1548, %v10415, %v10377
        %v10418 = vsel %vm1548, %v10416, %v10408
        %v10419 = vmul.f32 %v9915, 0.25
        %v10420 = vmul.f32 %v9916, 0.25
        %v10421 = vmul.f32 %v9929, 0.25
        %v10422 = vmul.f32 %v9930, 0.25
        %v10423 = vmul.f32 %v10417, 0.25
        %v10424 = vmul.f32 %v10418, 0.25
        %10425 = vst [vmem:[%s207] sm:$0xff] %v10419
        %10426 = vst [vmem:[%s207 + $0x8] sm:$0xff] %v10420
        %10427 = vst [vmem:[%s207 + $0x10] sm:$0xff] %v10421
        %10428 = vst [vmem:[%s207 + $0x18] sm:$0xff] %v10422
        %10429 = vst [vmem:[%s207 + $0x20] sm:$0x1f] %v10423
        %10430 = vst [vmem:[%s207 + $0x28] sm:$0x1f] %v10424
        %p10431 = scmp.lt.s32.totalorder %s20, 1
        %s10432 = scalar_select %p10431, %s20, 1
        %p10433 = scmp.lt.s32.totalorder %s21, 20
        %s10434 = scalar_select %p10433, %s21, 20
        %s10435 = smul.addr %s10434, 6
        %s10436 = smul.addr %s10432, 126
        %s10437 = sadd.s32 %s10435, %s10436
        %s10438 = smul.addr %s10437, 8
        %s10439 = scalar_lea.vmem %s2, %s10438
        // Predicated region
        $region33: #{correlation.1} parent=27 // pred_check
          %p10440 = pneg %p100
        $region34: #{correlation.1} parent=27 // pred_check_branch
          %10442 = sbr.rel (%p10440) target = $region36
        $region35: #{correlation.1} parent=27 // pred_region
          _
        $region36: #{correlation.1} parent=27 // pred_fallthru
          _
      $region28: #{correlation.1} parent=5 // pred_fallthru
        _
      %p10443 = scmp.le.s32.totalorder 2, %s11
      // Predicated region
      $region37: #{correlation.1} parent=5 // pred_check
        %p10444 = pneg %p10443
      $region38: #{correlation.1} parent=5 // pred_check_branch
        %10446 = sbr.rel (%p10444) target = $region40
      $region39: #{correlation.1} parent=5 // pred_region
        %s10447 = ssub.s32 %s11, 2
        // Predicated region
        $region41: #{correlation.1} parent=39 // pred_check
          %p10448 = pneg %p106
        $region42: #{correlation.1} parent=39 // pred_check_branch
          %10450 = sbr.rel (%p10448) target = $region44
        $region43: #{correlation.1} parent=39 // pred_region
          %p10451 = scmp.lt.s32.totalorder %s22, 1
          %s10452 = scalar_select %p10451, %s22, 1
          %p10453 = scmp.lt.s32.totalorder %s23, 20
          %s10454 = scalar_select %p10453, %s23, 20
          %s10455 = smul.addr %s10454, 6
          %s10456 = smul.addr %s10452, 126
          %s10457 = sadd.s32 %s10455, %s10456
          %s10458 = smul.addr %s10457, 8
          %s10459 = scalar_lea.vmem %s2, %s10458
        $region44: #{correlation.1} parent=39 // pred_fallthru
          _
      $region40: #{correlation.1} parent=5 // pred_fallthru
        _
    $region6: #{correlation.1} parent=1 // loop_footer
      %s15 = sadd.s32 1, %s11
    $region7: #{correlation.1} parent=1 // loop_footer_branch
      %10 = sbr.rel target = $region3
    $region8: #{correlation.1} parent=1 // loop_exit
      _
    %10460 = vsyncpa [#allocation3], 1
    %s10461 = scalar_lea.sflag [#allocation3], 1
    %10462 = vsyncpa %s10461, 1

</llo_original>
